<compile_context>
chip_gen: v6e
topology: v6e:2x2x1
jax: 0.10.0
libtpu: 0.0.40
codegen_flags: <defaults>
</compile_context>

<pallas_src>
import functools

import numpy as np
import jax
import jax.numpy as jnp
from jax import lax
from jax.experimental import pallas as pl
from jax.experimental.pallas import tpu as pltpu

NUM_CLASSES = 1000


def _round_up(x, m):
    return ((x + m - 1) // m) * m


# ----------------------------------------------------------------------------
# Wrapper-side helpers.  They only touch the tiny 3-channel input x (per call)
# and the conv weights (once, at model build time).
# ----------------------------------------------------------------------------
def _conv_w2d(w_oikk, dtype=jnp.bfloat16):
    """torch (Cout, Cin, K, K) -> (round_up(K*K*Cin, 128), Cout) bf16.

    Row order is (kh, kw, cin), matching the per-tap row slices the fused
    kernel takes (rows [t*Cin, (t+1)*Cin) for tap t = kh*K + kw)."""
    cout, cin, k, _ = w_oikk.shape
    kkc = k * k * cin
    w2d = jnp.transpose(w_oikk, (2, 3, 1, 0)).reshape(kkc, cout)
    kkc_p = _round_up(kkc, 128)
    if kkc_p != kkc:
        w2d = jnp.pad(w2d, ((0, kkc_p - kkc), (0, 0)))
    return w2d.astype(dtype)


def _conv1_patches(x_nhwc, k1, pad1, pad2, wp_pad, dtype=jnp.bfloat16):
    """im2col patches of x for conv1, laid out on the *zero-padded* output
    domain of the SECOND conv.

    Rows ordered (n, hp, wp) with hp = H + 2*pad2, wp = wp_pad (W + 2*pad2
    rounded up to a sublane multiple).  Border rows are all-zero, so
    conv1(x) = patches @ W1 directly yields the spatially zero-padded
    activation the second conv needs — no padding pass inside the kernel."""
    n, h, w, c = x_nhwc.shape
    xp = jnp.pad(x_nhwc, ((0, 0), (pad1, pad1), (pad1, pad1), (0, 0)))
    taps = [xp[:, a:a + h, b:b + w, :] for a in range(k1) for b in range(k1)]
    p = jnp.concatenate(taps, axis=-1)                       # (n, h, w, k1*k1*c)
    p = jnp.pad(p, ((0, 0), (pad2, pad2),
                    (pad2, wp_pad - w - pad2), (0, 0)))      # zero border rows
    hp = h + 2 * pad2
    p = p.reshape(n * hp * wp_pad, k1 * k1 * c)
    kkc = k1 * k1 * c
    kkc_p = _round_up(kkc, 128)
    if kkc_p != kkc:
        p = jnp.pad(p, ((0, 0), (0, kkc_p - kkc)))           # zero cols x zero W1 rows
    return p.astype(dtype)


# ----------------------------------------------------------------------------
# Fused kernel: conv1 + (conv2|conv3 Cout tile) + global-avg-pool + partial fc.
# One grid step per Cout tile; conv/fc weight tiles are streamed (Buffered(2)),
# everything else is VMEM resident.
# ----------------------------------------------------------------------------
def _nas_fused_kernel(p1_ref, w1_ref, w_ref, wfc_ref, o_ref, apad_ref, *,
                      n, h, w, k, cin):
    # p1_ref   : (n*hp*wp_pad, 128)  bf16  conv1 im2col patches (resident, const idx)
    # w1_ref   : (128, cin)          bf16  conv1 weights        (resident, const idx)
    # w_ref    : (k*k*cin, tco)      bf16  conv2/3 weight tile  (streamed)
    # wfc_ref  : (tco, 1024)         bf16  fc weight rows for this tile (streamed)
    # o_ref    : (1, n, 1024)        f32   partial fc result for this tile
    # apad_ref : (n, hp, wp_pad, cin) bf16 VMEM scratch: padded conv1 activation
    hw = h * w
    m = n * hw
    tco = w_ref.shape[1]

    # conv1: one tiny deep-K matmul over the padded output domain.  Border rows
    # of p1 are zero -> zero activation rows == the second conv's zero padding.
    a1 = jnp.dot(p1_ref[...], w1_ref[...], preferred_element_type=jnp.float32)
    apad_ref[...] = a1.astype(jnp.bfloat16).reshape(apad_ref.shape)

    # conv2/conv3 for this Cout tile: K*K per-tap deep (Cin=512) MXU matmuls.
    # Global-avg-pool is linear, so accumulate directly in pooled (n, tco) space.
    pooled = jnp.zeros((n, tco), jnp.float32)
    for kh in range(k):
        for kw in range(k):
            t = kh * k + kw
            patch = apad_ref[:, kh:kh + h, kw:kw + w, :].reshape(m, cin)
            conv_t = jnp.dot(patch, w_ref[t * cin:(t + 1) * cin, :],
                             preferred_element_type=jnp.float32)       # (m, tco)
            pooled = pooled + jnp.mean(conv_t.reshape(n, hw, tco), axis=1)

    # Partial fc against this Cout tile's rows of the fc weight matrix.  Partials
    # are summed in the wrapper so the grid axis stays fully "parallel".
    o_ref[0] = jnp.dot(pooled.astype(wfc_ref.dtype), wfc_ref[...],
                       preferred_element_type=jnp.float32)


def _conv_pool_fc_fused(p1, w1_2d, w2d, wfc_t, *, n, h, w, k, pad, wp_pad, tco):
    cin = w1_2d.shape[1]                 # 512
    kkc = w2d.shape[0]                   # k*k*cin (already a multiple of 128)
    cout = w2d.shape[1]
    outp = wfc_t.shape[1]                # 1024 (lane-dense, padded from 1000)
    assert cout % tco == 0
    n_tiles = cout // tco
    hp = h + 2 * pad
    m1 = n * hp * wp_pad

    kernel = functools.partial(_nas_fused_kernel, n=n, h=h, w=w, k=k, cin=cin)

    partials = pl.pallas_call(
        kernel,
        out_shape=jax.ShapeDtypeStruct((n_tiles, n, outp), jnp.float32),
        grid_spec=pltpu.PrefetchScalarGridSpec(
            num_scalar_prefetch=0,
            grid=(n_tiles,),
            in_specs=[
                # Resident inputs (constant block index -> DMA'd once, ~0.2 MB total).
                pl.BlockSpec((m1, p1.shape[1]), lambda j: (0, 0)),
                pl.BlockSpec(w1_2d.shape, lambda j: (0, 0)),
                # Streamed weight tiles (default double-buffering).
                pl.BlockSpec((kkc, tco), lambda j: (0, j)),
                pl.BlockSpec((tco, outp), lambda j: (j, 0)),
            ],
            out_specs=pl.BlockSpec((1, n, outp), lambda j: (j, 0, 0)),
            scratch_shapes=[
                pltpu.VMEM((n, hp, wp_pad, cin), jnp.bfloat16),
            ],
        ),
        compiler_params=pltpu.CompilerParams(
            dimension_semantics=("parallel",),          # megacore / v7x 2-TC friendly
            vmem_limit_bytes=32 * 1024 * 1024,          # real usage ~6.5-8 MB
        ),
    )(p1, w1_2d, w2d, wfc_t)
    return jnp.sum(partials, axis=0)                    # (n, outp)


# ----------------------------------------------------------------------------
# Full forward (jitted per branch).
# ----------------------------------------------------------------------------
@functools.partial(jax.jit, static_argnames=("k", "pad", "tco"))
def _forward(x_nchw, w1_2d, w2d, wfc_t, *, k, pad, tco):
    x = jnp.transpose(x_nchw, (0, 2, 3, 1))             # NCHW -> NHWC
    n, h, w, _ = x.shape
    wp_pad = _round_up(w + 2 * pad, 8)                  # sublane-aligned padded width
    p1 = _conv1_patches(x, 3, 1, pad, wp_pad)           # (n*hp*wp_pad, 128) bf16
    logits = _conv_pool_fc_fused(p1, w1_2d, w2d, wfc_t,
                                 n=n, h=h, w=w, k=k, pad=pad,
                                 wp_pad=wp_pad, tco=tco)
    return logits[:, :NUM_CLASSES]


class NASModelPallas:
    def __init__(self, key):
        k1, k2, k3, k4 = jax.random.split(key, 4)
        # Torch weight layouts: conv (Cout, Cin, K, K); linear (out, in). No biases.
        self.w1 = jax.random.normal(k1, (512, 3, 3, 3), jnp.float32) * 0.10
        self.w2 = jax.random.normal(k2, (1024, 512, 3, 3), jnp.float32) * 0.03
        self.w3 = jax.random.normal(k3, (1024, 512, 5, 5), jnp.float32) * 0.03
        self.wfc = jax.random.normal(k4, (1000, 1024), jnp.float32) * 0.05
        self.count = 0
        # Precompute bf16 matmul-layout weights (halves weight-HBM bytes; the
        # workload is weight-DMA bound).  f32 accumulation keeps accuracy.
        self._w1_2d = _conv_w2d(self.w1)                 # (128, 512)    bf16
        self._w2_2d = _conv_w2d(self.w2)                 # (4608, 1024)  bf16
        self._w3_2d = _conv_w2d(self.w3)                 # (12800, 1024) bf16
        wfc_t = jnp.transpose(self.wfc)                  # (1024, 1000)
        self._wfc_t = jnp.pad(
            wfc_t, ((0, 0), (0, 1024 - NUM_CLASSES))).astype(jnp.bfloat16)

    def __call__(self, x_nchw):
        even = (self.count % 2 == 0)
        self.count += 1
        if even:   # conv2: 3x3 pad 1, tco=256 -> grid=4 (review: 128-256)
            return _forward(x_nchw, self._w1_2d, self._w2_2d, self._wfc_t,
                            k=3, pad=1, tco=256)
        else:      # conv3: 5x5 pad 2, tco=128 -> grid=8 (review: 128)
            return _forward(x_nchw, self._w1_2d, self._w3_2d, self._wfc_t,
                            k=5, pad=2, tco=128)


# ----------------------------------------------------------------------------
# Pure-JAX f32 reference (original module semantics).
# ----------------------------------------------------------------------------
def reference(x_nchw, model, count):
    x = jnp.transpose(x_nchw, (0, 2, 3, 1))

    def conv(x, w, pad):
        w_hwio = jnp.transpose(w, (2, 3, 1, 0))
        return lax.conv_general_dilated(
            x, w_hwio, window_strides=(1, 1), padding=[(pad, pad), (pad, pad)],
            dimension_numbers=("NHWC", "HWIO", "NHWC"),
            precision=lax.Precision.HIGHEST)

    out = conv(x, model.w1, 1)
    out = conv(out, model.w2, 1) if count % 2 == 0 else conv(out, model.w3, 2)
    pooled = jnp.mean(out, axis=(1, 2))
    return jnp.dot(pooled, model.wfc.T, precision=lax.Precision.HIGHEST)


if __name__ == "__main__":
    key = jax.random.PRNGKey(0)
    kx, kp = jax.random.split(key)

    # Small shapes: batch=2, 3 input channels (fixed by conv1), 8x8 spatial (NCHW).
    x = jax.random.normal(kx, (2, 3, 8, 8), jnp.float32)

    model = NASModelPallas(kp)
    ref0 = reference(x, model, count=0)   # conv2 branch
    ref1 = reference(x, model, count=1)   # conv3 branch

    y0 = jax.block_until_ready(model(x))  # count==0 -> conv2
    y1 = jax.block_until_ready(model(x))  # count==1 -> conv3

    assert y0.shape == (2, NUM_CLASSES), y0.shape
    assert y1.shape == (2, NUM_CLASSES), y1.shape
    # bf16 weights/activations with f32 accumulation vs. the f32 reference.
    np.testing.assert_allclose(np.asarray(y0), np.asarray(ref0), rtol=2e-2, atol=1e-2)
    np.testing.assert_allclose(np.asarray(y1), np.asarray(ref1), rtol=2e-2, atol=1e-2)
    print("KERNEL_OK")
</pallas_src>

<mosaic_0001>
module attributes {stable_mosaic.version = 11 : i64} {
  func.func @_nas_fused_kernel(%arg0: i32, %arg1: memref<320x128xbf16, #tpu.memory_space<vmem>>, %arg2: memref<128x512xbf16, #tpu.memory_space<vmem>>, %arg3: memref<4608x256xbf16, #tpu.memory_space<vmem>>, %arg4: memref<256x1024xbf16, #tpu.memory_space<vmem>>, %arg5: memref<1x2x1024xf32, #tpu.memory_space<vmem>>, %arg6: memref<2x10x16x512xbf16, #tpu.memory_space<vmem>>) attributes {dimension_semantics = [#tpu.dimension_semantics<parallel>], iteration_bounds = array<i64: 4>, scalar_prefetch = 0 : i64, scratch_operands = 1 : i64, tpu.core_type = #tpu.core_type<tc>, window_params = [{pipeline_mode = #tpu.pipeline_mode<synchronous>, transform_indices = @transform_0, window_bounds = array<i64: 320, 128>}, {pipeline_mode = #tpu.pipeline_mode<synchronous>, transform_indices = @transform_1, window_bounds = array<i64: 128, 512>}, {transform_indices = @transform_2, window_bounds = array<i64: 4608, 256>}, {transform_indices = @transform_3, window_bounds = array<i64: 256, 1024>}, {transform_indices = @transform_4, window_bounds = array<i64: 1, 2, 1024>}]} {
    %c0 = arith.constant 0 : index
    %c0_0 = arith.constant 0 : index
    %0 = vector.load %arg1[%c0, %c0_0] : memref<320x128xbf16, #tpu.memory_space<vmem>>, vector<320x128xbf16>
    %c0_1 = arith.constant 0 : index
    %c0_2 = arith.constant 0 : index
    %1 = vector.load %arg2[%c0_1, %c0_2] : memref<128x512xbf16, #tpu.memory_space<vmem>>, vector<128x512xbf16>
    %cst = arith.constant dense<0.000000e+00> : vector<320x512xf32>
    %2 = tpu.matmul %0, %1, %cst {dimension_numbers = #tpu.dot_dimension_numbers<[1], [0], [0], [1], [0, 0, 1, 1], [], []>} : vector<320x128xbf16>, vector<128x512xbf16>, vector<320x512xf32> -> vector<320x512xf32>
    %3 = arith.truncf %2 : vector<320x512xf32> to vector<320x512xbf16>
    %4 = vector.shape_cast %3 : vector<320x512xbf16> to vector<2x10x16x512xbf16>
    %c0_3 = arith.constant 0 : index
    %c0_4 = arith.constant 0 : index
    %c0_5 = arith.constant 0 : index
    %c0_6 = arith.constant 0 : index
    %5 = vector.load %arg6[%c0_3, %c0_4, %c0_5, %c0_6] : memref<2x10x16x512xbf16, #tpu.memory_space<vmem>>, vector<2x10x16x512xbf16>
    tpu.vector_store %arg6[%c0_3, %c0_4, %c0_5, %c0_6], %4 {strides = array<i32>} : memref<2x10x16x512xbf16, #tpu.memory_space<vmem>>, vector<2x10x16x512xbf16>,
    %cst_7 = arith.constant 0.000000e+00 : f32
    %6 = vector.broadcast %cst_7 : f32 to vector<2x256xf32>
    %c0_8 = arith.constant 0 : index
    %c0_9 = arith.constant 0 : index
    %c0_10 = arith.constant 0 : index
    %c0_11 = arith.constant 0 : index
    %7 = vector.load %arg6[%c0_8, %c0_9, %c0_10, %c0_11] : memref<2x10x16x512xbf16, #tpu.memory_space<vmem>>, vector<2x8x8x512xbf16>
    %8 = vector.shape_cast %7 : vector<2x8x8x512xbf16> to vector<128x512xbf16>
    %c0_12 = arith.constant 0 : index
    %c0_13 = arith.constant 0 : index
    %9 = vector.load %arg3[%c0_12, %c0_13] : memref<4608x256xbf16, #tpu.memory_space<vmem>>, vector<512x256xbf16>
    %cst_14 = arith.constant dense<0.000000e+00> : vector<128x256xf32>
    %10 = tpu.matmul %8, %9, %cst_14 {dimension_numbers = #tpu.dot_dimension_numbers<[1], [0], [0], [1], [0, 0, 1, 1], [], []>} : vector<128x512xbf16>, vector<512x256xbf16>, vector<128x256xf32> -> vector<128x256xf32>
    %11 = vector.shape_cast %10 : vector<128x256xf32> to vector<2x64x256xf32>
    %cst_15 = arith.constant dense<0.000000e+00> : vector<2x256xf32>
    %12 = vector.multi_reduction <add>, %11, %cst_15 [1] : vector<2x64x256xf32> to vector<2x256xf32>
    %cst_16 = arith.constant 6.400000e+01 : f32
    %13 = vector.broadcast %cst_16 : f32 to vector<2x256xf32>
    %14 = arith.divf %12, %13 : vector<2x256xf32>
    %15 = arith.addf %6, %14 : vector<2x256xf32>
    %c0_17 = arith.constant 0 : index
    %c0_18 = arith.constant 0 : index
    %c1 = arith.constant 1 : index
    %c0_19 = arith.constant 0 : index
    %16 = vector.load %arg6[%c0_17, %c0_18, %c1, %c0_19] : memref<2x10x16x512xbf16, #tpu.memory_space<vmem>>, vector<2x8x8x512xbf16>
    %17 = vector.shape_cast %16 : vector<2x8x8x512xbf16> to vector<128x512xbf16>
    %c512 = arith.constant 512 : index
    %c0_20 = arith.constant 0 : index
    %18 = vector.load %arg3[%c512, %c0_20] : memref<4608x256xbf16, #tpu.memory_space<vmem>>, vector<512x256xbf16>
    %cst_21 = arith.constant dense<0.000000e+00> : vector<128x256xf32>
    %19 = tpu.matmul %17, %18, %cst_21 {dimension_numbers = #tpu.dot_dimension_numbers<[1], [0], [0], [1], [0, 0, 1, 1], [], []>} : vector<128x512xbf16>, vector<512x256xbf16>, vector<128x256xf32> -> vector<128x256xf32>
    %20 = vector.shape_cast %19 : vector<128x256xf32> to vector<2x64x256xf32>
    %cst_22 = arith.constant dense<0.000000e+00> : vector<2x256xf32>
    %21 = vector.multi_reduction <add>, %20, %cst_22 [1] : vector<2x64x256xf32> to vector<2x256xf32>
    %cst_23 = arith.constant 6.400000e+01 : f32
    %22 = vector.broadcast %cst_23 : f32 to vector<2x256xf32>
    %23 = arith.divf %21, %22 : vector<2x256xf32>
    %24 = arith.addf %15, %23 : vector<2x256xf32>
    %c0_24 = arith.constant 0 : index
    %c0_25 = arith.constant 0 : index
    %c2 = arith.constant 2 : index
    %c0_26 = arith.constant 0 : index
    %25 = vector.load %arg6[%c0_24, %c0_25, %c2, %c0_26] : memref<2x10x16x512xbf16, #tpu.memory_space<vmem>>, vector<2x8x8x512xbf16>
    %26 = vector.shape_cast %25 : vector<2x8x8x512xbf16> to vector<128x512xbf16>
    %c1024 = arith.constant 1024 : index
    %c0_27 = arith.constant 0 : index
    %27 = vector.load %arg3[%c1024, %c0_27] : memref<4608x256xbf16, #tpu.memory_space<vmem>>, vector<512x256xbf16>
    %cst_28 = arith.constant dense<0.000000e+00> : vector<128x256xf32>
    %28 = tpu.matmul %26, %27, %cst_28 {dimension_numbers = #tpu.dot_dimension_numbers<[1], [0], [0], [1], [0, 0, 1, 1], [], []>} : vector<128x512xbf16>, vector<512x256xbf16>, vector<128x256xf32> -> vector<128x256xf32>
    %29 = vector.shape_cast %28 : vector<128x256xf32> to vector<2x64x256xf32>
    %cst_29 = arith.constant dense<0.000000e+00> : vector<2x256xf32>
    %30 = vector.multi_reduction <add>, %29, %cst_29 [1] : vector<2x64x256xf32> to vector<2x256xf32>
    %cst_30 = arith.constant 6.400000e+01 : f32
    %31 = vector.broadcast %cst_30 : f32 to vector<2x256xf32>
    %32 = arith.divf %30, %31 : vector<2x256xf32>
    %33 = arith.addf %24, %32 : vector<2x256xf32>
    %c0_31 = arith.constant 0 : index
    %c1_32 = arith.constant 1 : index
    %c0_33 = arith.constant 0 : index
    %c0_34 = arith.constant 0 : index
    %34 = vector.load %arg6[%c0_31, %c1_32, %c0_33, %c0_34] : memref<2x10x16x512xbf16, #tpu.memory_space<vmem>>, vector<2x8x8x512xbf16>
    %35 = vector.shape_cast %34 : vector<2x8x8x512xbf16> to vector<128x512xbf16>
    %c1536 = arith.constant 1536 : index
    %c0_35 = arith.constant 0 : index
    %36 = vector.load %arg3[%c1536, %c0_35] : memref<4608x256xbf16, #tpu.memory_space<vmem>>, vector<512x256xbf16>
    %cst_36 = arith.constant dense<0.000000e+00> : vector<128x256xf32>
    %37 = tpu.matmul %35, %36, %cst_36 {dimension_numbers = #tpu.dot_dimension_numbers<[1], [0], [0], [1], [0, 0, 1, 1], [], []>} : vector<128x512xbf16>, vector<512x256xbf16>, vector<128x256xf32> -> vector<128x256xf32>
    %38 = vector.shape_cast %37 : vector<128x256xf32> to vector<2x64x256xf32>
    %cst_37 = arith.constant dense<0.000000e+00> : vector<2x256xf32>
    %39 = vector.multi_reduction <add>, %38, %cst_37 [1] : vector<2x64x256xf32> to vector<2x256xf32>
    %cst_38 = arith.constant 6.400000e+01 : f32
    %40 = vector.broadcast %cst_38 : f32 to vector<2x256xf32>
    %41 = arith.divf %39, %40 : vector<2x256xf32>
    %42 = arith.addf %33, %41 : vector<2x256xf32>
    %c0_39 = arith.constant 0 : index
    %c1_40 = arith.constant 1 : index
    %c1_41 = arith.constant 1 : index
    %c0_42 = arith.constant 0 : index
    %43 = vector.load %arg6[%c0_39, %c1_40, %c1_41, %c0_42] : memref<2x10x16x512xbf16, #tpu.memory_space<vmem>>, vector<2x8x8x512xbf16>
    %44 = vector.shape_cast %43 : vector<2x8x8x512xbf16> to vector<128x512xbf16>
    %c2048 = arith.constant 2048 : index
    %c0_43 = arith.constant 0 : index
    %45 = vector.load %arg3[%c2048, %c0_43] : memref<4608x256xbf16, #tpu.memory_space<vmem>>, vector<512x256xbf16>
    %cst_44 = arith.constant dense<0.000000e+00> : vector<128x256xf32>
    %46 = tpu.matmul %44, %45, %cst_44 {dimension_numbers = #tpu.dot_dimension_numbers<[1], [0], [0], [1], [0, 0, 1, 1], [], []>} : vector<128x512xbf16>, vector<512x256xbf16>, vector<128x256xf32> -> vector<128x256xf32>
    %47 = vector.shape_cast %46 : vector<128x256xf32> to vector<2x64x256xf32>
    %cst_45 = arith.constant dense<0.000000e+00> : vector<2x256xf32>
    %48 = vector.multi_reduction <add>, %47, %cst_45 [1] : vector<2x64x256xf32> to vector<2x256xf32>
    %cst_46 = arith.constant 6.400000e+01 : f32
    %49 = vector.broadcast %cst_46 : f32 to vector<2x256xf32>
    %50 = arith.divf %48, %49 : vector<2x256xf32>
    %51 = arith.addf %42, %50 : vector<2x256xf32>
    %c0_47 = arith.constant 0 : index
    %c1_48 = arith.constant 1 : index
    %c2_49 = arith.constant 2 : index
    %c0_50 = arith.constant 0 : index
    %52 = vector.load %arg6[%c0_47, %c1_48, %c2_49, %c0_50] : memref<2x10x16x512xbf16, #tpu.memory_space<vmem>>, vector<2x8x8x512xbf16>
    %53 = vector.shape_cast %52 : vector<2x8x8x512xbf16> to vector<128x512xbf16>
    %c2560 = arith.constant 2560 : index
    %c0_51 = arith.constant 0 : index
    %54 = vector.load %arg3[%c2560, %c0_51] : memref<4608x256xbf16, #tpu.memory_space<vmem>>, vector<512x256xbf16>
    %cst_52 = arith.constant dense<0.000000e+00> : vector<128x256xf32>
    %55 = tpu.matmul %53, %54, %cst_52 {dimension_numbers = #tpu.dot_dimension_numbers<[1], [0], [0], [1], [0, 0, 1, 1], [], []>} : vector<128x512xbf16>, vector<512x256xbf16>, vector<128x256xf32> -> vector<128x256xf32>
    %56 = vector.shape_cast %55 : vector<128x256xf32> to vector<2x64x256xf32>
    %cst_53 = arith.constant dense<0.000000e+00> : vector<2x256xf32>
    %57 = vector.multi_reduction <add>, %56, %cst_53 [1] : vector<2x64x256xf32> to vector<2x256xf32>
    %cst_54 = arith.constant 6.400000e+01 : f32
    %58 = vector.broadcast %cst_54 : f32 to vector<2x256xf32>
    %59 = arith.divf %57, %58 : vector<2x256xf32>
    %60 = arith.addf %51, %59 : vector<2x256xf32>
    %c0_55 = arith.constant 0 : index
    %c2_56 = arith.constant 2 : index
    %c0_57 = arith.constant 0 : index
    %c0_58 = arith.constant 0 : index
    %61 = vector.load %arg6[%c0_55, %c2_56, %c0_57, %c0_58] : memref<2x10x16x512xbf16, #tpu.memory_space<vmem>>, vector<2x8x8x512xbf16>
    %62 = vector.shape_cast %61 : vector<2x8x8x512xbf16> to vector<128x512xbf16>
    %c3072 = arith.constant 3072 : index
    %c0_59 = arith.constant 0 : index
    %63 = vector.load %arg3[%c3072, %c0_59] : memref<4608x256xbf16, #tpu.memory_space<vmem>>, vector<512x256xbf16>
    %cst_60 = arith.constant dense<0.000000e+00> : vector<128x256xf32>
    %64 = tpu.matmul %62, %63, %cst_60 {dimension_numbers = #tpu.dot_dimension_numbers<[1], [0], [0], [1], [0, 0, 1, 1], [], []>} : vector<128x512xbf16>, vector<512x256xbf16>, vector<128x256xf32> -> vector<128x256xf32>
    %65 = vector.shape_cast %64 : vector<128x256xf32> to vector<2x64x256xf32>
    %cst_61 = arith.constant dense<0.000000e+00> : vector<2x256xf32>
    %66 = vector.multi_reduction <add>, %65, %cst_61 [1] : vector<2x64x256xf32> to vector<2x256xf32>
    %cst_62 = arith.constant 6.400000e+01 : f32
    %67 = vector.broadcast %cst_62 : f32 to vector<2x256xf32>
    %68 = arith.divf %66, %67 : vector<2x256xf32>
    %69 = arith.addf %60, %68 : vector<2x256xf32>
    %c0_63 = arith.constant 0 : index
    %c2_64 = arith.constant 2 : index
    %c1_65 = arith.constant 1 : index
    %c0_66 = arith.constant 0 : index
    %70 = vector.load %arg6[%c0_63, %c2_64, %c1_65, %c0_66] : memref<2x10x16x512xbf16, #tpu.memory_space<vmem>>, vector<2x8x8x512xbf16>
    %71 = vector.shape_cast %70 : vector<2x8x8x512xbf16> to vector<128x512xbf16>
    %c3584 = arith.constant 3584 : index
    %c0_67 = arith.constant 0 : index
    %72 = vector.load %arg3[%c3584, %c0_67] : memref<4608x256xbf16, #tpu.memory_space<vmem>>, vector<512x256xbf16>
    %cst_68 = arith.constant dense<0.000000e+00> : vector<128x256xf32>
    %73 = tpu.matmul %71, %72, %cst_68 {dimension_numbers = #tpu.dot_dimension_numbers<[1], [0], [0], [1], [0, 0, 1, 1], [], []>} : vector<128x512xbf16>, vector<512x256xbf16>, vector<128x256xf32> -> vector<128x256xf32>
    %74 = vector.shape_cast %73 : vector<128x256xf32> to vector<2x64x256xf32>
    %cst_69 = arith.constant dense<0.000000e+00> : vector<2x256xf32>
    %75 = vector.multi_reduction <add>, %74, %cst_69 [1] : vector<2x64x256xf32> to vector<2x256xf32>
    %cst_70 = arith.constant 6.400000e+01 : f32
    %76 = vector.broadcast %cst_70 : f32 to vector<2x256xf32>
    %77 = arith.divf %75, %76 : vector<2x256xf32>
    %78 = arith.addf %69, %77 : vector<2x256xf32>
    %c0_71 = arith.constant 0 : index
    %c2_72 = arith.constant 2 : index
    %c2_73 = arith.constant 2 : index
    %c0_74 = arith.constant 0 : index
    %79 = vector.load %arg6[%c0_71, %c2_72, %c2_73, %c0_74] : memref<2x10x16x512xbf16, #tpu.memory_space<vmem>>, vector<2x8x8x512xbf16>
    %80 = vector.shape_cast %79 : vector<2x8x8x512xbf16> to vector<128x512xbf16>
    %c4096 = arith.constant 4096 : index
    %c0_75 = arith.constant 0 : index
    %81 = vector.load %arg3[%c4096, %c0_75] : memref<4608x256xbf16, #tpu.memory_space<vmem>>, vector<512x256xbf16>
    %cst_76 = arith.constant dense<0.000000e+00> : vector<128x256xf32>
    %82 = tpu.matmul %80, %81, %cst_76 {dimension_numbers = #tpu.dot_dimension_numbers<[1], [0], [0], [1], [0, 0, 1, 1], [], []>} : vector<128x512xbf16>, vector<512x256xbf16>, vector<128x256xf32> -> vector<128x256xf32>
    %83 = vector.shape_cast %82 : vector<128x256xf32> to vector<2x64x256xf32>
    %cst_77 = arith.constant dense<0.000000e+00> : vector<2x256xf32>
    %84 = vector.multi_reduction <add>, %83, %cst_77 [1] : vector<2x64x256xf32> to vector<2x256xf32>
    %cst_78 = arith.constant 6.400000e+01 : f32
    %85 = vector.broadcast %cst_78 : f32 to vector<2x256xf32>
    %86 = arith.divf %84, %85 : vector<2x256xf32>
    %87 = arith.addf %78, %86 : vector<2x256xf32>
    %88 = arith.truncf %87 : vector<2x256xf32> to vector<2x256xbf16>
    %c0_79 = arith.constant 0 : index
    %c0_80 = arith.constant 0 : index
    %89 = vector.load %arg4[%c0_79, %c0_80] : memref<256x1024xbf16, #tpu.memory_space<vmem>>, vector<256x1024xbf16>
    %cst_81 = arith.constant dense<0.000000e+00> : vector<2x1024xf32>
    %90 = tpu.matmul %88, %89, %cst_81 {dimension_numbers = #tpu.dot_dimension_numbers<[1], [0], [0], [1], [0, 0, 1, 1], [], []>} : vector<2x256xbf16>, vector<256x1024xbf16>, vector<2x1024xf32> -> vector<2x1024xf32>
    %c0_82 = arith.constant 0 : index
    %c0_83 = arith.constant 0 : index
    %c0_84 = arith.constant 0 : index
    %91 = vector.load %arg5[%c0_82, %c0_83, %c0_84] : memref<1x2x1024xf32, #tpu.memory_space<vmem>>, vector<1x2x1024xf32>
    %92 = vector.shape_cast %91 : vector<1x2x1024xf32> to vector<2x1024xf32>
    %93 = vector.shape_cast %90 : vector<2x1024xf32> to vector<1x2x1024xf32>
    tpu.vector_store %arg5[%c0_82, %c0_83, %c0_84], %93 {strides = array<i32>} : memref<1x2x1024xf32, #tpu.memory_space<vmem>>, vector<1x2x1024xf32>,
    return
  }
  func.func @transform_0(%arg0: i32) -> (i32, i32) {
    %c0_i32 = arith.constant 0 : i32
    %c0_i32_0 = arith.constant 0 : i32
    %c0_i32_1 = arith.constant 0 : i32
    return %c0_i32, %c0_i32_0 : i32, i32
  }
  func.func @transform_1(%arg0: i32) -> (i32, i32) {
    %c0_i32 = arith.constant 0 : i32
    %c0_i32_0 = arith.constant 0 : i32
    %c0_i32_1 = arith.constant 0 : i32
    return %c0_i32, %c0_i32_0 : i32, i32
  }
  func.func @transform_2(%arg0: i32) -> (i32, i32) {
    %c0_i32 = arith.constant 0 : i32
    %c0_i32_0 = arith.constant 0 : i32
    return %c0_i32, %arg0 : i32, i32
  }
  func.func @transform_3(%arg0: i32) -> (i32, i32) {
    %c0_i32 = arith.constant 0 : i32
    %c0_i32_0 = arith.constant 0 : i32
    return %arg0, %c0_i32 : i32, i32
  }
  func.func @transform_4(%arg0: i32) -> (i32, i32, i32) {
    %c0_i32 = arith.constant 0 : i32
    %c0_i32_0 = arith.constant 0 : i32
    %c0_i32_1 = arith.constant 0 : i32
    return %arg0, %c0_i32, %c0_i32_0 : i32, i32, i32
  }
}

</mosaic_0001>

<llo_original>
// kernel: _forward.1
$region0: #{_forward.1}
  #allocation0 [shape = 'u32[]', space=smem, size = 0x4, offset = 0x4, fixed_abs, tag = 'smem constant byte address 0x4 - core index']
  #allocation1 [shape = 'u32[144,128]{1,0:T(1,128)}', space=vmem, size = 0x12000, scoped, tag = 'internal scratch']
  #allocation2 [shape = 'bf16[2,10,16,512]{3,2,1,0:T(8,128)(2,1)}', space=vmem, size = 0x50000, scoped, tag = 'scratch operand']
  %s0 = inlined_call_operand.vmem [shape: bf16[320,128], index: 0, kind: input, shape index: {}]
  %s1 = inlined_call_operand.hbm [shape: bf16[128,512], index: 1, kind: input, shape index: {}]
  %s2 = inlined_call_operand.hbm [shape: bf16[4608,1024], index: 2, kind: input, shape index: {}]
  %s3 = inlined_call_operand.hbm [shape: bf16[1024,1024], index: 3, kind: input, shape index: {}]
  %s4 = inlined_call_operand.vmem [shape: f32[4,2,1024], index: 4, kind: output, shape index: {}]
  %s5 = sld [smem:[#allocation0]]
  $region61: #{_forward.1} parent=0
    _
  %s7 = ssub.s32 1, %s5
  %s8 = scalar_select 0, %s7, %s5
  $region1: #{_forward.1} parent=0
    #allocation3 [shape = 'u8[131072]{0}', space=vmem, size = 0x20000, scoped, tag = 'input window, operand 1, single buffered']
    #allocation4 [shape = 's32[2]{0}', space=sflag, size = 0x8, scoped, tag = 'scoped memory for _forward.1']
    #allocation5 [shape = 'u8[4718592]{0}', space=vmem, size = 0x480000, scoped, tag = 'input window, operand 2']
    #allocation6 [shape = 's32[2]{0}', space=sflag, size = 0x8, scoped, tag = 'scoped memory for _forward.1']
    #allocation7 [shape = 'u8[1048576]{0}', space=vmem, size = 0x100000, scoped, tag = 'input window, operand 3']
    %9 = vsyncpa [#allocation4], 0
    %10 = vsyncpa [#allocation6], 0
    %s11 = scalar_lea.sflag [#allocation6], 1
    %12 = vsyncpa %s11, 0
    loop: start=0, step=1, limit=6
    $region2: #{_forward.1} parent=1 // loop_pre_header
      _
    $region3: #{_forward.1} parent=1 // loop_header
      %s14 = sphi 0, %s18
      %p15 = scmp.ge.s32.totalorder %s14, 6
      %s22 = sphi 0, %s22
      %s24 = sphi 0, %s22
      %s25 = sphi 0, %s24
      %s39 = sphi 0, %s25
      %s43 = sphi 0, %s43
      %s45 = sphi 0, %s43
      %s46 = sphi 0, %s45
      %s60 = sphi 0, %s46
      %s66 = sphi 0, %s68
      %s69 = sphi 0, %s66
      %s70 = sphi 0, %s69
      %s86 = sphi 0, %s70
      %s92 = sphi 0, %s94
      %s95 = sphi 0, %s92
      %s96 = sphi 0, %s95
      %s112 = sphi 0, %s96
      %s118 = sphi 0, %s120
      %s121 = sphi 0, %s118
      %s122 = sphi 0, %s121
      %s138 = sphi 0, %s122
    $region4: #{_forward.1} parent=1 // loop_header_branch
      %17 = sbr.rel (%p15) target = $region8
    $region5: #{_forward.1} parent=1 // loop_body
      %s19 = ssub.s32 %s14, 1
      %s20 = ssub.s32 %s14, 2
      %s21 = sadd.s32 %s14, 1
      %s23 = sadd.s32 %s22, 1
      %p26 = scmp.eq.s32.totalorder %s14, 3
      %p27 = scmp.ne.s32.totalorder %s22, %s24
      %p28 = scmp.eq.s32.totalorder %s14, 0
      %p29 = por %p27, %p28
      %p30 = scmp.ne.s32.totalorder %s22, %s24
      %p31 = scmp.eq.s32.totalorder %s19, 3
      %p32 = por %p30, %p31
      %p33 = scmp.ne.s32.totalorder %s24, %s25
      %p34 = scmp.eq.s32.totalorder %s19, 0
      %p35 = por %p33, %p34
      %p36 = scmp.ne.s32.totalorder %s24, %s25
      %p37 = scmp.eq.s32.totalorder %s20, 3
      %p38 = por %p36, %p37
      %p40 = scmp.ne.s32.totalorder %s25, %s39
      %p41 = scmp.eq.s32.totalorder %s20, 0
      %p42 = por %p40, %p41
      %s44 = sadd.s32 %s43, 1
      %p47 = scmp.eq.s32.totalorder %s14, 3
      %p48 = scmp.ne.s32.totalorder %s43, %s45
      %p49 = scmp.eq.s32.totalorder %s14, 0
      %p50 = por %p48, %p49
      %p51 = scmp.ne.s32.totalorder %s43, %s45
      %p52 = scmp.eq.s32.totalorder %s19, 3
      %p53 = por %p51, %p52
      %p54 = scmp.ne.s32.totalorder %s45, %s46
      %p55 = scmp.eq.s32.totalorder %s19, 0
      %p56 = por %p54, %p55
      %p57 = scmp.ne.s32.totalorder %s45, %s46
      %p58 = scmp.eq.s32.totalorder %s20, 3
      %p59 = por %p57, %p58
      %p61 = scmp.ne.s32.totalorder %s46, %s60
      %p62 = scmp.eq.s32.totalorder %s20, 0
      %p63 = por %p61, %p62
      %s64 = ssub.s32 %s14, %s21
      %p65 = scmp.eq.s32.totalorder %s64, 0
      %s67 = sadd.s32 %s66, 1
      %s68 = scalar_select %p65, %s66, %s67
      %p71 = pneg %p65
      %p72 = scmp.eq.s32.totalorder %s14, 3
      %p73 = por %p71, %p72
      %p74 = scmp.ne.s32.totalorder %s66, %s69
      %p75 = scmp.eq.s32.totalorder %s14, 0
      %p76 = por %p74, %p75
      %p77 = scmp.ne.s32.totalorder %s66, %s69
      %p78 = scmp.eq.s32.totalorder %s19, 3
      %p79 = por %p77, %p78
      %p80 = scmp.ne.s32.totalorder %s69, %s70
      %p81 = scmp.eq.s32.totalorder %s19, 0
      %p82 = por %p80, %p81
      %p83 = scmp.ne.s32.totalorder %s69, %s70
      %p84 = scmp.eq.s32.totalorder %s20, 3
      %p85 = por %p83, %p84
      %p87 = scmp.ne.s32.totalorder %s70, %s86
      %p88 = scmp.eq.s32.totalorder %s20, 0
      %p89 = por %p87, %p88
      %s90 = ssub.s32 %s14, %s21
      %p91 = scmp.eq.s32.totalorder %s90, 0
      %s93 = sadd.s32 %s92, 1
      %s94 = scalar_select %p91, %s92, %s93
      %p97 = pneg %p91
      %p98 = scmp.eq.s32.totalorder %s14, 3
      %p99 = por %p97, %p98
      %p100 = scmp.ne.s32.totalorder %s92, %s95
      %p101 = scmp.eq.s32.totalorder %s14, 0
      %p102 = por %p100, %p101
      %p103 = scmp.ne.s32.totalorder %s92, %s95
      %p104 = scmp.eq.s32.totalorder %s19, 3
      %p105 = por %p103, %p104
      %p106 = scmp.ne.s32.totalorder %s95, %s96
      %p107 = scmp.eq.s32.totalorder %s19, 0
      %p108 = por %p106, %p107
      %p109 = scmp.ne.s32.totalorder %s95, %s96
      %p110 = scmp.eq.s32.totalorder %s20, 3
      %p111 = por %p109, %p110
      %p113 = scmp.ne.s32.totalorder %s96, %s112
      %p114 = scmp.eq.s32.totalorder %s20, 0
      %p115 = por %p113, %p114
      %s116 = ssub.s32 %s14, %s21
      %p117 = scmp.eq.s32.totalorder %s116, 0
      %s119 = sadd.s32 %s118, 1
      %s120 = scalar_select %p117, %s118, %s119
      %p123 = pneg %p117
      %p124 = scmp.eq.s32.totalorder %s14, 3
      %p125 = por %p123, %p124
      %p126 = scmp.ne.s32.totalorder %s118, %s121
      %p127 = scmp.eq.s32.totalorder %s14, 0
      %p128 = por %p126, %p127
      %p129 = scmp.ne.s32.totalorder %s118, %s121
      %p130 = scmp.eq.s32.totalorder %s19, 3
      %p131 = por %p129, %p130
      %p132 = scmp.ne.s32.totalorder %s121, %s122
      %p133 = scmp.eq.s32.totalorder %s19, 0
      %p134 = por %p132, %p133
      %p135 = scmp.ne.s32.totalorder %s121, %s122
      %p136 = scmp.eq.s32.totalorder %s20, 3
      %p137 = por %p135, %p136
      %p139 = scmp.ne.s32.totalorder %s122, %s138
      %p140 = scmp.eq.s32.totalorder %s20, 0
      %p141 = por %p139, %p140
      %p142 = scmp.le.s32.totalorder 1, %s14
      %p143 = scmp.lt.s32.totalorder %s14, 5
      %p144 = pnand %p142, %p143
      %p145 = pneg %p144
      // Predicated region
      $region9: #{_forward.1} parent=5 // pred_check
        _
      $region10: #{_forward.1} parent=5 // pred_check_branch
        %147 = sbr.rel (%p144) target = $region12
      $region11: #{_forward.1} parent=5 // pred_region
        %s148 = ssub.s32 %s14, 1
        // Predicated region
        $region13: #{_forward.1} parent=11 // pred_check
          %p149 = pneg %p35
        $region14: #{_forward.1} parent=11 // pred_check_branch
          %151 = sbr.rel (%p149) target = $region16
        $region15: #{_forward.1} parent=11 // pred_region
          _
        $region16: #{_forward.1} parent=11 // pred_fallthru
          _
        // Predicated region
        $region17: #{_forward.1} parent=11 // pred_check
          %p152 = pneg %p56
        $region18: #{_forward.1} parent=11 // pred_check_branch
          %154 = sbr.rel (%p152) target = $region20
        $region19: #{_forward.1} parent=11 // pred_region
          %s156 = ssub.s32 4096, 4096
          %157 = vsyncadd [#allocation4], %s156
          %s158 = sshll.u32 [#allocation3], 4
          %s159 = int_to_ptr.vmem [resolvable:$true] %s158
          %164 = dma.hbm_to_vmem [thread:$0]  %s1, 4096, %s159, [#allocation4], 256, 256, 16
        $region20: #{_forward.1} parent=11 // pred_fallthru
          _
      $region12: #{_forward.1} parent=5 // pred_fallthru
        _
      %p165 = scmp.lt.s32.totalorder %s14, 4
      // Predicated region
      $region21: #{_forward.1} parent=5 // pred_check
        %p166 = pneg %p165
      $region22: #{_forward.1} parent=5 // pred_check_branch
        %168 = sbr.rel (%p166) target = $region24
      $region23: #{_forward.1} parent=5 // pred_region
        // Predicated region
        $region25: #{_forward.1} parent=23 // pred_check
          %p169 = pneg %p76
        $region26: #{_forward.1} parent=23 // pred_check_branch
          %171 = sbr.rel (%p169) target = $region28
        $region27: #{_forward.1} parent=23 // pred_region
          %s172 = sand.u32 %s14, 1
          %s173 = scalar_lea.sflag [#allocation6], %s172
          %s174 = sand.u32 %s66, 1
          %s175 = smul.addr %s174, 4608
          %s176 = scalar_lea.vmem [#allocation5], %s175
          %s177 = smul.u32 2, %s14
          %s179 = ssub.s32 73728, 73728
          %180 = vsyncadd %s173, %s179
          %s181 = smul.addr %s177, 64
          %s182 = scalar_lea.hbm %s2, %s181
          %s183 = sshll.u32 %s176, 4
          %s184 = int_to_ptr.vmem [resolvable:$true] %s183
          %189 = dma.hbm_to_vmem [thread:$0]  %s182, 73728, %s184, %s173, 512, 128, 8
        $region28: #{_forward.1} parent=23 // pred_fallthru
          _
        // Predicated region
        $region29: #{_forward.1} parent=23 // pred_check
          %p190 = pneg %p102
        $region30: #{_forward.1} parent=23 // pred_check_branch
          %192 = sbr.rel (%p190) target = $region32
        $region31: #{_forward.1} parent=23 // pred_region
          %s193 = sand.u32 %s14, 1
          %s194 = scalar_lea.sflag [#allocation6], %s193
          %s195 = sand.u32 %s92, 1
          %s196 = smul.addr %s195, 1024
          %s197 = scalar_lea.vmem [#allocation7], %s196
          %s198 = smul.u32 32, %s14
          %s200 = ssub.s32 16384, 16384
          %201 = vsyncadd %s194, %s200
          %s202 = smul.addr %s198, 8
          %s203 = smul.addr %s202, 64
          %s204 = scalar_lea.hbm %s3, %s203
          %s205 = sshll.u32 %s197, 4
          %s206 = int_to_ptr.vmem [resolvable:$true] %s205
          %211 = dma.hbm_to_vmem [thread:$0]  %s204, 16384, %s206, %s194, 512, 512, 32
        $region32: #{_forward.1} parent=23 // pred_fallthru
          _
      $region24: #{_forward.1} parent=5 // pred_fallthru
        _
      %p212 = scmp.le.s32.totalorder 1, %s14
      %p213 = scmp.lt.s32.totalorder %s14, 5
      %p214 = pnand %p212, %p213
      %p215 = pneg %p214
      // Predicated region
      $region33: #{_forward.1} parent=5 // pred_check
        _
      $region34: #{_forward.1} parent=5 // pred_check_branch
        %217 = sbr.rel (%p214) target = $region36
      $region35: #{_forward.1} parent=5 // pred_region
        %s218 = ssub.s32 %s14, 1
        // Predicated region
        $region37: #{_forward.1} parent=35 // pred_check
          %p219 = pneg %p56
        $region38: #{_forward.1} parent=35 // pred_check_branch
          %221 = sbr.rel (%p219) target = $region40
        $region39: #{_forward.1} parent=35 // pred_region
          %222 = dma.done [#allocation4], 4096
        $region40: #{_forward.1} parent=35 // pred_fallthru
          _
        %s223 = sand.u32 %s19, 1
        %s224 = scalar_lea.sflag [#allocation6], %s223
        %s225 = sand.u32 %s69, 1
        %s226 = smul.addr %s225, 4608
        %s227 = scalar_lea.vmem [#allocation5], %s226
        // Predicated region
        $region41: #{_forward.1} parent=35 // pred_check
          %p228 = pneg %p82
        $region42: #{_forward.1} parent=35 // pred_check_branch
          %230 = sbr.rel (%p228) target = $region44
        $region43: #{_forward.1} parent=35 // pred_region
          %231 = dma.done %s224, 73728
        $region44: #{_forward.1} parent=35 // pred_fallthru
          _
        %s232 = sand.u32 %s19, 1
        %s233 = scalar_lea.sflag [#allocation6], %s232
        %s234 = sand.u32 %s95, 1
        %s235 = smul.addr %s234, 1024
        %s236 = scalar_lea.vmem [#allocation7], %s235
        // Predicated region
        $region45: #{_forward.1} parent=35 // pred_check
          %p237 = pneg %p108
        $region46: #{_forward.1} parent=35 // pred_check_branch
          %239 = sbr.rel (%p237) target = $region48
        $region47: #{_forward.1} parent=35 // pred_region
          %240 = dma.done %s233, 16384
        $region48: #{_forward.1} parent=35 // pred_fallthru
          _
        %p241 = pneg %p35
        %p242 = pneg %p32
        %p243 = pneg %p56
        %p244 = pneg %p53
        %s245 = sand.u32 %s19, 1
        %s246 = scalar_lea.sflag [#allocation6], %s245
        %s247 = sand.u32 %s69, 1
        %s248 = smul.addr %s247, 4608
        %s249 = scalar_lea.vmem [#allocation5], %s248
        %p250 = pneg %p82
        %p251 = pneg %p79
        %s252 = sand.u32 %s19, 1
        %s253 = scalar_lea.sflag [#allocation6], %s252
        %s254 = sand.u32 %s95, 1
        %s255 = smul.addr %s254, 1024
        %s256 = scalar_lea.vmem [#allocation7], %s255
        %p257 = pneg %p108
        %p258 = pneg %p105
        %p259 = pneg %p134
        %p260 = pneg %p131
        %p261 = scmp.lt.s32.totalorder %s19, 3
        %s262 = scalar_select %p261, %s19, 3
        %s263 = smul.addr %s262, 8
        %s264 = smul.addr %s263, 2
        %s265 = scalar_lea.vmem %s4, %s264
        %s266 = smul.u32 2, %s19
        %s267 = smul.u32 32, %s19
        %p268 = scmp.lt.s32.totalorder %s19, 3
        %s269 = scalar_select %p268, %s19, 3
        %s270 = smul.addr %s269, 8
        %s271 = smul.addr %s270, 2
        %s272 = scalar_lea.vmem %s4, %s271
        %v274 = vld [vmem:[%s0] sm:$0xf]
        %v275 = vld [vmem:[%s0 + $0x4] sm:$0xf]
        %v276 = vld [vmem:[%s0 + $0x8] sm:$0xf]
        %v277 = vld [vmem:[%s0 + $0xc] sm:$0xf]
        %v278 = vld [vmem:[%s0 + $0x10] sm:$0xf]
        %v279 = vld [vmem:[%s0 + $0x14] sm:$0xf]
        %v280 = vld [vmem:[%s0 + $0x18] sm:$0xf]
        %v281 = vld [vmem:[%s0 + $0x1c] sm:$0xf]
        %v282 = vld [vmem:[%s0 + $0x20] sm:$0xf]
        %v283 = vld [vmem:[%s0 + $0x24] sm:$0xf]
        %v284 = vld [vmem:[%s0 + $0x28] sm:$0xf]
        %v285 = vld [vmem:[%s0 + $0x2c] sm:$0xf]
        %v286 = vld [vmem:[%s0 + $0x30] sm:$0xf]
        %v287 = vld [vmem:[%s0 + $0x34] sm:$0xf]
        %v288 = vld [vmem:[%s0 + $0x38] sm:$0xf]
        %v289 = vld [vmem:[%s0 + $0x3c] sm:$0xf]
        %v290 = vld [vmem:[%s0 + $0x40] sm:$0xf]
        %v291 = vld [vmem:[%s0 + $0x44] sm:$0xf]
        %v292 = vld [vmem:[%s0 + $0x48] sm:$0xf]
        %v293 = vld [vmem:[%s0 + $0x4c] sm:$0xf]
        %v294 = vld [vmem:[%s0 + $0x50] sm:$0xf]
        %v295 = vld [vmem:[%s0 + $0x54] sm:$0xf]
        %v296 = vld [vmem:[%s0 + $0x58] sm:$0xf]
        %v297 = vld [vmem:[%s0 + $0x5c] sm:$0xf]
        %v298 = vld [vmem:[%s0 + $0x60] sm:$0xf]
        %v299 = vld [vmem:[%s0 + $0x64] sm:$0xf]
        %v300 = vld [vmem:[%s0 + $0x68] sm:$0xf]
        %v301 = vld [vmem:[%s0 + $0x6c] sm:$0xf]
        %v302 = vld [vmem:[%s0 + $0x70] sm:$0xf]
        %v303 = vld [vmem:[%s0 + $0x74] sm:$0xf]
        %v304 = vld [vmem:[%s0 + $0x78] sm:$0xf]
        %v305 = vld [vmem:[%s0 + $0x7c] sm:$0xf]
        %v306 = vld [vmem:[%s0 + $0x80] sm:$0xf]
        %v307 = vld [vmem:[%s0 + $0x84] sm:$0xf]
        %v308 = vld [vmem:[%s0 + $0x88] sm:$0xf]
        %v309 = vld [vmem:[%s0 + $0x8c] sm:$0xf]
        %v310 = vld [vmem:[%s0 + $0x90] sm:$0xf]
        %v311 = vld [vmem:[%s0 + $0x94] sm:$0xf]
        %v312 = vld [vmem:[%s0 + $0x98] sm:$0xf]
        %v313 = vld [vmem:[%s0 + $0x9c] sm:$0xf]
        %v314 = vld [vmem:[#allocation3] sm:$0xff]
        %v315 = vld [vmem:[#allocation3 + $0x8] sm:$0xff]
        %v316 = vld [vmem:[#allocation3 + $0x10] sm:$0xff]
        %v317 = vld [vmem:[#allocation3 + $0x18] sm:$0xff]
        %v318 = vld [vmem:[#allocation3 + $0x20] sm:$0xff]
        %v319 = vld [vmem:[#allocation3 + $0x28] sm:$0xff]
        %v320 = vld [vmem:[#allocation3 + $0x30] sm:$0xff]
        %v321 = vld [vmem:[#allocation3 + $0x38] sm:$0xff]
        %v322 = vld [vmem:[#allocation3 + $0x40] sm:$0xff]
        %v323 = vld [vmem:[#allocation3 + $0x48] sm:$0xff]
        %v324 = vld [vmem:[#allocation3 + $0x50] sm:$0xff]
        %v325 = vld [vmem:[#allocation3 + $0x58] sm:$0xff]
        %v326 = vld [vmem:[#allocation3 + $0x60] sm:$0xff]
        %v327 = vld [vmem:[#allocation3 + $0x68] sm:$0xff]
        %v328 = vld [vmem:[#allocation3 + $0x70] sm:$0xff]
        %v329 = vld [vmem:[#allocation3 + $0x78] sm:$0xff]
        %v330 = vld [vmem:[#allocation3 + $0x80] sm:$0xff]
        %v331 = vld [vmem:[#allocation3 + $0x88] sm:$0xff]
        %v332 = vld [vmem:[#allocation3 + $0x90] sm:$0xff]
        %v333 = vld [vmem:[#allocation3 + $0x98] sm:$0xff]
        %v334 = vld [vmem:[#allocation3 + $0xa0] sm:$0xff]
        %v335 = vld [vmem:[#allocation3 + $0xa8] sm:$0xff]
        %v336 = vld [vmem:[#allocation3 + $0xb0] sm:$0xff]
        %v337 = vld [vmem:[#allocation3 + $0xb8] sm:$0xff]
        %v338 = vld [vmem:[#allocation3 + $0xc0] sm:$0xff]
        %v339 = vld [vmem:[#allocation3 + $0xc8] sm:$0xff]
        %v340 = vld [vmem:[#allocation3 + $0xd0] sm:$0xff]
        %v341 = vld [vmem:[#allocation3 + $0xd8] sm:$0xff]
        %v342 = vld [vmem:[#allocation3 + $0xe0] sm:$0xff]
        %v343 = vld [vmem:[#allocation3 + $0xe8] sm:$0xff]
        %v344 = vld [vmem:[#allocation3 + $0xf0] sm:$0xff]
        %v345 = vld [vmem:[#allocation3 + $0xf8] sm:$0xff]
        %v386 = vunpack.c.l.b16 %v274
        %v387 = vunpack.c.l.b16 %v275
        %v388 = vunpack.c.l.b16 %v276
        %v389 = vunpack.c.l.b16 %v277
        %v390 = vunpack.c.l.b16 %v278
        %v391 = vunpack.c.l.b16 %v279
        %v392 = vunpack.c.l.b16 %v280
        %v393 = vunpack.c.l.b16 %v281
        %v394 = vunpack.c.l.b16 %v282
        %v395 = vunpack.c.l.b16 %v283
        %v396 = vunpack.c.l.b16 %v284
        %v397 = vunpack.c.l.b16 %v285
        %v398 = vunpack.c.l.b16 %v286
        %v399 = vunpack.c.l.b16 %v287
        %v400 = vunpack.c.l.b16 %v288
        %v401 = vunpack.c.l.b16 %v289
        %v402 = vunpack.c.l.b16 %v290
        %v403 = vunpack.c.l.b16 %v291
        %v404 = vunpack.c.l.b16 %v292
        %v405 = vunpack.c.l.b16 %v293
        %v406 = vunpack.c.l.b16 %v294
        %v407 = vunpack.c.l.b16 %v295
        %v408 = vunpack.c.l.b16 %v296
        %v409 = vunpack.c.l.b16 %v297
        %v410 = vunpack.c.l.b16 %v298
        %v411 = vunpack.c.l.b16 %v299
        %v412 = vunpack.c.l.b16 %v300
        %v413 = vunpack.c.l.b16 %v301
        %v414 = vunpack.c.l.b16 %v302
        %v415 = vunpack.c.l.b16 %v303
        %v416 = vunpack.c.l.b16 %v304
        %v417 = vunpack.c.l.b16 %v305
        %v418 = vunpack.c.l.b16 %v306
        %v419 = vunpack.c.l.b16 %v307
        %v420 = vunpack.c.l.b16 %v308
        %v421 = vunpack.c.l.b16 %v309
        %v422 = vunpack.c.l.b16 %v310
        %v423 = vunpack.c.l.b16 %v311
        %v424 = vunpack.c.l.b16 %v312
        %v425 = vunpack.c.l.b16 %v313
        %v426 = vpack.c.b16 %v387, %v386
        %v427 = vpack.c.b16 %v389, %v388
        %v428 = vpack.c.b16 %v391, %v390
        %v429 = vpack.c.b16 %v393, %v392
        %v430 = vpack.c.b16 %v395, %v394
        %v431 = vpack.c.b16 %v397, %v396
        %v432 = vpack.c.b16 %v399, %v398
        %v433 = vpack.c.b16 %v401, %v400
        %v434 = vpack.c.b16 %v403, %v402
        %v435 = vpack.c.b16 %v405, %v404
        %v436 = vpack.c.b16 %v407, %v406
        %v437 = vpack.c.b16 %v409, %v408
        %v438 = vpack.c.b16 %v411, %v410
        %v439 = vpack.c.b16 %v413, %v412
        %v440 = vpack.c.b16 %v415, %v414
        %v441 = vpack.c.b16 %v417, %v416
        %v442 = vpack.c.b16 %v419, %v418
        %v443 = vpack.c.b16 %v421, %v420
        %v444 = vpack.c.b16 %v423, %v422
        %v445 = vpack.c.b16 %v425, %v424
        %v498 = vunpack.c.l.b16 %v314
        %v499 = vunpack.c.h.b16 %v314
        %v500 = vunpack.c.l.b16 %v315
        %v501 = vunpack.c.h.b16 %v315
        %v502 = vunpack.c.l.b16 %v316
        %v503 = vunpack.c.h.b16 %v316
        %v504 = vunpack.c.l.b16 %v317
        %v505 = vunpack.c.h.b16 %v317
        %v506 = vunpack.c.l.b16 %v318
        %v507 = vunpack.c.h.b16 %v318
        %v508 = vunpack.c.l.b16 %v319
        %v509 = vunpack.c.h.b16 %v319
        %v510 = vunpack.c.l.b16 %v320
        %v511 = vunpack.c.h.b16 %v320
        %v512 = vunpack.c.l.b16 %v321
        %v513 = vunpack.c.h.b16 %v321
        %v514 = vunpack.c.l.b16 %v322
        %v515 = vunpack.c.h.b16 %v322
        %v516 = vunpack.c.l.b16 %v323
        %v517 = vunpack.c.h.b16 %v323
        %v518 = vunpack.c.l.b16 %v324
        %v519 = vunpack.c.h.b16 %v324
        %v520 = vunpack.c.l.b16 %v325
        %v521 = vunpack.c.h.b16 %v325
        %v522 = vunpack.c.l.b16 %v326
        %v523 = vunpack.c.h.b16 %v326
        %v524 = vunpack.c.l.b16 %v327
        %v525 = vunpack.c.h.b16 %v327
        %v526 = vunpack.c.l.b16 %v328
        %v527 = vunpack.c.h.b16 %v328
        %v528 = vunpack.c.l.b16 %v329
        %v529 = vunpack.c.h.b16 %v329
        %v530 = vunpack.c.l.b16 %v330
        %v531 = vunpack.c.h.b16 %v330
        %v532 = vunpack.c.l.b16 %v331
        %v533 = vunpack.c.h.b16 %v331
        %v534 = vunpack.c.l.b16 %v332
        %v535 = vunpack.c.h.b16 %v332
        %v536 = vunpack.c.l.b16 %v333
        %v537 = vunpack.c.h.b16 %v333
        %v538 = vunpack.c.l.b16 %v334
        %v539 = vunpack.c.h.b16 %v334
        %v540 = vunpack.c.l.b16 %v335
        %v541 = vunpack.c.h.b16 %v335
        %v542 = vunpack.c.l.b16 %v336
        %v543 = vunpack.c.h.b16 %v336
        %v544 = vunpack.c.l.b16 %v337
        %v545 = vunpack.c.h.b16 %v337
        %v546 = vunpack.c.l.b16 %v338
        %v547 = vunpack.c.h.b16 %v338
        %v548 = vunpack.c.l.b16 %v339
        %v549 = vunpack.c.h.b16 %v339
        %v550 = vunpack.c.l.b16 %v340
        %v551 = vunpack.c.h.b16 %v340
        %v552 = vunpack.c.l.b16 %v341
        %v553 = vunpack.c.h.b16 %v341
        %v554 = vunpack.c.l.b16 %v342
        %v555 = vunpack.c.h.b16 %v342
        %v556 = vunpack.c.l.b16 %v343
        %v557 = vunpack.c.h.b16 %v343
        %v558 = vunpack.c.l.b16 %v344
        %v559 = vunpack.c.h.b16 %v344
        %v560 = vunpack.c.l.b16 %v345
        %v561 = vunpack.c.h.b16 %v345
        %v562 = vpack.c.b16 %v502, %v498
        %v563 = vpack.c.b16 %v503, %v499
        %v564 = vpack.c.b16 %v504, %v500
        %v565 = vpack.c.b16 %v505, %v501
        %v566 = vpack.c.b16 %v510, %v506
        %v567 = vpack.c.b16 %v511, %v507
        %v568 = vpack.c.b16 %v512, %v508
        %v569 = vpack.c.b16 %v513, %v509
        %v570 = vpack.c.b16 %v518, %v514
        %v571 = vpack.c.b16 %v519, %v515
        %v572 = vpack.c.b16 %v520, %v516
        %v573 = vpack.c.b16 %v521, %v517
        %v574 = vpack.c.b16 %v526, %v522
        %v575 = vpack.c.b16 %v527, %v523
        %v576 = vpack.c.b16 %v528, %v524
        %v577 = vpack.c.b16 %v529, %v525
        %v578 = vpack.c.b16 %v534, %v530
        %v579 = vpack.c.b16 %v535, %v531
        %v580 = vpack.c.b16 %v536, %v532
        %v581 = vpack.c.b16 %v537, %v533
        %v582 = vpack.c.b16 %v542, %v538
        %v583 = vpack.c.b16 %v543, %v539
        %v584 = vpack.c.b16 %v544, %v540
        %v585 = vpack.c.b16 %v545, %v541
        %v586 = vpack.c.b16 %v550, %v546
        %v587 = vpack.c.b16 %v551, %v547
        %v588 = vpack.c.b16 %v552, %v548
        %v589 = vpack.c.b16 %v553, %v549
        %v590 = vpack.c.b16 %v558, %v554
        %v591 = vpack.c.b16 %v559, %v555
        %v592 = vpack.c.b16 %v560, %v556
        %v593 = vpack.c.b16 %v561, %v557
        %626 = vmatprep.subr.bf16.mxu0 %v591
        %627 = vmatpush1.bf16.msra.mxu0 %v590
        %628 = vmatprep.subr.bf16.mxu0 %v587
        %629 = vmatpush1.bf16.msra.mxu0 %v586
        %630 = vmatprep.subr.bf16.mxu0 %v583
        %631 = vmatpush1.bf16.msra.mxu0 %v582
        %632 = vmatprep.subr.bf16.mxu0 %v579
        %633 = vmatpush1.bf16.msra.mxu0 %v578
        %634 = vmatprep.subr.bf16.mxu0 %v575
        %635 = vmatpush1.bf16.msra.mxu0 %v574
        %636 = vmatprep.subr.bf16.mxu0 %v571
        %637 = vmatpush1.bf16.msra.mxu0 %v570
        %638 = vmatprep.subr.bf16.mxu0 %v567
        %639 = vmatpush1.bf16.msra.mxu0 %v566
        %640 = vmatprep.subr.bf16.mxu0 %v563
        %641 = vmatpush1.bf16.msra.mxu0 %v562
        %642 = vmatprep.subr.bf16.mxu0 0
        %643 = vmatpush2.bf16.msra.mxu0 0
        %644 = vmatprep.subr.bf16.mxu0 0
        %645 = vmatpush2.bf16.msra.mxu0 0
        %646 = vmatprep.subr.bf16.mxu0 0
        %647 = vmatpush2.bf16.msra.mxu0 0
        %648 = vmatprep.subr.bf16.mxu0 0
        %649 = vmatpush2.bf16.msra.mxu0 0
        %650 = vmatprep.subr.bf16.mxu0 0
        %651 = vmatpush2.bf16.msra.mxu0 0
        %652 = vmatprep.subr.bf16.mxu0 0
        %653 = vmatpush2.bf16.msra.mxu0 0
        %654 = vmatprep.subr.bf16.mxu0 0
        %655 = vmatpush2.bf16.msra.mxu0 0
        %656 = vmatprep.subr.bf16.mxu0 0
        %657 = vmatpush2.bf16.msra.mxu0 0
        %658 = vmatprep.mubr.bf16.mxu0 0
        %659 = vmatmul.mubr.bf16.gmra.mxu0 %v426
        %v660 = vpop.f32.mrf.mxu0
        %v661 = vadd.f32 0.0, %v660
        %v662 = vpop.f32.mrf.mxu0
        %v663 = vadd.f32 0.0, %v662
        %v664 = vpop.f32.mrf.mxu0
        %v665 = vadd.f32 0.0, %v664
        %v666 = vpop.f32.mrf.mxu0
        %v667 = vadd.f32 0.0, %v666
        %668 = vmatprep.mubr.bf16.mxu0 0
        %669 = vmatmul.mubr.bf16.gmra.mxu0 %v427
        %v670 = vpop.f32.mrf.mxu0
        %v671 = vadd.f32 0.0, %v670
        %v672 = vpop.f32.mrf.mxu0
        %v673 = vadd.f32 0.0, %v672
        %v674 = vpop.f32.mrf.mxu0
        %v675 = vadd.f32 0.0, %v674
        %v676 = vpop.f32.mrf.mxu0
        %v677 = vadd.f32 0.0, %v676
        %678 = vmatprep.mubr.bf16.mxu0 0
        %679 = vmatmul.mubr.bf16.gmra.mxu0 %v428
        %v680 = vpop.f32.mrf.mxu0
        %v681 = vadd.f32 0.0, %v680
        %v682 = vpop.f32.mrf.mxu0
        %v683 = vadd.f32 0.0, %v682
        %v684 = vpop.f32.mrf.mxu0
        %v685 = vadd.f32 0.0, %v684
        %v686 = vpop.f32.mrf.mxu0
        %v687 = vadd.f32 0.0, %v686
        %688 = vmatprep.mubr.bf16.mxu0 0
        %689 = vmatmul.mubr.bf16.gmra.mxu0 %v429
        %v690 = vpop.f32.mrf.mxu0
        %v691 = vadd.f32 0.0, %v690
        %v692 = vpop.f32.mrf.mxu0
        %v693 = vadd.f32 0.0, %v692
        %v694 = vpop.f32.mrf.mxu0
        %v695 = vadd.f32 0.0, %v694
        %v696 = vpop.f32.mrf.mxu0
        %v697 = vadd.f32 0.0, %v696
        %698 = vmatprep.mubr.bf16.mxu0 0
        %699 = vmatmul.mubr.bf16.gmra.mxu0 %v430
        %v700 = vpop.f32.mrf.mxu0
        %v701 = vadd.f32 0.0, %v700
        %v702 = vpop.f32.mrf.mxu0
        %v703 = vadd.f32 0.0, %v702
        %v704 = vpop.f32.mrf.mxu0
        %v705 = vadd.f32 0.0, %v704
        %v706 = vpop.f32.mrf.mxu0
        %v707 = vadd.f32 0.0, %v706
        %708 = vmatprep.mubr.bf16.mxu0 0
        %709 = vmatmul.mubr.bf16.gmra.mxu0 %v431
        %v710 = vpop.f32.mrf.mxu0
        %v711 = vadd.f32 0.0, %v710
        %v712 = vpop.f32.mrf.mxu0
        %v713 = vadd.f32 0.0, %v712
        %v714 = vpop.f32.mrf.mxu0
        %v715 = vadd.f32 0.0, %v714
        %v716 = vpop.f32.mrf.mxu0
        %v717 = vadd.f32 0.0, %v716
        %718 = vmatprep.mubr.bf16.mxu0 0
        %719 = vmatmul.mubr.bf16.gmra.mxu0 %v432
        %v720 = vpop.f32.mrf.mxu0
        %v721 = vadd.f32 0.0, %v720
        %v722 = vpop.f32.mrf.mxu0
        %v723 = vadd.f32 0.0, %v722
        %v724 = vpop.f32.mrf.mxu0
        %v725 = vadd.f32 0.0, %v724
        %v726 = vpop.f32.mrf.mxu0
        %v727 = vadd.f32 0.0, %v726
        %728 = vmatprep.mubr.bf16.mxu0 0
        %729 = vmatmul.mubr.bf16.gmra.mxu0 %v433
        %v730 = vpop.f32.mrf.mxu0
        %v731 = vadd.f32 0.0, %v730
        %v732 = vpop.f32.mrf.mxu0
        %v733 = vadd.f32 0.0, %v732
        %v734 = vpop.f32.mrf.mxu0
        %v735 = vadd.f32 0.0, %v734
        %v736 = vpop.f32.mrf.mxu0
        %v737 = vadd.f32 0.0, %v736
        %738 = vmatprep.mubr.bf16.mxu0 0
        %739 = vmatmul.mubr.bf16.gmra.mxu0 %v434
        %v740 = vpop.f32.mrf.mxu0
        %v741 = vadd.f32 0.0, %v740
        %v742 = vpop.f32.mrf.mxu0
        %v743 = vadd.f32 0.0, %v742
        %v744 = vpop.f32.mrf.mxu0
        %v745 = vadd.f32 0.0, %v744
        %v746 = vpop.f32.mrf.mxu0
        %v747 = vadd.f32 0.0, %v746
        %748 = vmatprep.mubr.bf16.mxu0 0
        %749 = vmatmul.mubr.bf16.gmra.mxu0 %v435
        %v750 = vpop.f32.mrf.mxu0
        %v751 = vadd.f32 0.0, %v750
        %v752 = vpop.f32.mrf.mxu0
        %v753 = vadd.f32 0.0, %v752
        %v754 = vpop.f32.mrf.mxu0
        %v755 = vadd.f32 0.0, %v754
        %v756 = vpop.f32.mrf.mxu0
        %v757 = vadd.f32 0.0, %v756
        %758 = vmatprep.mubr.bf16.mxu0 0
        %759 = vmatmul.mubr.bf16.gmra.mxu0 %v436
        %v760 = vpop.f32.mrf.mxu0
        %v761 = vadd.f32 0.0, %v760
        %v762 = vpop.f32.mrf.mxu0
        %v763 = vadd.f32 0.0, %v762
        %v764 = vpop.f32.mrf.mxu0
        %v765 = vadd.f32 0.0, %v764
        %v766 = vpop.f32.mrf.mxu0
        %v767 = vadd.f32 0.0, %v766
        %768 = vmatprep.mubr.bf16.mxu0 0
        %769 = vmatmul.mubr.bf16.gmra.mxu0 %v437
        %v770 = vpop.f32.mrf.mxu0
        %v771 = vadd.f32 0.0, %v770
        %v772 = vpop.f32.mrf.mxu0
        %v773 = vadd.f32 0.0, %v772
        %v774 = vpop.f32.mrf.mxu0
        %v775 = vadd.f32 0.0, %v774
        %v776 = vpop.f32.mrf.mxu0
        %v777 = vadd.f32 0.0, %v776
        %778 = vmatprep.mubr.bf16.mxu0 0
        %779 = vmatmul.mubr.bf16.gmra.mxu0 %v438
        %v780 = vpop.f32.mrf.mxu0
        %v781 = vadd.f32 0.0, %v780
        %v782 = vpop.f32.mrf.mxu0
        %v783 = vadd.f32 0.0, %v782
        %v784 = vpop.f32.mrf.mxu0
        %v785 = vadd.f32 0.0, %v784
        %v786 = vpop.f32.mrf.mxu0
        %v787 = vadd.f32 0.0, %v786
        %788 = vmatprep.mubr.bf16.mxu0 0
        %789 = vmatmul.mubr.bf16.gmra.mxu0 %v439
        %v790 = vpop.f32.mrf.mxu0
        %v791 = vadd.f32 0.0, %v790
        %v792 = vpop.f32.mrf.mxu0
        %v793 = vadd.f32 0.0, %v792
        %v794 = vpop.f32.mrf.mxu0
        %v795 = vadd.f32 0.0, %v794
        %v796 = vpop.f32.mrf.mxu0
        %v797 = vadd.f32 0.0, %v796
        %798 = vmatprep.mubr.bf16.mxu0 0
        %799 = vmatmul.mubr.bf16.gmra.mxu0 %v440
        %v800 = vpop.f32.mrf.mxu0
        %v801 = vadd.f32 0.0, %v800
        %v802 = vpop.f32.mrf.mxu0
        %v803 = vadd.f32 0.0, %v802
        %v804 = vpop.f32.mrf.mxu0
        %v805 = vadd.f32 0.0, %v804
        %v806 = vpop.f32.mrf.mxu0
        %v807 = vadd.f32 0.0, %v806
        %808 = vmatprep.mubr.bf16.mxu0 0
        %809 = vmatmul.mubr.bf16.gmra.mxu0 %v441
        %v810 = vpop.f32.mrf.mxu0
        %v811 = vadd.f32 0.0, %v810
        %v812 = vpop.f32.mrf.mxu0
        %v813 = vadd.f32 0.0, %v812
        %v814 = vpop.f32.mrf.mxu0
        %v815 = vadd.f32 0.0, %v814
        %v816 = vpop.f32.mrf.mxu0
        %v817 = vadd.f32 0.0, %v816
        %818 = vmatprep.mubr.bf16.mxu0 0
        %819 = vmatmul.mubr.bf16.gmra.mxu0 %v442
        %v820 = vpop.f32.mrf.mxu0
        %v821 = vadd.f32 0.0, %v820
        %v822 = vpop.f32.mrf.mxu0
        %v823 = vadd.f32 0.0, %v822
        %v824 = vpop.f32.mrf.mxu0
        %v825 = vadd.f32 0.0, %v824
        %v826 = vpop.f32.mrf.mxu0
        %v827 = vadd.f32 0.0, %v826
        %828 = vmatprep.mubr.bf16.mxu0 0
        %829 = vmatmul.mubr.bf16.gmra.mxu0 %v443
        %v830 = vpop.f32.mrf.mxu0
        %v831 = vadd.f32 0.0, %v830
        %v832 = vpop.f32.mrf.mxu0
        %v833 = vadd.f32 0.0, %v832
        %v834 = vpop.f32.mrf.mxu0
        %v835 = vadd.f32 0.0, %v834
        %v836 = vpop.f32.mrf.mxu0
        %v837 = vadd.f32 0.0, %v836
        %838 = vmatprep.mubr.bf16.mxu0 0
        %839 = vmatmul.mubr.bf16.gmra.mxu0 %v444
        %v840 = vpop.f32.mrf.mxu0
        %v841 = vadd.f32 0.0, %v840
        %v842 = vpop.f32.mrf.mxu0
        %v843 = vadd.f32 0.0, %v842
        %v844 = vpop.f32.mrf.mxu0
        %v845 = vadd.f32 0.0, %v844
        %v846 = vpop.f32.mrf.mxu0
        %v847 = vadd.f32 0.0, %v846
        %848 = vmatprep.mubr.bf16.mxu0 0
        %849 = vmatmul.mubr.bf16.gmra.mxu0 %v445
        %v850 = vpop.f32.mrf.mxu0
        %v851 = vadd.f32 0.0, %v850
        %v852 = vpop.f32.mrf.mxu0
        %v853 = vadd.f32 0.0, %v852
        %v854 = vpop.f32.mrf.mxu0
        %v855 = vadd.f32 0.0, %v854
        %v856 = vpop.f32.mrf.mxu0
        %v857 = vadd.f32 0.0, %v856
        %858 = vdwg.mxu0
        %859 = vmatprep.subr.bf16.mxu0 %v593
        %860 = vmatpush1.bf16.msra.mxu0 %v592
        %861 = vmatprep.subr.bf16.mxu0 %v589
        %862 = vmatpush1.bf16.msra.mxu0 %v588
        %863 = vmatprep.subr.bf16.mxu0 %v585
        %864 = vmatpush1.bf16.msra.mxu0 %v584
        %865 = vmatprep.subr.bf16.mxu0 %v581
        %866 = vmatpush1.bf16.msra.mxu0 %v580
        %867 = vmatprep.subr.bf16.mxu0 %v577
        %868 = vmatpush1.bf16.msra.mxu0 %v576
        %869 = vmatprep.subr.bf16.mxu0 %v573
        %870 = vmatpush1.bf16.msra.mxu0 %v572
        %871 = vmatprep.subr.bf16.mxu0 %v569
        %872 = vmatpush1.bf16.msra.mxu0 %v568
        %873 = vmatprep.subr.bf16.mxu0 %v565
        %874 = vmatpush1.bf16.msra.mxu0 %v564
        %875 = vmatprep.subr.bf16.mxu0 0
        %876 = vmatpush2.bf16.msra.mxu0 0
        %877 = vmatprep.subr.bf16.mxu0 0
        %878 = vmatpush2.bf16.msra.mxu0 0
        %879 = vmatprep.subr.bf16.mxu0 0
        %880 = vmatpush2.bf16.msra.mxu0 0
        %881 = vmatprep.subr.bf16.mxu0 0
        %882 = vmatpush2.bf16.msra.mxu0 0
        %883 = vmatprep.subr.bf16.mxu0 0
        %884 = vmatpush2.bf16.msra.mxu0 0
        %885 = vmatprep.subr.bf16.mxu0 0
        %886 = vmatpush2.bf16.msra.mxu0 0
        %887 = vmatprep.subr.bf16.mxu0 0
        %888 = vmatpush2.bf16.msra.mxu0 0
        %889 = vmatprep.subr.bf16.mxu0 0
        %890 = vmatpush2.bf16.msra.mxu0 0
        %891 = vmatprep.mubr.bf16.mxu0 0
        %892 = vmatmul.mubr.bf16.gmra.mxu0 %v426
        %v893 = vpop.f32.mrf.mxu0
        %v894 = vadd.f32 0.0, %v893
        %v895 = vpop.f32.mrf.mxu0
        %v896 = vadd.f32 0.0, %v895
        %v897 = vpop.f32.mrf.mxu0
        %v898 = vadd.f32 0.0, %v897
        %v899 = vpop.f32.mrf.mxu0
        %v900 = vadd.f32 0.0, %v899
        %901 = vmatprep.mubr.bf16.mxu0 0
        %902 = vmatmul.mubr.bf16.gmra.mxu0 %v427
        %v903 = vpop.f32.mrf.mxu0
        %v904 = vadd.f32 0.0, %v903
        %v905 = vpop.f32.mrf.mxu0
        %v906 = vadd.f32 0.0, %v905
        %v907 = vpop.f32.mrf.mxu0
        %v908 = vadd.f32 0.0, %v907
        %v909 = vpop.f32.mrf.mxu0
        %v910 = vadd.f32 0.0, %v909
        %911 = vmatprep.mubr.bf16.mxu0 0
        %912 = vmatmul.mubr.bf16.gmra.mxu0 %v428
        %v913 = vpop.f32.mrf.mxu0
        %v914 = vadd.f32 0.0, %v913
        %v915 = vpop.f32.mrf.mxu0
        %v916 = vadd.f32 0.0, %v915
        %v917 = vpop.f32.mrf.mxu0
        %v918 = vadd.f32 0.0, %v917
        %v919 = vpop.f32.mrf.mxu0
        %v920 = vadd.f32 0.0, %v919
        %921 = vmatprep.mubr.bf16.mxu0 0
        %922 = vmatmul.mubr.bf16.gmra.mxu0 %v429
        %v923 = vpop.f32.mrf.mxu0
        %v924 = vadd.f32 0.0, %v923
        %v925 = vpop.f32.mrf.mxu0
        %v926 = vadd.f32 0.0, %v925
        %v927 = vpop.f32.mrf.mxu0
        %v928 = vadd.f32 0.0, %v927
        %v929 = vpop.f32.mrf.mxu0
        %v930 = vadd.f32 0.0, %v929
        %931 = vmatprep.mubr.bf16.mxu0 0
        %932 = vmatmul.mubr.bf16.gmra.mxu0 %v430
        %v933 = vpop.f32.mrf.mxu0
        %v934 = vadd.f32 0.0, %v933
        %v935 = vpop.f32.mrf.mxu0
        %v936 = vadd.f32 0.0, %v935
        %v937 = vpop.f32.mrf.mxu0
        %v938 = vadd.f32 0.0, %v937
        %v939 = vpop.f32.mrf.mxu0
        %v940 = vadd.f32 0.0, %v939
        %941 = vmatprep.mubr.bf16.mxu0 0
        %942 = vmatmul.mubr.bf16.gmra.mxu0 %v431
        %v943 = vpop.f32.mrf.mxu0
        %v944 = vadd.f32 0.0, %v943
        %v945 = vpop.f32.mrf.mxu0
        %v946 = vadd.f32 0.0, %v945
        %v947 = vpop.f32.mrf.mxu0
        %v948 = vadd.f32 0.0, %v947
        %v949 = vpop.f32.mrf.mxu0
        %v950 = vadd.f32 0.0, %v949
        %951 = vmatprep.mubr.bf16.mxu0 0
        %952 = vmatmul.mubr.bf16.gmra.mxu0 %v432
        %v953 = vpop.f32.mrf.mxu0
        %v954 = vadd.f32 0.0, %v953
        %v955 = vpop.f32.mrf.mxu0
        %v956 = vadd.f32 0.0, %v955
        %v957 = vpop.f32.mrf.mxu0
        %v958 = vadd.f32 0.0, %v957
        %v959 = vpop.f32.mrf.mxu0
        %v960 = vadd.f32 0.0, %v959
        %961 = vmatprep.mubr.bf16.mxu0 0
        %962 = vmatmul.mubr.bf16.gmra.mxu0 %v433
        %v963 = vpop.f32.mrf.mxu0
        %v964 = vadd.f32 0.0, %v963
        %v965 = vpop.f32.mrf.mxu0
        %v966 = vadd.f32 0.0, %v965
        %v967 = vpop.f32.mrf.mxu0
        %v968 = vadd.f32 0.0, %v967
        %v969 = vpop.f32.mrf.mxu0
        %v970 = vadd.f32 0.0, %v969
        %971 = vmatprep.mubr.bf16.mxu0 0
        %972 = vmatmul.mubr.bf16.gmra.mxu0 %v434
        %v973 = vpop.f32.mrf.mxu0
        %v974 = vadd.f32 0.0, %v973
        %v975 = vpop.f32.mrf.mxu0
        %v976 = vadd.f32 0.0, %v975
        %v977 = vpop.f32.mrf.mxu0
        %v978 = vadd.f32 0.0, %v977
        %v979 = vpop.f32.mrf.mxu0
        %v980 = vadd.f32 0.0, %v979
        %981 = vmatprep.mubr.bf16.mxu0 0
        %982 = vmatmul.mubr.bf16.gmra.mxu0 %v435
        %v983 = vpop.f32.mrf.mxu0
        %v984 = vadd.f32 0.0, %v983
        %v985 = vpop.f32.mrf.mxu0
        %v986 = vadd.f32 0.0, %v985
        %v987 = vpop.f32.mrf.mxu0
        %v988 = vadd.f32 0.0, %v987
        %v989 = vpop.f32.mrf.mxu0
        %v990 = vadd.f32 0.0, %v989
        %991 = vmatprep.mubr.bf16.mxu0 0
        %992 = vmatmul.mubr.bf16.gmra.mxu0 %v436
        %v993 = vpop.f32.mrf.mxu0
        %v994 = vadd.f32 0.0, %v993
        %v995 = vpop.f32.mrf.mxu0
        %v996 = vadd.f32 0.0, %v995
        %v997 = vpop.f32.mrf.mxu0
        %v998 = vadd.f32 0.0, %v997
        %v999 = vpop.f32.mrf.mxu0
        %v1000 = vadd.f32 0.0, %v999
        %1001 = vmatprep.mubr.bf16.mxu0 0
        %1002 = vmatmul.mubr.bf16.gmra.mxu0 %v437
        %v1003 = vpop.f32.mrf.mxu0
        %v1004 = vadd.f32 0.0, %v1003
        %v1005 = vpop.f32.mrf.mxu0
        %v1006 = vadd.f32 0.0, %v1005
        %v1007 = vpop.f32.mrf.mxu0
        %v1008 = vadd.f32 0.0, %v1007
        %v1009 = vpop.f32.mrf.mxu0
        %v1010 = vadd.f32 0.0, %v1009
        %1011 = vmatprep.mubr.bf16.mxu0 0
        %1012 = vmatmul.mubr.bf16.gmra.mxu0 %v438
        %v1013 = vpop.f32.mrf.mxu0
        %v1014 = vadd.f32 0.0, %v1013
        %v1015 = vpop.f32.mrf.mxu0
        %v1016 = vadd.f32 0.0, %v1015
        %v1017 = vpop.f32.mrf.mxu0
        %v1018 = vadd.f32 0.0, %v1017
        %v1019 = vpop.f32.mrf.mxu0
        %v1020 = vadd.f32 0.0, %v1019
        %1021 = vmatprep.mubr.bf16.mxu0 0
        %1022 = vmatmul.mubr.bf16.gmra.mxu0 %v439
        %v1023 = vpop.f32.mrf.mxu0
        %v1024 = vadd.f32 0.0, %v1023
        %v1025 = vpop.f32.mrf.mxu0
        %v1026 = vadd.f32 0.0, %v1025
        %v1027 = vpop.f32.mrf.mxu0
        %v1028 = vadd.f32 0.0, %v1027
        %v1029 = vpop.f32.mrf.mxu0
        %v1030 = vadd.f32 0.0, %v1029
        %1031 = vmatprep.mubr.bf16.mxu0 0
        %1032 = vmatmul.mubr.bf16.gmra.mxu0 %v440
        %v1033 = vpop.f32.mrf.mxu0
        %v1034 = vadd.f32 0.0, %v1033
        %v1035 = vpop.f32.mrf.mxu0
        %v1036 = vadd.f32 0.0, %v1035
        %v1037 = vpop.f32.mrf.mxu0
        %v1038 = vadd.f32 0.0, %v1037
        %v1039 = vpop.f32.mrf.mxu0
        %v1040 = vadd.f32 0.0, %v1039
        %1041 = vmatprep.mubr.bf16.mxu0 0
        %1042 = vmatmul.mubr.bf16.gmra.mxu0 %v441
        %v1043 = vpop.f32.mrf.mxu0
        %v1044 = vadd.f32 0.0, %v1043
        %v1045 = vpop.f32.mrf.mxu0
        %v1046 = vadd.f32 0.0, %v1045
        %v1047 = vpop.f32.mrf.mxu0
        %v1048 = vadd.f32 0.0, %v1047
        %v1049 = vpop.f32.mrf.mxu0
        %v1050 = vadd.f32 0.0, %v1049
        %1051 = vmatprep.mubr.bf16.mxu0 0
        %1052 = vmatmul.mubr.bf16.gmra.mxu0 %v442
        %v1053 = vpop.f32.mrf.mxu0
        %v1054 = vadd.f32 0.0, %v1053
        %v1055 = vpop.f32.mrf.mxu0
        %v1056 = vadd.f32 0.0, %v1055
        %v1057 = vpop.f32.mrf.mxu0
        %v1058 = vadd.f32 0.0, %v1057
        %v1059 = vpop.f32.mrf.mxu0
        %v1060 = vadd.f32 0.0, %v1059
        %1061 = vmatprep.mubr.bf16.mxu0 0
        %1062 = vmatmul.mubr.bf16.gmra.mxu0 %v443
        %v1063 = vpop.f32.mrf.mxu0
        %v1064 = vadd.f32 0.0, %v1063
        %v1065 = vpop.f32.mrf.mxu0
        %v1066 = vadd.f32 0.0, %v1065
        %v1067 = vpop.f32.mrf.mxu0
        %v1068 = vadd.f32 0.0, %v1067
        %v1069 = vpop.f32.mrf.mxu0
        %v1070 = vadd.f32 0.0, %v1069
        %1071 = vmatprep.mubr.bf16.mxu0 0
        %1072 = vmatmul.mubr.bf16.gmra.mxu0 %v444
        %v1073 = vpop.f32.mrf.mxu0
        %v1074 = vadd.f32 0.0, %v1073
        %v1075 = vpop.f32.mrf.mxu0
        %v1076 = vadd.f32 0.0, %v1075
        %v1077 = vpop.f32.mrf.mxu0
        %v1078 = vadd.f32 0.0, %v1077
        %v1079 = vpop.f32.mrf.mxu0
        %v1080 = vadd.f32 0.0, %v1079
        %1081 = vmatprep.mubr.bf16.mxu0 0
        %1082 = vmatmul.mubr.bf16.gmra.mxu0 %v445
        %v1083 = vpop.f32.mrf.mxu0
        %v1084 = vadd.f32 0.0, %v1083
        %v1085 = vpop.f32.mrf.mxu0
        %v1086 = vadd.f32 0.0, %v1085
        %v1087 = vpop.f32.mrf.mxu0
        %v1088 = vadd.f32 0.0, %v1087
        %v1089 = vpop.f32.mrf.mxu0
        %v1090 = vadd.f32 0.0, %v1089
        %1091 = vdwg.mxu0
        %v1092 = vpack.c.bf16 %v665, %v661
        %v1093 = vpack.c.bf16 %v667, %v663
        %v1094 = vpack.c.bf16 %v898, %v894
        %v1095 = vpack.c.bf16 %v900, %v896
        %v1096 = vpack.c.bf16 %v675, %v671
        %v1097 = vpack.c.bf16 %v677, %v673
        %v1098 = vpack.c.bf16 %v908, %v904
        %v1099 = vpack.c.bf16 %v910, %v906
        %v1100 = vpack.c.bf16 %v685, %v681
        %v1101 = vpack.c.bf16 %v687, %v683
        %v1102 = vpack.c.bf16 %v918, %v914
        %v1103 = vpack.c.bf16 %v920, %v916
        %v1104 = vpack.c.bf16 %v695, %v691
        %v1105 = vpack.c.bf16 %v697, %v693
        %v1106 = vpack.c.bf16 %v928, %v924
        %v1107 = vpack.c.bf16 %v930, %v926
        %v1108 = vpack.c.bf16 %v705, %v701
        %v1109 = vpack.c.bf16 %v707, %v703
        %v1110 = vpack.c.bf16 %v938, %v934
        %v1111 = vpack.c.bf16 %v940, %v936
        %v1112 = vpack.c.bf16 %v715, %v711
        %v1113 = vpack.c.bf16 %v717, %v713
        %v1114 = vpack.c.bf16 %v948, %v944
        %v1115 = vpack.c.bf16 %v950, %v946
        %v1116 = vpack.c.bf16 %v725, %v721
        %v1117 = vpack.c.bf16 %v727, %v723
        %v1118 = vpack.c.bf16 %v958, %v954
        %v1119 = vpack.c.bf16 %v960, %v956
        %v1120 = vpack.c.bf16 %v735, %v731
        %v1121 = vpack.c.bf16 %v737, %v733
        %v1122 = vpack.c.bf16 %v968, %v964
        %v1123 = vpack.c.bf16 %v970, %v966
        %v1124 = vpack.c.bf16 %v745, %v741
        %v1125 = vpack.c.bf16 %v747, %v743
        %v1126 = vpack.c.bf16 %v978, %v974
        %v1127 = vpack.c.bf16 %v980, %v976
        %v1128 = vpack.c.bf16 %v755, %v751
        %v1129 = vpack.c.bf16 %v757, %v753
        %v1130 = vpack.c.bf16 %v988, %v984
        %v1131 = vpack.c.bf16 %v990, %v986
        %v1132 = vpack.c.bf16 %v765, %v761
        %v1133 = vpack.c.bf16 %v767, %v763
        %v1134 = vpack.c.bf16 %v998, %v994
        %v1135 = vpack.c.bf16 %v1000, %v996
        %v1136 = vpack.c.bf16 %v775, %v771
        %v1137 = vpack.c.bf16 %v777, %v773
        %v1138 = vpack.c.bf16 %v1008, %v1004
        %v1139 = vpack.c.bf16 %v1010, %v1006
        %v1140 = vpack.c.bf16 %v785, %v781
        %v1141 = vpack.c.bf16 %v787, %v783
        %v1142 = vpack.c.bf16 %v1018, %v1014
        %v1143 = vpack.c.bf16 %v1020, %v1016
        %v1144 = vpack.c.bf16 %v795, %v791
        %v1145 = vpack.c.bf16 %v797, %v793
        %v1146 = vpack.c.bf16 %v1028, %v1024
        %v1147 = vpack.c.bf16 %v1030, %v1026
        %v1148 = vpack.c.bf16 %v805, %v801
        %v1149 = vpack.c.bf16 %v807, %v803
        %v1150 = vpack.c.bf16 %v1038, %v1034
        %v1151 = vpack.c.bf16 %v1040, %v1036
        %v1152 = vpack.c.bf16 %v815, %v811
        %v1153 = vpack.c.bf16 %v817, %v813
        %v1154 = vpack.c.bf16 %v1048, %v1044
        %v1155 = vpack.c.bf16 %v1050, %v1046
        %v1156 = vpack.c.bf16 %v825, %v821
        %v1157 = vpack.c.bf16 %v827, %v823
        %v1158 = vpack.c.bf16 %v1058, %v1054
        %v1159 = vpack.c.bf16 %v1060, %v1056
        %v1160 = vpack.c.bf16 %v835, %v831
        %v1161 = vpack.c.bf16 %v837, %v833
        %v1162 = vpack.c.bf16 %v1068, %v1064
        %v1163 = vpack.c.bf16 %v1070, %v1066
        %v1164 = vpack.c.bf16 %v845, %v841
        %v1165 = vpack.c.bf16 %v847, %v843
        %v1166 = vpack.c.bf16 %v1078, %v1074
        %v1167 = vpack.c.bf16 %v1080, %v1076
        %v1168 = vpack.c.bf16 %v855, %v851
        %v1169 = vpack.c.bf16 %v857, %v853
        %v1170 = vpack.c.bf16 %v1088, %v1084
        %v1171 = vpack.c.bf16 %v1090, %v1086
        %v1252 = vunpack.c.l.b16 %v1092
        %v1253 = vunpack.c.l.b16 %v1093
        %v1254 = vunpack.c.l.b16 %v1094
        %v1255 = vunpack.c.l.b16 %v1095
        %v1256 = vunpack.c.h.b16 %v1092
        %v1257 = vunpack.c.h.b16 %v1093
        %v1258 = vunpack.c.h.b16 %v1094
        %v1259 = vunpack.c.h.b16 %v1095
        %v1260 = vunpack.c.l.b16 %v1096
        %v1261 = vunpack.c.l.b16 %v1097
        %v1262 = vunpack.c.l.b16 %v1098
        %v1263 = vunpack.c.l.b16 %v1099
        %v1264 = vunpack.c.h.b16 %v1096
        %v1265 = vunpack.c.h.b16 %v1097
        %v1266 = vunpack.c.h.b16 %v1098
        %v1267 = vunpack.c.h.b16 %v1099
        %v1268 = vunpack.c.l.b16 %v1100
        %v1269 = vunpack.c.l.b16 %v1101
        %v1270 = vunpack.c.l.b16 %v1102
        %v1271 = vunpack.c.l.b16 %v1103
        %v1272 = vunpack.c.h.b16 %v1100
        %v1273 = vunpack.c.h.b16 %v1101
        %v1274 = vunpack.c.h.b16 %v1102
        %v1275 = vunpack.c.h.b16 %v1103
        %v1276 = vunpack.c.l.b16 %v1104
        %v1277 = vunpack.c.l.b16 %v1105
        %v1278 = vunpack.c.l.b16 %v1106
        %v1279 = vunpack.c.l.b16 %v1107
        %v1280 = vunpack.c.h.b16 %v1104
        %v1281 = vunpack.c.h.b16 %v1105
        %v1282 = vunpack.c.h.b16 %v1106
        %v1283 = vunpack.c.h.b16 %v1107
        %v1284 = vunpack.c.l.b16 %v1108
        %v1285 = vunpack.c.l.b16 %v1109
        %v1286 = vunpack.c.l.b16 %v1110
        %v1287 = vunpack.c.l.b16 %v1111
        %v1288 = vunpack.c.h.b16 %v1108
        %v1289 = vunpack.c.h.b16 %v1109
        %v1290 = vunpack.c.h.b16 %v1110
        %v1291 = vunpack.c.h.b16 %v1111
        %v1292 = vunpack.c.l.b16 %v1112
        %v1293 = vunpack.c.l.b16 %v1113
        %v1294 = vunpack.c.l.b16 %v1114
        %v1295 = vunpack.c.l.b16 %v1115
        %v1296 = vunpack.c.h.b16 %v1112
        %v1297 = vunpack.c.h.b16 %v1113
        %v1298 = vunpack.c.h.b16 %v1114
        %v1299 = vunpack.c.h.b16 %v1115
        %v1300 = vunpack.c.l.b16 %v1116
        %v1301 = vunpack.c.l.b16 %v1117
        %v1302 = vunpack.c.l.b16 %v1118
        %v1303 = vunpack.c.l.b16 %v1119
        %v1304 = vunpack.c.h.b16 %v1116
        %v1305 = vunpack.c.h.b16 %v1117
        %v1306 = vunpack.c.h.b16 %v1118
        %v1307 = vunpack.c.h.b16 %v1119
        %v1308 = vunpack.c.l.b16 %v1120
        %v1309 = vunpack.c.l.b16 %v1121
        %v1310 = vunpack.c.l.b16 %v1122
        %v1311 = vunpack.c.l.b16 %v1123
        %v1312 = vunpack.c.h.b16 %v1120
        %v1313 = vunpack.c.h.b16 %v1121
        %v1314 = vunpack.c.h.b16 %v1122
        %v1315 = vunpack.c.h.b16 %v1123
        %v1316 = vunpack.c.l.b16 %v1124
        %v1317 = vunpack.c.l.b16 %v1125
        %v1318 = vunpack.c.l.b16 %v1126
        %v1319 = vunpack.c.l.b16 %v1127
        %v1320 = vunpack.c.h.b16 %v1124
        %v1321 = vunpack.c.h.b16 %v1125
        %v1322 = vunpack.c.h.b16 %v1126
        %v1323 = vunpack.c.h.b16 %v1127
        %v1324 = vunpack.c.l.b16 %v1128
        %v1325 = vunpack.c.l.b16 %v1129
        %v1326 = vunpack.c.l.b16 %v1130
        %v1327 = vunpack.c.l.b16 %v1131
        %v1328 = vunpack.c.h.b16 %v1128
        %v1329 = vunpack.c.h.b16 %v1129
        %v1330 = vunpack.c.h.b16 %v1130
        %v1331 = vunpack.c.h.b16 %v1131
        %v1332 = vunpack.c.l.b16 %v1132
        %v1333 = vunpack.c.l.b16 %v1133
        %v1334 = vunpack.c.l.b16 %v1134
        %v1335 = vunpack.c.l.b16 %v1135
        %v1336 = vunpack.c.h.b16 %v1132
        %v1337 = vunpack.c.h.b16 %v1133
        %v1338 = vunpack.c.h.b16 %v1134
        %v1339 = vunpack.c.h.b16 %v1135
        %v1340 = vunpack.c.l.b16 %v1136
        %v1341 = vunpack.c.l.b16 %v1137
        %v1342 = vunpack.c.l.b16 %v1138
        %v1343 = vunpack.c.l.b16 %v1139
        %v1344 = vunpack.c.h.b16 %v1136
        %v1345 = vunpack.c.h.b16 %v1137
        %v1346 = vunpack.c.h.b16 %v1138
        %v1347 = vunpack.c.h.b16 %v1139
        %v1348 = vunpack.c.l.b16 %v1140
        %v1349 = vunpack.c.l.b16 %v1141
        %v1350 = vunpack.c.l.b16 %v1142
        %v1351 = vunpack.c.l.b16 %v1143
        %v1352 = vunpack.c.h.b16 %v1140
        %v1353 = vunpack.c.h.b16 %v1141
        %v1354 = vunpack.c.h.b16 %v1142
        %v1355 = vunpack.c.h.b16 %v1143
        %v1356 = vunpack.c.l.b16 %v1144
        %v1357 = vunpack.c.l.b16 %v1145
        %v1358 = vunpack.c.l.b16 %v1146
        %v1359 = vunpack.c.l.b16 %v1147
        %v1360 = vunpack.c.h.b16 %v1144
        %v1361 = vunpack.c.h.b16 %v1145
        %v1362 = vunpack.c.h.b16 %v1146
        %v1363 = vunpack.c.h.b16 %v1147
        %v1364 = vunpack.c.l.b16 %v1148
        %v1365 = vunpack.c.l.b16 %v1149
        %v1366 = vunpack.c.l.b16 %v1150
        %v1367 = vunpack.c.l.b16 %v1151
        %v1368 = vunpack.c.h.b16 %v1148
        %v1369 = vunpack.c.h.b16 %v1149
        %v1370 = vunpack.c.h.b16 %v1150
        %v1371 = vunpack.c.h.b16 %v1151
        %v1372 = vunpack.c.l.b16 %v1152
        %v1373 = vunpack.c.l.b16 %v1153
        %v1374 = vunpack.c.l.b16 %v1154
        %v1375 = vunpack.c.l.b16 %v1155
        %v1376 = vunpack.c.h.b16 %v1152
        %v1377 = vunpack.c.h.b16 %v1153
        %v1378 = vunpack.c.h.b16 %v1154
        %v1379 = vunpack.c.h.b16 %v1155
        %v1380 = vunpack.c.l.b16 %v1156
        %v1381 = vunpack.c.l.b16 %v1157
        %v1382 = vunpack.c.l.b16 %v1158
        %v1383 = vunpack.c.l.b16 %v1159
        %v1384 = vunpack.c.h.b16 %v1156
        %v1385 = vunpack.c.h.b16 %v1157
        %v1386 = vunpack.c.h.b16 %v1158
        %v1387 = vunpack.c.h.b16 %v1159
        %v1388 = vunpack.c.l.b16 %v1160
        %v1389 = vunpack.c.l.b16 %v1161
        %v1390 = vunpack.c.l.b16 %v1162
        %v1391 = vunpack.c.l.b16 %v1163
        %v1392 = vunpack.c.h.b16 %v1160
        %v1393 = vunpack.c.h.b16 %v1161
        %v1394 = vunpack.c.h.b16 %v1162
        %v1395 = vunpack.c.h.b16 %v1163
        %v1396 = vunpack.c.l.b16 %v1164
        %v1397 = vunpack.c.l.b16 %v1165
        %v1398 = vunpack.c.l.b16 %v1166
        %v1399 = vunpack.c.l.b16 %v1167
        %v1400 = vunpack.c.h.b16 %v1164
        %v1401 = vunpack.c.h.b16 %v1165
        %v1402 = vunpack.c.h.b16 %v1166
        %v1403 = vunpack.c.h.b16 %v1167
        %v1404 = vunpack.c.l.b16 %v1168
        %v1405 = vunpack.c.l.b16 %v1169
        %v1406 = vunpack.c.l.b16 %v1170
        %v1407 = vunpack.c.l.b16 %v1171
        %v1408 = vunpack.c.h.b16 %v1168
        %v1409 = vunpack.c.h.b16 %v1169
        %v1410 = vunpack.c.h.b16 %v1170
        %v1411 = vunpack.c.h.b16 %v1171
        %v1412 = vpack.c.b16 %v1253, %v1252
        %v1413 = vpack.c.b16 %v1255, %v1254
        %v1414 = vpack.c.b16 %v1257, %v1256
        %v1415 = vpack.c.b16 %v1259, %v1258
        %v1416 = vpack.c.b16 %v1261, %v1260
        %v1417 = vpack.c.b16 %v1263, %v1262
        %v1418 = vpack.c.b16 %v1265, %v1264
        %v1419 = vpack.c.b16 %v1267, %v1266
        %v1420 = vpack.c.b16 %v1269, %v1268
        %v1421 = vpack.c.b16 %v1271, %v1270
        %v1422 = vpack.c.b16 %v1273, %v1272
        %v1423 = vpack.c.b16 %v1275, %v1274
        %v1424 = vpack.c.b16 %v1277, %v1276
        %v1425 = vpack.c.b16 %v1279, %v1278
        %v1426 = vpack.c.b16 %v1281, %v1280
        %v1427 = vpack.c.b16 %v1283, %v1282
        %v1428 = vpack.c.b16 %v1285, %v1284
        %v1429 = vpack.c.b16 %v1287, %v1286
        %v1430 = vpack.c.b16 %v1289, %v1288
        %v1431 = vpack.c.b16 %v1291, %v1290
        %v1432 = vpack.c.b16 %v1293, %v1292
        %v1433 = vpack.c.b16 %v1295, %v1294
        %v1434 = vpack.c.b16 %v1297, %v1296
        %v1435 = vpack.c.b16 %v1299, %v1298
        %v1436 = vpack.c.b16 %v1301, %v1300
        %v1437 = vpack.c.b16 %v1303, %v1302
        %v1438 = vpack.c.b16 %v1305, %v1304
        %v1439 = vpack.c.b16 %v1307, %v1306
        %v1440 = vpack.c.b16 %v1309, %v1308
        %v1441 = vpack.c.b16 %v1311, %v1310
        %v1442 = vpack.c.b16 %v1313, %v1312
        %v1443 = vpack.c.b16 %v1315, %v1314
        %v1444 = vpack.c.b16 %v1317, %v1316
        %v1445 = vpack.c.b16 %v1319, %v1318
        %v1446 = vpack.c.b16 %v1321, %v1320
        %v1447 = vpack.c.b16 %v1323, %v1322
        %v1448 = vpack.c.b16 %v1325, %v1324
        %v1449 = vpack.c.b16 %v1327, %v1326
        %v1450 = vpack.c.b16 %v1329, %v1328
        %v1451 = vpack.c.b16 %v1331, %v1330
        %v1452 = vpack.c.b16 %v1333, %v1332
        %v1453 = vpack.c.b16 %v1335, %v1334
        %v1454 = vpack.c.b16 %v1337, %v1336
        %v1455 = vpack.c.b16 %v1339, %v1338
        %v1456 = vpack.c.b16 %v1341, %v1340
        %v1457 = vpack.c.b16 %v1343, %v1342
        %v1458 = vpack.c.b16 %v1345, %v1344
        %v1459 = vpack.c.b16 %v1347, %v1346
        %v1460 = vpack.c.b16 %v1349, %v1348
        %v1461 = vpack.c.b16 %v1351, %v1350
        %v1462 = vpack.c.b16 %v1353, %v1352
        %v1463 = vpack.c.b16 %v1355, %v1354
        %v1464 = vpack.c.b16 %v1357, %v1356
        %v1465 = vpack.c.b16 %v1359, %v1358
        %v1466 = vpack.c.b16 %v1361, %v1360
        %v1467 = vpack.c.b16 %v1363, %v1362
        %v1468 = vpack.c.b16 %v1365, %v1364
        %v1469 = vpack.c.b16 %v1367, %v1366
        %v1470 = vpack.c.b16 %v1369, %v1368
        %v1471 = vpack.c.b16 %v1371, %v1370
        %v1472 = vpack.c.b16 %v1373, %v1372
        %v1473 = vpack.c.b16 %v1375, %v1374
        %v1474 = vpack.c.b16 %v1377, %v1376
        %v1475 = vpack.c.b16 %v1379, %v1378
        %v1476 = vpack.c.b16 %v1381, %v1380
        %v1477 = vpack.c.b16 %v1383, %v1382
        %v1478 = vpack.c.b16 %v1385, %v1384
        %v1479 = vpack.c.b16 %v1387, %v1386
        %v1480 = vpack.c.b16 %v1389, %v1388
        %v1481 = vpack.c.b16 %v1391, %v1390
        %v1482 = vpack.c.b16 %v1393, %v1392
        %v1483 = vpack.c.b16 %v1395, %v1394
        %v1484 = vpack.c.b16 %v1397, %v1396
        %v1485 = vpack.c.b16 %v1399, %v1398
        %v1486 = vpack.c.b16 %v1401, %v1400
        %v1487 = vpack.c.b16 %v1403, %v1402
        %v1488 = vpack.c.b16 %v1405, %v1404
        %v1489 = vpack.c.b16 %v1407, %v1406
        %v1490 = vpack.c.b16 %v1409, %v1408
        %v1491 = vpack.c.b16 %v1411, %v1410
        %1572 = vst [vmem:[#allocation2] sm:$0xff] %v1412
        %1573 = vst [vmem:[#allocation2 + $0x8] sm:$0xff] %v1413
        %1574 = vst [vmem:[#allocation2 + $0x10] sm:$0xff] %v1414
        %1575 = vst [vmem:[#allocation2 + $0x18] sm:$0xff] %v1415
        %1576 = vst [vmem:[#allocation2 + $0x20] sm:$0xff] %v1416
        %1577 = vst [vmem:[#allocation2 + $0x28] sm:$0xff] %v1417
        %1578 = vst [vmem:[#allocation2 + $0x30] sm:$0xff] %v1418
        %1579 = vst [vmem:[#allocation2 + $0x38] sm:$0xff] %v1419
        %1580 = vst [vmem:[#allocation2 + $0x40] sm:$0xff] %v1420
        %1581 = vst [vmem:[#allocation2 + $0x48] sm:$0xff] %v1421
        %1582 = vst [vmem:[#allocation2 + $0x50] sm:$0xff] %v1422
        %1583 = vst [vmem:[#allocation2 + $0x58] sm:$0xff] %v1423
        %1584 = vst [vmem:[#allocation2 + $0x60] sm:$0xff] %v1424
        %1585 = vst [vmem:[#allocation2 + $0x68] sm:$0xff] %v1425
        %1586 = vst [vmem:[#allocation2 + $0x70] sm:$0xff] %v1426
        %1587 = vst [vmem:[#allocation2 + $0x78] sm:$0xff] %v1427
        %1588 = vst [vmem:[#allocation2 + $0x80] sm:$0xff] %v1428
        %1589 = vst [vmem:[#allocation2 + $0x88] sm:$0xff] %v1429
        %1590 = vst [vmem:[#allocation2 + $0x90] sm:$0xff] %v1430
        %1591 = vst [vmem:[#allocation2 + $0x98] sm:$0xff] %v1431
        %1592 = vst [vmem:[#allocation2 + $0xa0] sm:$0xff] %v1432
        %1593 = vst [vmem:[#allocation2 + $0xa8] sm:$0xff] %v1433
        %1594 = vst [vmem:[#allocation2 + $0xb0] sm:$0xff] %v1434
        %1595 = vst [vmem:[#allocation2 + $0xb8] sm:$0xff] %v1435
        %1596 = vst [vmem:[#allocation2 + $0xc0] sm:$0xff] %v1436
        %1597 = vst [vmem:[#allocation2 + $0xc8] sm:$0xff] %v1437
        %1598 = vst [vmem:[#allocation2 + $0xd0] sm:$0xff] %v1438
        %1599 = vst [vmem:[#allocation2 + $0xd8] sm:$0xff] %v1439
        %1600 = vst [vmem:[#allocation2 + $0xe0] sm:$0xff] %v1440
        %1601 = vst [vmem:[#allocation2 + $0xe8] sm:$0xff] %v1441
        %1602 = vst [vmem:[#allocation2 + $0xf0] sm:$0xff] %v1442
        %1603 = vst [vmem:[#allocation2 + $0xf8] sm:$0xff] %v1443
        %1604 = vst [vmem:[#allocation2 + $0x100] sm:$0xff] %v1444
        %1605 = vst [vmem:[#allocation2 + $0x108] sm:$0xff] %v1445
        %1606 = vst [vmem:[#allocation2 + $0x110] sm:$0xff] %v1446
        %1607 = vst [vmem:[#allocation2 + $0x118] sm:$0xff] %v1447
        %1608 = vst [vmem:[#allocation2 + $0x120] sm:$0xff] %v1448
        %1609 = vst [vmem:[#allocation2 + $0x128] sm:$0xff] %v1449
        %1610 = vst [vmem:[#allocation2 + $0x130] sm:$0xff] %v1450
        %1611 = vst [vmem:[#allocation2 + $0x138] sm:$0xff] %v1451
        %1612 = vst [vmem:[#allocation2 + $0x140] sm:$0xff] %v1452
        %1613 = vst [vmem:[#allocation2 + $0x148] sm:$0xff] %v1453
        %1614 = vst [vmem:[#allocation2 + $0x150] sm:$0xff] %v1454
        %1615 = vst [vmem:[#allocation2 + $0x158] sm:$0xff] %v1455
        %1616 = vst [vmem:[#allocation2 + $0x160] sm:$0xff] %v1456
        %1617 = vst [vmem:[#allocation2 + $0x168] sm:$0xff] %v1457
        %1618 = vst [vmem:[#allocation2 + $0x170] sm:$0xff] %v1458
        %1619 = vst [vmem:[#allocation2 + $0x178] sm:$0xff] %v1459
        %1620 = vst [vmem:[#allocation2 + $0x180] sm:$0xff] %v1460
        %1621 = vst [vmem:[#allocation2 + $0x188] sm:$0xff] %v1461
        %1622 = vst [vmem:[#allocation2 + $0x190] sm:$0xff] %v1462
        %1623 = vst [vmem:[#allocation2 + $0x198] sm:$0xff] %v1463
        %1624 = vst [vmem:[#allocation2 + $0x1a0] sm:$0xff] %v1464
        %1625 = vst [vmem:[#allocation2 + $0x1a8] sm:$0xff] %v1465
        %1626 = vst [vmem:[#allocation2 + $0x1b0] sm:$0xff] %v1466
        %1627 = vst [vmem:[#allocation2 + $0x1b8] sm:$0xff] %v1467
        %1628 = vst [vmem:[#allocation2 + $0x1c0] sm:$0xff] %v1468
        %1629 = vst [vmem:[#allocation2 + $0x1c8] sm:$0xff] %v1469
        %1630 = vst [vmem:[#allocation2 + $0x1d0] sm:$0xff] %v1470
        %1631 = vst [vmem:[#allocation2 + $0x1d8] sm:$0xff] %v1471
        %1632 = vst [vmem:[#allocation2 + $0x1e0] sm:$0xff] %v1472
        %1633 = vst [vmem:[#allocation2 + $0x1e8] sm:$0xff] %v1473
        %1634 = vst [vmem:[#allocation2 + $0x1f0] sm:$0xff] %v1474
        %1635 = vst [vmem:[#allocation2 + $0x1f8] sm:$0xff] %v1475
        %1636 = vst [vmem:[#allocation2 + $0x200] sm:$0xff] %v1476
        %1637 = vst [vmem:[#allocation2 + $0x208] sm:$0xff] %v1477
        %1638 = vst [vmem:[#allocation2 + $0x210] sm:$0xff] %v1478
        %1639 = vst [vmem:[#allocation2 + $0x218] sm:$0xff] %v1479
        %1640 = vst [vmem:[#allocation2 + $0x220] sm:$0xff] %v1480
        %1641 = vst [vmem:[#allocation2 + $0x228] sm:$0xff] %v1481
        %1642 = vst [vmem:[#allocation2 + $0x230] sm:$0xff] %v1482
        %1643 = vst [vmem:[#allocation2 + $0x238] sm:$0xff] %v1483
        %1644 = vst [vmem:[#allocation2 + $0x240] sm:$0xff] %v1484
        %1645 = vst [vmem:[#allocation2 + $0x248] sm:$0xff] %v1485
        %1646 = vst [vmem:[#allocation2 + $0x250] sm:$0xff] %v1486
        %1647 = vst [vmem:[#allocation2 + $0x258] sm:$0xff] %v1487
        %1648 = vst [vmem:[#allocation2 + $0x260] sm:$0xff] %v1488
        %1649 = vst [vmem:[#allocation2 + $0x268] sm:$0xff] %v1489
        %1650 = vst [vmem:[#allocation2 + $0x270] sm:$0xff] %v1490
        %1651 = vst [vmem:[#allocation2 + $0x278] sm:$0xff] %v1491
        %v1652 = vld [vmem:[#allocation2] sm:$0xff]
        %v1653 = vld [vmem:[#allocation2 + $0x8] sm:$0xff]
        %v1654 = vld [vmem:[#allocation2 + $0x20] sm:$0xff]
        %v1655 = vld [vmem:[#allocation2 + $0x28] sm:$0xff]
        %v1656 = vld [vmem:[#allocation2 + $0x40] sm:$0xff]
        %v1657 = vld [vmem:[#allocation2 + $0x48] sm:$0xff]
        %v1658 = vld [vmem:[#allocation2 + $0x60] sm:$0xff]
        %v1659 = vld [vmem:[#allocation2 + $0x68] sm:$0xff]
        %v1660 = vld [vmem:[#allocation2 + $0x80] sm:$0xff]
        %v1661 = vld [vmem:[#allocation2 + $0x88] sm:$0xff]
        %v1662 = vld [vmem:[#allocation2 + $0xa0] sm:$0xff]
        %v1663 = vld [vmem:[#allocation2 + $0xa8] sm:$0xff]
        %v1664 = vld [vmem:[#allocation2 + $0xc0] sm:$0xff]
        %v1665 = vld [vmem:[#allocation2 + $0xc8] sm:$0xff]
        %v1666 = vld [vmem:[#allocation2 + $0xe0] sm:$0xff]
        %v1667 = vld [vmem:[#allocation2 + $0xe8] sm:$0xff]
        %v1668 = vld [vmem:[#allocation2 + $0x140] sm:$0xff]
        %v1669 = vld [vmem:[#allocation2 + $0x148] sm:$0xff]
        %v1670 = vld [vmem:[#allocation2 + $0x160] sm:$0xff]
        %v1671 = vld [vmem:[#allocation2 + $0x168] sm:$0xff]
        %v1672 = vld [vmem:[#allocation2 + $0x180] sm:$0xff]
        %v1673 = vld [vmem:[#allocation2 + $0x188] sm:$0xff]
        %v1674 = vld [vmem:[#allocation2 + $0x1a0] sm:$0xff]
        %v1675 = vld [vmem:[#allocation2 + $0x1a8] sm:$0xff]
        %v1676 = vld [vmem:[#allocation2 + $0x1c0] sm:$0xff]
        %v1677 = vld [vmem:[#allocation2 + $0x1c8] sm:$0xff]
        %v1678 = vld [vmem:[#allocation2 + $0x1e0] sm:$0xff]
        %v1679 = vld [vmem:[#allocation2 + $0x1e8] sm:$0xff]
        %v1680 = vld [vmem:[#allocation2 + $0x200] sm:$0xff]
        %v1681 = vld [vmem:[#allocation2 + $0x208] sm:$0xff]
        %v1682 = vld [vmem:[#allocation2 + $0x220] sm:$0xff]
        %v1683 = vld [vmem:[#allocation2 + $0x228] sm:$0xff]
        %v1684 = vld [vmem:[%s227] sm:$0xff]
        %v1685 = vld [vmem:[%s227 + $0x8] sm:$0xff]
        %v1686 = vld [vmem:[%s227 + $0x10] sm:$0xff]
        %v1687 = vld [vmem:[%s227 + $0x18] sm:$0xff]
        %v1688 = vld [vmem:[%s227 + $0x20] sm:$0xff]
        %v1689 = vld [vmem:[%s227 + $0x28] sm:$0xff]
        %v1690 = vld [vmem:[%s227 + $0x30] sm:$0xff]
        %v1691 = vld [vmem:[%s227 + $0x38] sm:$0xff]
        %v1692 = vld [vmem:[%s227 + $0x40] sm:$0xff]
        %v1693 = vld [vmem:[%s227 + $0x48] sm:$0xff]
        %v1694 = vld [vmem:[%s227 + $0x50] sm:$0xff]
        %v1695 = vld [vmem:[%s227 + $0x58] sm:$0xff]
        %v1696 = vld [vmem:[%s227 + $0x60] sm:$0xff]
        %v1697 = vld [vmem:[%s227 + $0x68] sm:$0xff]
        %v1698 = vld [vmem:[%s227 + $0x70] sm:$0xff]
        %v1699 = vld [vmem:[%s227 + $0x78] sm:$0xff]
        %v1700 = vld [vmem:[%s227 + $0x80] sm:$0xff]
        %v1701 = vld [vmem:[%s227 + $0x88] sm:$0xff]
        %v1702 = vld [vmem:[%s227 + $0x90] sm:$0xff]
        %v1703 = vld [vmem:[%s227 + $0x98] sm:$0xff]
        %v1704 = vld [vmem:[%s227 + $0xa0] sm:$0xff]
        %v1705 = vld [vmem:[%s227 + $0xa8] sm:$0xff]
        %v1706 = vld [vmem:[%s227 + $0xb0] sm:$0xff]
        %v1707 = vld [vmem:[%s227 + $0xb8] sm:$0xff]
        %v1708 = vld [vmem:[%s227 + $0xc0] sm:$0xff]
        %v1709 = vld [vmem:[%s227 + $0xc8] sm:$0xff]
        %v1710 = vld [vmem:[%s227 + $0xd0] sm:$0xff]
        %v1711 = vld [vmem:[%s227 + $0xd8] sm:$0xff]
        %v1712 = vld [vmem:[%s227 + $0xe0] sm:$0xff]
        %v1713 = vld [vmem:[%s227 + $0xe8] sm:$0xff]
        %v1714 = vld [vmem:[%s227 + $0xf0] sm:$0xff]
        %v1715 = vld [vmem:[%s227 + $0xf8] sm:$0xff]
        %v1716 = vld [vmem:[%s227 + $0x100] sm:$0xff]
        %v1717 = vld [vmem:[%s227 + $0x108] sm:$0xff]
        %v1718 = vld [vmem:[%s227 + $0x110] sm:$0xff]
        %v1719 = vld [vmem:[%s227 + $0x118] sm:$0xff]
        %v1720 = vld [vmem:[%s227 + $0x120] sm:$0xff]
        %v1721 = vld [vmem:[%s227 + $0x128] sm:$0xff]
        %v1722 = vld [vmem:[%s227 + $0x130] sm:$0xff]
        %v1723 = vld [vmem:[%s227 + $0x138] sm:$0xff]
        %v1724 = vld [vmem:[%s227 + $0x140] sm:$0xff]
        %v1725 = vld [vmem:[%s227 + $0x148] sm:$0xff]
        %v1726 = vld [vmem:[%s227 + $0x150] sm:$0xff]
        %v1727 = vld [vmem:[%s227 + $0x158] sm:$0xff]
        %v1728 = vld [vmem:[%s227 + $0x160] sm:$0xff]
        %v1729 = vld [vmem:[%s227 + $0x168] sm:$0xff]
        %v1730 = vld [vmem:[%s227 + $0x170] sm:$0xff]
        %v1731 = vld [vmem:[%s227 + $0x178] sm:$0xff]
        %v1732 = vld [vmem:[%s227 + $0x180] sm:$0xff]
        %v1733 = vld [vmem:[%s227 + $0x188] sm:$0xff]
        %v1734 = vld [vmem:[%s227 + $0x190] sm:$0xff]
        %v1735 = vld [vmem:[%s227 + $0x198] sm:$0xff]
        %v1736 = vld [vmem:[%s227 + $0x1a0] sm:$0xff]
        %v1737 = vld [vmem:[%s227 + $0x1a8] sm:$0xff]
        %v1738 = vld [vmem:[%s227 + $0x1b0] sm:$0xff]
        %v1739 = vld [vmem:[%s227 + $0x1b8] sm:$0xff]
        %v1740 = vld [vmem:[%s227 + $0x1c0] sm:$0xff]
        %v1741 = vld [vmem:[%s227 + $0x1c8] sm:$0xff]
        %v1742 = vld [vmem:[%s227 + $0x1d0] sm:$0xff]
        %v1743 = vld [vmem:[%s227 + $0x1d8] sm:$0xff]
        %v1744 = vld [vmem:[%s227 + $0x1e0] sm:$0xff]
        %v1745 = vld [vmem:[%s227 + $0x1e8] sm:$0xff]
        %v1746 = vld [vmem:[%s227 + $0x1f0] sm:$0xff]
        %v1747 = vld [vmem:[%s227 + $0x1f8] sm:$0xff]
        %v1780 = vunpack.c.l.b16 %v1652
        %v1781 = vunpack.c.h.b16 %v1652
        %v1782 = vunpack.c.l.b16 %v1653
        %v1783 = vunpack.c.h.b16 %v1653
        %v1784 = vunpack.c.l.b16 %v1654
        %v1785 = vunpack.c.h.b16 %v1654
        %v1786 = vunpack.c.l.b16 %v1655
        %v1787 = vunpack.c.h.b16 %v1655
        %v1788 = vunpack.c.l.b16 %v1656
        %v1789 = vunpack.c.h.b16 %v1656
        %v1790 = vunpack.c.l.b16 %v1657
        %v1791 = vunpack.c.h.b16 %v1657
        %v1792 = vunpack.c.l.b16 %v1658
        %v1793 = vunpack.c.h.b16 %v1658
        %v1794 = vunpack.c.l.b16 %v1659
        %v1795 = vunpack.c.h.b16 %v1659
        %v1796 = vunpack.c.l.b16 %v1660
        %v1797 = vunpack.c.h.b16 %v1660
        %v1798 = vunpack.c.l.b16 %v1661
        %v1799 = vunpack.c.h.b16 %v1661
        %v1800 = vunpack.c.l.b16 %v1662
        %v1801 = vunpack.c.h.b16 %v1662
        %v1802 = vunpack.c.l.b16 %v1663
        %v1803 = vunpack.c.h.b16 %v1663
        %v1804 = vunpack.c.l.b16 %v1664
        %v1805 = vunpack.c.h.b16 %v1664
        %v1806 = vunpack.c.l.b16 %v1665
        %v1807 = vunpack.c.h.b16 %v1665
        %v1808 = vunpack.c.l.b16 %v1666
        %v1809 = vunpack.c.h.b16 %v1666
        %v1810 = vunpack.c.l.b16 %v1667
        %v1811 = vunpack.c.h.b16 %v1667
        %v1812 = vunpack.c.l.b16 %v1668
        %v1813 = vunpack.c.h.b16 %v1668
        %v1814 = vunpack.c.l.b16 %v1669
        %v1815 = vunpack.c.h.b16 %v1669
        %v1816 = vunpack.c.l.b16 %v1670
        %v1817 = vunpack.c.h.b16 %v1670
        %v1818 = vunpack.c.l.b16 %v1671
        %v1819 = vunpack.c.h.b16 %v1671
        %v1820 = vunpack.c.l.b16 %v1672
        %v1821 = vunpack.c.h.b16 %v1672
        %v1822 = vunpack.c.l.b16 %v1673
        %v1823 = vunpack.c.h.b16 %v1673
        %v1824 = vunpack.c.l.b16 %v1674
        %v1825 = vunpack.c.h.b16 %v1674
        %v1826 = vunpack.c.l.b16 %v1675
        %v1827 = vunpack.c.h.b16 %v1675
        %v1828 = vunpack.c.l.b16 %v1676
        %v1829 = vunpack.c.h.b16 %v1676
        %v1830 = vunpack.c.l.b16 %v1677
        %v1831 = vunpack.c.h.b16 %v1677
        %v1832 = vunpack.c.l.b16 %v1678
        %v1833 = vunpack.c.h.b16 %v1678
        %v1834 = vunpack.c.l.b16 %v1679
        %v1835 = vunpack.c.h.b16 %v1679
        %v1836 = vunpack.c.l.b16 %v1680
        %v1837 = vunpack.c.h.b16 %v1680
        %v1838 = vunpack.c.l.b16 %v1681
        %v1839 = vunpack.c.h.b16 %v1681
        %v1840 = vunpack.c.l.b16 %v1682
        %v1841 = vunpack.c.h.b16 %v1682
        %v1842 = vunpack.c.l.b16 %v1683
        %v1843 = vunpack.c.h.b16 %v1683
        %v1844 = vpack.c.b16 %v1784, %v1780
        %v1845 = vpack.c.b16 %v1785, %v1781
        %v1846 = vpack.c.b16 %v1786, %v1782
        %v1847 = vpack.c.b16 %v1787, %v1783
        %v1848 = vpack.c.b16 %v1792, %v1788
        %v1849 = vpack.c.b16 %v1793, %v1789
        %v1850 = vpack.c.b16 %v1794, %v1790
        %v1851 = vpack.c.b16 %v1795, %v1791
        %v1852 = vpack.c.b16 %v1800, %v1796
        %v1853 = vpack.c.b16 %v1801, %v1797
        %v1854 = vpack.c.b16 %v1802, %v1798
        %v1855 = vpack.c.b16 %v1803, %v1799
        %v1856 = vpack.c.b16 %v1808, %v1804
        %v1857 = vpack.c.b16 %v1809, %v1805
        %v1858 = vpack.c.b16 %v1810, %v1806
        %v1859 = vpack.c.b16 %v1811, %v1807
        %v1860 = vpack.c.b16 %v1816, %v1812
        %v1861 = vpack.c.b16 %v1817, %v1813
        %v1862 = vpack.c.b16 %v1818, %v1814
        %v1863 = vpack.c.b16 %v1819, %v1815
        %v1864 = vpack.c.b16 %v1824, %v1820
        %v1865 = vpack.c.b16 %v1825, %v1821
        %v1866 = vpack.c.b16 %v1826, %v1822
        %v1867 = vpack.c.b16 %v1827, %v1823
        %v1868 = vpack.c.b16 %v1832, %v1828
        %v1869 = vpack.c.b16 %v1833, %v1829
        %v1870 = vpack.c.b16 %v1834, %v1830
        %v1871 = vpack.c.b16 %v1835, %v1831
        %v1872 = vpack.c.b16 %v1840, %v1836
        %v1873 = vpack.c.b16 %v1841, %v1837
        %v1874 = vpack.c.b16 %v1842, %v1838
        %v1875 = vpack.c.b16 %v1843, %v1839
        %v1972 = vunpack.c.l.b16 %v1684
        %v1973 = vunpack.c.h.b16 %v1684
        %v1974 = vunpack.c.l.b16 %v1685
        %v1975 = vunpack.c.h.b16 %v1685
        %v1976 = vunpack.c.l.b16 %v1686
        %v1977 = vunpack.c.h.b16 %v1686
        %v1978 = vunpack.c.l.b16 %v1687
        %v1979 = vunpack.c.h.b16 %v1687
        %v1980 = vunpack.c.l.b16 %v1688
        %v1981 = vunpack.c.h.b16 %v1688
        %v1982 = vunpack.c.l.b16 %v1689
        %v1983 = vunpack.c.h.b16 %v1689
        %v1984 = vunpack.c.l.b16 %v1690
        %v1985 = vunpack.c.h.b16 %v1690
        %v1986 = vunpack.c.l.b16 %v1691
        %v1987 = vunpack.c.h.b16 %v1691
        %v1988 = vunpack.c.l.b16 %v1692
        %v1989 = vunpack.c.h.b16 %v1692
        %v1990 = vunpack.c.l.b16 %v1693
        %v1991 = vunpack.c.h.b16 %v1693
        %v1992 = vunpack.c.l.b16 %v1694
        %v1993 = vunpack.c.h.b16 %v1694
        %v1994 = vunpack.c.l.b16 %v1695
        %v1995 = vunpack.c.h.b16 %v1695
        %v1996 = vunpack.c.l.b16 %v1696
        %v1997 = vunpack.c.h.b16 %v1696
        %v1998 = vunpack.c.l.b16 %v1697
        %v1999 = vunpack.c.h.b16 %v1697
        %v2000 = vunpack.c.l.b16 %v1698
        %v2001 = vunpack.c.h.b16 %v1698
        %v2002 = vunpack.c.l.b16 %v1699
        %v2003 = vunpack.c.h.b16 %v1699
        %v2004 = vunpack.c.l.b16 %v1700
        %v2005 = vunpack.c.h.b16 %v1700
        %v2006 = vunpack.c.l.b16 %v1701
        %v2007 = vunpack.c.h.b16 %v1701
        %v2008 = vunpack.c.l.b16 %v1702
        %v2009 = vunpack.c.h.b16 %v1702
        %v2010 = vunpack.c.l.b16 %v1703
        %v2011 = vunpack.c.h.b16 %v1703
        %v2012 = vunpack.c.l.b16 %v1704
        %v2013 = vunpack.c.h.b16 %v1704
        %v2014 = vunpack.c.l.b16 %v1705
        %v2015 = vunpack.c.h.b16 %v1705
        %v2016 = vunpack.c.l.b16 %v1706
        %v2017 = vunpack.c.h.b16 %v1706
        %v2018 = vunpack.c.l.b16 %v1707
        %v2019 = vunpack.c.h.b16 %v1707
        %v2020 = vunpack.c.l.b16 %v1708
        %v2021 = vunpack.c.h.b16 %v1708
        %v2022 = vunpack.c.l.b16 %v1709
        %v2023 = vunpack.c.h.b16 %v1709
        %v2024 = vunpack.c.l.b16 %v1710
        %v2025 = vunpack.c.h.b16 %v1710
        %v2026 = vunpack.c.l.b16 %v1711
        %v2027 = vunpack.c.h.b16 %v1711
        %v2028 = vunpack.c.l.b16 %v1712
        %v2029 = vunpack.c.h.b16 %v1712
        %v2030 = vunpack.c.l.b16 %v1713
        %v2031 = vunpack.c.h.b16 %v1713
        %v2032 = vunpack.c.l.b16 %v1714
        %v2033 = vunpack.c.h.b16 %v1714
        %v2034 = vunpack.c.l.b16 %v1715
        %v2035 = vunpack.c.h.b16 %v1715
        %v2036 = vunpack.c.l.b16 %v1716
        %v2037 = vunpack.c.h.b16 %v1716
        %v2038 = vunpack.c.l.b16 %v1717
        %v2039 = vunpack.c.h.b16 %v1717
        %v2040 = vunpack.c.l.b16 %v1718
        %v2041 = vunpack.c.h.b16 %v1718
        %v2042 = vunpack.c.l.b16 %v1719
        %v2043 = vunpack.c.h.b16 %v1719
        %v2044 = vunpack.c.l.b16 %v1720
        %v2045 = vunpack.c.h.b16 %v1720
        %v2046 = vunpack.c.l.b16 %v1721
        %v2047 = vunpack.c.h.b16 %v1721
        %v2048 = vunpack.c.l.b16 %v1722
        %v2049 = vunpack.c.h.b16 %v1722
        %v2050 = vunpack.c.l.b16 %v1723
        %v2051 = vunpack.c.h.b16 %v1723
        %v2052 = vunpack.c.l.b16 %v1724
        %v2053 = vunpack.c.h.b16 %v1724
        %v2054 = vunpack.c.l.b16 %v1725
        %v2055 = vunpack.c.h.b16 %v1725
        %v2056 = vunpack.c.l.b16 %v1726
        %v2057 = vunpack.c.h.b16 %v1726
        %v2058 = vunpack.c.l.b16 %v1727
        %v2059 = vunpack.c.h.b16 %v1727
        %v2060 = vunpack.c.l.b16 %v1728
        %v2061 = vunpack.c.h.b16 %v1728
        %v2062 = vunpack.c.l.b16 %v1729
        %v2063 = vunpack.c.h.b16 %v1729
        %v2064 = vunpack.c.l.b16 %v1730
        %v2065 = vunpack.c.h.b16 %v1730
        %v2066 = vunpack.c.l.b16 %v1731
        %v2067 = vunpack.c.h.b16 %v1731
        %v2068 = vunpack.c.l.b16 %v1732
        %v2069 = vunpack.c.h.b16 %v1732
        %v2070 = vunpack.c.l.b16 %v1733
        %v2071 = vunpack.c.h.b16 %v1733
        %v2072 = vunpack.c.l.b16 %v1734
        %v2073 = vunpack.c.h.b16 %v1734
        %v2074 = vunpack.c.l.b16 %v1735
        %v2075 = vunpack.c.h.b16 %v1735
        %v2076 = vunpack.c.l.b16 %v1736
        %v2077 = vunpack.c.h.b16 %v1736
        %v2078 = vunpack.c.l.b16 %v1737
        %v2079 = vunpack.c.h.b16 %v1737
        %v2080 = vunpack.c.l.b16 %v1738
        %v2081 = vunpack.c.h.b16 %v1738
        %v2082 = vunpack.c.l.b16 %v1739
        %v2083 = vunpack.c.h.b16 %v1739
        %v2084 = vunpack.c.l.b16 %v1740
        %v2085 = vunpack.c.h.b16 %v1740
        %v2086 = vunpack.c.l.b16 %v1741
        %v2087 = vunpack.c.h.b16 %v1741
        %v2088 = vunpack.c.l.b16 %v1742
        %v2089 = vunpack.c.h.b16 %v1742
        %v2090 = vunpack.c.l.b16 %v1743
        %v2091 = vunpack.c.h.b16 %v1743
        %v2092 = vunpack.c.l.b16 %v1744
        %v2093 = vunpack.c.h.b16 %v1744
        %v2094 = vunpack.c.l.b16 %v1745
        %v2095 = vunpack.c.h.b16 %v1745
        %v2096 = vunpack.c.l.b16 %v1746
        %v2097 = vunpack.c.h.b16 %v1746
        %v2098 = vunpack.c.l.b16 %v1747
        %v2099 = vunpack.c.h.b16 %v1747
        %v2100 = vpack.c.b16 %v1974, %v1972
        %v2101 = vpack.c.b16 %v1975, %v1973
        %v2102 = vpack.c.b16 %v1978, %v1976
        %v2103 = vpack.c.b16 %v1979, %v1977
        %v2104 = vpack.c.b16 %v1982, %v1980
        %v2105 = vpack.c.b16 %v1983, %v1981
        %v2106 = vpack.c.b16 %v1986, %v1984
        %v2107 = vpack.c.b16 %v1987, %v1985
        %v2108 = vpack.c.b16 %v1990, %v1988
        %v2109 = vpack.c.b16 %v1991, %v1989
        %v2110 = vpack.c.b16 %v1994, %v1992
        %v2111 = vpack.c.b16 %v1995, %v1993
        %v2112 = vpack.c.b16 %v1998, %v1996
        %v2113 = vpack.c.b16 %v1999, %v1997
        %v2114 = vpack.c.b16 %v2002, %v2000
        %v2115 = vpack.c.b16 %v2003, %v2001
        %v2116 = vpack.c.b16 %v2006, %v2004
        %v2117 = vpack.c.b16 %v2007, %v2005
        %v2118 = vpack.c.b16 %v2010, %v2008
        %v2119 = vpack.c.b16 %v2011, %v2009
        %v2120 = vpack.c.b16 %v2014, %v2012
        %v2121 = vpack.c.b16 %v2015, %v2013
        %v2122 = vpack.c.b16 %v2018, %v2016
        %v2123 = vpack.c.b16 %v2019, %v2017
        %v2124 = vpack.c.b16 %v2022, %v2020
        %v2125 = vpack.c.b16 %v2023, %v2021
        %v2126 = vpack.c.b16 %v2026, %v2024
        %v2127 = vpack.c.b16 %v2027, %v2025
        %v2128 = vpack.c.b16 %v2030, %v2028
        %v2129 = vpack.c.b16 %v2031, %v2029
        %v2130 = vpack.c.b16 %v2034, %v2032
        %v2131 = vpack.c.b16 %v2035, %v2033
        %v2132 = vpack.c.b16 %v2038, %v2036
        %v2133 = vpack.c.b16 %v2039, %v2037
        %v2134 = vpack.c.b16 %v2042, %v2040
        %v2135 = vpack.c.b16 %v2043, %v2041
        %v2136 = vpack.c.b16 %v2046, %v2044
        %v2137 = vpack.c.b16 %v2047, %v2045
        %v2138 = vpack.c.b16 %v2050, %v2048
        %v2139 = vpack.c.b16 %v2051, %v2049
        %v2140 = vpack.c.b16 %v2054, %v2052
        %v2141 = vpack.c.b16 %v2055, %v2053
        %v2142 = vpack.c.b16 %v2058, %v2056
        %v2143 = vpack.c.b16 %v2059, %v2057
        %v2144 = vpack.c.b16 %v2062, %v2060
        %v2145 = vpack.c.b16 %v2063, %v2061
        %v2146 = vpack.c.b16 %v2066, %v2064
        %v2147 = vpack.c.b16 %v2067, %v2065
        %v2148 = vpack.c.b16 %v2070, %v2068
        %v2149 = vpack.c.b16 %v2071, %v2069
        %v2150 = vpack.c.b16 %v2074, %v2072
        %v2151 = vpack.c.b16 %v2075, %v2073
        %v2152 = vpack.c.b16 %v2078, %v2076
        %v2153 = vpack.c.b16 %v2079, %v2077
        %v2154 = vpack.c.b16 %v2082, %v2080
        %v2155 = vpack.c.b16 %v2083, %v2081
        %v2156 = vpack.c.b16 %v2086, %v2084
        %v2157 = vpack.c.b16 %v2087, %v2085
        %v2158 = vpack.c.b16 %v2090, %v2088
        %v2159 = vpack.c.b16 %v2091, %v2089
        %v2160 = vpack.c.b16 %v2094, %v2092
        %v2161 = vpack.c.b16 %v2095, %v2093
        %v2162 = vpack.c.b16 %v2098, %v2096
        %v2163 = vpack.c.b16 %v2099, %v2097
        %2228 = vmatprep.subr.bf16.mxu0 %v2115
        %2229 = vmatpush1.bf16.msra.mxu0 %v2114
        %2230 = vmatprep.subr.bf16.mxu0 %v2113
        %2231 = vmatpush1.bf16.msra.mxu0 %v2112
        %2232 = vmatprep.subr.bf16.mxu0 %v2111
        %2233 = vmatpush1.bf16.msra.mxu0 %v2110
        %2234 = vmatprep.subr.bf16.mxu0 %v2109
        %2235 = vmatpush1.bf16.msra.mxu0 %v2108
        %2236 = vmatprep.subr.bf16.mxu0 %v2107
        %2237 = vmatpush1.bf16.msra.mxu0 %v2106
        %2238 = vmatprep.subr.bf16.mxu0 %v2105
        %2239 = vmatpush1.bf16.msra.mxu0 %v2104
        %2240 = vmatprep.subr.bf16.mxu0 %v2103
        %2241 = vmatpush1.bf16.msra.mxu0 %v2102
        %2242 = vmatprep.subr.bf16.mxu0 %v2101
        %2243 = vmatpush1.bf16.msra.mxu0 %v2100
        %2244 = vmatprep.subr.bf16.mxu0 %v2131
        %2245 = vmatpush2.bf16.msra.mxu0 %v2130
        %2246 = vmatprep.subr.bf16.mxu0 %v2129
        %2247 = vmatpush2.bf16.msra.mxu0 %v2128
        %2248 = vmatprep.subr.bf16.mxu0 %v2127
        %2249 = vmatpush2.bf16.msra.mxu0 %v2126
        %2250 = vmatprep.subr.bf16.mxu0 %v2125
        %2251 = vmatpush2.bf16.msra.mxu0 %v2124
        %2252 = vmatprep.subr.bf16.mxu0 %v2123
        %2253 = vmatpush2.bf16.msra.mxu0 %v2122
        %2254 = vmatprep.subr.bf16.mxu0 %v2121
        %2255 = vmatpush2.bf16.msra.mxu0 %v2120
        %2256 = vmatprep.subr.bf16.mxu0 %v2119
        %2257 = vmatpush2.bf16.msra.mxu0 %v2118
        %2258 = vmatprep.subr.bf16.mxu0 %v2117
        %2259 = vmatpush2.bf16.msra.mxu0 %v2116
        %2260 = vmatprep.mubr.bf16.mxu0 %v1845
        %2261 = vmatmul.mubr.bf16.gmra.mxu0 %v1844
        %v2262 = vpop.f32.mrf.mxu0
        %v2263 = vadd.f32 0.0, %v2262
        %v2264 = vpop.f32.mrf.mxu0
        %v2265 = vadd.f32 0.0, %v2264
        %v2266 = vpop.f32.mrf.mxu0
        %v2267 = vadd.f32 0.0, %v2266
        %v2268 = vpop.f32.mrf.mxu0
        %v2269 = vadd.f32 0.0, %v2268
        %2270 = vmatprep.mubr.bf16.mxu0 %v1849
        %2271 = vmatmul.mubr.bf16.gmra.mxu0 %v1848
        %v2272 = vpop.f32.mrf.mxu0
        %v2273 = vadd.f32 0.0, %v2272
        %v2274 = vpop.f32.mrf.mxu0
        %v2275 = vadd.f32 0.0, %v2274
        %v2276 = vpop.f32.mrf.mxu0
        %v2277 = vadd.f32 0.0, %v2276
        %v2278 = vpop.f32.mrf.mxu0
        %v2279 = vadd.f32 0.0, %v2278
        %2280 = vmatprep.mubr.bf16.mxu0 %v1853
        %2281 = vmatmul.mubr.bf16.gmra.mxu0 %v1852
        %v2282 = vpop.f32.mrf.mxu0
        %v2283 = vadd.f32 0.0, %v2282
        %v2284 = vpop.f32.mrf.mxu0
        %v2285 = vadd.f32 0.0, %v2284
        %v2286 = vpop.f32.mrf.mxu0
        %v2287 = vadd.f32 0.0, %v2286
        %v2288 = vpop.f32.mrf.mxu0
        %v2289 = vadd.f32 0.0, %v2288
        %2290 = vmatprep.mubr.bf16.mxu0 %v1857
        %2291 = vmatmul.mubr.bf16.gmra.mxu0 %v1856
        %v2292 = vpop.f32.mrf.mxu0
        %v2293 = vadd.f32 0.0, %v2292
        %v2294 = vpop.f32.mrf.mxu0
        %v2295 = vadd.f32 0.0, %v2294
        %v2296 = vpop.f32.mrf.mxu0
        %v2297 = vadd.f32 0.0, %v2296
        %v2298 = vpop.f32.mrf.mxu0
        %v2299 = vadd.f32 0.0, %v2298
        %2300 = vmatprep.mubr.bf16.mxu0 %v1861
        %2301 = vmatmul.mubr.bf16.gmra.mxu0 %v1860
        %v2302 = vpop.f32.mrf.mxu0
        %v2303 = vadd.f32 0.0, %v2302
        %v2304 = vpop.f32.mrf.mxu0
        %v2305 = vadd.f32 0.0, %v2304
        %v2306 = vpop.f32.mrf.mxu0
        %v2307 = vadd.f32 0.0, %v2306
        %v2308 = vpop.f32.mrf.mxu0
        %v2309 = vadd.f32 0.0, %v2308
        %2310 = vmatprep.mubr.bf16.mxu0 %v1865
        %2311 = vmatmul.mubr.bf16.gmra.mxu0 %v1864
        %v2312 = vpop.f32.mrf.mxu0
        %v2313 = vadd.f32 0.0, %v2312
        %v2314 = vpop.f32.mrf.mxu0
        %v2315 = vadd.f32 0.0, %v2314
        %v2316 = vpop.f32.mrf.mxu0
        %v2317 = vadd.f32 0.0, %v2316
        %v2318 = vpop.f32.mrf.mxu0
        %v2319 = vadd.f32 0.0, %v2318
        %2320 = vmatprep.mubr.bf16.mxu0 %v1869
        %2321 = vmatmul.mubr.bf16.gmra.mxu0 %v1868
        %v2322 = vpop.f32.mrf.mxu0
        %v2323 = vadd.f32 0.0, %v2322
        %v2324 = vpop.f32.mrf.mxu0
        %v2325 = vadd.f32 0.0, %v2324
        %v2326 = vpop.f32.mrf.mxu0
        %v2327 = vadd.f32 0.0, %v2326
        %v2328 = vpop.f32.mrf.mxu0
        %v2329 = vadd.f32 0.0, %v2328
        %2330 = vmatprep.mubr.bf16.mxu0 %v1873
        %2331 = vmatmul.mubr.bf16.gmra.mxu0 %v1872
        %v2332 = vpop.f32.mrf.mxu0
        %v2333 = vadd.f32 0.0, %v2332
        %v2334 = vpop.f32.mrf.mxu0
        %v2335 = vadd.f32 0.0, %v2334
        %v2336 = vpop.f32.mrf.mxu0
        %v2337 = vadd.f32 0.0, %v2336
        %v2338 = vpop.f32.mrf.mxu0
        %v2339 = vadd.f32 0.0, %v2338
        %2340 = vdwg.mxu0
        %2341 = vmatprep.subr.bf16.mxu0 %v2147
        %2342 = vmatpush1.bf16.msra.mxu0 %v2146
        %2343 = vmatprep.subr.bf16.mxu0 %v2145
        %2344 = vmatpush1.bf16.msra.mxu0 %v2144
        %2345 = vmatprep.subr.bf16.mxu0 %v2143
        %2346 = vmatpush1.bf16.msra.mxu0 %v2142
        %2347 = vmatprep.subr.bf16.mxu0 %v2141
        %2348 = vmatpush1.bf16.msra.mxu0 %v2140
        %2349 = vmatprep.subr.bf16.mxu0 %v2139
        %2350 = vmatpush1.bf16.msra.mxu0 %v2138
        %2351 = vmatprep.subr.bf16.mxu0 %v2137
        %2352 = vmatpush1.bf16.msra.mxu0 %v2136
        %2353 = vmatprep.subr.bf16.mxu0 %v2135
        %2354 = vmatpush1.bf16.msra.mxu0 %v2134
        %2355 = vmatprep.subr.bf16.mxu0 %v2133
        %2356 = vmatpush1.bf16.msra.mxu0 %v2132
        %2357 = vmatprep.subr.bf16.mxu0 %v2163
        %2358 = vmatpush2.bf16.msra.mxu0 %v2162
        %2359 = vmatprep.subr.bf16.mxu0 %v2161
        %2360 = vmatpush2.bf16.msra.mxu0 %v2160
        %2361 = vmatprep.subr.bf16.mxu0 %v2159
        %2362 = vmatpush2.bf16.msra.mxu0 %v2158
        %2363 = vmatprep.subr.bf16.mxu0 %v2157
        %2364 = vmatpush2.bf16.msra.mxu0 %v2156
        %2365 = vmatprep.subr.bf16.mxu0 %v2155
        %2366 = vmatpush2.bf16.msra.mxu0 %v2154
        %2367 = vmatprep.subr.bf16.mxu0 %v2153
        %2368 = vmatpush2.bf16.msra.mxu0 %v2152
        %2369 = vmatprep.subr.bf16.mxu0 %v2151
        %2370 = vmatpush2.bf16.msra.mxu0 %v2150
        %2371 = vmatprep.subr.bf16.mxu0 %v2149
        %2372 = vmatpush2.bf16.msra.mxu0 %v2148
        %2373 = vmatprep.mubr.bf16.mxu0 %v1847
        %2374 = vmatmul.mubr.bf16.gmra.mxu0 %v1846
        %v2375 = vpop.f32.mrf.mxu0
        %v2376 = vadd.f32 %v2263, %v2375
        %v2377 = vpop.f32.mrf.mxu0
        %v2378 = vadd.f32 %v2265, %v2377
        %v2379 = vpop.f32.mrf.mxu0
        %v2380 = vadd.f32 %v2267, %v2379
        %v2381 = vpop.f32.mrf.mxu0
        %v2382 = vadd.f32 %v2269, %v2381
        %2383 = vmatprep.mubr.bf16.mxu0 %v1851
        %2384 = vmatmul.mubr.bf16.gmra.mxu0 %v1850
        %v2385 = vpop.f32.mrf.mxu0
        %v2386 = vadd.f32 %v2273, %v2385
        %v2387 = vpop.f32.mrf.mxu0
        %v2388 = vadd.f32 %v2275, %v2387
        %v2389 = vpop.f32.mrf.mxu0
        %v2390 = vadd.f32 %v2277, %v2389
        %v2391 = vpop.f32.mrf.mxu0
        %v2392 = vadd.f32 %v2279, %v2391
        %2393 = vmatprep.mubr.bf16.mxu0 %v1855
        %2394 = vmatmul.mubr.bf16.gmra.mxu0 %v1854
        %v2395 = vpop.f32.mrf.mxu0
        %v2396 = vadd.f32 %v2283, %v2395
        %v2397 = vpop.f32.mrf.mxu0
        %v2398 = vadd.f32 %v2285, %v2397
        %v2399 = vpop.f32.mrf.mxu0
        %v2400 = vadd.f32 %v2287, %v2399
        %v2401 = vpop.f32.mrf.mxu0
        %v2402 = vadd.f32 %v2289, %v2401
        %2403 = vmatprep.mubr.bf16.mxu0 %v1859
        %2404 = vmatmul.mubr.bf16.gmra.mxu0 %v1858
        %v2405 = vpop.f32.mrf.mxu0
        %v2406 = vadd.f32 %v2293, %v2405
        %v2407 = vpop.f32.mrf.mxu0
        %v2408 = vadd.f32 %v2295, %v2407
        %v2409 = vpop.f32.mrf.mxu0
        %v2410 = vadd.f32 %v2297, %v2409
        %v2411 = vpop.f32.mrf.mxu0
        %v2412 = vadd.f32 %v2299, %v2411
        %2413 = vmatprep.mubr.bf16.mxu0 %v1863
        %2414 = vmatmul.mubr.bf16.gmra.mxu0 %v1862
        %v2415 = vpop.f32.mrf.mxu0
        %v2416 = vadd.f32 %v2303, %v2415
        %v2417 = vpop.f32.mrf.mxu0
        %v2418 = vadd.f32 %v2305, %v2417
        %v2419 = vpop.f32.mrf.mxu0
        %v2420 = vadd.f32 %v2307, %v2419
        %v2421 = vpop.f32.mrf.mxu0
        %v2422 = vadd.f32 %v2309, %v2421
        %2423 = vmatprep.mubr.bf16.mxu0 %v1867
        %2424 = vmatmul.mubr.bf16.gmra.mxu0 %v1866
        %v2425 = vpop.f32.mrf.mxu0
        %v2426 = vadd.f32 %v2313, %v2425
        %v2427 = vpop.f32.mrf.mxu0
        %v2428 = vadd.f32 %v2315, %v2427
        %v2429 = vpop.f32.mrf.mxu0
        %v2430 = vadd.f32 %v2317, %v2429
        %v2431 = vpop.f32.mrf.mxu0
        %v2432 = vadd.f32 %v2319, %v2431
        %2433 = vmatprep.mubr.bf16.mxu0 %v1871
        %2434 = vmatmul.mubr.bf16.gmra.mxu0 %v1870
        %v2435 = vpop.f32.mrf.mxu0
        %v2436 = vadd.f32 %v2323, %v2435
        %v2437 = vpop.f32.mrf.mxu0
        %v2438 = vadd.f32 %v2325, %v2437
        %v2439 = vpop.f32.mrf.mxu0
        %v2440 = vadd.f32 %v2327, %v2439
        %v2441 = vpop.f32.mrf.mxu0
        %v2442 = vadd.f32 %v2329, %v2441
        %2443 = vmatprep.mubr.bf16.mxu0 %v1875
        %2444 = vmatmul.mubr.bf16.gmra.mxu0 %v1874
        %v2445 = vpop.f32.mrf.mxu0
        %v2446 = vadd.f32 %v2333, %v2445
        %v2447 = vpop.f32.mrf.mxu0
        %v2448 = vadd.f32 %v2335, %v2447
        %v2449 = vpop.f32.mrf.mxu0
        %v2450 = vadd.f32 %v2337, %v2449
        %v2451 = vpop.f32.mrf.mxu0
        %v2452 = vadd.f32 %v2339, %v2451
        %2453 = vdwg.mxu0
        %v2454 = vadd.f32 %v2376, %v2380
        %v2455 = vadd.f32 %v2454, %v2386
        %v2456 = vadd.f32 %v2455, %v2390
        %v2457 = vadd.f32 %v2456, %v2396
        %v2458 = vadd.f32 %v2457, %v2400
        %v2459 = vadd.f32 %v2458, %v2406
        %v2460 = vadd.f32 %v2459, %v2410
        %v2461 = vrot.slane %v2460, 4
        %v2462 = vadd.f32 %v2460, %v2461
        %v2463 = vrot.slane %v2462, 2
        %v2464 = vadd.f32 %v2462, %v2463
        %v2465 = vrot.slane %v2464, 1
        %v2466 = vadd.f32 %v2464, %v2465
        %v2467 = vadd.f32 %v2378, %v2382
        %v2468 = vadd.f32 %v2467, %v2388
        %v2469 = vadd.f32 %v2468, %v2392
        %v2470 = vadd.f32 %v2469, %v2398
        %v2471 = vadd.f32 %v2470, %v2402
        %v2472 = vadd.f32 %v2471, %v2408
        %v2473 = vadd.f32 %v2472, %v2412
        %v2474 = vrot.slane %v2473, 4
        %v2475 = vadd.f32 %v2473, %v2474
        %v2476 = vrot.slane %v2475, 2
        %v2477 = vadd.f32 %v2475, %v2476
        %v2478 = vrot.slane %v2477, 1
        %v2479 = vadd.f32 %v2477, %v2478
        %v2480 = vadd.f32 %v2416, %v2420
        %v2481 = vadd.f32 %v2480, %v2426
        %v2482 = vadd.f32 %v2481, %v2430
        %v2483 = vadd.f32 %v2482, %v2436
        %v2484 = vadd.f32 %v2483, %v2440
        %v2485 = vadd.f32 %v2484, %v2446
        %v2486 = vadd.f32 %v2485, %v2450
        %v2487 = vrot.slane %v2486, 4
        %v2488 = vadd.f32 %v2486, %v2487
        %v2489 = vrot.slane %v2488, 2
        %v2490 = vadd.f32 %v2488, %v2489
        %v2491 = vrot.slane %v2490, 1
        %v2492 = vadd.f32 %v2490, %v2491
        %v2493 = vadd.f32 %v2418, %v2422
        %v2494 = vadd.f32 %v2493, %v2428
        %v2495 = vadd.f32 %v2494, %v2432
        %v2496 = vadd.f32 %v2495, %v2438
        %v2497 = vadd.f32 %v2496, %v2442
        %v2498 = vadd.f32 %v2497, %v2448
        %v2499 = vadd.f32 %v2498, %v2452
        %v2500 = vrot.slane %v2499, 4
        %v2501 = vadd.f32 %v2499, %v2500
        %v2502 = vrot.slane %v2501, 2
        %v2503 = vadd.f32 %v2501, %v2502
        %v2504 = vrot.slane %v2503, 1
        %v2505 = vadd.f32 %v2503, %v2504
        %v2506 = vrcp.pop 64.0
        %v2507 = vmul.f32 %v2466, %v2506
        %v2508 = vmul.f32 %v2479, %v2506
        %v2509 = vmul.f32 %v2492, %v2506
        %v2510 = vmul.f32 %v2505, %v2506
        %v2511 = vadd.f32 %v2507, 0.0
        %v2512 = vadd.f32 %v2508, 0.0
        %v2513 = vadd.f32 %v2509, 0.0
        %v2514 = vadd.f32 %v2510, 0.0
        %v2515 = vld [vmem:[#allocation2] sm:$0xff]
        %v2516 = vld [vmem:[#allocation2 + $0x8] sm:$0xff]
        %v2517 = vld [vmem:[#allocation2 + $0x10] sm:$0x11]
        %v2518 = vld [vmem:[#allocation2 + $0x18] sm:$0x11]
        %v2519 = vld [vmem:[#allocation2 + $0x20] sm:$0xff]
        %v2520 = vld [vmem:[#allocation2 + $0x28] sm:$0xff]
        %v2521 = vld [vmem:[#allocation2 + $0x30] sm:$0x11]
        %v2522 = vld [vmem:[#allocation2 + $0x38] sm:$0x11]
        %v2523 = vld [vmem:[#allocation2 + $0x40] sm:$0xff]
        %v2524 = vld [vmem:[#allocation2 + $0x48] sm:$0xff]
        %v2525 = vld [vmem:[#allocation2 + $0x50] sm:$0x11]
        %v2526 = vld [vmem:[#allocation2 + $0x58] sm:$0x11]
        %v2527 = vld [vmem:[#allocation2 + $0x60] sm:$0xff]
        %v2528 = vld [vmem:[#allocation2 + $0x68] sm:$0xff]
        %v2529 = vld [vmem:[#allocation2 + $0x70] sm:$0x11]
        %v2530 = vld [vmem:[#allocation2 + $0x78] sm:$0x11]
        %v2531 = vld [vmem:[#allocation2 + $0x80] sm:$0xff]
        %v2532 = vld [vmem:[#allocation2 + $0x88] sm:$0xff]
        %v2533 = vld [vmem:[#allocation2 + $0x90] sm:$0x11]
        %v2534 = vld [vmem:[#allocation2 + $0x98] sm:$0x11]
        %v2535 = vld [vmem:[#allocation2 + $0xa0] sm:$0xff]
        %v2536 = vld [vmem:[#allocation2 + $0xa8] sm:$0xff]
        %v2537 = vld [vmem:[#allocation2 + $0xb0] sm:$0x11]
        %v2538 = vld [vmem:[#allocation2 + $0xb8] sm:$0x11]
        %v2539 = vld [vmem:[#allocation2 + $0xc0] sm:$0xff]
        %v2540 = vld [vmem:[#allocation2 + $0xc8] sm:$0xff]
        %v2541 = vld [vmem:[#allocation2 + $0xd0] sm:$0x11]
        %v2542 = vld [vmem:[#allocation2 + $0xd8] sm:$0x11]
        %v2543 = vld [vmem:[#allocation2 + $0xe0] sm:$0xff]
        %v2544 = vld [vmem:[#allocation2 + $0xe8] sm:$0xff]
        %v2545 = vld [vmem:[#allocation2 + $0xf0] sm:$0x11]
        %v2546 = vld [vmem:[#allocation2 + $0xf8] sm:$0x11]
        %v2547 = vld [vmem:[#allocation2 + $0x140] sm:$0xff]
        %v2548 = vld [vmem:[#allocation2 + $0x148] sm:$0xff]
        %v2549 = vld [vmem:[#allocation2 + $0x150] sm:$0x11]
        %v2550 = vld [vmem:[#allocation2 + $0x158] sm:$0x11]
        %v2551 = vld [vmem:[#allocation2 + $0x160] sm:$0xff]
        %v2552 = vld [vmem:[#allocation2 + $0x168] sm:$0xff]
        %v2553 = vld [vmem:[#allocation2 + $0x170] sm:$0x11]
        %v2554 = vld [vmem:[#allocation2 + $0x178] sm:$0x11]
        %v2555 = vld [vmem:[#allocation2 + $0x180] sm:$0xff]
        %v2556 = vld [vmem:[#allocation2 + $0x188] sm:$0xff]
        %v2557 = vld [vmem:[#allocation2 + $0x190] sm:$0x11]
        %v2558 = vld [vmem:[#allocation2 + $0x198] sm:$0x11]
        %v2559 = vld [vmem:[#allocation2 + $0x1a0] sm:$0xff]
        %v2560 = vld [vmem:[#allocation2 + $0x1a8] sm:$0xff]
        %v2561 = vld [vmem:[#allocation2 + $0x1b0] sm:$0x11]
        %v2562 = vld [vmem:[#allocation2 + $0x1b8] sm:$0x11]
        %v2563 = vld [vmem:[#allocation2 + $0x1c0] sm:$0xff]
        %v2564 = vld [vmem:[#allocation2 + $0x1c8] sm:$0xff]
        %v2565 = vld [vmem:[#allocation2 + $0x1d0] sm:$0x11]
        %v2566 = vld [vmem:[#allocation2 + $0x1d8] sm:$0x11]
        %v2567 = vld [vmem:[#allocation2 + $0x1e0] sm:$0xff]
        %v2568 = vld [vmem:[#allocation2 + $0x1e8] sm:$0xff]
        %v2569 = vld [vmem:[#allocation2 + $0x1f0] sm:$0x11]
        %v2570 = vld [vmem:[#allocation2 + $0x1f8] sm:$0x11]
        %v2571 = vld [vmem:[#allocation2 + $0x200] sm:$0xff]
        %v2572 = vld [vmem:[#allocation2 + $0x208] sm:$0xff]
        %v2573 = vld [vmem:[#allocation2 + $0x210] sm:$0x11]
        %v2574 = vld [vmem:[#allocation2 + $0x218] sm:$0x11]
        %v2575 = vld [vmem:[#allocation2 + $0x220] sm:$0xff]
        %v2576 = vld [vmem:[#allocation2 + $0x228] sm:$0xff]
        %v2577 = vld [vmem:[#allocation2 + $0x230] sm:$0x11]
        %v2578 = vld [vmem:[#allocation2 + $0x238] sm:$0x11]
        %vm2579 = vsmask.f32 3328
        %vm2580 = vsmask.f32 7440
        %vm2581 = vmor %vm2579, %vm2580
        %v2583 = vshrl.u32 %v2515, 16
        %v2585 = vrot.slane %v2583, 4
        %v2586 = vshll.u32 %v2515, 16
        %v2588 = vrot.slane %v2586, 5
        %v2589 = vor.u32 %v2585, %v2588
        %v2590 = vrot.slane %v2589, 4
        %v2592 = vshll.u32 %v2517, 16
        %v2594 = vrot.slane %v2592, 5
        %v2595 = vsel %vm2581, %v2590, %v2594
        %v2597 = vshrl.u32 %v2516, 16
        %v2599 = vrot.slane %v2597, 4
        %v2600 = vshll.u32 %v2516, 16
        %v2602 = vrot.slane %v2600, 5
        %v2603 = vor.u32 %v2599, %v2602
        %v2604 = vrot.slane %v2603, 4
        %v2606 = vshll.u32 %v2518, 16
        %v2608 = vrot.slane %v2606, 5
        %v2609 = vsel %vm2581, %v2604, %v2608
        %v2611 = vshrl.u32 %v2519, 16
        %v2613 = vrot.slane %v2611, 4
        %v2614 = vshll.u32 %v2519, 16
        %v2616 = vrot.slane %v2614, 5
        %v2617 = vor.u32 %v2613, %v2616
        %v2618 = vrot.slane %v2617, 4
        %v2620 = vshll.u32 %v2521, 16
        %v2622 = vrot.slane %v2620, 5
        %v2623 = vsel %vm2581, %v2618, %v2622
        %v2625 = vshrl.u32 %v2520, 16
        %v2627 = vrot.slane %v2625, 4
        %v2628 = vshll.u32 %v2520, 16
        %v2630 = vrot.slane %v2628, 5
        %v2631 = vor.u32 %v2627, %v2630
        %v2632 = vrot.slane %v2631, 4
        %v2634 = vshll.u32 %v2522, 16
        %v2636 = vrot.slane %v2634, 5
        %v2637 = vsel %vm2581, %v2632, %v2636
        %v2639 = vshrl.u32 %v2523, 16
        %v2641 = vrot.slane %v2639, 4
        %v2642 = vshll.u32 %v2523, 16
        %v2644 = vrot.slane %v2642, 5
        %v2645 = vor.u32 %v2641, %v2644
        %v2646 = vrot.slane %v2645, 4
        %v2648 = vshll.u32 %v2525, 16
        %v2650 = vrot.slane %v2648, 5
        %v2651 = vsel %vm2581, %v2646, %v2650
        %v2653 = vshrl.u32 %v2524, 16
        %v2655 = vrot.slane %v2653, 4
        %v2656 = vshll.u32 %v2524, 16
        %v2658 = vrot.slane %v2656, 5
        %v2659 = vor.u32 %v2655, %v2658
        %v2660 = vrot.slane %v2659, 4
        %v2662 = vshll.u32 %v2526, 16
        %v2664 = vrot.slane %v2662, 5
        %v2665 = vsel %vm2581, %v2660, %v2664
        %v2667 = vshrl.u32 %v2527, 16
        %v2669 = vrot.slane %v2667, 4
        %v2670 = vshll.u32 %v2527, 16
        %v2672 = vrot.slane %v2670, 5
        %v2673 = vor.u32 %v2669, %v2672
        %v2674 = vrot.slane %v2673, 4
        %v2676 = vshll.u32 %v2529, 16
        %v2678 = vrot.slane %v2676, 5
        %v2679 = vsel %vm2581, %v2674, %v2678
        %v2681 = vshrl.u32 %v2528, 16
        %v2683 = vrot.slane %v2681, 4
        %v2684 = vshll.u32 %v2528, 16
        %v2686 = vrot.slane %v2684, 5
        %v2687 = vor.u32 %v2683, %v2686
        %v2688 = vrot.slane %v2687, 4
        %v2690 = vshll.u32 %v2530, 16
        %v2692 = vrot.slane %v2690, 5
        %v2693 = vsel %vm2581, %v2688, %v2692
        %v2695 = vshrl.u32 %v2531, 16
        %v2697 = vrot.slane %v2695, 4
        %v2698 = vshll.u32 %v2531, 16
        %v2700 = vrot.slane %v2698, 5
        %v2701 = vor.u32 %v2697, %v2700
        %v2702 = vrot.slane %v2701, 4
        %v2704 = vshll.u32 %v2533, 16
        %v2706 = vrot.slane %v2704, 5
        %v2707 = vsel %vm2581, %v2702, %v2706
        %v2709 = vshrl.u32 %v2532, 16
        %v2711 = vrot.slane %v2709, 4
        %v2712 = vshll.u32 %v2532, 16
        %v2714 = vrot.slane %v2712, 5
        %v2715 = vor.u32 %v2711, %v2714
        %v2716 = vrot.slane %v2715, 4
        %v2718 = vshll.u32 %v2534, 16
        %v2720 = vrot.slane %v2718, 5
        %v2721 = vsel %vm2581, %v2716, %v2720
        %v2723 = vshrl.u32 %v2535, 16
        %v2725 = vrot.slane %v2723, 4
        %v2726 = vshll.u32 %v2535, 16
        %v2728 = vrot.slane %v2726, 5
        %v2729 = vor.u32 %v2725, %v2728
        %v2730 = vrot.slane %v2729, 4
        %v2732 = vshll.u32 %v2537, 16
        %v2734 = vrot.slane %v2732, 5
        %v2735 = vsel %vm2581, %v2730, %v2734
        %v2737 = vshrl.u32 %v2536, 16
        %v2739 = vrot.slane %v2737, 4
        %v2740 = vshll.u32 %v2536, 16
        %v2742 = vrot.slane %v2740, 5
        %v2743 = vor.u32 %v2739, %v2742
        %v2744 = vrot.slane %v2743, 4
        %v2746 = vshll.u32 %v2538, 16
        %v2748 = vrot.slane %v2746, 5
        %v2749 = vsel %vm2581, %v2744, %v2748
        %v2751 = vshrl.u32 %v2539, 16
        %v2753 = vrot.slane %v2751, 4
        %v2754 = vshll.u32 %v2539, 16
        %v2756 = vrot.slane %v2754, 5
        %v2757 = vor.u32 %v2753, %v2756
        %v2758 = vrot.slane %v2757, 4
        %v2760 = vshll.u32 %v2541, 16
        %v2762 = vrot.slane %v2760, 5
        %v2763 = vsel %vm2581, %v2758, %v2762
        %v2765 = vshrl.u32 %v2540, 16
        %v2767 = vrot.slane %v2765, 4
        %v2768 = vshll.u32 %v2540, 16
        %v2770 = vrot.slane %v2768, 5
        %v2771 = vor.u32 %v2767, %v2770
        %v2772 = vrot.slane %v2771, 4
        %v2774 = vshll.u32 %v2542, 16
        %v2776 = vrot.slane %v2774, 5
        %v2777 = vsel %vm2581, %v2772, %v2776
        %v2779 = vshrl.u32 %v2543, 16
        %v2781 = vrot.slane %v2779, 4
        %v2782 = vshll.u32 %v2543, 16
        %v2784 = vrot.slane %v2782, 5
        %v2785 = vor.u32 %v2781, %v2784
        %v2786 = vrot.slane %v2785, 4
        %v2788 = vshll.u32 %v2545, 16
        %v2790 = vrot.slane %v2788, 5
        %v2791 = vsel %vm2581, %v2786, %v2790
        %v2793 = vshrl.u32 %v2544, 16
        %v2795 = vrot.slane %v2793, 4
        %v2796 = vshll.u32 %v2544, 16
        %v2798 = vrot.slane %v2796, 5
        %v2799 = vor.u32 %v2795, %v2798
        %v2800 = vrot.slane %v2799, 4
        %v2802 = vshll.u32 %v2546, 16
        %v2804 = vrot.slane %v2802, 5
        %v2805 = vsel %vm2581, %v2800, %v2804
        %v2807 = vshrl.u32 %v2547, 16
        %v2809 = vrot.slane %v2807, 4
        %v2810 = vshll.u32 %v2547, 16
        %v2812 = vrot.slane %v2810, 5
        %v2813 = vor.u32 %v2809, %v2812
        %v2814 = vrot.slane %v2813, 4
        %v2816 = vshll.u32 %v2549, 16
        %v2818 = vrot.slane %v2816, 5
        %v2819 = vsel %vm2581, %v2814, %v2818
        %v2821 = vshrl.u32 %v2548, 16
        %v2823 = vrot.slane %v2821, 4
        %v2824 = vshll.u32 %v2548, 16
        %v2826 = vrot.slane %v2824, 5
        %v2827 = vor.u32 %v2823, %v2826
        %v2828 = vrot.slane %v2827, 4
        %v2830 = vshll.u32 %v2550, 16
        %v2832 = vrot.slane %v2830, 5
        %v2833 = vsel %vm2581, %v2828, %v2832
        %v2835 = vshrl.u32 %v2551, 16
        %v2837 = vrot.slane %v2835, 4
        %v2838 = vshll.u32 %v2551, 16
        %v2840 = vrot.slane %v2838, 5
        %v2841 = vor.u32 %v2837, %v2840
        %v2842 = vrot.slane %v2841, 4
        %v2844 = vshll.u32 %v2553, 16
        %v2846 = vrot.slane %v2844, 5
        %v2847 = vsel %vm2581, %v2842, %v2846
        %v2849 = vshrl.u32 %v2552, 16
        %v2851 = vrot.slane %v2849, 4
        %v2852 = vshll.u32 %v2552, 16
        %v2854 = vrot.slane %v2852, 5
        %v2855 = vor.u32 %v2851, %v2854
        %v2856 = vrot.slane %v2855, 4
        %v2858 = vshll.u32 %v2554, 16
        %v2860 = vrot.slane %v2858, 5
        %v2861 = vsel %vm2581, %v2856, %v2860
        %v2863 = vshrl.u32 %v2555, 16
        %v2865 = vrot.slane %v2863, 4
        %v2866 = vshll.u32 %v2555, 16
        %v2868 = vrot.slane %v2866, 5
        %v2869 = vor.u32 %v2865, %v2868
        %v2870 = vrot.slane %v2869, 4
        %v2872 = vshll.u32 %v2557, 16
        %v2874 = vrot.slane %v2872, 5
        %v2875 = vsel %vm2581, %v2870, %v2874
        %v2877 = vshrl.u32 %v2556, 16
        %v2879 = vrot.slane %v2877, 4
        %v2880 = vshll.u32 %v2556, 16
        %v2882 = vrot.slane %v2880, 5
        %v2883 = vor.u32 %v2879, %v2882
        %v2884 = vrot.slane %v2883, 4
        %v2886 = vshll.u32 %v2558, 16
        %v2888 = vrot.slane %v2886, 5
        %v2889 = vsel %vm2581, %v2884, %v2888
        %v2891 = vshrl.u32 %v2559, 16
        %v2893 = vrot.slane %v2891, 4
        %v2894 = vshll.u32 %v2559, 16
        %v2896 = vrot.slane %v2894, 5
        %v2897 = vor.u32 %v2893, %v2896
        %v2898 = vrot.slane %v2897, 4
        %v2900 = vshll.u32 %v2561, 16
        %v2902 = vrot.slane %v2900, 5
        %v2903 = vsel %vm2581, %v2898, %v2902
        %v2905 = vshrl.u32 %v2560, 16
        %v2907 = vrot.slane %v2905, 4
        %v2908 = vshll.u32 %v2560, 16
        %v2910 = vrot.slane %v2908, 5
        %v2911 = vor.u32 %v2907, %v2910
        %v2912 = vrot.slane %v2911, 4
        %v2914 = vshll.u32 %v2562, 16
        %v2916 = vrot.slane %v2914, 5
        %v2917 = vsel %vm2581, %v2912, %v2916
        %v2919 = vshrl.u32 %v2563, 16
        %v2921 = vrot.slane %v2919, 4
        %v2922 = vshll.u32 %v2563, 16
        %v2924 = vrot.slane %v2922, 5
        %v2925 = vor.u32 %v2921, %v2924
        %v2926 = vrot.slane %v2925, 4
        %v2928 = vshll.u32 %v2565, 16
        %v2930 = vrot.slane %v2928, 5
        %v2931 = vsel %vm2581, %v2926, %v2930
        %v2933 = vshrl.u32 %v2564, 16
        %v2935 = vrot.slane %v2933, 4
        %v2936 = vshll.u32 %v2564, 16
        %v2938 = vrot.slane %v2936, 5
        %v2939 = vor.u32 %v2935, %v2938
        %v2940 = vrot.slane %v2939, 4
        %v2942 = vshll.u32 %v2566, 16
        %v2944 = vrot.slane %v2942, 5
        %v2945 = vsel %vm2581, %v2940, %v2944
        %v2947 = vshrl.u32 %v2567, 16
        %v2949 = vrot.slane %v2947, 4
        %v2950 = vshll.u32 %v2567, 16
        %v2952 = vrot.slane %v2950, 5
        %v2953 = vor.u32 %v2949, %v2952
        %v2954 = vrot.slane %v2953, 4
        %v2956 = vshll.u32 %v2569, 16
        %v2958 = vrot.slane %v2956, 5
        %v2959 = vsel %vm2581, %v2954, %v2958
        %v2961 = vshrl.u32 %v2568, 16
        %v2963 = vrot.slane %v2961, 4
        %v2964 = vshll.u32 %v2568, 16
        %v2966 = vrot.slane %v2964, 5
        %v2967 = vor.u32 %v2963, %v2966
        %v2968 = vrot.slane %v2967, 4
        %v2970 = vshll.u32 %v2570, 16
        %v2972 = vrot.slane %v2970, 5
        %v2973 = vsel %vm2581, %v2968, %v2972
        %v2975 = vshrl.u32 %v2571, 16
        %v2977 = vrot.slane %v2975, 4
        %v2978 = vshll.u32 %v2571, 16
        %v2980 = vrot.slane %v2978, 5
        %v2981 = vor.u32 %v2977, %v2980
        %v2982 = vrot.slane %v2981, 4
        %v2984 = vshll.u32 %v2573, 16
        %v2986 = vrot.slane %v2984, 5
        %v2987 = vsel %vm2581, %v2982, %v2986
        %v2989 = vshrl.u32 %v2572, 16
        %v2991 = vrot.slane %v2989, 4
        %v2992 = vshll.u32 %v2572, 16
        %v2994 = vrot.slane %v2992, 5
        %v2995 = vor.u32 %v2991, %v2994
        %v2996 = vrot.slane %v2995, 4
        %v2998 = vshll.u32 %v2574, 16
        %v3000 = vrot.slane %v2998, 5
        %v3001 = vsel %vm2581, %v2996, %v3000
        %v3003 = vshrl.u32 %v2575, 16
        %v3005 = vrot.slane %v3003, 4
        %v3006 = vshll.u32 %v2575, 16
        %v3008 = vrot.slane %v3006, 5
        %v3009 = vor.u32 %v3005, %v3008
        %v3010 = vrot.slane %v3009, 4
        %v3012 = vshll.u32 %v2577, 16
        %v3014 = vrot.slane %v3012, 5
        %v3015 = vsel %vm2581, %v3010, %v3014
        %v3017 = vshrl.u32 %v2576, 16
        %v3019 = vrot.slane %v3017, 4
        %v3020 = vshll.u32 %v2576, 16
        %v3022 = vrot.slane %v3020, 5
        %v3023 = vor.u32 %v3019, %v3022
        %v3024 = vrot.slane %v3023, 4
        %v3026 = vshll.u32 %v2578, 16
        %v3028 = vrot.slane %v3026, 5
        %v3029 = vsel %vm2581, %v3024, %v3028
        %v3030 = vld [vmem:[%s227 + $0x200] sm:$0xff]
        %v3031 = vld [vmem:[%s227 + $0x208] sm:$0xff]
        %v3032 = vld [vmem:[%s227 + $0x210] sm:$0xff]
        %v3033 = vld [vmem:[%s227 + $0x218] sm:$0xff]
        %v3034 = vld [vmem:[%s227 + $0x220] sm:$0xff]
        %v3035 = vld [vmem:[%s227 + $0x228] sm:$0xff]
        %v3036 = vld [vmem:[%s227 + $0x230] sm:$0xff]
        %v3037 = vld [vmem:[%s227 + $0x238] sm:$0xff]
        %v3038 = vld [vmem:[%s227 + $0x240] sm:$0xff]
        %v3039 = vld [vmem:[%s227 + $0x248] sm:$0xff]
        %v3040 = vld [vmem:[%s227 + $0x250] sm:$0xff]
        %v3041 = vld [vmem:[%s227 + $0x258] sm:$0xff]
        %v3042 = vld [vmem:[%s227 + $0x260] sm:$0xff]
        %v3043 = vld [vmem:[%s227 + $0x268] sm:$0xff]
        %v3044 = vld [vmem:[%s227 + $0x270] sm:$0xff]
        %v3045 = vld [vmem:[%s227 + $0x278] sm:$0xff]
        %v3046 = vld [vmem:[%s227 + $0x280] sm:$0xff]
        %v3047 = vld [vmem:[%s227 + $0x288] sm:$0xff]
        %v3048 = vld [vmem:[%s227 + $0x290] sm:$0xff]
        %v3049 = vld [vmem:[%s227 + $0x298] sm:$0xff]
        %v3050 = vld [vmem:[%s227 + $0x2a0] sm:$0xff]
        %v3051 = vld [vmem:[%s227 + $0x2a8] sm:$0xff]
        %v3052 = vld [vmem:[%s227 + $0x2b0] sm:$0xff]
        %v3053 = vld [vmem:[%s227 + $0x2b8] sm:$0xff]
        %v3054 = vld [vmem:[%s227 + $0x2c0] sm:$0xff]
        %v3055 = vld [vmem:[%s227 + $0x2c8] sm:$0xff]
        %v3056 = vld [vmem:[%s227 + $0x2d0] sm:$0xff]
        %v3057 = vld [vmem:[%s227 + $0x2d8] sm:$0xff]
        %v3058 = vld [vmem:[%s227 + $0x2e0] sm:$0xff]
        %v3059 = vld [vmem:[%s227 + $0x2e8] sm:$0xff]
        %v3060 = vld [vmem:[%s227 + $0x2f0] sm:$0xff]
        %v3061 = vld [vmem:[%s227 + $0x2f8] sm:$0xff]
        %v3062 = vld [vmem:[%s227 + $0x300] sm:$0xff]
        %v3063 = vld [vmem:[%s227 + $0x308] sm:$0xff]
        %v3064 = vld [vmem:[%s227 + $0x310] sm:$0xff]
        %v3065 = vld [vmem:[%s227 + $0x318] sm:$0xff]
        %v3066 = vld [vmem:[%s227 + $0x320] sm:$0xff]
        %v3067 = vld [vmem:[%s227 + $0x328] sm:$0xff]
        %v3068 = vld [vmem:[%s227 + $0x330] sm:$0xff]
        %v3069 = vld [vmem:[%s227 + $0x338] sm:$0xff]
        %v3070 = vld [vmem:[%s227 + $0x340] sm:$0xff]
        %v3071 = vld [vmem:[%s227 + $0x348] sm:$0xff]
        %v3072 = vld [vmem:[%s227 + $0x350] sm:$0xff]
        %v3073 = vld [vmem:[%s227 + $0x358] sm:$0xff]
        %v3074 = vld [vmem:[%s227 + $0x360] sm:$0xff]
        %v3075 = vld [vmem:[%s227 + $0x368] sm:$0xff]
        %v3076 = vld [vmem:[%s227 + $0x370] sm:$0xff]
        %v3077 = vld [vmem:[%s227 + $0x378] sm:$0xff]
        %v3078 = vld [vmem:[%s227 + $0x380] sm:$0xff]
        %v3079 = vld [vmem:[%s227 + $0x388] sm:$0xff]
        %v3080 = vld [vmem:[%s227 + $0x390] sm:$0xff]
        %v3081 = vld [vmem:[%s227 + $0x398] sm:$0xff]
        %v3082 = vld [vmem:[%s227 + $0x3a0] sm:$0xff]
        %v3083 = vld [vmem:[%s227 + $0x3a8] sm:$0xff]
        %v3084 = vld [vmem:[%s227 + $0x3b0] sm:$0xff]
        %v3085 = vld [vmem:[%s227 + $0x3b8] sm:$0xff]
        %v3086 = vld [vmem:[%s227 + $0x3c0] sm:$0xff]
        %v3087 = vld [vmem:[%s227 + $0x3c8] sm:$0xff]
        %v3088 = vld [vmem:[%s227 + $0x3d0] sm:$0xff]
        %v3089 = vld [vmem:[%s227 + $0x3d8] sm:$0xff]
        %v3090 = vld [vmem:[%s227 + $0x3e0] sm:$0xff]
        %v3091 = vld [vmem:[%s227 + $0x3e8] sm:$0xff]
        %v3092 = vld [vmem:[%s227 + $0x3f0] sm:$0xff]
        %v3093 = vld [vmem:[%s227 + $0x3f8] sm:$0xff]
        %v3094 = vunpack.c.l.b16 %v2595
        %v3095 = vunpack.c.h.b16 %v2595
        %v3096 = vunpack.c.l.b16 %v2609
        %v3097 = vunpack.c.h.b16 %v2609
        %v3098 = vunpack.c.l.b16 %v2623
        %v3099 = vunpack.c.h.b16 %v2623
        %v3100 = vunpack.c.l.b16 %v2637
        %v3101 = vunpack.c.h.b16 %v2637
        %v3102 = vunpack.c.l.b16 %v2651
        %v3103 = vunpack.c.h.b16 %v2651
        %v3104 = vunpack.c.l.b16 %v2665
        %v3105 = vunpack.c.h.b16 %v2665
        %v3106 = vunpack.c.l.b16 %v2679
        %v3107 = vunpack.c.h.b16 %v2679
        %v3108 = vunpack.c.l.b16 %v2693
        %v3109 = vunpack.c.h.b16 %v2693
        %v3110 = vunpack.c.l.b16 %v2707
        %v3111 = vunpack.c.h.b16 %v2707
        %v3112 = vunpack.c.l.b16 %v2721
        %v3113 = vunpack.c.h.b16 %v2721
        %v3114 = vunpack.c.l.b16 %v2735
        %v3115 = vunpack.c.h.b16 %v2735
        %v3116 = vunpack.c.l.b16 %v2749
        %v3117 = vunpack.c.h.b16 %v2749
        %v3118 = vunpack.c.l.b16 %v2763
        %v3119 = vunpack.c.h.b16 %v2763
        %v3120 = vunpack.c.l.b16 %v2777
        %v3121 = vunpack.c.h.b16 %v2777
        %v3122 = vunpack.c.l.b16 %v2791
        %v3123 = vunpack.c.h.b16 %v2791
        %v3124 = vunpack.c.l.b16 %v2805
        %v3125 = vunpack.c.h.b16 %v2805
        %v3126 = vunpack.c.l.b16 %v2819
        %v3127 = vunpack.c.h.b16 %v2819
        %v3128 = vunpack.c.l.b16 %v2833
        %v3129 = vunpack.c.h.b16 %v2833
        %v3130 = vunpack.c.l.b16 %v2847
        %v3131 = vunpack.c.h.b16 %v2847
        %v3132 = vunpack.c.l.b16 %v2861
        %v3133 = vunpack.c.h.b16 %v2861
        %v3134 = vunpack.c.l.b16 %v2875
        %v3135 = vunpack.c.h.b16 %v2875
        %v3136 = vunpack.c.l.b16 %v2889
        %v3137 = vunpack.c.h.b16 %v2889
        %v3138 = vunpack.c.l.b16 %v2903
        %v3139 = vunpack.c.h.b16 %v2903
        %v3140 = vunpack.c.l.b16 %v2917
        %v3141 = vunpack.c.h.b16 %v2917
        %v3142 = vunpack.c.l.b16 %v2931
        %v3143 = vunpack.c.h.b16 %v2931
        %v3144 = vunpack.c.l.b16 %v2945
        %v3145 = vunpack.c.h.b16 %v2945
        %v3146 = vunpack.c.l.b16 %v2959
        %v3147 = vunpack.c.h.b16 %v2959
        %v3148 = vunpack.c.l.b16 %v2973
        %v3149 = vunpack.c.h.b16 %v2973
        %v3150 = vunpack.c.l.b16 %v2987
        %v3151 = vunpack.c.h.b16 %v2987
        %v3152 = vunpack.c.l.b16 %v3001
        %v3153 = vunpack.c.h.b16 %v3001
        %v3154 = vunpack.c.l.b16 %v3015
        %v3155 = vunpack.c.h.b16 %v3015
        %v3156 = vunpack.c.l.b16 %v3029
        %v3157 = vunpack.c.h.b16 %v3029
        %v3158 = vpack.c.b16 %v3098, %v3094
        %v3159 = vpack.c.b16 %v3099, %v3095
        %v3160 = vpack.c.b16 %v3100, %v3096
        %v3161 = vpack.c.b16 %v3101, %v3097
        %v3162 = vpack.c.b16 %v3106, %v3102
        %v3163 = vpack.c.b16 %v3107, %v3103
        %v3164 = vpack.c.b16 %v3108, %v3104
        %v3165 = vpack.c.b16 %v3109, %v3105
        %v3166 = vpack.c.b16 %v3114, %v3110
        %v3167 = vpack.c.b16 %v3115, %v3111
        %v3168 = vpack.c.b16 %v3116, %v3112
        %v3169 = vpack.c.b16 %v3117, %v3113
        %v3170 = vpack.c.b16 %v3122, %v3118
        %v3171 = vpack.c.b16 %v3123, %v3119
        %v3172 = vpack.c.b16 %v3124, %v3120
        %v3173 = vpack.c.b16 %v3125, %v3121
        %v3174 = vpack.c.b16 %v3130, %v3126
        %v3175 = vpack.c.b16 %v3131, %v3127
        %v3176 = vpack.c.b16 %v3132, %v3128
        %v3177 = vpack.c.b16 %v3133, %v3129
        %v3178 = vpack.c.b16 %v3138, %v3134
        %v3179 = vpack.c.b16 %v3139, %v3135
        %v3180 = vpack.c.b16 %v3140, %v3136
        %v3181 = vpack.c.b16 %v3141, %v3137
        %v3182 = vpack.c.b16 %v3146, %v3142
        %v3183 = vpack.c.b16 %v3147, %v3143
        %v3184 = vpack.c.b16 %v3148, %v3144
        %v3185 = vpack.c.b16 %v3149, %v3145
        %v3186 = vpack.c.b16 %v3154, %v3150
        %v3187 = vpack.c.b16 %v3155, %v3151
        %v3188 = vpack.c.b16 %v3156, %v3152
        %v3189 = vpack.c.b16 %v3157, %v3153
        %v3286 = vunpack.c.l.b16 %v3030
        %v3287 = vunpack.c.h.b16 %v3030
        %v3288 = vunpack.c.l.b16 %v3031
        %v3289 = vunpack.c.h.b16 %v3031
        %v3290 = vunpack.c.l.b16 %v3032
        %v3291 = vunpack.c.h.b16 %v3032
        %v3292 = vunpack.c.l.b16 %v3033
        %v3293 = vunpack.c.h.b16 %v3033
        %v3294 = vunpack.c.l.b16 %v3034
        %v3295 = vunpack.c.h.b16 %v3034
        %v3296 = vunpack.c.l.b16 %v3035
        %v3297 = vunpack.c.h.b16 %v3035
        %v3298 = vunpack.c.l.b16 %v3036
        %v3299 = vunpack.c.h.b16 %v3036
        %v3300 = vunpack.c.l.b16 %v3037
        %v3301 = vunpack.c.h.b16 %v3037
        %v3302 = vunpack.c.l.b16 %v3038
        %v3303 = vunpack.c.h.b16 %v3038
        %v3304 = vunpack.c.l.b16 %v3039
        %v3305 = vunpack.c.h.b16 %v3039
        %v3306 = vunpack.c.l.b16 %v3040
        %v3307 = vunpack.c.h.b16 %v3040
        %v3308 = vunpack.c.l.b16 %v3041
        %v3309 = vunpack.c.h.b16 %v3041
        %v3310 = vunpack.c.l.b16 %v3042
        %v3311 = vunpack.c.h.b16 %v3042
        %v3312 = vunpack.c.l.b16 %v3043
        %v3313 = vunpack.c.h.b16 %v3043
        %v3314 = vunpack.c.l.b16 %v3044
        %v3315 = vunpack.c.h.b16 %v3044
        %v3316 = vunpack.c.l.b16 %v3045
        %v3317 = vunpack.c.h.b16 %v3045
        %v3318 = vunpack.c.l.b16 %v3046
        %v3319 = vunpack.c.h.b16 %v3046
        %v3320 = vunpack.c.l.b16 %v3047
        %v3321 = vunpack.c.h.b16 %v3047
        %v3322 = vunpack.c.l.b16 %v3048
        %v3323 = vunpack.c.h.b16 %v3048
        %v3324 = vunpack.c.l.b16 %v3049
        %v3325 = vunpack.c.h.b16 %v3049
        %v3326 = vunpack.c.l.b16 %v3050
        %v3327 = vunpack.c.h.b16 %v3050
        %v3328 = vunpack.c.l.b16 %v3051
        %v3329 = vunpack.c.h.b16 %v3051
        %v3330 = vunpack.c.l.b16 %v3052
        %v3331 = vunpack.c.h.b16 %v3052
        %v3332 = vunpack.c.l.b16 %v3053
        %v3333 = vunpack.c.h.b16 %v3053
        %v3334 = vunpack.c.l.b16 %v3054
        %v3335 = vunpack.c.h.b16 %v3054
        %v3336 = vunpack.c.l.b16 %v3055
        %v3337 = vunpack.c.h.b16 %v3055
        %v3338 = vunpack.c.l.b16 %v3056
        %v3339 = vunpack.c.h.b16 %v3056
        %v3340 = vunpack.c.l.b16 %v3057
        %v3341 = vunpack.c.h.b16 %v3057
        %v3342 = vunpack.c.l.b16 %v3058
        %v3343 = vunpack.c.h.b16 %v3058
        %v3344 = vunpack.c.l.b16 %v3059
        %v3345 = vunpack.c.h.b16 %v3059
        %v3346 = vunpack.c.l.b16 %v3060
        %v3347 = vunpack.c.h.b16 %v3060
        %v3348 = vunpack.c.l.b16 %v3061
        %v3349 = vunpack.c.h.b16 %v3061
        %v3350 = vunpack.c.l.b16 %v3062
        %v3351 = vunpack.c.h.b16 %v3062
        %v3352 = vunpack.c.l.b16 %v3063
        %v3353 = vunpack.c.h.b16 %v3063
        %v3354 = vunpack.c.l.b16 %v3064
        %v3355 = vunpack.c.h.b16 %v3064
        %v3356 = vunpack.c.l.b16 %v3065
        %v3357 = vunpack.c.h.b16 %v3065
        %v3358 = vunpack.c.l.b16 %v3066
        %v3359 = vunpack.c.h.b16 %v3066
        %v3360 = vunpack.c.l.b16 %v3067
        %v3361 = vunpack.c.h.b16 %v3067
        %v3362 = vunpack.c.l.b16 %v3068
        %v3363 = vunpack.c.h.b16 %v3068
        %v3364 = vunpack.c.l.b16 %v3069
        %v3365 = vunpack.c.h.b16 %v3069
        %v3366 = vunpack.c.l.b16 %v3070
        %v3367 = vunpack.c.h.b16 %v3070
        %v3368 = vunpack.c.l.b16 %v3071
        %v3369 = vunpack.c.h.b16 %v3071
        %v3370 = vunpack.c.l.b16 %v3072
        %v3371 = vunpack.c.h.b16 %v3072
        %v3372 = vunpack.c.l.b16 %v3073
        %v3373 = vunpack.c.h.b16 %v3073
        %v3374 = vunpack.c.l.b16 %v3074
        %v3375 = vunpack.c.h.b16 %v3074
        %v3376 = vunpack.c.l.b16 %v3075
        %v3377 = vunpack.c.h.b16 %v3075
        %v3378 = vunpack.c.l.b16 %v3076
        %v3379 = vunpack.c.h.b16 %v3076
        %v3380 = vunpack.c.l.b16 %v3077
        %v3381 = vunpack.c.h.b16 %v3077
        %v3382 = vunpack.c.l.b16 %v3078
        %v3383 = vunpack.c.h.b16 %v3078
        %v3384 = vunpack.c.l.b16 %v3079
        %v3385 = vunpack.c.h.b16 %v3079
        %v3386 = vunpack.c.l.b16 %v3080
        %v3387 = vunpack.c.h.b16 %v3080
        %v3388 = vunpack.c.l.b16 %v3081
        %v3389 = vunpack.c.h.b16 %v3081
        %v3390 = vunpack.c.l.b16 %v3082
        %v3391 = vunpack.c.h.b16 %v3082
        %v3392 = vunpack.c.l.b16 %v3083
        %v3393 = vunpack.c.h.b16 %v3083
        %v3394 = vunpack.c.l.b16 %v3084
        %v3395 = vunpack.c.h.b16 %v3084
        %v3396 = vunpack.c.l.b16 %v3085
        %v3397 = vunpack.c.h.b16 %v3085
        %v3398 = vunpack.c.l.b16 %v3086
        %v3399 = vunpack.c.h.b16 %v3086
        %v3400 = vunpack.c.l.b16 %v3087
        %v3401 = vunpack.c.h.b16 %v3087
        %v3402 = vunpack.c.l.b16 %v3088
        %v3403 = vunpack.c.h.b16 %v3088
        %v3404 = vunpack.c.l.b16 %v3089
        %v3405 = vunpack.c.h.b16 %v3089
        %v3406 = vunpack.c.l.b16 %v3090
        %v3407 = vunpack.c.h.b16 %v3090
        %v3408 = vunpack.c.l.b16 %v3091
        %v3409 = vunpack.c.h.b16 %v3091
        %v3410 = vunpack.c.l.b16 %v3092
        %v3411 = vunpack.c.h.b16 %v3092
        %v3412 = vunpack.c.l.b16 %v3093
        %v3413 = vunpack.c.h.b16 %v3093
        %v3414 = vpack.c.b16 %v3288, %v3286
        %v3415 = vpack.c.b16 %v3289, %v3287
        %v3416 = vpack.c.b16 %v3292, %v3290
        %v3417 = vpack.c.b16 %v3293, %v3291
        %v3418 = vpack.c.b16 %v3296, %v3294
        %v3419 = vpack.c.b16 %v3297, %v3295
        %v3420 = vpack.c.b16 %v3300, %v3298
        %v3421 = vpack.c.b16 %v3301, %v3299
        %v3422 = vpack.c.b16 %v3304, %v3302
        %v3423 = vpack.c.b16 %v3305, %v3303
        %v3424 = vpack.c.b16 %v3308, %v3306
        %v3425 = vpack.c.b16 %v3309, %v3307
        %v3426 = vpack.c.b16 %v3312, %v3310
        %v3427 = vpack.c.b16 %v3313, %v3311
        %v3428 = vpack.c.b16 %v3316, %v3314
        %v3429 = vpack.c.b16 %v3317, %v3315
        %v3430 = vpack.c.b16 %v3320, %v3318
        %v3431 = vpack.c.b16 %v3321, %v3319
        %v3432 = vpack.c.b16 %v3324, %v3322
        %v3433 = vpack.c.b16 %v3325, %v3323
        %v3434 = vpack.c.b16 %v3328, %v3326
        %v3435 = vpack.c.b16 %v3329, %v3327
        %v3436 = vpack.c.b16 %v3332, %v3330
        %v3437 = vpack.c.b16 %v3333, %v3331
        %v3438 = vpack.c.b16 %v3336, %v3334
        %v3439 = vpack.c.b16 %v3337, %v3335
        %v3440 = vpack.c.b16 %v3340, %v3338
        %v3441 = vpack.c.b16 %v3341, %v3339
        %v3442 = vpack.c.b16 %v3344, %v3342
        %v3443 = vpack.c.b16 %v3345, %v3343
        %v3444 = vpack.c.b16 %v3348, %v3346
        %v3445 = vpack.c.b16 %v3349, %v3347
        %v3446 = vpack.c.b16 %v3352, %v3350
        %v3447 = vpack.c.b16 %v3353, %v3351
        %v3448 = vpack.c.b16 %v3356, %v3354
        %v3449 = vpack.c.b16 %v3357, %v3355
        %v3450 = vpack.c.b16 %v3360, %v3358
        %v3451 = vpack.c.b16 %v3361, %v3359
        %v3452 = vpack.c.b16 %v3364, %v3362
        %v3453 = vpack.c.b16 %v3365, %v3363
        %v3454 = vpack.c.b16 %v3368, %v3366
        %v3455 = vpack.c.b16 %v3369, %v3367
        %v3456 = vpack.c.b16 %v3372, %v3370
        %v3457 = vpack.c.b16 %v3373, %v3371
        %v3458 = vpack.c.b16 %v3376, %v3374
        %v3459 = vpack.c.b16 %v3377, %v3375
        %v3460 = vpack.c.b16 %v3380, %v3378
        %v3461 = vpack.c.b16 %v3381, %v3379
        %v3462 = vpack.c.b16 %v3384, %v3382
        %v3463 = vpack.c.b16 %v3385, %v3383
        %v3464 = vpack.c.b16 %v3388, %v3386
        %v3465 = vpack.c.b16 %v3389, %v3387
        %v3466 = vpack.c.b16 %v3392, %v3390
        %v3467 = vpack.c.b16 %v3393, %v3391
        %v3468 = vpack.c.b16 %v3396, %v3394
        %v3469 = vpack.c.b16 %v3397, %v3395
        %v3470 = vpack.c.b16 %v3400, %v3398
        %v3471 = vpack.c.b16 %v3401, %v3399
        %v3472 = vpack.c.b16 %v3404, %v3402
        %v3473 = vpack.c.b16 %v3405, %v3403
        %v3474 = vpack.c.b16 %v3408, %v3406
        %v3475 = vpack.c.b16 %v3409, %v3407
        %v3476 = vpack.c.b16 %v3412, %v3410
        %v3477 = vpack.c.b16 %v3413, %v3411
        %3542 = vmatprep.subr.bf16.mxu0 %v3429
        %3543 = vmatpush1.bf16.msra.mxu0 %v3428
        %3544 = vmatprep.subr.bf16.mxu0 %v3427
        %3545 = vmatpush1.bf16.msra.mxu0 %v3426
        %3546 = vmatprep.subr.bf16.mxu0 %v3425
        %3547 = vmatpush1.bf16.msra.mxu0 %v3424
        %3548 = vmatprep.subr.bf16.mxu0 %v3423
        %3549 = vmatpush1.bf16.msra.mxu0 %v3422
        %3550 = vmatprep.subr.bf16.mxu0 %v3421
        %3551 = vmatpush1.bf16.msra.mxu0 %v3420
        %3552 = vmatprep.subr.bf16.mxu0 %v3419
        %3553 = vmatpush1.bf16.msra.mxu0 %v3418
        %3554 = vmatprep.subr.bf16.mxu0 %v3417
        %3555 = vmatpush1.bf16.msra.mxu0 %v3416
        %3556 = vmatprep.subr.bf16.mxu0 %v3415
        %3557 = vmatpush1.bf16.msra.mxu0 %v3414
        %3558 = vmatprep.subr.bf16.mxu0 %v3445
        %3559 = vmatpush2.bf16.msra.mxu0 %v3444
        %3560 = vmatprep.subr.bf16.mxu0 %v3443
        %3561 = vmatpush2.bf16.msra.mxu0 %v3442
        %3562 = vmatprep.subr.bf16.mxu0 %v3441
        %3563 = vmatpush2.bf16.msra.mxu0 %v3440
        %3564 = vmatprep.subr.bf16.mxu0 %v3439
        %3565 = vmatpush2.bf16.msra.mxu0 %v3438
        %3566 = vmatprep.subr.bf16.mxu0 %v3437
        %3567 = vmatpush2.bf16.msra.mxu0 %v3436
        %3568 = vmatprep.subr.bf16.mxu0 %v3435
        %3569 = vmatpush2.bf16.msra.mxu0 %v3434
        %3570 = vmatprep.subr.bf16.mxu0 %v3433
        %3571 = vmatpush2.bf16.msra.mxu0 %v3432
        %3572 = vmatprep.subr.bf16.mxu0 %v3431
        %3573 = vmatpush2.bf16.msra.mxu0 %v3430
        %3574 = vmatprep.mubr.bf16.mxu0 %v3159
        %3575 = vmatmul.mubr.bf16.gmra.mxu0 %v3158
        %v3576 = vpop.f32.mrf.mxu0
        %v3577 = vadd.f32 0.0, %v3576
        %v3578 = vpop.f32.mrf.mxu0
        %v3579 = vadd.f32 0.0, %v3578
        %v3580 = vpop.f32.mrf.mxu0
        %v3581 = vadd.f32 0.0, %v3580
        %v3582 = vpop.f32.mrf.mxu0
        %v3583 = vadd.f32 0.0, %v3582
        %3584 = vmatprep.mubr.bf16.mxu0 %v3163
        %3585 = vmatmul.mubr.bf16.gmra.mxu0 %v3162
        %v3586 = vpop.f32.mrf.mxu0
        %v3587 = vadd.f32 0.0, %v3586
        %v3588 = vpop.f32.mrf.mxu0
        %v3589 = vadd.f32 0.0, %v3588
        %v3590 = vpop.f32.mrf.mxu0
        %v3591 = vadd.f32 0.0, %v3590
        %v3592 = vpop.f32.mrf.mxu0
        %v3593 = vadd.f32 0.0, %v3592
        %3594 = vmatprep.mubr.bf16.mxu0 %v3167
        %3595 = vmatmul.mubr.bf16.gmra.mxu0 %v3166
        %v3596 = vpop.f32.mrf.mxu0
        %v3597 = vadd.f32 0.0, %v3596
        %v3598 = vpop.f32.mrf.mxu0
        %v3599 = vadd.f32 0.0, %v3598
        %v3600 = vpop.f32.mrf.mxu0
        %v3601 = vadd.f32 0.0, %v3600
        %v3602 = vpop.f32.mrf.mxu0
        %v3603 = vadd.f32 0.0, %v3602
        %3604 = vmatprep.mubr.bf16.mxu0 %v3171
        %3605 = vmatmul.mubr.bf16.gmra.mxu0 %v3170
        %v3606 = vpop.f32.mrf.mxu0
        %v3607 = vadd.f32 0.0, %v3606
        %v3608 = vpop.f32.mrf.mxu0
        %v3609 = vadd.f32 0.0, %v3608
        %v3610 = vpop.f32.mrf.mxu0
        %v3611 = vadd.f32 0.0, %v3610
        %v3612 = vpop.f32.mrf.mxu0
        %v3613 = vadd.f32 0.0, %v3612
        %3614 = vmatprep.mubr.bf16.mxu0 %v3175
        %3615 = vmatmul.mubr.bf16.gmra.mxu0 %v3174
        %v3616 = vpop.f32.mrf.mxu0
        %v3617 = vadd.f32 0.0, %v3616
        %v3618 = vpop.f32.mrf.mxu0
        %v3619 = vadd.f32 0.0, %v3618
        %v3620 = vpop.f32.mrf.mxu0
        %v3621 = vadd.f32 0.0, %v3620
        %v3622 = vpop.f32.mrf.mxu0
        %v3623 = vadd.f32 0.0, %v3622
        %3624 = vmatprep.mubr.bf16.mxu0 %v3179
        %3625 = vmatmul.mubr.bf16.gmra.mxu0 %v3178
        %v3626 = vpop.f32.mrf.mxu0
        %v3627 = vadd.f32 0.0, %v3626
        %v3628 = vpop.f32.mrf.mxu0
        %v3629 = vadd.f32 0.0, %v3628
        %v3630 = vpop.f32.mrf.mxu0
        %v3631 = vadd.f32 0.0, %v3630
        %v3632 = vpop.f32.mrf.mxu0
        %v3633 = vadd.f32 0.0, %v3632
        %3634 = vmatprep.mubr.bf16.mxu0 %v3183
        %3635 = vmatmul.mubr.bf16.gmra.mxu0 %v3182
        %v3636 = vpop.f32.mrf.mxu0
        %v3637 = vadd.f32 0.0, %v3636
        %v3638 = vpop.f32.mrf.mxu0
        %v3639 = vadd.f32 0.0, %v3638
        %v3640 = vpop.f32.mrf.mxu0
        %v3641 = vadd.f32 0.0, %v3640
        %v3642 = vpop.f32.mrf.mxu0
        %v3643 = vadd.f32 0.0, %v3642
        %3644 = vmatprep.mubr.bf16.mxu0 %v3187
        %3645 = vmatmul.mubr.bf16.gmra.mxu0 %v3186
        %v3646 = vpop.f32.mrf.mxu0
        %v3647 = vadd.f32 0.0, %v3646
        %v3648 = vpop.f32.mrf.mxu0
        %v3649 = vadd.f32 0.0, %v3648
        %v3650 = vpop.f32.mrf.mxu0
        %v3651 = vadd.f32 0.0, %v3650
        %v3652 = vpop.f32.mrf.mxu0
        %v3653 = vadd.f32 0.0, %v3652
        %3654 = vdwg.mxu0
        %3655 = vmatprep.subr.bf16.mxu0 %v3461
        %3656 = vmatpush1.bf16.msra.mxu0 %v3460
        %3657 = vmatprep.subr.bf16.mxu0 %v3459
        %3658 = vmatpush1.bf16.msra.mxu0 %v3458
        %3659 = vmatprep.subr.bf16.mxu0 %v3457
        %3660 = vmatpush1.bf16.msra.mxu0 %v3456
        %3661 = vmatprep.subr.bf16.mxu0 %v3455
        %3662 = vmatpush1.bf16.msra.mxu0 %v3454
        %3663 = vmatprep.subr.bf16.mxu0 %v3453
        %3664 = vmatpush1.bf16.msra.mxu0 %v3452
        %3665 = vmatprep.subr.bf16.mxu0 %v3451
        %3666 = vmatpush1.bf16.msra.mxu0 %v3450
        %3667 = vmatprep.subr.bf16.mxu0 %v3449
        %3668 = vmatpush1.bf16.msra.mxu0 %v3448
        %3669 = vmatprep.subr.bf16.mxu0 %v3447
        %3670 = vmatpush1.bf16.msra.mxu0 %v3446
        %3671 = vmatprep.subr.bf16.mxu0 %v3477
        %3672 = vmatpush2.bf16.msra.mxu0 %v3476
        %3673 = vmatprep.subr.bf16.mxu0 %v3475
        %3674 = vmatpush2.bf16.msra.mxu0 %v3474
        %3675 = vmatprep.subr.bf16.mxu0 %v3473
        %3676 = vmatpush2.bf16.msra.mxu0 %v3472
        %3677 = vmatprep.subr.bf16.mxu0 %v3471
        %3678 = vmatpush2.bf16.msra.mxu0 %v3470
        %3679 = vmatprep.subr.bf16.mxu0 %v3469
        %3680 = vmatpush2.bf16.msra.mxu0 %v3468
        %3681 = vmatprep.subr.bf16.mxu0 %v3467
        %3682 = vmatpush2.bf16.msra.mxu0 %v3466
        %3683 = vmatprep.subr.bf16.mxu0 %v3465
        %3684 = vmatpush2.bf16.msra.mxu0 %v3464
        %3685 = vmatprep.subr.bf16.mxu0 %v3463
        %3686 = vmatpush2.bf16.msra.mxu0 %v3462
        %3687 = vmatprep.mubr.bf16.mxu0 %v3161
        %3688 = vmatmul.mubr.bf16.gmra.mxu0 %v3160
        %v3689 = vpop.f32.mrf.mxu0
        %v3690 = vadd.f32 %v3577, %v3689
        %v3691 = vpop.f32.mrf.mxu0
        %v3692 = vadd.f32 %v3579, %v3691
        %v3693 = vpop.f32.mrf.mxu0
        %v3694 = vadd.f32 %v3581, %v3693
        %v3695 = vpop.f32.mrf.mxu0
        %v3696 = vadd.f32 %v3583, %v3695
        %3697 = vmatprep.mubr.bf16.mxu0 %v3165
        %3698 = vmatmul.mubr.bf16.gmra.mxu0 %v3164
        %v3699 = vpop.f32.mrf.mxu0
        %v3700 = vadd.f32 %v3587, %v3699
        %v3701 = vpop.f32.mrf.mxu0
        %v3702 = vadd.f32 %v3589, %v3701
        %v3703 = vpop.f32.mrf.mxu0
        %v3704 = vadd.f32 %v3591, %v3703
        %v3705 = vpop.f32.mrf.mxu0
        %v3706 = vadd.f32 %v3593, %v3705
        %3707 = vmatprep.mubr.bf16.mxu0 %v3169
        %3708 = vmatmul.mubr.bf16.gmra.mxu0 %v3168
        %v3709 = vpop.f32.mrf.mxu0
        %v3710 = vadd.f32 %v3597, %v3709
        %v3711 = vpop.f32.mrf.mxu0
        %v3712 = vadd.f32 %v3599, %v3711
        %v3713 = vpop.f32.mrf.mxu0
        %v3714 = vadd.f32 %v3601, %v3713
        %v3715 = vpop.f32.mrf.mxu0
        %v3716 = vadd.f32 %v3603, %v3715
        %3717 = vmatprep.mubr.bf16.mxu0 %v3173
        %3718 = vmatmul.mubr.bf16.gmra.mxu0 %v3172
        %v3719 = vpop.f32.mrf.mxu0
        %v3720 = vadd.f32 %v3607, %v3719
        %v3721 = vpop.f32.mrf.mxu0
        %v3722 = vadd.f32 %v3609, %v3721
        %v3723 = vpop.f32.mrf.mxu0
        %v3724 = vadd.f32 %v3611, %v3723
        %v3725 = vpop.f32.mrf.mxu0
        %v3726 = vadd.f32 %v3613, %v3725
        %3727 = vmatprep.mubr.bf16.mxu0 %v3177
        %3728 = vmatmul.mubr.bf16.gmra.mxu0 %v3176
        %v3729 = vpop.f32.mrf.mxu0
        %v3730 = vadd.f32 %v3617, %v3729
        %v3731 = vpop.f32.mrf.mxu0
        %v3732 = vadd.f32 %v3619, %v3731
        %v3733 = vpop.f32.mrf.mxu0
        %v3734 = vadd.f32 %v3621, %v3733
        %v3735 = vpop.f32.mrf.mxu0
        %v3736 = vadd.f32 %v3623, %v3735
        %3737 = vmatprep.mubr.bf16.mxu0 %v3181
        %3738 = vmatmul.mubr.bf16.gmra.mxu0 %v3180
        %v3739 = vpop.f32.mrf.mxu0
        %v3740 = vadd.f32 %v3627, %v3739
        %v3741 = vpop.f32.mrf.mxu0
        %v3742 = vadd.f32 %v3629, %v3741
        %v3743 = vpop.f32.mrf.mxu0
        %v3744 = vadd.f32 %v3631, %v3743
        %v3745 = vpop.f32.mrf.mxu0
        %v3746 = vadd.f32 %v3633, %v3745
        %3747 = vmatprep.mubr.bf16.mxu0 %v3185
        %3748 = vmatmul.mubr.bf16.gmra.mxu0 %v3184
        %v3749 = vpop.f32.mrf.mxu0
        %v3750 = vadd.f32 %v3637, %v3749
        %v3751 = vpop.f32.mrf.mxu0
        %v3752 = vadd.f32 %v3639, %v3751
        %v3753 = vpop.f32.mrf.mxu0
        %v3754 = vadd.f32 %v3641, %v3753
        %v3755 = vpop.f32.mrf.mxu0
        %v3756 = vadd.f32 %v3643, %v3755
        %3757 = vmatprep.mubr.bf16.mxu0 %v3189
        %3758 = vmatmul.mubr.bf16.gmra.mxu0 %v3188
        %v3759 = vpop.f32.mrf.mxu0
        %v3760 = vadd.f32 %v3647, %v3759
        %v3761 = vpop.f32.mrf.mxu0
        %v3762 = vadd.f32 %v3649, %v3761
        %v3763 = vpop.f32.mrf.mxu0
        %v3764 = vadd.f32 %v3651, %v3763
        %v3765 = vpop.f32.mrf.mxu0
        %v3766 = vadd.f32 %v3653, %v3765
        %3767 = vdwg.mxu0
        %v3768 = vadd.f32 %v3690, %v3694
        %v3769 = vadd.f32 %v3768, %v3700
        %v3770 = vadd.f32 %v3769, %v3704
        %v3771 = vadd.f32 %v3770, %v3710
        %v3772 = vadd.f32 %v3771, %v3714
        %v3773 = vadd.f32 %v3772, %v3720
        %v3774 = vadd.f32 %v3773, %v3724
        %v3775 = vrot.slane %v3774, 4
        %v3776 = vadd.f32 %v3774, %v3775
        %v3777 = vrot.slane %v3776, 2
        %v3778 = vadd.f32 %v3776, %v3777
        %v3779 = vrot.slane %v3778, 1
        %v3780 = vadd.f32 %v3778, %v3779
        %v3781 = vadd.f32 %v3692, %v3696
        %v3782 = vadd.f32 %v3781, %v3702
        %v3783 = vadd.f32 %v3782, %v3706
        %v3784 = vadd.f32 %v3783, %v3712
        %v3785 = vadd.f32 %v3784, %v3716
        %v3786 = vadd.f32 %v3785, %v3722
        %v3787 = vadd.f32 %v3786, %v3726
        %v3788 = vrot.slane %v3787, 4
        %v3789 = vadd.f32 %v3787, %v3788
        %v3790 = vrot.slane %v3789, 2
        %v3791 = vadd.f32 %v3789, %v3790
        %v3792 = vrot.slane %v3791, 1
        %v3793 = vadd.f32 %v3791, %v3792
        %v3794 = vadd.f32 %v3730, %v3734
        %v3795 = vadd.f32 %v3794, %v3740
        %v3796 = vadd.f32 %v3795, %v3744
        %v3797 = vadd.f32 %v3796, %v3750
        %v3798 = vadd.f32 %v3797, %v3754
        %v3799 = vadd.f32 %v3798, %v3760
        %v3800 = vadd.f32 %v3799, %v3764
        %v3801 = vrot.slane %v3800, 4
        %v3802 = vadd.f32 %v3800, %v3801
        %v3803 = vrot.slane %v3802, 2
        %v3804 = vadd.f32 %v3802, %v3803
        %v3805 = vrot.slane %v3804, 1
        %v3806 = vadd.f32 %v3804, %v3805
        %v3807 = vadd.f32 %v3732, %v3736
        %v3808 = vadd.f32 %v3807, %v3742
        %v3809 = vadd.f32 %v3808, %v3746
        %v3810 = vadd.f32 %v3809, %v3752
        %v3811 = vadd.f32 %v3810, %v3756
        %v3812 = vadd.f32 %v3811, %v3762
        %v3813 = vadd.f32 %v3812, %v3766
        %v3814 = vrot.slane %v3813, 4
        %v3815 = vadd.f32 %v3813, %v3814
        %v3816 = vrot.slane %v3815, 2
        %v3817 = vadd.f32 %v3815, %v3816
        %v3818 = vrot.slane %v3817, 1
        %v3819 = vadd.f32 %v3817, %v3818
        %v3820 = vmul.f32 %v3780, %v2506
        %v3821 = vmul.f32 %v3793, %v2506
        %v3822 = vmul.f32 %v3806, %v2506
        %v3823 = vmul.f32 %v3819, %v2506
        %v3824 = vadd.f32 %v2511, %v3820
        %v3825 = vadd.f32 %v2512, %v3821
        %v3826 = vadd.f32 %v2513, %v3822
        %v3827 = vadd.f32 %v2514, %v3823
        %v3828 = vld [vmem:[#allocation2] sm:$0xee]
        %v3829 = vld [vmem:[#allocation2 + $0x8] sm:$0xee]
        %v3830 = vld [vmem:[#allocation2 + $0x20] sm:$0xee]
        %v3831 = vld [vmem:[#allocation2 + $0x28] sm:$0xee]
        %v3832 = vld [vmem:[#allocation2 + $0x40] sm:$0xee]
        %v3833 = vld [vmem:[#allocation2 + $0x48] sm:$0xee]
        %v3834 = vld [vmem:[#allocation2 + $0x60] sm:$0xee]
        %v3835 = vld [vmem:[#allocation2 + $0x68] sm:$0xee]
        %v3836 = vld [vmem:[#allocation2 + $0x80] sm:$0xee]
        %v3837 = vld [vmem:[#allocation2 + $0x88] sm:$0xee]
        %v3838 = vld [vmem:[#allocation2 + $0xa0] sm:$0xee]
        %v3839 = vld [vmem:[#allocation2 + $0xa8] sm:$0xee]
        %v3840 = vld [vmem:[#allocation2 + $0xc0] sm:$0xee]
        %v3841 = vld [vmem:[#allocation2 + $0xc8] sm:$0xee]
        %v3842 = vld [vmem:[#allocation2 + $0xe0] sm:$0xee]
        %v3843 = vld [vmem:[#allocation2 + $0xe8] sm:$0xee]
        %v3844 = vld [vmem:[#allocation2 + $0x140] sm:$0xee]
        %v3845 = vld [vmem:[#allocation2 + $0x148] sm:$0xee]
        %v3846 = vld [vmem:[#allocation2 + $0x160] sm:$0xee]
        %v3847 = vld [vmem:[#allocation2 + $0x168] sm:$0xee]
        %v3848 = vld [vmem:[#allocation2 + $0x180] sm:$0xee]
        %v3849 = vld [vmem:[#allocation2 + $0x188] sm:$0xee]
        %v3850 = vld [vmem:[#allocation2 + $0x1a0] sm:$0xee]
        %v3851 = vld [vmem:[#allocation2 + $0x1a8] sm:$0xee]
        %v3852 = vld [vmem:[#allocation2 + $0x1c0] sm:$0xee]
        %v3853 = vld [vmem:[#allocation2 + $0x1c8] sm:$0xee]
        %v3854 = vld [vmem:[#allocation2 + $0x1e0] sm:$0xee]
        %v3855 = vld [vmem:[#allocation2 + $0x1e8] sm:$0xee]
        %v3856 = vld [vmem:[#allocation2 + $0x200] sm:$0xee]
        %v3857 = vld [vmem:[#allocation2 + $0x208] sm:$0xee]
        %v3858 = vld [vmem:[#allocation2 + $0x220] sm:$0xee]
        %v3859 = vld [vmem:[#allocation2 + $0x228] sm:$0xee]
        %vm3924 = vcmask 1042432
        %vm3925 = vcmask 1046532
        %vm3926 = vmor %vm3924, %vm3925
        %v3927 = vrot.slane %v3828, 5
        %v3928 = vrot.slane %v3927, 4
        %v3929 = vrot.slane %v2517, 5
        %v3930 = vsel %vm3926, %v3928, %v3929
        %v3931 = vrot.slane %v3829, 5
        %v3932 = vrot.slane %v3931, 4
        %v3933 = vrot.slane %v2518, 5
        %v3934 = vsel %vm3926, %v3932, %v3933
        %v3935 = vrot.slane %v3830, 5
        %v3936 = vrot.slane %v3935, 4
        %v3937 = vrot.slane %v2521, 5
        %v3938 = vsel %vm3926, %v3936, %v3937
        %v3939 = vrot.slane %v3831, 5
        %v3940 = vrot.slane %v3939, 4
        %v3941 = vrot.slane %v2522, 5
        %v3942 = vsel %vm3926, %v3940, %v3941
        %v3943 = vrot.slane %v3832, 5
        %v3944 = vrot.slane %v3943, 4
        %v3945 = vrot.slane %v2525, 5
        %v3946 = vsel %vm3926, %v3944, %v3945
        %v3947 = vrot.slane %v3833, 5
        %v3948 = vrot.slane %v3947, 4
        %v3949 = vrot.slane %v2526, 5
        %v3950 = vsel %vm3926, %v3948, %v3949
        %v3951 = vrot.slane %v3834, 5
        %v3952 = vrot.slane %v3951, 4
        %v3953 = vrot.slane %v2529, 5
        %v3954 = vsel %vm3926, %v3952, %v3953
        %v3955 = vrot.slane %v3835, 5
        %v3956 = vrot.slane %v3955, 4
        %v3957 = vrot.slane %v2530, 5
        %v3958 = vsel %vm3926, %v3956, %v3957
        %v3959 = vrot.slane %v3836, 5
        %v3960 = vrot.slane %v3959, 4
        %v3961 = vrot.slane %v2533, 5
        %v3962 = vsel %vm3926, %v3960, %v3961
        %v3963 = vrot.slane %v3837, 5
        %v3964 = vrot.slane %v3963, 4
        %v3965 = vrot.slane %v2534, 5
        %v3966 = vsel %vm3926, %v3964, %v3965
        %v3967 = vrot.slane %v3838, 5
        %v3968 = vrot.slane %v3967, 4
        %v3969 = vrot.slane %v2537, 5
        %v3970 = vsel %vm3926, %v3968, %v3969
        %v3971 = vrot.slane %v3839, 5
        %v3972 = vrot.slane %v3971, 4
        %v3973 = vrot.slane %v2538, 5
        %v3974 = vsel %vm3926, %v3972, %v3973
        %v3975 = vrot.slane %v3840, 5
        %v3976 = vrot.slane %v3975, 4
        %v3977 = vrot.slane %v2541, 5
        %v3978 = vsel %vm3926, %v3976, %v3977
        %v3979 = vrot.slane %v3841, 5
        %v3980 = vrot.slane %v3979, 4
        %v3981 = vrot.slane %v2542, 5
        %v3982 = vsel %vm3926, %v3980, %v3981
        %v3983 = vrot.slane %v3842, 5
        %v3984 = vrot.slane %v3983, 4
        %v3985 = vrot.slane %v2545, 5
        %v3986 = vsel %vm3926, %v3984, %v3985
        %v3987 = vrot.slane %v3843, 5
        %v3988 = vrot.slane %v3987, 4
        %v3989 = vrot.slane %v2546, 5
        %v3990 = vsel %vm3926, %v3988, %v3989
        %v3991 = vrot.slane %v3844, 5
        %v3992 = vrot.slane %v3991, 4
        %v3993 = vrot.slane %v2549, 5
        %v3994 = vsel %vm3926, %v3992, %v3993
        %v3995 = vrot.slane %v3845, 5
        %v3996 = vrot.slane %v3995, 4
        %v3997 = vrot.slane %v2550, 5
        %v3998 = vsel %vm3926, %v3996, %v3997
        %v3999 = vrot.slane %v3846, 5
        %v4000 = vrot.slane %v3999, 4
        %v4001 = vrot.slane %v2553, 5
        %v4002 = vsel %vm3926, %v4000, %v4001
        %v4003 = vrot.slane %v3847, 5
        %v4004 = vrot.slane %v4003, 4
        %v4005 = vrot.slane %v2554, 5
        %v4006 = vsel %vm3926, %v4004, %v4005
        %v4007 = vrot.slane %v3848, 5
        %v4008 = vrot.slane %v4007, 4
        %v4009 = vrot.slane %v2557, 5
        %v4010 = vsel %vm3926, %v4008, %v4009
        %v4011 = vrot.slane %v3849, 5
        %v4012 = vrot.slane %v4011, 4
        %v4013 = vrot.slane %v2558, 5
        %v4014 = vsel %vm3926, %v4012, %v4013
        %v4015 = vrot.slane %v3850, 5
        %v4016 = vrot.slane %v4015, 4
        %v4017 = vrot.slane %v2561, 5
        %v4018 = vsel %vm3926, %v4016, %v4017
        %v4019 = vrot.slane %v3851, 5
        %v4020 = vrot.slane %v4019, 4
        %v4021 = vrot.slane %v2562, 5
        %v4022 = vsel %vm3926, %v4020, %v4021
        %v4023 = vrot.slane %v3852, 5
        %v4024 = vrot.slane %v4023, 4
        %v4025 = vrot.slane %v2565, 5
        %v4026 = vsel %vm3926, %v4024, %v4025
        %v4027 = vrot.slane %v3853, 5
        %v4028 = vrot.slane %v4027, 4
        %v4029 = vrot.slane %v2566, 5
        %v4030 = vsel %vm3926, %v4028, %v4029
        %v4031 = vrot.slane %v3854, 5
        %v4032 = vrot.slane %v4031, 4
        %v4033 = vrot.slane %v2569, 5
        %v4034 = vsel %vm3926, %v4032, %v4033
        %v4035 = vrot.slane %v3855, 5
        %v4036 = vrot.slane %v4035, 4
        %v4037 = vrot.slane %v2570, 5
        %v4038 = vsel %vm3926, %v4036, %v4037
        %v4039 = vrot.slane %v3856, 5
        %v4040 = vrot.slane %v4039, 4
        %v4041 = vrot.slane %v2573, 5
        %v4042 = vsel %vm3926, %v4040, %v4041
        %v4043 = vrot.slane %v3857, 5
        %v4044 = vrot.slane %v4043, 4
        %v4045 = vrot.slane %v2574, 5
        %v4046 = vsel %vm3926, %v4044, %v4045
        %v4047 = vrot.slane %v3858, 5
        %v4048 = vrot.slane %v4047, 4
        %v4049 = vrot.slane %v2577, 5
        %v4050 = vsel %vm3926, %v4048, %v4049
        %v4051 = vrot.slane %v3859, 5
        %v4052 = vrot.slane %v4051, 4
        %v4053 = vrot.slane %v2578, 5
        %v4054 = vsel %vm3926, %v4052, %v4053
        %v4055 = vld [vmem:[%s227 + $0x400] sm:$0xff]
        %v4056 = vld [vmem:[%s227 + $0x408] sm:$0xff]
        %v4057 = vld [vmem:[%s227 + $0x410] sm:$0xff]
        %v4058 = vld [vmem:[%s227 + $0x418] sm:$0xff]
        %v4059 = vld [vmem:[%s227 + $0x420] sm:$0xff]
        %v4060 = vld [vmem:[%s227 + $0x428] sm:$0xff]
        %v4061 = vld [vmem:[%s227 + $0x430] sm:$0xff]
        %v4062 = vld [vmem:[%s227 + $0x438] sm:$0xff]
        %v4063 = vld [vmem:[%s227 + $0x440] sm:$0xff]
        %v4064 = vld [vmem:[%s227 + $0x448] sm:$0xff]
        %v4065 = vld [vmem:[%s227 + $0x450] sm:$0xff]
        %v4066 = vld [vmem:[%s227 + $0x458] sm:$0xff]
        %v4067 = vld [vmem:[%s227 + $0x460] sm:$0xff]
        %v4068 = vld [vmem:[%s227 + $0x468] sm:$0xff]
        %v4069 = vld [vmem:[%s227 + $0x470] sm:$0xff]
        %v4070 = vld [vmem:[%s227 + $0x478] sm:$0xff]
        %v4071 = vld [vmem:[%s227 + $0x480] sm:$0xff]
        %v4072 = vld [vmem:[%s227 + $0x488] sm:$0xff]
        %v4073 = vld [vmem:[%s227 + $0x490] sm:$0xff]
        %v4074 = vld [vmem:[%s227 + $0x498] sm:$0xff]
        %v4075 = vld [vmem:[%s227 + $0x4a0] sm:$0xff]
        %v4076 = vld [vmem:[%s227 + $0x4a8] sm:$0xff]
        %v4077 = vld [vmem:[%s227 + $0x4b0] sm:$0xff]
        %v4078 = vld [vmem:[%s227 + $0x4b8] sm:$0xff]
        %v4079 = vld [vmem:[%s227 + $0x4c0] sm:$0xff]
        %v4080 = vld [vmem:[%s227 + $0x4c8] sm:$0xff]
        %v4081 = vld [vmem:[%s227 + $0x4d0] sm:$0xff]
        %v4082 = vld [vmem:[%s227 + $0x4d8] sm:$0xff]
        %v4083 = vld [vmem:[%s227 + $0x4e0] sm:$0xff]
        %v4084 = vld [vmem:[%s227 + $0x4e8] sm:$0xff]
        %v4085 = vld [vmem:[%s227 + $0x4f0] sm:$0xff]
        %v4086 = vld [vmem:[%s227 + $0x4f8] sm:$0xff]
        %v4087 = vld [vmem:[%s227 + $0x500] sm:$0xff]
        %v4088 = vld [vmem:[%s227 + $0x508] sm:$0xff]
        %v4089 = vld [vmem:[%s227 + $0x510] sm:$0xff]
        %v4090 = vld [vmem:[%s227 + $0x518] sm:$0xff]
        %v4091 = vld [vmem:[%s227 + $0x520] sm:$0xff]
        %v4092 = vld [vmem:[%s227 + $0x528] sm:$0xff]
        %v4093 = vld [vmem:[%s227 + $0x530] sm:$0xff]
        %v4094 = vld [vmem:[%s227 + $0x538] sm:$0xff]
        %v4095 = vld [vmem:[%s227 + $0x540] sm:$0xff]
        %v4096 = vld [vmem:[%s227 + $0x548] sm:$0xff]
        %v4097 = vld [vmem:[%s227 + $0x550] sm:$0xff]
        %v4098 = vld [vmem:[%s227 + $0x558] sm:$0xff]
        %v4099 = vld [vmem:[%s227 + $0x560] sm:$0xff]
        %v4100 = vld [vmem:[%s227 + $0x568] sm:$0xff]
        %v4101 = vld [vmem:[%s227 + $0x570] sm:$0xff]
        %v4102 = vld [vmem:[%s227 + $0x578] sm:$0xff]
        %v4103 = vld [vmem:[%s227 + $0x580] sm:$0xff]
        %v4104 = vld [vmem:[%s227 + $0x588] sm:$0xff]
        %v4105 = vld [vmem:[%s227 + $0x590] sm:$0xff]
        %v4106 = vld [vmem:[%s227 + $0x598] sm:$0xff]
        %v4107 = vld [vmem:[%s227 + $0x5a0] sm:$0xff]
        %v4108 = vld [vmem:[%s227 + $0x5a8] sm:$0xff]
        %v4109 = vld [vmem:[%s227 + $0x5b0] sm:$0xff]
        %v4110 = vld [vmem:[%s227 + $0x5b8] sm:$0xff]
        %v4111 = vld [vmem:[%s227 + $0x5c0] sm:$0xff]
        %v4112 = vld [vmem:[%s227 + $0x5c8] sm:$0xff]
        %v4113 = vld [vmem:[%s227 + $0x5d0] sm:$0xff]
        %v4114 = vld [vmem:[%s227 + $0x5d8] sm:$0xff]
        %v4115 = vld [vmem:[%s227 + $0x5e0] sm:$0xff]
        %v4116 = vld [vmem:[%s227 + $0x5e8] sm:$0xff]
        %v4117 = vld [vmem:[%s227 + $0x5f0] sm:$0xff]
        %v4118 = vld [vmem:[%s227 + $0x5f8] sm:$0xff]
        %v4119 = vunpack.c.l.b16 %v3930
        %v4120 = vunpack.c.h.b16 %v3930
        %v4121 = vunpack.c.l.b16 %v3934
        %v4122 = vunpack.c.h.b16 %v3934
        %v4123 = vunpack.c.l.b16 %v3938
        %v4124 = vunpack.c.h.b16 %v3938
        %v4125 = vunpack.c.l.b16 %v3942
        %v4126 = vunpack.c.h.b16 %v3942
        %v4127 = vunpack.c.l.b16 %v3946
        %v4128 = vunpack.c.h.b16 %v3946
        %v4129 = vunpack.c.l.b16 %v3950
        %v4130 = vunpack.c.h.b16 %v3950
        %v4131 = vunpack.c.l.b16 %v3954
        %v4132 = vunpack.c.h.b16 %v3954
        %v4133 = vunpack.c.l.b16 %v3958
        %v4134 = vunpack.c.h.b16 %v3958
        %v4135 = vunpack.c.l.b16 %v3962
        %v4136 = vunpack.c.h.b16 %v3962
        %v4137 = vunpack.c.l.b16 %v3966
        %v4138 = vunpack.c.h.b16 %v3966
        %v4139 = vunpack.c.l.b16 %v3970
        %v4140 = vunpack.c.h.b16 %v3970
        %v4141 = vunpack.c.l.b16 %v3974
        %v4142 = vunpack.c.h.b16 %v3974
        %v4143 = vunpack.c.l.b16 %v3978
        %v4144 = vunpack.c.h.b16 %v3978
        %v4145 = vunpack.c.l.b16 %v3982
        %v4146 = vunpack.c.h.b16 %v3982
        %v4147 = vunpack.c.l.b16 %v3986
        %v4148 = vunpack.c.h.b16 %v3986
        %v4149 = vunpack.c.l.b16 %v3990
        %v4150 = vunpack.c.h.b16 %v3990
        %v4151 = vunpack.c.l.b16 %v3994
        %v4152 = vunpack.c.h.b16 %v3994
        %v4153 = vunpack.c.l.b16 %v3998
        %v4154 = vunpack.c.h.b16 %v3998
        %v4155 = vunpack.c.l.b16 %v4002
        %v4156 = vunpack.c.h.b16 %v4002
        %v4157 = vunpack.c.l.b16 %v4006
        %v4158 = vunpack.c.h.b16 %v4006
        %v4159 = vunpack.c.l.b16 %v4010
        %v4160 = vunpack.c.h.b16 %v4010
        %v4161 = vunpack.c.l.b16 %v4014
        %v4162 = vunpack.c.h.b16 %v4014
        %v4163 = vunpack.c.l.b16 %v4018
        %v4164 = vunpack.c.h.b16 %v4018
        %v4165 = vunpack.c.l.b16 %v4022
        %v4166 = vunpack.c.h.b16 %v4022
        %v4167 = vunpack.c.l.b16 %v4026
        %v4168 = vunpack.c.h.b16 %v4026
        %v4169 = vunpack.c.l.b16 %v4030
        %v4170 = vunpack.c.h.b16 %v4030
        %v4171 = vunpack.c.l.b16 %v4034
        %v4172 = vunpack.c.h.b16 %v4034
        %v4173 = vunpack.c.l.b16 %v4038
        %v4174 = vunpack.c.h.b16 %v4038
        %v4175 = vunpack.c.l.b16 %v4042
        %v4176 = vunpack.c.h.b16 %v4042
        %v4177 = vunpack.c.l.b16 %v4046
        %v4178 = vunpack.c.h.b16 %v4046
        %v4179 = vunpack.c.l.b16 %v4050
        %v4180 = vunpack.c.h.b16 %v4050
        %v4181 = vunpack.c.l.b16 %v4054
        %v4182 = vunpack.c.h.b16 %v4054
        %v4183 = vpack.c.b16 %v4123, %v4119
        %v4184 = vpack.c.b16 %v4124, %v4120
        %v4185 = vpack.c.b16 %v4125, %v4121
        %v4186 = vpack.c.b16 %v4126, %v4122
        %v4187 = vpack.c.b16 %v4131, %v4127
        %v4188 = vpack.c.b16 %v4132, %v4128
        %v4189 = vpack.c.b16 %v4133, %v4129
        %v4190 = vpack.c.b16 %v4134, %v4130
        %v4191 = vpack.c.b16 %v4139, %v4135
        %v4192 = vpack.c.b16 %v4140, %v4136
        %v4193 = vpack.c.b16 %v4141, %v4137
        %v4194 = vpack.c.b16 %v4142, %v4138
        %v4195 = vpack.c.b16 %v4147, %v4143
        %v4196 = vpack.c.b16 %v4148, %v4144
        %v4197 = vpack.c.b16 %v4149, %v4145
        %v4198 = vpack.c.b16 %v4150, %v4146
        %v4199 = vpack.c.b16 %v4155, %v4151
        %v4200 = vpack.c.b16 %v4156, %v4152
        %v4201 = vpack.c.b16 %v4157, %v4153
        %v4202 = vpack.c.b16 %v4158, %v4154
        %v4203 = vpack.c.b16 %v4163, %v4159
        %v4204 = vpack.c.b16 %v4164, %v4160
        %v4205 = vpack.c.b16 %v4165, %v4161
        %v4206 = vpack.c.b16 %v4166, %v4162
        %v4207 = vpack.c.b16 %v4171, %v4167
        %v4208 = vpack.c.b16 %v4172, %v4168
        %v4209 = vpack.c.b16 %v4173, %v4169
        %v4210 = vpack.c.b16 %v4174, %v4170
        %v4211 = vpack.c.b16 %v4179, %v4175
        %v4212 = vpack.c.b16 %v4180, %v4176
        %v4213 = vpack.c.b16 %v4181, %v4177
        %v4214 = vpack.c.b16 %v4182, %v4178
        %v4311 = vunpack.c.l.b16 %v4055
        %v4312 = vunpack.c.h.b16 %v4055
        %v4313 = vunpack.c.l.b16 %v4056
        %v4314 = vunpack.c.h.b16 %v4056
        %v4315 = vunpack.c.l.b16 %v4057
        %v4316 = vunpack.c.h.b16 %v4057
        %v4317 = vunpack.c.l.b16 %v4058
        %v4318 = vunpack.c.h.b16 %v4058
        %v4319 = vunpack.c.l.b16 %v4059
        %v4320 = vunpack.c.h.b16 %v4059
        %v4321 = vunpack.c.l.b16 %v4060
        %v4322 = vunpack.c.h.b16 %v4060
        %v4323 = vunpack.c.l.b16 %v4061
        %v4324 = vunpack.c.h.b16 %v4061
        %v4325 = vunpack.c.l.b16 %v4062
        %v4326 = vunpack.c.h.b16 %v4062
        %v4327 = vunpack.c.l.b16 %v4063
        %v4328 = vunpack.c.h.b16 %v4063
        %v4329 = vunpack.c.l.b16 %v4064
        %v4330 = vunpack.c.h.b16 %v4064
        %v4331 = vunpack.c.l.b16 %v4065
        %v4332 = vunpack.c.h.b16 %v4065
        %v4333 = vunpack.c.l.b16 %v4066
        %v4334 = vunpack.c.h.b16 %v4066
        %v4335 = vunpack.c.l.b16 %v4067
        %v4336 = vunpack.c.h.b16 %v4067
        %v4337 = vunpack.c.l.b16 %v4068
        %v4338 = vunpack.c.h.b16 %v4068
        %v4339 = vunpack.c.l.b16 %v4069
        %v4340 = vunpack.c.h.b16 %v4069
        %v4341 = vunpack.c.l.b16 %v4070
        %v4342 = vunpack.c.h.b16 %v4070
        %v4343 = vunpack.c.l.b16 %v4071
        %v4344 = vunpack.c.h.b16 %v4071
        %v4345 = vunpack.c.l.b16 %v4072
        %v4346 = vunpack.c.h.b16 %v4072
        %v4347 = vunpack.c.l.b16 %v4073
        %v4348 = vunpack.c.h.b16 %v4073
        %v4349 = vunpack.c.l.b16 %v4074
        %v4350 = vunpack.c.h.b16 %v4074
        %v4351 = vunpack.c.l.b16 %v4075
        %v4352 = vunpack.c.h.b16 %v4075
        %v4353 = vunpack.c.l.b16 %v4076
        %v4354 = vunpack.c.h.b16 %v4076
        %v4355 = vunpack.c.l.b16 %v4077
        %v4356 = vunpack.c.h.b16 %v4077
        %v4357 = vunpack.c.l.b16 %v4078
        %v4358 = vunpack.c.h.b16 %v4078
        %v4359 = vunpack.c.l.b16 %v4079
        %v4360 = vunpack.c.h.b16 %v4079
        %v4361 = vunpack.c.l.b16 %v4080
        %v4362 = vunpack.c.h.b16 %v4080
        %v4363 = vunpack.c.l.b16 %v4081
        %v4364 = vunpack.c.h.b16 %v4081
        %v4365 = vunpack.c.l.b16 %v4082
        %v4366 = vunpack.c.h.b16 %v4082
        %v4367 = vunpack.c.l.b16 %v4083
        %v4368 = vunpack.c.h.b16 %v4083
        %v4369 = vunpack.c.l.b16 %v4084
        %v4370 = vunpack.c.h.b16 %v4084
        %v4371 = vunpack.c.l.b16 %v4085
        %v4372 = vunpack.c.h.b16 %v4085
        %v4373 = vunpack.c.l.b16 %v4086
        %v4374 = vunpack.c.h.b16 %v4086
        %v4375 = vunpack.c.l.b16 %v4087
        %v4376 = vunpack.c.h.b16 %v4087
        %v4377 = vunpack.c.l.b16 %v4088
        %v4378 = vunpack.c.h.b16 %v4088
        %v4379 = vunpack.c.l.b16 %v4089
        %v4380 = vunpack.c.h.b16 %v4089
        %v4381 = vunpack.c.l.b16 %v4090
        %v4382 = vunpack.c.h.b16 %v4090
        %v4383 = vunpack.c.l.b16 %v4091
        %v4384 = vunpack.c.h.b16 %v4091
        %v4385 = vunpack.c.l.b16 %v4092
        %v4386 = vunpack.c.h.b16 %v4092
        %v4387 = vunpack.c.l.b16 %v4093
        %v4388 = vunpack.c.h.b16 %v4093
        %v4389 = vunpack.c.l.b16 %v4094
        %v4390 = vunpack.c.h.b16 %v4094
        %v4391 = vunpack.c.l.b16 %v4095
        %v4392 = vunpack.c.h.b16 %v4095
        %v4393 = vunpack.c.l.b16 %v4096
        %v4394 = vunpack.c.h.b16 %v4096
        %v4395 = vunpack.c.l.b16 %v4097
        %v4396 = vunpack.c.h.b16 %v4097
        %v4397 = vunpack.c.l.b16 %v4098
        %v4398 = vunpack.c.h.b16 %v4098
        %v4399 = vunpack.c.l.b16 %v4099
        %v4400 = vunpack.c.h.b16 %v4099
        %v4401 = vunpack.c.l.b16 %v4100
        %v4402 = vunpack.c.h.b16 %v4100
        %v4403 = vunpack.c.l.b16 %v4101
        %v4404 = vunpack.c.h.b16 %v4101
        %v4405 = vunpack.c.l.b16 %v4102
        %v4406 = vunpack.c.h.b16 %v4102
        %v4407 = vunpack.c.l.b16 %v4103
        %v4408 = vunpack.c.h.b16 %v4103
        %v4409 = vunpack.c.l.b16 %v4104
        %v4410 = vunpack.c.h.b16 %v4104
        %v4411 = vunpack.c.l.b16 %v4105
        %v4412 = vunpack.c.h.b16 %v4105
        %v4413 = vunpack.c.l.b16 %v4106
        %v4414 = vunpack.c.h.b16 %v4106
        %v4415 = vunpack.c.l.b16 %v4107
        %v4416 = vunpack.c.h.b16 %v4107
        %v4417 = vunpack.c.l.b16 %v4108
        %v4418 = vunpack.c.h.b16 %v4108
        %v4419 = vunpack.c.l.b16 %v4109
        %v4420 = vunpack.c.h.b16 %v4109
        %v4421 = vunpack.c.l.b16 %v4110
        %v4422 = vunpack.c.h.b16 %v4110
        %v4423 = vunpack.c.l.b16 %v4111
        %v4424 = vunpack.c.h.b16 %v4111
        %v4425 = vunpack.c.l.b16 %v4112
        %v4426 = vunpack.c.h.b16 %v4112
        %v4427 = vunpack.c.l.b16 %v4113
        %v4428 = vunpack.c.h.b16 %v4113
        %v4429 = vunpack.c.l.b16 %v4114
        %v4430 = vunpack.c.h.b16 %v4114
        %v4431 = vunpack.c.l.b16 %v4115
        %v4432 = vunpack.c.h.b16 %v4115
        %v4433 = vunpack.c.l.b16 %v4116
        %v4434 = vunpack.c.h.b16 %v4116
        %v4435 = vunpack.c.l.b16 %v4117
        %v4436 = vunpack.c.h.b16 %v4117
        %v4437 = vunpack.c.l.b16 %v4118
        %v4438 = vunpack.c.h.b16 %v4118
        %v4439 = vpack.c.b16 %v4313, %v4311
        %v4440 = vpack.c.b16 %v4314, %v4312
        %v4441 = vpack.c.b16 %v4317, %v4315
        %v4442 = vpack.c.b16 %v4318, %v4316
        %v4443 = vpack.c.b16 %v4321, %v4319
        %v4444 = vpack.c.b16 %v4322, %v4320
        %v4445 = vpack.c.b16 %v4325, %v4323
        %v4446 = vpack.c.b16 %v4326, %v4324
        %v4447 = vpack.c.b16 %v4329, %v4327
        %v4448 = vpack.c.b16 %v4330, %v4328
        %v4449 = vpack.c.b16 %v4333, %v4331
        %v4450 = vpack.c.b16 %v4334, %v4332
        %v4451 = vpack.c.b16 %v4337, %v4335
        %v4452 = vpack.c.b16 %v4338, %v4336
        %v4453 = vpack.c.b16 %v4341, %v4339
        %v4454 = vpack.c.b16 %v4342, %v4340
        %v4455 = vpack.c.b16 %v4345, %v4343
        %v4456 = vpack.c.b16 %v4346, %v4344
        %v4457 = vpack.c.b16 %v4349, %v4347
        %v4458 = vpack.c.b16 %v4350, %v4348
        %v4459 = vpack.c.b16 %v4353, %v4351
        %v4460 = vpack.c.b16 %v4354, %v4352
        %v4461 = vpack.c.b16 %v4357, %v4355
        %v4462 = vpack.c.b16 %v4358, %v4356
        %v4463 = vpack.c.b16 %v4361, %v4359
        %v4464 = vpack.c.b16 %v4362, %v4360
        %v4465 = vpack.c.b16 %v4365, %v4363
        %v4466 = vpack.c.b16 %v4366, %v4364
        %v4467 = vpack.c.b16 %v4369, %v4367
        %v4468 = vpack.c.b16 %v4370, %v4368
        %v4469 = vpack.c.b16 %v4373, %v4371
        %v4470 = vpack.c.b16 %v4374, %v4372
        %v4471 = vpack.c.b16 %v4377, %v4375
        %v4472 = vpack.c.b16 %v4378, %v4376
        %v4473 = vpack.c.b16 %v4381, %v4379
        %v4474 = vpack.c.b16 %v4382, %v4380
        %v4475 = vpack.c.b16 %v4385, %v4383
        %v4476 = vpack.c.b16 %v4386, %v4384
        %v4477 = vpack.c.b16 %v4389, %v4387
        %v4478 = vpack.c.b16 %v4390, %v4388
        %v4479 = vpack.c.b16 %v4393, %v4391
        %v4480 = vpack.c.b16 %v4394, %v4392
        %v4481 = vpack.c.b16 %v4397, %v4395
        %v4482 = vpack.c.b16 %v4398, %v4396
        %v4483 = vpack.c.b16 %v4401, %v4399
        %v4484 = vpack.c.b16 %v4402, %v4400
        %v4485 = vpack.c.b16 %v4405, %v4403
        %v4486 = vpack.c.b16 %v4406, %v4404
        %v4487 = vpack.c.b16 %v4409, %v4407
        %v4488 = vpack.c.b16 %v4410, %v4408
        %v4489 = vpack.c.b16 %v4413, %v4411
        %v4490 = vpack.c.b16 %v4414, %v4412
        %v4491 = vpack.c.b16 %v4417, %v4415
        %v4492 = vpack.c.b16 %v4418, %v4416
        %v4493 = vpack.c.b16 %v4421, %v4419
        %v4494 = vpack.c.b16 %v4422, %v4420
        %v4495 = vpack.c.b16 %v4425, %v4423
        %v4496 = vpack.c.b16 %v4426, %v4424
        %v4497 = vpack.c.b16 %v4429, %v4427
        %v4498 = vpack.c.b16 %v4430, %v4428
        %v4499 = vpack.c.b16 %v4433, %v4431
        %v4500 = vpack.c.b16 %v4434, %v4432
        %v4501 = vpack.c.b16 %v4437, %v4435
        %v4502 = vpack.c.b16 %v4438, %v4436
        %4567 = vmatprep.subr.bf16.mxu0 %v4454
        %4568 = vmatpush1.bf16.msra.mxu0 %v4453
        %4569 = vmatprep.subr.bf16.mxu0 %v4452
        %4570 = vmatpush1.bf16.msra.mxu0 %v4451
        %4571 = vmatprep.subr.bf16.mxu0 %v4450
        %4572 = vmatpush1.bf16.msra.mxu0 %v4449
        %4573 = vmatprep.subr.bf16.mxu0 %v4448
        %4574 = vmatpush1.bf16.msra.mxu0 %v4447
        %4575 = vmatprep.subr.bf16.mxu0 %v4446
        %4576 = vmatpush1.bf16.msra.mxu0 %v4445
        %4577 = vmatprep.subr.bf16.mxu0 %v4444
        %4578 = vmatpush1.bf16.msra.mxu0 %v4443
        %4579 = vmatprep.subr.bf16.mxu0 %v4442
        %4580 = vmatpush1.bf16.msra.mxu0 %v4441
        %4581 = vmatprep.subr.bf16.mxu0 %v4440
        %4582 = vmatpush1.bf16.msra.mxu0 %v4439
        %4583 = vmatprep.subr.bf16.mxu0 %v4470
        %4584 = vmatpush2.bf16.msra.mxu0 %v4469
        %4585 = vmatprep.subr.bf16.mxu0 %v4468
        %4586 = vmatpush2.bf16.msra.mxu0 %v4467
        %4587 = vmatprep.subr.bf16.mxu0 %v4466
        %4588 = vmatpush2.bf16.msra.mxu0 %v4465
        %4589 = vmatprep.subr.bf16.mxu0 %v4464
        %4590 = vmatpush2.bf16.msra.mxu0 %v4463
        %4591 = vmatprep.subr.bf16.mxu0 %v4462
        %4592 = vmatpush2.bf16.msra.mxu0 %v4461
        %4593 = vmatprep.subr.bf16.mxu0 %v4460
        %4594 = vmatpush2.bf16.msra.mxu0 %v4459
        %4595 = vmatprep.subr.bf16.mxu0 %v4458
        %4596 = vmatpush2.bf16.msra.mxu0 %v4457
        %4597 = vmatprep.subr.bf16.mxu0 %v4456
        %4598 = vmatpush2.bf16.msra.mxu0 %v4455
        %4599 = vmatprep.mubr.bf16.mxu0 %v4184
        %4600 = vmatmul.mubr.bf16.gmra.mxu0 %v4183
        %v4601 = vpop.f32.mrf.mxu0
        %v4602 = vadd.f32 0.0, %v4601
        %v4603 = vpop.f32.mrf.mxu0
        %v4604 = vadd.f32 0.0, %v4603
        %v4605 = vpop.f32.mrf.mxu0
        %v4606 = vadd.f32 0.0, %v4605
        %v4607 = vpop.f32.mrf.mxu0
        %v4608 = vadd.f32 0.0, %v4607
        %4609 = vmatprep.mubr.bf16.mxu0 %v4188
        %4610 = vmatmul.mubr.bf16.gmra.mxu0 %v4187
        %v4611 = vpop.f32.mrf.mxu0
        %v4612 = vadd.f32 0.0, %v4611
        %v4613 = vpop.f32.mrf.mxu0
        %v4614 = vadd.f32 0.0, %v4613
        %v4615 = vpop.f32.mrf.mxu0
        %v4616 = vadd.f32 0.0, %v4615
        %v4617 = vpop.f32.mrf.mxu0
        %v4618 = vadd.f32 0.0, %v4617
        %4619 = vmatprep.mubr.bf16.mxu0 %v4192
        %4620 = vmatmul.mubr.bf16.gmra.mxu0 %v4191
        %v4621 = vpop.f32.mrf.mxu0
        %v4622 = vadd.f32 0.0, %v4621
        %v4623 = vpop.f32.mrf.mxu0
        %v4624 = vadd.f32 0.0, %v4623
        %v4625 = vpop.f32.mrf.mxu0
        %v4626 = vadd.f32 0.0, %v4625
        %v4627 = vpop.f32.mrf.mxu0
        %v4628 = vadd.f32 0.0, %v4627
        %4629 = vmatprep.mubr.bf16.mxu0 %v4196
        %4630 = vmatmul.mubr.bf16.gmra.mxu0 %v4195
        %v4631 = vpop.f32.mrf.mxu0
        %v4632 = vadd.f32 0.0, %v4631
        %v4633 = vpop.f32.mrf.mxu0
        %v4634 = vadd.f32 0.0, %v4633
        %v4635 = vpop.f32.mrf.mxu0
        %v4636 = vadd.f32 0.0, %v4635
        %v4637 = vpop.f32.mrf.mxu0
        %v4638 = vadd.f32 0.0, %v4637
        %4639 = vmatprep.mubr.bf16.mxu0 %v4200
        %4640 = vmatmul.mubr.bf16.gmra.mxu0 %v4199
        %v4641 = vpop.f32.mrf.mxu0
        %v4642 = vadd.f32 0.0, %v4641
        %v4643 = vpop.f32.mrf.mxu0
        %v4644 = vadd.f32 0.0, %v4643
        %v4645 = vpop.f32.mrf.mxu0
        %v4646 = vadd.f32 0.0, %v4645
        %v4647 = vpop.f32.mrf.mxu0
        %v4648 = vadd.f32 0.0, %v4647
        %4649 = vmatprep.mubr.bf16.mxu0 %v4204
        %4650 = vmatmul.mubr.bf16.gmra.mxu0 %v4203
        %v4651 = vpop.f32.mrf.mxu0
        %v4652 = vadd.f32 0.0, %v4651
        %v4653 = vpop.f32.mrf.mxu0
        %v4654 = vadd.f32 0.0, %v4653
        %v4655 = vpop.f32.mrf.mxu0
        %v4656 = vadd.f32 0.0, %v4655
        %v4657 = vpop.f32.mrf.mxu0
        %v4658 = vadd.f32 0.0, %v4657
        %4659 = vmatprep.mubr.bf16.mxu0 %v4208
        %4660 = vmatmul.mubr.bf16.gmra.mxu0 %v4207
        %v4661 = vpop.f32.mrf.mxu0
        %v4662 = vadd.f32 0.0, %v4661
        %v4663 = vpop.f32.mrf.mxu0
        %v4664 = vadd.f32 0.0, %v4663
        %v4665 = vpop.f32.mrf.mxu0
        %v4666 = vadd.f32 0.0, %v4665
        %v4667 = vpop.f32.mrf.mxu0
        %v4668 = vadd.f32 0.0, %v4667
        %4669 = vmatprep.mubr.bf16.mxu0 %v4212
        %4670 = vmatmul.mubr.bf16.gmra.mxu0 %v4211
        %v4671 = vpop.f32.mrf.mxu0
        %v4672 = vadd.f32 0.0, %v4671
        %v4673 = vpop.f32.mrf.mxu0
        %v4674 = vadd.f32 0.0, %v4673
        %v4675 = vpop.f32.mrf.mxu0
        %v4676 = vadd.f32 0.0, %v4675
        %v4677 = vpop.f32.mrf.mxu0
        %v4678 = vadd.f32 0.0, %v4677
        %4679 = vdwg.mxu0
        %4680 = vmatprep.subr.bf16.mxu0 %v4486
        %4681 = vmatpush1.bf16.msra.mxu0 %v4485
        %4682 = vmatprep.subr.bf16.mxu0 %v4484
        %4683 = vmatpush1.bf16.msra.mxu0 %v4483
        %4684 = vmatprep.subr.bf16.mxu0 %v4482
        %4685 = vmatpush1.bf16.msra.mxu0 %v4481
        %4686 = vmatprep.subr.bf16.mxu0 %v4480
        %4687 = vmatpush1.bf16.msra.mxu0 %v4479
        %4688 = vmatprep.subr.bf16.mxu0 %v4478
        %4689 = vmatpush1.bf16.msra.mxu0 %v4477
        %4690 = vmatprep.subr.bf16.mxu0 %v4476
        %4691 = vmatpush1.bf16.msra.mxu0 %v4475
        %4692 = vmatprep.subr.bf16.mxu0 %v4474
        %4693 = vmatpush1.bf16.msra.mxu0 %v4473
        %4694 = vmatprep.subr.bf16.mxu0 %v4472
        %4695 = vmatpush1.bf16.msra.mxu0 %v4471
        %4696 = vmatprep.subr.bf16.mxu0 %v4502
        %4697 = vmatpush2.bf16.msra.mxu0 %v4501
        %4698 = vmatprep.subr.bf16.mxu0 %v4500
        %4699 = vmatpush2.bf16.msra.mxu0 %v4499
        %4700 = vmatprep.subr.bf16.mxu0 %v4498
        %4701 = vmatpush2.bf16.msra.mxu0 %v4497
        %4702 = vmatprep.subr.bf16.mxu0 %v4496
        %4703 = vmatpush2.bf16.msra.mxu0 %v4495
        %4704 = vmatprep.subr.bf16.mxu0 %v4494
        %4705 = vmatpush2.bf16.msra.mxu0 %v4493
        %4706 = vmatprep.subr.bf16.mxu0 %v4492
        %4707 = vmatpush2.bf16.msra.mxu0 %v4491
        %4708 = vmatprep.subr.bf16.mxu0 %v4490
        %4709 = vmatpush2.bf16.msra.mxu0 %v4489
        %4710 = vmatprep.subr.bf16.mxu0 %v4488
        %4711 = vmatpush2.bf16.msra.mxu0 %v4487
        %4712 = vmatprep.mubr.bf16.mxu0 %v4186
        %4713 = vmatmul.mubr.bf16.gmra.mxu0 %v4185
        %v4714 = vpop.f32.mrf.mxu0
        %v4715 = vadd.f32 %v4602, %v4714
        %v4716 = vpop.f32.mrf.mxu0
        %v4717 = vadd.f32 %v4604, %v4716
        %v4718 = vpop.f32.mrf.mxu0
        %v4719 = vadd.f32 %v4606, %v4718
        %v4720 = vpop.f32.mrf.mxu0
        %v4721 = vadd.f32 %v4608, %v4720
        %4722 = vmatprep.mubr.bf16.mxu0 %v4190
        %4723 = vmatmul.mubr.bf16.gmra.mxu0 %v4189
        %v4724 = vpop.f32.mrf.mxu0
        %v4725 = vadd.f32 %v4612, %v4724
        %v4726 = vpop.f32.mrf.mxu0
        %v4727 = vadd.f32 %v4614, %v4726
        %v4728 = vpop.f32.mrf.mxu0
        %v4729 = vadd.f32 %v4616, %v4728
        %v4730 = vpop.f32.mrf.mxu0
        %v4731 = vadd.f32 %v4618, %v4730
        %4732 = vmatprep.mubr.bf16.mxu0 %v4194
        %4733 = vmatmul.mubr.bf16.gmra.mxu0 %v4193
        %v4734 = vpop.f32.mrf.mxu0
        %v4735 = vadd.f32 %v4622, %v4734
        %v4736 = vpop.f32.mrf.mxu0
        %v4737 = vadd.f32 %v4624, %v4736
        %v4738 = vpop.f32.mrf.mxu0
        %v4739 = vadd.f32 %v4626, %v4738
        %v4740 = vpop.f32.mrf.mxu0
        %v4741 = vadd.f32 %v4628, %v4740
        %4742 = vmatprep.mubr.bf16.mxu0 %v4198
        %4743 = vmatmul.mubr.bf16.gmra.mxu0 %v4197
        %v4744 = vpop.f32.mrf.mxu0
        %v4745 = vadd.f32 %v4632, %v4744
        %v4746 = vpop.f32.mrf.mxu0
        %v4747 = vadd.f32 %v4634, %v4746
        %v4748 = vpop.f32.mrf.mxu0
        %v4749 = vadd.f32 %v4636, %v4748
        %v4750 = vpop.f32.mrf.mxu0
        %v4751 = vadd.f32 %v4638, %v4750
        %4752 = vmatprep.mubr.bf16.mxu0 %v4202
        %4753 = vmatmul.mubr.bf16.gmra.mxu0 %v4201
        %v4754 = vpop.f32.mrf.mxu0
        %v4755 = vadd.f32 %v4642, %v4754
        %v4756 = vpop.f32.mrf.mxu0
        %v4757 = vadd.f32 %v4644, %v4756
        %v4758 = vpop.f32.mrf.mxu0
        %v4759 = vadd.f32 %v4646, %v4758
        %v4760 = vpop.f32.mrf.mxu0
        %v4761 = vadd.f32 %v4648, %v4760
        %4762 = vmatprep.mubr.bf16.mxu0 %v4206
        %4763 = vmatmul.mubr.bf16.gmra.mxu0 %v4205
        %v4764 = vpop.f32.mrf.mxu0
        %v4765 = vadd.f32 %v4652, %v4764
        %v4766 = vpop.f32.mrf.mxu0
        %v4767 = vadd.f32 %v4654, %v4766
        %v4768 = vpop.f32.mrf.mxu0
        %v4769 = vadd.f32 %v4656, %v4768
        %v4770 = vpop.f32.mrf.mxu0
        %v4771 = vadd.f32 %v4658, %v4770
        %4772 = vmatprep.mubr.bf16.mxu0 %v4210
        %4773 = vmatmul.mubr.bf16.gmra.mxu0 %v4209
        %v4774 = vpop.f32.mrf.mxu0
        %v4775 = vadd.f32 %v4662, %v4774
        %v4776 = vpop.f32.mrf.mxu0
        %v4777 = vadd.f32 %v4664, %v4776
        %v4778 = vpop.f32.mrf.mxu0
        %v4779 = vadd.f32 %v4666, %v4778
        %v4780 = vpop.f32.mrf.mxu0
        %v4781 = vadd.f32 %v4668, %v4780
        %4782 = vmatprep.mubr.bf16.mxu0 %v4214
        %4783 = vmatmul.mubr.bf16.gmra.mxu0 %v4213
        %v4784 = vpop.f32.mrf.mxu0
        %v4785 = vadd.f32 %v4672, %v4784
        %v4786 = vpop.f32.mrf.mxu0
        %v4787 = vadd.f32 %v4674, %v4786
        %v4788 = vpop.f32.mrf.mxu0
        %v4789 = vadd.f32 %v4676, %v4788
        %v4790 = vpop.f32.mrf.mxu0
        %v4791 = vadd.f32 %v4678, %v4790
        %4792 = vdwg.mxu0
        %v4793 = vadd.f32 %v4715, %v4719
        %v4794 = vadd.f32 %v4793, %v4725
        %v4795 = vadd.f32 %v4794, %v4729
        %v4796 = vadd.f32 %v4795, %v4735
        %v4797 = vadd.f32 %v4796, %v4739
        %v4798 = vadd.f32 %v4797, %v4745
        %v4799 = vadd.f32 %v4798, %v4749
        %v4800 = vrot.slane %v4799, 4
        %v4801 = vadd.f32 %v4799, %v4800
        %v4802 = vrot.slane %v4801, 2
        %v4803 = vadd.f32 %v4801, %v4802
        %v4804 = vrot.slane %v4803, 1
        %v4805 = vadd.f32 %v4803, %v4804
        %v4806 = vadd.f32 %v4717, %v4721
        %v4807 = vadd.f32 %v4806, %v4727
        %v4808 = vadd.f32 %v4807, %v4731
        %v4809 = vadd.f32 %v4808, %v4737
        %v4810 = vadd.f32 %v4809, %v4741
        %v4811 = vadd.f32 %v4810, %v4747
        %v4812 = vadd.f32 %v4811, %v4751
        %v4813 = vrot.slane %v4812, 4
        %v4814 = vadd.f32 %v4812, %v4813
        %v4815 = vrot.slane %v4814, 2
        %v4816 = vadd.f32 %v4814, %v4815
        %v4817 = vrot.slane %v4816, 1
        %v4818 = vadd.f32 %v4816, %v4817
        %v4819 = vadd.f32 %v4755, %v4759
        %v4820 = vadd.f32 %v4819, %v4765
        %v4821 = vadd.f32 %v4820, %v4769
        %v4822 = vadd.f32 %v4821, %v4775
        %v4823 = vadd.f32 %v4822, %v4779
        %v4824 = vadd.f32 %v4823, %v4785
        %v4825 = vadd.f32 %v4824, %v4789
        %v4826 = vrot.slane %v4825, 4
        %v4827 = vadd.f32 %v4825, %v4826
        %v4828 = vrot.slane %v4827, 2
        %v4829 = vadd.f32 %v4827, %v4828
        %v4830 = vrot.slane %v4829, 1
        %v4831 = vadd.f32 %v4829, %v4830
        %v4832 = vadd.f32 %v4757, %v4761
        %v4833 = vadd.f32 %v4832, %v4767
        %v4834 = vadd.f32 %v4833, %v4771
        %v4835 = vadd.f32 %v4834, %v4777
        %v4836 = vadd.f32 %v4835, %v4781
        %v4837 = vadd.f32 %v4836, %v4787
        %v4838 = vadd.f32 %v4837, %v4791
        %v4839 = vrot.slane %v4838, 4
        %v4840 = vadd.f32 %v4838, %v4839
        %v4841 = vrot.slane %v4840, 2
        %v4842 = vadd.f32 %v4840, %v4841
        %v4843 = vrot.slane %v4842, 1
        %v4844 = vadd.f32 %v4842, %v4843
        %v4845 = vmul.f32 %v4805, %v2506
        %v4846 = vmul.f32 %v4818, %v2506
        %v4847 = vmul.f32 %v4831, %v2506
        %v4848 = vmul.f32 %v4844, %v2506
        %v4849 = vadd.f32 %v3824, %v4845
        %v4850 = vadd.f32 %v3825, %v4846
        %v4851 = vadd.f32 %v3826, %v4847
        %v4852 = vadd.f32 %v3827, %v4848
        %s4853 = scalar_lea.vmem [#allocation2], 32
        %v4854 = vld [vmem:[%s4853] sm:$0xff]
        %v4855 = vld [vmem:[%s4853 + $0x8] sm:$0xff]
        %v4856 = vld [vmem:[%s4853 + $0x20] sm:$0xff]
        %v4857 = vld [vmem:[%s4853 + $0x28] sm:$0xff]
        %v4858 = vld [vmem:[%s4853 + $0x40] sm:$0xff]
        %v4859 = vld [vmem:[%s4853 + $0x48] sm:$0xff]
        %v4860 = vld [vmem:[%s4853 + $0x60] sm:$0xff]
        %v4861 = vld [vmem:[%s4853 + $0x68] sm:$0xff]
        %v4862 = vld [vmem:[%s4853 + $0x80] sm:$0xff]
        %v4863 = vld [vmem:[%s4853 + $0x88] sm:$0xff]
        %v4864 = vld [vmem:[%s4853 + $0xa0] sm:$0xff]
        %v4865 = vld [vmem:[%s4853 + $0xa8] sm:$0xff]
        %v4866 = vld [vmem:[%s4853 + $0xc0] sm:$0xff]
        %v4867 = vld [vmem:[%s4853 + $0xc8] sm:$0xff]
        %v4868 = vld [vmem:[%s4853 + $0xe0] sm:$0xff]
        %v4869 = vld [vmem:[%s4853 + $0xe8] sm:$0xff]
        %v4870 = vld [vmem:[%s4853 + $0x140] sm:$0xff]
        %v4871 = vld [vmem:[%s4853 + $0x148] sm:$0xff]
        %v4872 = vld [vmem:[%s4853 + $0x160] sm:$0xff]
        %v4873 = vld [vmem:[%s4853 + $0x168] sm:$0xff]
        %v4874 = vld [vmem:[%s4853 + $0x180] sm:$0xff]
        %v4875 = vld [vmem:[%s4853 + $0x188] sm:$0xff]
        %v4876 = vld [vmem:[%s4853 + $0x1a0] sm:$0xff]
        %v4877 = vld [vmem:[%s4853 + $0x1a8] sm:$0xff]
        %v4878 = vld [vmem:[%s4853 + $0x1c0] sm:$0xff]
        %v4879 = vld [vmem:[%s4853 + $0x1c8] sm:$0xff]
        %v4880 = vld [vmem:[%s4853 + $0x1e0] sm:$0xff]
        %v4881 = vld [vmem:[%s4853 + $0x1e8] sm:$0xff]
        %v4882 = vld [vmem:[%s4853 + $0x200] sm:$0xff]
        %v4883 = vld [vmem:[%s4853 + $0x208] sm:$0xff]
        %v4884 = vld [vmem:[%s4853 + $0x220] sm:$0xff]
        %v4885 = vld [vmem:[%s4853 + $0x228] sm:$0xff]
        %v4886 = vld [vmem:[%s227 + $0x600] sm:$0xff]
        %v4887 = vld [vmem:[%s227 + $0x608] sm:$0xff]
        %v4888 = vld [vmem:[%s227 + $0x610] sm:$0xff]
        %v4889 = vld [vmem:[%s227 + $0x618] sm:$0xff]
        %v4890 = vld [vmem:[%s227 + $0x620] sm:$0xff]
        %v4891 = vld [vmem:[%s227 + $0x628] sm:$0xff]
        %v4892 = vld [vmem:[%s227 + $0x630] sm:$0xff]
        %v4893 = vld [vmem:[%s227 + $0x638] sm:$0xff]
        %v4894 = vld [vmem:[%s227 + $0x640] sm:$0xff]
        %v4895 = vld [vmem:[%s227 + $0x648] sm:$0xff]
        %v4896 = vld [vmem:[%s227 + $0x650] sm:$0xff]
        %v4897 = vld [vmem:[%s227 + $0x658] sm:$0xff]
        %v4898 = vld [vmem:[%s227 + $0x660] sm:$0xff]
        %v4899 = vld [vmem:[%s227 + $0x668] sm:$0xff]
        %v4900 = vld [vmem:[%s227 + $0x670] sm:$0xff]
        %v4901 = vld [vmem:[%s227 + $0x678] sm:$0xff]
        %v4902 = vld [vmem:[%s227 + $0x680] sm:$0xff]
        %v4903 = vld [vmem:[%s227 + $0x688] sm:$0xff]
        %v4904 = vld [vmem:[%s227 + $0x690] sm:$0xff]
        %v4905 = vld [vmem:[%s227 + $0x698] sm:$0xff]
        %v4906 = vld [vmem:[%s227 + $0x6a0] sm:$0xff]
        %v4907 = vld [vmem:[%s227 + $0x6a8] sm:$0xff]
        %v4908 = vld [vmem:[%s227 + $0x6b0] sm:$0xff]
        %v4909 = vld [vmem:[%s227 + $0x6b8] sm:$0xff]
        %v4910 = vld [vmem:[%s227 + $0x6c0] sm:$0xff]
        %v4911 = vld [vmem:[%s227 + $0x6c8] sm:$0xff]
        %v4912 = vld [vmem:[%s227 + $0x6d0] sm:$0xff]
        %v4913 = vld [vmem:[%s227 + $0x6d8] sm:$0xff]
        %v4914 = vld [vmem:[%s227 + $0x6e0] sm:$0xff]
        %v4915 = vld [vmem:[%s227 + $0x6e8] sm:$0xff]
        %v4916 = vld [vmem:[%s227 + $0x6f0] sm:$0xff]
        %v4917 = vld [vmem:[%s227 + $0x6f8] sm:$0xff]
        %v4918 = vld [vmem:[%s227 + $0x700] sm:$0xff]
        %v4919 = vld [vmem:[%s227 + $0x708] sm:$0xff]
        %v4920 = vld [vmem:[%s227 + $0x710] sm:$0xff]
        %v4921 = vld [vmem:[%s227 + $0x718] sm:$0xff]
        %v4922 = vld [vmem:[%s227 + $0x720] sm:$0xff]
        %v4923 = vld [vmem:[%s227 + $0x728] sm:$0xff]
        %v4924 = vld [vmem:[%s227 + $0x730] sm:$0xff]
        %v4925 = vld [vmem:[%s227 + $0x738] sm:$0xff]
        %v4926 = vld [vmem:[%s227 + $0x740] sm:$0xff]
        %v4927 = vld [vmem:[%s227 + $0x748] sm:$0xff]
        %v4928 = vld [vmem:[%s227 + $0x750] sm:$0xff]
        %v4929 = vld [vmem:[%s227 + $0x758] sm:$0xff]
        %v4930 = vld [vmem:[%s227 + $0x760] sm:$0xff]
        %v4931 = vld [vmem:[%s227 + $0x768] sm:$0xff]
        %v4932 = vld [vmem:[%s227 + $0x770] sm:$0xff]
        %v4933 = vld [vmem:[%s227 + $0x778] sm:$0xff]
        %v4934 = vld [vmem:[%s227 + $0x780] sm:$0xff]
        %v4935 = vld [vmem:[%s227 + $0x788] sm:$0xff]
        %v4936 = vld [vmem:[%s227 + $0x790] sm:$0xff]
        %v4937 = vld [vmem:[%s227 + $0x798] sm:$0xff]
        %v4938 = vld [vmem:[%s227 + $0x7a0] sm:$0xff]
        %v4939 = vld [vmem:[%s227 + $0x7a8] sm:$0xff]
        %v4940 = vld [vmem:[%s227 + $0x7b0] sm:$0xff]
        %v4941 = vld [vmem:[%s227 + $0x7b8] sm:$0xff]
        %v4942 = vld [vmem:[%s227 + $0x7c0] sm:$0xff]
        %v4943 = vld [vmem:[%s227 + $0x7c8] sm:$0xff]
        %v4944 = vld [vmem:[%s227 + $0x7d0] sm:$0xff]
        %v4945 = vld [vmem:[%s227 + $0x7d8] sm:$0xff]
        %v4946 = vld [vmem:[%s227 + $0x7e0] sm:$0xff]
        %v4947 = vld [vmem:[%s227 + $0x7e8] sm:$0xff]
        %v4948 = vld [vmem:[%s227 + $0x7f0] sm:$0xff]
        %v4949 = vld [vmem:[%s227 + $0x7f8] sm:$0xff]
        %v4982 = vunpack.c.l.b16 %v4854
        %v4983 = vunpack.c.h.b16 %v4854
        %v4984 = vunpack.c.l.b16 %v4855
        %v4985 = vunpack.c.h.b16 %v4855
        %v4986 = vunpack.c.l.b16 %v4856
        %v4987 = vunpack.c.h.b16 %v4856
        %v4988 = vunpack.c.l.b16 %v4857
        %v4989 = vunpack.c.h.b16 %v4857
        %v4990 = vunpack.c.l.b16 %v4858
        %v4991 = vunpack.c.h.b16 %v4858
        %v4992 = vunpack.c.l.b16 %v4859
        %v4993 = vunpack.c.h.b16 %v4859
        %v4994 = vunpack.c.l.b16 %v4860
        %v4995 = vunpack.c.h.b16 %v4860
        %v4996 = vunpack.c.l.b16 %v4861
        %v4997 = vunpack.c.h.b16 %v4861
        %v4998 = vunpack.c.l.b16 %v4862
        %v4999 = vunpack.c.h.b16 %v4862
        %v5000 = vunpack.c.l.b16 %v4863
        %v5001 = vunpack.c.h.b16 %v4863
        %v5002 = vunpack.c.l.b16 %v4864
        %v5003 = vunpack.c.h.b16 %v4864
        %v5004 = vunpack.c.l.b16 %v4865
        %v5005 = vunpack.c.h.b16 %v4865
        %v5006 = vunpack.c.l.b16 %v4866
        %v5007 = vunpack.c.h.b16 %v4866
        %v5008 = vunpack.c.l.b16 %v4867
        %v5009 = vunpack.c.h.b16 %v4867
        %v5010 = vunpack.c.l.b16 %v4868
        %v5011 = vunpack.c.h.b16 %v4868
        %v5012 = vunpack.c.l.b16 %v4869
        %v5013 = vunpack.c.h.b16 %v4869
        %v5014 = vunpack.c.l.b16 %v4870
        %v5015 = vunpack.c.h.b16 %v4870
        %v5016 = vunpack.c.l.b16 %v4871
        %v5017 = vunpack.c.h.b16 %v4871
        %v5018 = vunpack.c.l.b16 %v4872
        %v5019 = vunpack.c.h.b16 %v4872
        %v5020 = vunpack.c.l.b16 %v4873
        %v5021 = vunpack.c.h.b16 %v4873
        %v5022 = vunpack.c.l.b16 %v4874
        %v5023 = vunpack.c.h.b16 %v4874
        %v5024 = vunpack.c.l.b16 %v4875
        %v5025 = vunpack.c.h.b16 %v4875
        %v5026 = vunpack.c.l.b16 %v4876
        %v5027 = vunpack.c.h.b16 %v4876
        %v5028 = vunpack.c.l.b16 %v4877
        %v5029 = vunpack.c.h.b16 %v4877
        %v5030 = vunpack.c.l.b16 %v4878
        %v5031 = vunpack.c.h.b16 %v4878
        %v5032 = vunpack.c.l.b16 %v4879
        %v5033 = vunpack.c.h.b16 %v4879
        %v5034 = vunpack.c.l.b16 %v4880
        %v5035 = vunpack.c.h.b16 %v4880
        %v5036 = vunpack.c.l.b16 %v4881
        %v5037 = vunpack.c.h.b16 %v4881
        %v5038 = vunpack.c.l.b16 %v4882
        %v5039 = vunpack.c.h.b16 %v4882
        %v5040 = vunpack.c.l.b16 %v4883
        %v5041 = vunpack.c.h.b16 %v4883
        %v5042 = vunpack.c.l.b16 %v4884
        %v5043 = vunpack.c.h.b16 %v4884
        %v5044 = vunpack.c.l.b16 %v4885
        %v5045 = vunpack.c.h.b16 %v4885
        %v5046 = vpack.c.b16 %v4986, %v4982
        %v5047 = vpack.c.b16 %v4987, %v4983
        %v5048 = vpack.c.b16 %v4988, %v4984
        %v5049 = vpack.c.b16 %v4989, %v4985
        %v5050 = vpack.c.b16 %v4994, %v4990
        %v5051 = vpack.c.b16 %v4995, %v4991
        %v5052 = vpack.c.b16 %v4996, %v4992
        %v5053 = vpack.c.b16 %v4997, %v4993
        %v5054 = vpack.c.b16 %v5002, %v4998
        %v5055 = vpack.c.b16 %v5003, %v4999
        %v5056 = vpack.c.b16 %v5004, %v5000
        %v5057 = vpack.c.b16 %v5005, %v5001
        %v5058 = vpack.c.b16 %v5010, %v5006
        %v5059 = vpack.c.b16 %v5011, %v5007
        %v5060 = vpack.c.b16 %v5012, %v5008
        %v5061 = vpack.c.b16 %v5013, %v5009
        %v5062 = vpack.c.b16 %v5018, %v5014
        %v5063 = vpack.c.b16 %v5019, %v5015
        %v5064 = vpack.c.b16 %v5020, %v5016
        %v5065 = vpack.c.b16 %v5021, %v5017
        %v5066 = vpack.c.b16 %v5026, %v5022
        %v5067 = vpack.c.b16 %v5027, %v5023
        %v5068 = vpack.c.b16 %v5028, %v5024
        %v5069 = vpack.c.b16 %v5029, %v5025
        %v5070 = vpack.c.b16 %v5034, %v5030
        %v5071 = vpack.c.b16 %v5035, %v5031
        %v5072 = vpack.c.b16 %v5036, %v5032
        %v5073 = vpack.c.b16 %v5037, %v5033
        %v5074 = vpack.c.b16 %v5042, %v5038
        %v5075 = vpack.c.b16 %v5043, %v5039
        %v5076 = vpack.c.b16 %v5044, %v5040
        %v5077 = vpack.c.b16 %v5045, %v5041
        %v5174 = vunpack.c.l.b16 %v4886
        %v5175 = vunpack.c.h.b16 %v4886
        %v5176 = vunpack.c.l.b16 %v4887
        %v5177 = vunpack.c.h.b16 %v4887
        %v5178 = vunpack.c.l.b16 %v4888
        %v5179 = vunpack.c.h.b16 %v4888
        %v5180 = vunpack.c.l.b16 %v4889
        %v5181 = vunpack.c.h.b16 %v4889
        %v5182 = vunpack.c.l.b16 %v4890
        %v5183 = vunpack.c.h.b16 %v4890
        %v5184 = vunpack.c.l.b16 %v4891
        %v5185 = vunpack.c.h.b16 %v4891
        %v5186 = vunpack.c.l.b16 %v4892
        %v5187 = vunpack.c.h.b16 %v4892
        %v5188 = vunpack.c.l.b16 %v4893
        %v5189 = vunpack.c.h.b16 %v4893
        %v5190 = vunpack.c.l.b16 %v4894
        %v5191 = vunpack.c.h.b16 %v4894
        %v5192 = vunpack.c.l.b16 %v4895
        %v5193 = vunpack.c.h.b16 %v4895
        %v5194 = vunpack.c.l.b16 %v4896
        %v5195 = vunpack.c.h.b16 %v4896
        %v5196 = vunpack.c.l.b16 %v4897
        %v5197 = vunpack.c.h.b16 %v4897
        %v5198 = vunpack.c.l.b16 %v4898
        %v5199 = vunpack.c.h.b16 %v4898
        %v5200 = vunpack.c.l.b16 %v4899
        %v5201 = vunpack.c.h.b16 %v4899
        %v5202 = vunpack.c.l.b16 %v4900
        %v5203 = vunpack.c.h.b16 %v4900
        %v5204 = vunpack.c.l.b16 %v4901
        %v5205 = vunpack.c.h.b16 %v4901
        %v5206 = vunpack.c.l.b16 %v4902
        %v5207 = vunpack.c.h.b16 %v4902
        %v5208 = vunpack.c.l.b16 %v4903
        %v5209 = vunpack.c.h.b16 %v4903
        %v5210 = vunpack.c.l.b16 %v4904
        %v5211 = vunpack.c.h.b16 %v4904
        %v5212 = vunpack.c.l.b16 %v4905
        %v5213 = vunpack.c.h.b16 %v4905
        %v5214 = vunpack.c.l.b16 %v4906
        %v5215 = vunpack.c.h.b16 %v4906
        %v5216 = vunpack.c.l.b16 %v4907
        %v5217 = vunpack.c.h.b16 %v4907
        %v5218 = vunpack.c.l.b16 %v4908
        %v5219 = vunpack.c.h.b16 %v4908
        %v5220 = vunpack.c.l.b16 %v4909
        %v5221 = vunpack.c.h.b16 %v4909
        %v5222 = vunpack.c.l.b16 %v4910
        %v5223 = vunpack.c.h.b16 %v4910
        %v5224 = vunpack.c.l.b16 %v4911
        %v5225 = vunpack.c.h.b16 %v4911
        %v5226 = vunpack.c.l.b16 %v4912
        %v5227 = vunpack.c.h.b16 %v4912
        %v5228 = vunpack.c.l.b16 %v4913
        %v5229 = vunpack.c.h.b16 %v4913
        %v5230 = vunpack.c.l.b16 %v4914
        %v5231 = vunpack.c.h.b16 %v4914
        %v5232 = vunpack.c.l.b16 %v4915
        %v5233 = vunpack.c.h.b16 %v4915
        %v5234 = vunpack.c.l.b16 %v4916
        %v5235 = vunpack.c.h.b16 %v4916
        %v5236 = vunpack.c.l.b16 %v4917
        %v5237 = vunpack.c.h.b16 %v4917
        %v5238 = vunpack.c.l.b16 %v4918
        %v5239 = vunpack.c.h.b16 %v4918
        %v5240 = vunpack.c.l.b16 %v4919
        %v5241 = vunpack.c.h.b16 %v4919
        %v5242 = vunpack.c.l.b16 %v4920
        %v5243 = vunpack.c.h.b16 %v4920
        %v5244 = vunpack.c.l.b16 %v4921
        %v5245 = vunpack.c.h.b16 %v4921
        %v5246 = vunpack.c.l.b16 %v4922
        %v5247 = vunpack.c.h.b16 %v4922
        %v5248 = vunpack.c.l.b16 %v4923
        %v5249 = vunpack.c.h.b16 %v4923
        %v5250 = vunpack.c.l.b16 %v4924
        %v5251 = vunpack.c.h.b16 %v4924
        %v5252 = vunpack.c.l.b16 %v4925
        %v5253 = vunpack.c.h.b16 %v4925
        %v5254 = vunpack.c.l.b16 %v4926
        %v5255 = vunpack.c.h.b16 %v4926
        %v5256 = vunpack.c.l.b16 %v4927
        %v5257 = vunpack.c.h.b16 %v4927
        %v5258 = vunpack.c.l.b16 %v4928
        %v5259 = vunpack.c.h.b16 %v4928
        %v5260 = vunpack.c.l.b16 %v4929
        %v5261 = vunpack.c.h.b16 %v4929
        %v5262 = vunpack.c.l.b16 %v4930
        %v5263 = vunpack.c.h.b16 %v4930
        %v5264 = vunpack.c.l.b16 %v4931
        %v5265 = vunpack.c.h.b16 %v4931
        %v5266 = vunpack.c.l.b16 %v4932
        %v5267 = vunpack.c.h.b16 %v4932
        %v5268 = vunpack.c.l.b16 %v4933
        %v5269 = vunpack.c.h.b16 %v4933
        %v5270 = vunpack.c.l.b16 %v4934
        %v5271 = vunpack.c.h.b16 %v4934
        %v5272 = vunpack.c.l.b16 %v4935
        %v5273 = vunpack.c.h.b16 %v4935
        %v5274 = vunpack.c.l.b16 %v4936
        %v5275 = vunpack.c.h.b16 %v4936
        %v5276 = vunpack.c.l.b16 %v4937
        %v5277 = vunpack.c.h.b16 %v4937
        %v5278 = vunpack.c.l.b16 %v4938
        %v5279 = vunpack.c.h.b16 %v4938
        %v5280 = vunpack.c.l.b16 %v4939
        %v5281 = vunpack.c.h.b16 %v4939
        %v5282 = vunpack.c.l.b16 %v4940
        %v5283 = vunpack.c.h.b16 %v4940
        %v5284 = vunpack.c.l.b16 %v4941
        %v5285 = vunpack.c.h.b16 %v4941
        %v5286 = vunpack.c.l.b16 %v4942
        %v5287 = vunpack.c.h.b16 %v4942
        %v5288 = vunpack.c.l.b16 %v4943
        %v5289 = vunpack.c.h.b16 %v4943
        %v5290 = vunpack.c.l.b16 %v4944
        %v5291 = vunpack.c.h.b16 %v4944
        %v5292 = vunpack.c.l.b16 %v4945
        %v5293 = vunpack.c.h.b16 %v4945
        %v5294 = vunpack.c.l.b16 %v4946
        %v5295 = vunpack.c.h.b16 %v4946
        %v5296 = vunpack.c.l.b16 %v4947
        %v5297 = vunpack.c.h.b16 %v4947
        %v5298 = vunpack.c.l.b16 %v4948
        %v5299 = vunpack.c.h.b16 %v4948
        %v5300 = vunpack.c.l.b16 %v4949
        %v5301 = vunpack.c.h.b16 %v4949
        %v5302 = vpack.c.b16 %v5176, %v5174
        %v5303 = vpack.c.b16 %v5177, %v5175
        %v5304 = vpack.c.b16 %v5180, %v5178
        %v5305 = vpack.c.b16 %v5181, %v5179
        %v5306 = vpack.c.b16 %v5184, %v5182
        %v5307 = vpack.c.b16 %v5185, %v5183
        %v5308 = vpack.c.b16 %v5188, %v5186
        %v5309 = vpack.c.b16 %v5189, %v5187
        %v5310 = vpack.c.b16 %v5192, %v5190
        %v5311 = vpack.c.b16 %v5193, %v5191
        %v5312 = vpack.c.b16 %v5196, %v5194
        %v5313 = vpack.c.b16 %v5197, %v5195
        %v5314 = vpack.c.b16 %v5200, %v5198
        %v5315 = vpack.c.b16 %v5201, %v5199
        %v5316 = vpack.c.b16 %v5204, %v5202
        %v5317 = vpack.c.b16 %v5205, %v5203
        %v5318 = vpack.c.b16 %v5208, %v5206
        %v5319 = vpack.c.b16 %v5209, %v5207
        %v5320 = vpack.c.b16 %v5212, %v5210
        %v5321 = vpack.c.b16 %v5213, %v5211
        %v5322 = vpack.c.b16 %v5216, %v5214
        %v5323 = vpack.c.b16 %v5217, %v5215
        %v5324 = vpack.c.b16 %v5220, %v5218
        %v5325 = vpack.c.b16 %v5221, %v5219
        %v5326 = vpack.c.b16 %v5224, %v5222
        %v5327 = vpack.c.b16 %v5225, %v5223
        %v5328 = vpack.c.b16 %v5228, %v5226
        %v5329 = vpack.c.b16 %v5229, %v5227
        %v5330 = vpack.c.b16 %v5232, %v5230
        %v5331 = vpack.c.b16 %v5233, %v5231
        %v5332 = vpack.c.b16 %v5236, %v5234
        %v5333 = vpack.c.b16 %v5237, %v5235
        %v5334 = vpack.c.b16 %v5240, %v5238
        %v5335 = vpack.c.b16 %v5241, %v5239
        %v5336 = vpack.c.b16 %v5244, %v5242
        %v5337 = vpack.c.b16 %v5245, %v5243
        %v5338 = vpack.c.b16 %v5248, %v5246
        %v5339 = vpack.c.b16 %v5249, %v5247
        %v5340 = vpack.c.b16 %v5252, %v5250
        %v5341 = vpack.c.b16 %v5253, %v5251
        %v5342 = vpack.c.b16 %v5256, %v5254
        %v5343 = vpack.c.b16 %v5257, %v5255
        %v5344 = vpack.c.b16 %v5260, %v5258
        %v5345 = vpack.c.b16 %v5261, %v5259
        %v5346 = vpack.c.b16 %v5264, %v5262
        %v5347 = vpack.c.b16 %v5265, %v5263
        %v5348 = vpack.c.b16 %v5268, %v5266
        %v5349 = vpack.c.b16 %v5269, %v5267
        %v5350 = vpack.c.b16 %v5272, %v5270
        %v5351 = vpack.c.b16 %v5273, %v5271
        %v5352 = vpack.c.b16 %v5276, %v5274
        %v5353 = vpack.c.b16 %v5277, %v5275
        %v5354 = vpack.c.b16 %v5280, %v5278
        %v5355 = vpack.c.b16 %v5281, %v5279
        %v5356 = vpack.c.b16 %v5284, %v5282
        %v5357 = vpack.c.b16 %v5285, %v5283
        %v5358 = vpack.c.b16 %v5288, %v5286
        %v5359 = vpack.c.b16 %v5289, %v5287
        %v5360 = vpack.c.b16 %v5292, %v5290
        %v5361 = vpack.c.b16 %v5293, %v5291
        %v5362 = vpack.c.b16 %v5296, %v5294
        %v5363 = vpack.c.b16 %v5297, %v5295
        %v5364 = vpack.c.b16 %v5300, %v5298
        %v5365 = vpack.c.b16 %v5301, %v5299
        %5430 = vmatprep.subr.bf16.mxu0 %v5317
        %5431 = vmatpush1.bf16.msra.mxu0 %v5316
        %5432 = vmatprep.subr.bf16.mxu0 %v5315
        %5433 = vmatpush1.bf16.msra.mxu0 %v5314
        %5434 = vmatprep.subr.bf16.mxu0 %v5313
        %5435 = vmatpush1.bf16.msra.mxu0 %v5312
        %5436 = vmatprep.subr.bf16.mxu0 %v5311
        %5437 = vmatpush1.bf16.msra.mxu0 %v5310
        %5438 = vmatprep.subr.bf16.mxu0 %v5309
        %5439 = vmatpush1.bf16.msra.mxu0 %v5308
        %5440 = vmatprep.subr.bf16.mxu0 %v5307
        %5441 = vmatpush1.bf16.msra.mxu0 %v5306
        %5442 = vmatprep.subr.bf16.mxu0 %v5305
        %5443 = vmatpush1.bf16.msra.mxu0 %v5304
        %5444 = vmatprep.subr.bf16.mxu0 %v5303
        %5445 = vmatpush1.bf16.msra.mxu0 %v5302
        %5446 = vmatprep.subr.bf16.mxu0 %v5333
        %5447 = vmatpush2.bf16.msra.mxu0 %v5332
        %5448 = vmatprep.subr.bf16.mxu0 %v5331
        %5449 = vmatpush2.bf16.msra.mxu0 %v5330
        %5450 = vmatprep.subr.bf16.mxu0 %v5329
        %5451 = vmatpush2.bf16.msra.mxu0 %v5328
        %5452 = vmatprep.subr.bf16.mxu0 %v5327
        %5453 = vmatpush2.bf16.msra.mxu0 %v5326
        %5454 = vmatprep.subr.bf16.mxu0 %v5325
        %5455 = vmatpush2.bf16.msra.mxu0 %v5324
        %5456 = vmatprep.subr.bf16.mxu0 %v5323
        %5457 = vmatpush2.bf16.msra.mxu0 %v5322
        %5458 = vmatprep.subr.bf16.mxu0 %v5321
        %5459 = vmatpush2.bf16.msra.mxu0 %v5320
        %5460 = vmatprep.subr.bf16.mxu0 %v5319
        %5461 = vmatpush2.bf16.msra.mxu0 %v5318
        %5462 = vmatprep.mubr.bf16.mxu0 %v5047
        %5463 = vmatmul.mubr.bf16.gmra.mxu0 %v5046
        %v5464 = vpop.f32.mrf.mxu0
        %v5465 = vadd.f32 0.0, %v5464
        %v5466 = vpop.f32.mrf.mxu0
        %v5467 = vadd.f32 0.0, %v5466
        %v5468 = vpop.f32.mrf.mxu0
        %v5469 = vadd.f32 0.0, %v5468
        %v5470 = vpop.f32.mrf.mxu0
        %v5471 = vadd.f32 0.0, %v5470
        %5472 = vmatprep.mubr.bf16.mxu0 %v5051
        %5473 = vmatmul.mubr.bf16.gmra.mxu0 %v5050
        %v5474 = vpop.f32.mrf.mxu0
        %v5475 = vadd.f32 0.0, %v5474
        %v5476 = vpop.f32.mrf.mxu0
        %v5477 = vadd.f32 0.0, %v5476
        %v5478 = vpop.f32.mrf.mxu0
        %v5479 = vadd.f32 0.0, %v5478
        %v5480 = vpop.f32.mrf.mxu0
        %v5481 = vadd.f32 0.0, %v5480
        %5482 = vmatprep.mubr.bf16.mxu0 %v5055
        %5483 = vmatmul.mubr.bf16.gmra.mxu0 %v5054
        %v5484 = vpop.f32.mrf.mxu0
        %v5485 = vadd.f32 0.0, %v5484
        %v5486 = vpop.f32.mrf.mxu0
        %v5487 = vadd.f32 0.0, %v5486
        %v5488 = vpop.f32.mrf.mxu0
        %v5489 = vadd.f32 0.0, %v5488
        %v5490 = vpop.f32.mrf.mxu0
        %v5491 = vadd.f32 0.0, %v5490
        %5492 = vmatprep.mubr.bf16.mxu0 %v5059
        %5493 = vmatmul.mubr.bf16.gmra.mxu0 %v5058
        %v5494 = vpop.f32.mrf.mxu0
        %v5495 = vadd.f32 0.0, %v5494
        %v5496 = vpop.f32.mrf.mxu0
        %v5497 = vadd.f32 0.0, %v5496
        %v5498 = vpop.f32.mrf.mxu0
        %v5499 = vadd.f32 0.0, %v5498
        %v5500 = vpop.f32.mrf.mxu0
        %v5501 = vadd.f32 0.0, %v5500
        %5502 = vmatprep.mubr.bf16.mxu0 %v5063
        %5503 = vmatmul.mubr.bf16.gmra.mxu0 %v5062
        %v5504 = vpop.f32.mrf.mxu0
        %v5505 = vadd.f32 0.0, %v5504
        %v5506 = vpop.f32.mrf.mxu0
        %v5507 = vadd.f32 0.0, %v5506
        %v5508 = vpop.f32.mrf.mxu0
        %v5509 = vadd.f32 0.0, %v5508
        %v5510 = vpop.f32.mrf.mxu0
        %v5511 = vadd.f32 0.0, %v5510
        %5512 = vmatprep.mubr.bf16.mxu0 %v5067
        %5513 = vmatmul.mubr.bf16.gmra.mxu0 %v5066
        %v5514 = vpop.f32.mrf.mxu0
        %v5515 = vadd.f32 0.0, %v5514
        %v5516 = vpop.f32.mrf.mxu0
        %v5517 = vadd.f32 0.0, %v5516
        %v5518 = vpop.f32.mrf.mxu0
        %v5519 = vadd.f32 0.0, %v5518
        %v5520 = vpop.f32.mrf.mxu0
        %v5521 = vadd.f32 0.0, %v5520
        %5522 = vmatprep.mubr.bf16.mxu0 %v5071
        %5523 = vmatmul.mubr.bf16.gmra.mxu0 %v5070
        %v5524 = vpop.f32.mrf.mxu0
        %v5525 = vadd.f32 0.0, %v5524
        %v5526 = vpop.f32.mrf.mxu0
        %v5527 = vadd.f32 0.0, %v5526
        %v5528 = vpop.f32.mrf.mxu0
        %v5529 = vadd.f32 0.0, %v5528
        %v5530 = vpop.f32.mrf.mxu0
        %v5531 = vadd.f32 0.0, %v5530
        %5532 = vmatprep.mubr.bf16.mxu0 %v5075
        %5533 = vmatmul.mubr.bf16.gmra.mxu0 %v5074
        %v5534 = vpop.f32.mrf.mxu0
        %v5535 = vadd.f32 0.0, %v5534
        %v5536 = vpop.f32.mrf.mxu0
        %v5537 = vadd.f32 0.0, %v5536
        %v5538 = vpop.f32.mrf.mxu0
        %v5539 = vadd.f32 0.0, %v5538
        %v5540 = vpop.f32.mrf.mxu0
        %v5541 = vadd.f32 0.0, %v5540
        %5542 = vdwg.mxu0
        %5543 = vmatprep.subr.bf16.mxu0 %v5349
        %5544 = vmatpush1.bf16.msra.mxu0 %v5348
        %5545 = vmatprep.subr.bf16.mxu0 %v5347
        %5546 = vmatpush1.bf16.msra.mxu0 %v5346
        %5547 = vmatprep.subr.bf16.mxu0 %v5345
        %5548 = vmatpush1.bf16.msra.mxu0 %v5344
        %5549 = vmatprep.subr.bf16.mxu0 %v5343
        %5550 = vmatpush1.bf16.msra.mxu0 %v5342
        %5551 = vmatprep.subr.bf16.mxu0 %v5341
        %5552 = vmatpush1.bf16.msra.mxu0 %v5340
        %5553 = vmatprep.subr.bf16.mxu0 %v5339
        %5554 = vmatpush1.bf16.msra.mxu0 %v5338
        %5555 = vmatprep.subr.bf16.mxu0 %v5337
        %5556 = vmatpush1.bf16.msra.mxu0 %v5336
        %5557 = vmatprep.subr.bf16.mxu0 %v5335
        %5558 = vmatpush1.bf16.msra.mxu0 %v5334
        %5559 = vmatprep.subr.bf16.mxu0 %v5365
        %5560 = vmatpush2.bf16.msra.mxu0 %v5364
        %5561 = vmatprep.subr.bf16.mxu0 %v5363
        %5562 = vmatpush2.bf16.msra.mxu0 %v5362
        %5563 = vmatprep.subr.bf16.mxu0 %v5361
        %5564 = vmatpush2.bf16.msra.mxu0 %v5360
        %5565 = vmatprep.subr.bf16.mxu0 %v5359
        %5566 = vmatpush2.bf16.msra.mxu0 %v5358
        %5567 = vmatprep.subr.bf16.mxu0 %v5357
        %5568 = vmatpush2.bf16.msra.mxu0 %v5356
        %5569 = vmatprep.subr.bf16.mxu0 %v5355
        %5570 = vmatpush2.bf16.msra.mxu0 %v5354
        %5571 = vmatprep.subr.bf16.mxu0 %v5353
        %5572 = vmatpush2.bf16.msra.mxu0 %v5352
        %5573 = vmatprep.subr.bf16.mxu0 %v5351
        %5574 = vmatpush2.bf16.msra.mxu0 %v5350
        %5575 = vmatprep.mubr.bf16.mxu0 %v5049
        %5576 = vmatmul.mubr.bf16.gmra.mxu0 %v5048
        %v5577 = vpop.f32.mrf.mxu0
        %v5578 = vadd.f32 %v5465, %v5577
        %v5579 = vpop.f32.mrf.mxu0
        %v5580 = vadd.f32 %v5467, %v5579
        %v5581 = vpop.f32.mrf.mxu0
        %v5582 = vadd.f32 %v5469, %v5581
        %v5583 = vpop.f32.mrf.mxu0
        %v5584 = vadd.f32 %v5471, %v5583
        %5585 = vmatprep.mubr.bf16.mxu0 %v5053
        %5586 = vmatmul.mubr.bf16.gmra.mxu0 %v5052
        %v5587 = vpop.f32.mrf.mxu0
        %v5588 = vadd.f32 %v5475, %v5587
        %v5589 = vpop.f32.mrf.mxu0
        %v5590 = vadd.f32 %v5477, %v5589
        %v5591 = vpop.f32.mrf.mxu0
        %v5592 = vadd.f32 %v5479, %v5591
        %v5593 = vpop.f32.mrf.mxu0
        %v5594 = vadd.f32 %v5481, %v5593
        %5595 = vmatprep.mubr.bf16.mxu0 %v5057
        %5596 = vmatmul.mubr.bf16.gmra.mxu0 %v5056
        %v5597 = vpop.f32.mrf.mxu0
        %v5598 = vadd.f32 %v5485, %v5597
        %v5599 = vpop.f32.mrf.mxu0
        %v5600 = vadd.f32 %v5487, %v5599
        %v5601 = vpop.f32.mrf.mxu0
        %v5602 = vadd.f32 %v5489, %v5601
        %v5603 = vpop.f32.mrf.mxu0
        %v5604 = vadd.f32 %v5491, %v5603
        %5605 = vmatprep.mubr.bf16.mxu0 %v5061
        %5606 = vmatmul.mubr.bf16.gmra.mxu0 %v5060
        %v5607 = vpop.f32.mrf.mxu0
        %v5608 = vadd.f32 %v5495, %v5607
        %v5609 = vpop.f32.mrf.mxu0
        %v5610 = vadd.f32 %v5497, %v5609
        %v5611 = vpop.f32.mrf.mxu0
        %v5612 = vadd.f32 %v5499, %v5611
        %v5613 = vpop.f32.mrf.mxu0
        %v5614 = vadd.f32 %v5501, %v5613
        %5615 = vmatprep.mubr.bf16.mxu0 %v5065
        %5616 = vmatmul.mubr.bf16.gmra.mxu0 %v5064
        %v5617 = vpop.f32.mrf.mxu0
        %v5618 = vadd.f32 %v5505, %v5617
        %v5619 = vpop.f32.mrf.mxu0
        %v5620 = vadd.f32 %v5507, %v5619
        %v5621 = vpop.f32.mrf.mxu0
        %v5622 = vadd.f32 %v5509, %v5621
        %v5623 = vpop.f32.mrf.mxu0
        %v5624 = vadd.f32 %v5511, %v5623
        %5625 = vmatprep.mubr.bf16.mxu0 %v5069
        %5626 = vmatmul.mubr.bf16.gmra.mxu0 %v5068
        %v5627 = vpop.f32.mrf.mxu0
        %v5628 = vadd.f32 %v5515, %v5627
        %v5629 = vpop.f32.mrf.mxu0
        %v5630 = vadd.f32 %v5517, %v5629
        %v5631 = vpop.f32.mrf.mxu0
        %v5632 = vadd.f32 %v5519, %v5631
        %v5633 = vpop.f32.mrf.mxu0
        %v5634 = vadd.f32 %v5521, %v5633
        %5635 = vmatprep.mubr.bf16.mxu0 %v5073
        %5636 = vmatmul.mubr.bf16.gmra.mxu0 %v5072
        %v5637 = vpop.f32.mrf.mxu0
        %v5638 = vadd.f32 %v5525, %v5637
        %v5639 = vpop.f32.mrf.mxu0
        %v5640 = vadd.f32 %v5527, %v5639
        %v5641 = vpop.f32.mrf.mxu0
        %v5642 = vadd.f32 %v5529, %v5641
        %v5643 = vpop.f32.mrf.mxu0
        %v5644 = vadd.f32 %v5531, %v5643
        %5645 = vmatprep.mubr.bf16.mxu0 %v5077
        %5646 = vmatmul.mubr.bf16.gmra.mxu0 %v5076
        %v5647 = vpop.f32.mrf.mxu0
        %v5648 = vadd.f32 %v5535, %v5647
        %v5649 = vpop.f32.mrf.mxu0
        %v5650 = vadd.f32 %v5537, %v5649
        %v5651 = vpop.f32.mrf.mxu0
        %v5652 = vadd.f32 %v5539, %v5651
        %v5653 = vpop.f32.mrf.mxu0
        %v5654 = vadd.f32 %v5541, %v5653
        %5655 = vdwg.mxu0
        %v5656 = vadd.f32 %v5578, %v5582
        %v5657 = vadd.f32 %v5656, %v5588
        %v5658 = vadd.f32 %v5657, %v5592
        %v5659 = vadd.f32 %v5658, %v5598
        %v5660 = vadd.f32 %v5659, %v5602
        %v5661 = vadd.f32 %v5660, %v5608
        %v5662 = vadd.f32 %v5661, %v5612
        %v5663 = vrot.slane %v5662, 4
        %v5664 = vadd.f32 %v5662, %v5663
        %v5665 = vrot.slane %v5664, 2
        %v5666 = vadd.f32 %v5664, %v5665
        %v5667 = vrot.slane %v5666, 1
        %v5668 = vadd.f32 %v5666, %v5667
        %v5669 = vadd.f32 %v5580, %v5584
        %v5670 = vadd.f32 %v5669, %v5590
        %v5671 = vadd.f32 %v5670, %v5594
        %v5672 = vadd.f32 %v5671, %v5600
        %v5673 = vadd.f32 %v5672, %v5604
        %v5674 = vadd.f32 %v5673, %v5610
        %v5675 = vadd.f32 %v5674, %v5614
        %v5676 = vrot.slane %v5675, 4
        %v5677 = vadd.f32 %v5675, %v5676
        %v5678 = vrot.slane %v5677, 2
        %v5679 = vadd.f32 %v5677, %v5678
        %v5680 = vrot.slane %v5679, 1
        %v5681 = vadd.f32 %v5679, %v5680
        %v5682 = vadd.f32 %v5618, %v5622
        %v5683 = vadd.f32 %v5682, %v5628
        %v5684 = vadd.f32 %v5683, %v5632
        %v5685 = vadd.f32 %v5684, %v5638
        %v5686 = vadd.f32 %v5685, %v5642
        %v5687 = vadd.f32 %v5686, %v5648
        %v5688 = vadd.f32 %v5687, %v5652
        %v5689 = vrot.slane %v5688, 4
        %v5690 = vadd.f32 %v5688, %v5689
        %v5691 = vrot.slane %v5690, 2
        %v5692 = vadd.f32 %v5690, %v5691
        %v5693 = vrot.slane %v5692, 1
        %v5694 = vadd.f32 %v5692, %v5693
        %v5695 = vadd.f32 %v5620, %v5624
        %v5696 = vadd.f32 %v5695, %v5630
        %v5697 = vadd.f32 %v5696, %v5634
        %v5698 = vadd.f32 %v5697, %v5640
        %v5699 = vadd.f32 %v5698, %v5644
        %v5700 = vadd.f32 %v5699, %v5650
        %v5701 = vadd.f32 %v5700, %v5654
        %v5702 = vrot.slane %v5701, 4
        %v5703 = vadd.f32 %v5701, %v5702
        %v5704 = vrot.slane %v5703, 2
        %v5705 = vadd.f32 %v5703, %v5704
        %v5706 = vrot.slane %v5705, 1
        %v5707 = vadd.f32 %v5705, %v5706
        %v5708 = vmul.f32 %v5668, %v2506
        %v5709 = vmul.f32 %v5681, %v2506
        %v5710 = vmul.f32 %v5694, %v2506
        %v5711 = vmul.f32 %v5707, %v2506
        %v5712 = vadd.f32 %v4849, %v5708
        %v5713 = vadd.f32 %v4850, %v5709
        %v5714 = vadd.f32 %v4851, %v5710
        %v5715 = vadd.f32 %v4852, %v5711
        %v5716 = vld [vmem:[%s4853] sm:$0xff]
        %v5717 = vld [vmem:[%s4853 + $0x8] sm:$0xff]
        %v5718 = vld [vmem:[%s4853 + $0x10] sm:$0x11]
        %v5719 = vld [vmem:[%s4853 + $0x18] sm:$0x11]
        %v5720 = vld [vmem:[%s4853 + $0x20] sm:$0xff]
        %v5721 = vld [vmem:[%s4853 + $0x28] sm:$0xff]
        %v5722 = vld [vmem:[%s4853 + $0x30] sm:$0x11]
        %v5723 = vld [vmem:[%s4853 + $0x38] sm:$0x11]
        %v5724 = vld [vmem:[%s4853 + $0x40] sm:$0xff]
        %v5725 = vld [vmem:[%s4853 + $0x48] sm:$0xff]
        %v5726 = vld [vmem:[%s4853 + $0x50] sm:$0x11]
        %v5727 = vld [vmem:[%s4853 + $0x58] sm:$0x11]
        %v5728 = vld [vmem:[%s4853 + $0x60] sm:$0xff]
        %v5729 = vld [vmem:[%s4853 + $0x68] sm:$0xff]
        %v5730 = vld [vmem:[%s4853 + $0x70] sm:$0x11]
        %v5731 = vld [vmem:[%s4853 + $0x78] sm:$0x11]
        %v5732 = vld [vmem:[%s4853 + $0x80] sm:$0xff]
        %v5733 = vld [vmem:[%s4853 + $0x88] sm:$0xff]
        %v5734 = vld [vmem:[%s4853 + $0x90] sm:$0x11]
        %v5735 = vld [vmem:[%s4853 + $0x98] sm:$0x11]
        %v5736 = vld [vmem:[%s4853 + $0xa0] sm:$0xff]
        %v5737 = vld [vmem:[%s4853 + $0xa8] sm:$0xff]
        %v5738 = vld [vmem:[%s4853 + $0xb0] sm:$0x11]
        %v5739 = vld [vmem:[%s4853 + $0xb8] sm:$0x11]
        %v5740 = vld [vmem:[%s4853 + $0xc0] sm:$0xff]
        %v5741 = vld [vmem:[%s4853 + $0xc8] sm:$0xff]
        %v5742 = vld [vmem:[%s4853 + $0xd0] sm:$0x11]
        %v5743 = vld [vmem:[%s4853 + $0xd8] sm:$0x11]
        %v5744 = vld [vmem:[%s4853 + $0xe0] sm:$0xff]
        %v5745 = vld [vmem:[%s4853 + $0xe8] sm:$0xff]
        %v5746 = vld [vmem:[%s4853 + $0xf0] sm:$0x11]
        %v5747 = vld [vmem:[%s4853 + $0xf8] sm:$0x11]
        %v5748 = vld [vmem:[%s4853 + $0x140] sm:$0xff]
        %v5749 = vld [vmem:[%s4853 + $0x148] sm:$0xff]
        %v5750 = vld [vmem:[%s4853 + $0x150] sm:$0x11]
        %v5751 = vld [vmem:[%s4853 + $0x158] sm:$0x11]
        %v5752 = vld [vmem:[%s4853 + $0x160] sm:$0xff]
        %v5753 = vld [vmem:[%s4853 + $0x168] sm:$0xff]
        %v5754 = vld [vmem:[%s4853 + $0x170] sm:$0x11]
        %v5755 = vld [vmem:[%s4853 + $0x178] sm:$0x11]
        %v5756 = vld [vmem:[%s4853 + $0x180] sm:$0xff]
        %v5757 = vld [vmem:[%s4853 + $0x188] sm:$0xff]
        %v5758 = vld [vmem:[%s4853 + $0x190] sm:$0x11]
        %v5759 = vld [vmem:[%s4853 + $0x198] sm:$0x11]
        %v5760 = vld [vmem:[%s4853 + $0x1a0] sm:$0xff]
        %v5761 = vld [vmem:[%s4853 + $0x1a8] sm:$0xff]
        %v5762 = vld [vmem:[%s4853 + $0x1b0] sm:$0x11]
        %v5763 = vld [vmem:[%s4853 + $0x1b8] sm:$0x11]
        %v5764 = vld [vmem:[%s4853 + $0x1c0] sm:$0xff]
        %v5765 = vld [vmem:[%s4853 + $0x1c8] sm:$0xff]
        %v5766 = vld [vmem:[%s4853 + $0x1d0] sm:$0x11]
        %v5767 = vld [vmem:[%s4853 + $0x1d8] sm:$0x11]
        %v5768 = vld [vmem:[%s4853 + $0x1e0] sm:$0xff]
        %v5769 = vld [vmem:[%s4853 + $0x1e8] sm:$0xff]
        %v5770 = vld [vmem:[%s4853 + $0x1f0] sm:$0x11]
        %v5771 = vld [vmem:[%s4853 + $0x1f8] sm:$0x11]
        %v5772 = vld [vmem:[%s4853 + $0x200] sm:$0xff]
        %v5773 = vld [vmem:[%s4853 + $0x208] sm:$0xff]
        %v5774 = vld [vmem:[%s4853 + $0x210] sm:$0x11]
        %v5775 = vld [vmem:[%s4853 + $0x218] sm:$0x11]
        %v5776 = vld [vmem:[%s4853 + $0x220] sm:$0xff]
        %v5777 = vld [vmem:[%s4853 + $0x228] sm:$0xff]
        %v5778 = vld [vmem:[%s4853 + $0x230] sm:$0x11]
        %v5779 = vld [vmem:[%s4853 + $0x238] sm:$0x11]
        %v5781 = vshrl.u32 %v5716, 16
        %v5783 = vrot.slane %v5781, 4
        %v5784 = vshll.u32 %v5716, 16
        %v5786 = vrot.slane %v5784, 5
        %v5787 = vor.u32 %v5783, %v5786
        %v5788 = vrot.slane %v5787, 4
        %v5790 = vshll.u32 %v5718, 16
        %v5792 = vrot.slane %v5790, 5
        %v5793 = vsel %vm2581, %v5788, %v5792
        %v5795 = vshrl.u32 %v5717, 16
        %v5797 = vrot.slane %v5795, 4
        %v5798 = vshll.u32 %v5717, 16
        %v5800 = vrot.slane %v5798, 5
        %v5801 = vor.u32 %v5797, %v5800
        %v5802 = vrot.slane %v5801, 4
        %v5804 = vshll.u32 %v5719, 16
        %v5806 = vrot.slane %v5804, 5
        %v5807 = vsel %vm2581, %v5802, %v5806
        %v5809 = vshrl.u32 %v5720, 16
        %v5811 = vrot.slane %v5809, 4
        %v5812 = vshll.u32 %v5720, 16
        %v5814 = vrot.slane %v5812, 5
        %v5815 = vor.u32 %v5811, %v5814
        %v5816 = vrot.slane %v5815, 4
        %v5818 = vshll.u32 %v5722, 16
        %v5820 = vrot.slane %v5818, 5
        %v5821 = vsel %vm2581, %v5816, %v5820
        %v5823 = vshrl.u32 %v5721, 16
        %v5825 = vrot.slane %v5823, 4
        %v5826 = vshll.u32 %v5721, 16
        %v5828 = vrot.slane %v5826, 5
        %v5829 = vor.u32 %v5825, %v5828
        %v5830 = vrot.slane %v5829, 4
        %v5832 = vshll.u32 %v5723, 16
        %v5834 = vrot.slane %v5832, 5
        %v5835 = vsel %vm2581, %v5830, %v5834
        %v5837 = vshrl.u32 %v5724, 16
        %v5839 = vrot.slane %v5837, 4
        %v5840 = vshll.u32 %v5724, 16
        %v5842 = vrot.slane %v5840, 5
        %v5843 = vor.u32 %v5839, %v5842
        %v5844 = vrot.slane %v5843, 4
        %v5846 = vshll.u32 %v5726, 16
        %v5848 = vrot.slane %v5846, 5
        %v5849 = vsel %vm2581, %v5844, %v5848
        %v5851 = vshrl.u32 %v5725, 16
        %v5853 = vrot.slane %v5851, 4
        %v5854 = vshll.u32 %v5725, 16
        %v5856 = vrot.slane %v5854, 5
        %v5857 = vor.u32 %v5853, %v5856
        %v5858 = vrot.slane %v5857, 4
        %v5860 = vshll.u32 %v5727, 16
        %v5862 = vrot.slane %v5860, 5
        %v5863 = vsel %vm2581, %v5858, %v5862
        %v5865 = vshrl.u32 %v5728, 16
        %v5867 = vrot.slane %v5865, 4
        %v5868 = vshll.u32 %v5728, 16
        %v5870 = vrot.slane %v5868, 5
        %v5871 = vor.u32 %v5867, %v5870
        %v5872 = vrot.slane %v5871, 4
        %v5874 = vshll.u32 %v5730, 16
        %v5876 = vrot.slane %v5874, 5
        %v5877 = vsel %vm2581, %v5872, %v5876
        %v5879 = vshrl.u32 %v5729, 16
        %v5881 = vrot.slane %v5879, 4
        %v5882 = vshll.u32 %v5729, 16
        %v5884 = vrot.slane %v5882, 5
        %v5885 = vor.u32 %v5881, %v5884
        %v5886 = vrot.slane %v5885, 4
        %v5888 = vshll.u32 %v5731, 16
        %v5890 = vrot.slane %v5888, 5
        %v5891 = vsel %vm2581, %v5886, %v5890
        %v5893 = vshrl.u32 %v5732, 16
        %v5895 = vrot.slane %v5893, 4
        %v5896 = vshll.u32 %v5732, 16
        %v5898 = vrot.slane %v5896, 5
        %v5899 = vor.u32 %v5895, %v5898
        %v5900 = vrot.slane %v5899, 4
        %v5902 = vshll.u32 %v5734, 16
        %v5904 = vrot.slane %v5902, 5
        %v5905 = vsel %vm2581, %v5900, %v5904
        %v5907 = vshrl.u32 %v5733, 16
        %v5909 = vrot.slane %v5907, 4
        %v5910 = vshll.u32 %v5733, 16
        %v5912 = vrot.slane %v5910, 5
        %v5913 = vor.u32 %v5909, %v5912
        %v5914 = vrot.slane %v5913, 4
        %v5916 = vshll.u32 %v5735, 16
        %v5918 = vrot.slane %v5916, 5
        %v5919 = vsel %vm2581, %v5914, %v5918
        %v5921 = vshrl.u32 %v5736, 16
        %v5923 = vrot.slane %v5921, 4
        %v5924 = vshll.u32 %v5736, 16
        %v5926 = vrot.slane %v5924, 5
        %v5927 = vor.u32 %v5923, %v5926
        %v5928 = vrot.slane %v5927, 4
        %v5930 = vshll.u32 %v5738, 16
        %v5932 = vrot.slane %v5930, 5
        %v5933 = vsel %vm2581, %v5928, %v5932
        %v5935 = vshrl.u32 %v5737, 16
        %v5937 = vrot.slane %v5935, 4
        %v5938 = vshll.u32 %v5737, 16
        %v5940 = vrot.slane %v5938, 5
        %v5941 = vor.u32 %v5937, %v5940
        %v5942 = vrot.slane %v5941, 4
        %v5944 = vshll.u32 %v5739, 16
        %v5946 = vrot.slane %v5944, 5
        %v5947 = vsel %vm2581, %v5942, %v5946
        %v5949 = vshrl.u32 %v5740, 16
        %v5951 = vrot.slane %v5949, 4
        %v5952 = vshll.u32 %v5740, 16
        %v5954 = vrot.slane %v5952, 5
        %v5955 = vor.u32 %v5951, %v5954
        %v5956 = vrot.slane %v5955, 4
        %v5958 = vshll.u32 %v5742, 16
        %v5960 = vrot.slane %v5958, 5
        %v5961 = vsel %vm2581, %v5956, %v5960
        %v5963 = vshrl.u32 %v5741, 16
        %v5965 = vrot.slane %v5963, 4
        %v5966 = vshll.u32 %v5741, 16
        %v5968 = vrot.slane %v5966, 5
        %v5969 = vor.u32 %v5965, %v5968
        %v5970 = vrot.slane %v5969, 4
        %v5972 = vshll.u32 %v5743, 16
        %v5974 = vrot.slane %v5972, 5
        %v5975 = vsel %vm2581, %v5970, %v5974
        %v5977 = vshrl.u32 %v5744, 16
        %v5979 = vrot.slane %v5977, 4
        %v5980 = vshll.u32 %v5744, 16
        %v5982 = vrot.slane %v5980, 5
        %v5983 = vor.u32 %v5979, %v5982
        %v5984 = vrot.slane %v5983, 4
        %v5986 = vshll.u32 %v5746, 16
        %v5988 = vrot.slane %v5986, 5
        %v5989 = vsel %vm2581, %v5984, %v5988
        %v5991 = vshrl.u32 %v5745, 16
        %v5993 = vrot.slane %v5991, 4
        %v5994 = vshll.u32 %v5745, 16
        %v5996 = vrot.slane %v5994, 5
        %v5997 = vor.u32 %v5993, %v5996
        %v5998 = vrot.slane %v5997, 4
        %v6000 = vshll.u32 %v5747, 16
        %v6002 = vrot.slane %v6000, 5
        %v6003 = vsel %vm2581, %v5998, %v6002
        %v6005 = vshrl.u32 %v5748, 16
        %v6007 = vrot.slane %v6005, 4
        %v6008 = vshll.u32 %v5748, 16
        %v6010 = vrot.slane %v6008, 5
        %v6011 = vor.u32 %v6007, %v6010
        %v6012 = vrot.slane %v6011, 4
        %v6014 = vshll.u32 %v5750, 16
        %v6016 = vrot.slane %v6014, 5
        %v6017 = vsel %vm2581, %v6012, %v6016
        %v6019 = vshrl.u32 %v5749, 16
        %v6021 = vrot.slane %v6019, 4
        %v6022 = vshll.u32 %v5749, 16
        %v6024 = vrot.slane %v6022, 5
        %v6025 = vor.u32 %v6021, %v6024
        %v6026 = vrot.slane %v6025, 4
        %v6028 = vshll.u32 %v5751, 16
        %v6030 = vrot.slane %v6028, 5
        %v6031 = vsel %vm2581, %v6026, %v6030
        %v6033 = vshrl.u32 %v5752, 16
        %v6035 = vrot.slane %v6033, 4
        %v6036 = vshll.u32 %v5752, 16
        %v6038 = vrot.slane %v6036, 5
        %v6039 = vor.u32 %v6035, %v6038
        %v6040 = vrot.slane %v6039, 4
        %v6042 = vshll.u32 %v5754, 16
        %v6044 = vrot.slane %v6042, 5
        %v6045 = vsel %vm2581, %v6040, %v6044
        %v6047 = vshrl.u32 %v5753, 16
        %v6049 = vrot.slane %v6047, 4
        %v6050 = vshll.u32 %v5753, 16
        %v6052 = vrot.slane %v6050, 5
        %v6053 = vor.u32 %v6049, %v6052
        %v6054 = vrot.slane %v6053, 4
        %v6056 = vshll.u32 %v5755, 16
        %v6058 = vrot.slane %v6056, 5
        %v6059 = vsel %vm2581, %v6054, %v6058
        %v6061 = vshrl.u32 %v5756, 16
        %v6063 = vrot.slane %v6061, 4
        %v6064 = vshll.u32 %v5756, 16
        %v6066 = vrot.slane %v6064, 5
        %v6067 = vor.u32 %v6063, %v6066
        %v6068 = vrot.slane %v6067, 4
        %v6070 = vshll.u32 %v5758, 16
        %v6072 = vrot.slane %v6070, 5
        %v6073 = vsel %vm2581, %v6068, %v6072
        %v6075 = vshrl.u32 %v5757, 16
        %v6077 = vrot.slane %v6075, 4
        %v6078 = vshll.u32 %v5757, 16
        %v6080 = vrot.slane %v6078, 5
        %v6081 = vor.u32 %v6077, %v6080
        %v6082 = vrot.slane %v6081, 4
        %v6084 = vshll.u32 %v5759, 16
        %v6086 = vrot.slane %v6084, 5
        %v6087 = vsel %vm2581, %v6082, %v6086
        %v6089 = vshrl.u32 %v5760, 16
        %v6091 = vrot.slane %v6089, 4
        %v6092 = vshll.u32 %v5760, 16
        %v6094 = vrot.slane %v6092, 5
        %v6095 = vor.u32 %v6091, %v6094
        %v6096 = vrot.slane %v6095, 4
        %v6098 = vshll.u32 %v5762, 16
        %v6100 = vrot.slane %v6098, 5
        %v6101 = vsel %vm2581, %v6096, %v6100
        %v6103 = vshrl.u32 %v5761, 16
        %v6105 = vrot.slane %v6103, 4
        %v6106 = vshll.u32 %v5761, 16
        %v6108 = vrot.slane %v6106, 5
        %v6109 = vor.u32 %v6105, %v6108
        %v6110 = vrot.slane %v6109, 4
        %v6112 = vshll.u32 %v5763, 16
        %v6114 = vrot.slane %v6112, 5
        %v6115 = vsel %vm2581, %v6110, %v6114
        %v6117 = vshrl.u32 %v5764, 16
        %v6119 = vrot.slane %v6117, 4
        %v6120 = vshll.u32 %v5764, 16
        %v6122 = vrot.slane %v6120, 5
        %v6123 = vor.u32 %v6119, %v6122
        %v6124 = vrot.slane %v6123, 4
        %v6126 = vshll.u32 %v5766, 16
        %v6128 = vrot.slane %v6126, 5
        %v6129 = vsel %vm2581, %v6124, %v6128
        %v6131 = vshrl.u32 %v5765, 16
        %v6133 = vrot.slane %v6131, 4
        %v6134 = vshll.u32 %v5765, 16
        %v6136 = vrot.slane %v6134, 5
        %v6137 = vor.u32 %v6133, %v6136
        %v6138 = vrot.slane %v6137, 4
        %v6140 = vshll.u32 %v5767, 16
        %v6142 = vrot.slane %v6140, 5
        %v6143 = vsel %vm2581, %v6138, %v6142
        %v6145 = vshrl.u32 %v5768, 16
        %v6147 = vrot.slane %v6145, 4
        %v6148 = vshll.u32 %v5768, 16
        %v6150 = vrot.slane %v6148, 5
        %v6151 = vor.u32 %v6147, %v6150
        %v6152 = vrot.slane %v6151, 4
        %v6154 = vshll.u32 %v5770, 16
        %v6156 = vrot.slane %v6154, 5
        %v6157 = vsel %vm2581, %v6152, %v6156
        %v6159 = vshrl.u32 %v5769, 16
        %v6161 = vrot.slane %v6159, 4
        %v6162 = vshll.u32 %v5769, 16
        %v6164 = vrot.slane %v6162, 5
        %v6165 = vor.u32 %v6161, %v6164
        %v6166 = vrot.slane %v6165, 4
        %v6168 = vshll.u32 %v5771, 16
        %v6170 = vrot.slane %v6168, 5
        %v6171 = vsel %vm2581, %v6166, %v6170
        %v6173 = vshrl.u32 %v5772, 16
        %v6175 = vrot.slane %v6173, 4
        %v6176 = vshll.u32 %v5772, 16
        %v6178 = vrot.slane %v6176, 5
        %v6179 = vor.u32 %v6175, %v6178
        %v6180 = vrot.slane %v6179, 4
        %v6182 = vshll.u32 %v5774, 16
        %v6184 = vrot.slane %v6182, 5
        %v6185 = vsel %vm2581, %v6180, %v6184
        %v6187 = vshrl.u32 %v5773, 16
        %v6189 = vrot.slane %v6187, 4
        %v6190 = vshll.u32 %v5773, 16
        %v6192 = vrot.slane %v6190, 5
        %v6193 = vor.u32 %v6189, %v6192
        %v6194 = vrot.slane %v6193, 4
        %v6196 = vshll.u32 %v5775, 16
        %v6198 = vrot.slane %v6196, 5
        %v6199 = vsel %vm2581, %v6194, %v6198
        %v6201 = vshrl.u32 %v5776, 16
        %v6203 = vrot.slane %v6201, 4
        %v6204 = vshll.u32 %v5776, 16
        %v6206 = vrot.slane %v6204, 5
        %v6207 = vor.u32 %v6203, %v6206
        %v6208 = vrot.slane %v6207, 4
        %v6210 = vshll.u32 %v5778, 16
        %v6212 = vrot.slane %v6210, 5
        %v6213 = vsel %vm2581, %v6208, %v6212
        %v6215 = vshrl.u32 %v5777, 16
        %v6217 = vrot.slane %v6215, 4
        %v6218 = vshll.u32 %v5777, 16
        %v6220 = vrot.slane %v6218, 5
        %v6221 = vor.u32 %v6217, %v6220
        %v6222 = vrot.slane %v6221, 4
        %v6224 = vshll.u32 %v5779, 16
        %v6226 = vrot.slane %v6224, 5
        %v6227 = vsel %vm2581, %v6222, %v6226
        %v6228 = vld [vmem:[%s227 + $0x800] sm:$0xff]
        %v6229 = vld [vmem:[%s227 + $0x808] sm:$0xff]
        %v6230 = vld [vmem:[%s227 + $0x810] sm:$0xff]
        %v6231 = vld [vmem:[%s227 + $0x818] sm:$0xff]
        %v6232 = vld [vmem:[%s227 + $0x820] sm:$0xff]
        %v6233 = vld [vmem:[%s227 + $0x828] sm:$0xff]
        %v6234 = vld [vmem:[%s227 + $0x830] sm:$0xff]
        %v6235 = vld [vmem:[%s227 + $0x838] sm:$0xff]
        %v6236 = vld [vmem:[%s227 + $0x840] sm:$0xff]
        %v6237 = vld [vmem:[%s227 + $0x848] sm:$0xff]
        %v6238 = vld [vmem:[%s227 + $0x850] sm:$0xff]
        %v6239 = vld [vmem:[%s227 + $0x858] sm:$0xff]
        %v6240 = vld [vmem:[%s227 + $0x860] sm:$0xff]
        %v6241 = vld [vmem:[%s227 + $0x868] sm:$0xff]
        %v6242 = vld [vmem:[%s227 + $0x870] sm:$0xff]
        %v6243 = vld [vmem:[%s227 + $0x878] sm:$0xff]
        %v6244 = vld [vmem:[%s227 + $0x880] sm:$0xff]
        %v6245 = vld [vmem:[%s227 + $0x888] sm:$0xff]
        %v6246 = vld [vmem:[%s227 + $0x890] sm:$0xff]
        %v6247 = vld [vmem:[%s227 + $0x898] sm:$0xff]
        %v6248 = vld [vmem:[%s227 + $0x8a0] sm:$0xff]
        %v6249 = vld [vmem:[%s227 + $0x8a8] sm:$0xff]
        %v6250 = vld [vmem:[%s227 + $0x8b0] sm:$0xff]
        %v6251 = vld [vmem:[%s227 + $0x8b8] sm:$0xff]
        %v6252 = vld [vmem:[%s227 + $0x8c0] sm:$0xff]
        %v6253 = vld [vmem:[%s227 + $0x8c8] sm:$0xff]
        %v6254 = vld [vmem:[%s227 + $0x8d0] sm:$0xff]
        %v6255 = vld [vmem:[%s227 + $0x8d8] sm:$0xff]
        %v6256 = vld [vmem:[%s227 + $0x8e0] sm:$0xff]
        %v6257 = vld [vmem:[%s227 + $0x8e8] sm:$0xff]
        %v6258 = vld [vmem:[%s227 + $0x8f0] sm:$0xff]
        %v6259 = vld [vmem:[%s227 + $0x8f8] sm:$0xff]
        %v6260 = vld [vmem:[%s227 + $0x900] sm:$0xff]
        %v6261 = vld [vmem:[%s227 + $0x908] sm:$0xff]
        %v6262 = vld [vmem:[%s227 + $0x910] sm:$0xff]
        %v6263 = vld [vmem:[%s227 + $0x918] sm:$0xff]
        %v6264 = vld [vmem:[%s227 + $0x920] sm:$0xff]
        %v6265 = vld [vmem:[%s227 + $0x928] sm:$0xff]
        %v6266 = vld [vmem:[%s227 + $0x930] sm:$0xff]
        %v6267 = vld [vmem:[%s227 + $0x938] sm:$0xff]
        %v6268 = vld [vmem:[%s227 + $0x940] sm:$0xff]
        %v6269 = vld [vmem:[%s227 + $0x948] sm:$0xff]
        %v6270 = vld [vmem:[%s227 + $0x950] sm:$0xff]
        %v6271 = vld [vmem:[%s227 + $0x958] sm:$0xff]
        %v6272 = vld [vmem:[%s227 + $0x960] sm:$0xff]
        %v6273 = vld [vmem:[%s227 + $0x968] sm:$0xff]
        %v6274 = vld [vmem:[%s227 + $0x970] sm:$0xff]
        %v6275 = vld [vmem:[%s227 + $0x978] sm:$0xff]
        %v6276 = vld [vmem:[%s227 + $0x980] sm:$0xff]
        %v6277 = vld [vmem:[%s227 + $0x988] sm:$0xff]
        %v6278 = vld [vmem:[%s227 + $0x990] sm:$0xff]
        %v6279 = vld [vmem:[%s227 + $0x998] sm:$0xff]
        %v6280 = vld [vmem:[%s227 + $0x9a0] sm:$0xff]
        %v6281 = vld [vmem:[%s227 + $0x9a8] sm:$0xff]
        %v6282 = vld [vmem:[%s227 + $0x9b0] sm:$0xff]
        %v6283 = vld [vmem:[%s227 + $0x9b8] sm:$0xff]
        %v6284 = vld [vmem:[%s227 + $0x9c0] sm:$0xff]
        %v6285 = vld [vmem:[%s227 + $0x9c8] sm:$0xff]
        %v6286 = vld [vmem:[%s227 + $0x9d0] sm:$0xff]
        %v6287 = vld [vmem:[%s227 + $0x9d8] sm:$0xff]
        %v6288 = vld [vmem:[%s227 + $0x9e0] sm:$0xff]
        %v6289 = vld [vmem:[%s227 + $0x9e8] sm:$0xff]
        %v6290 = vld [vmem:[%s227 + $0x9f0] sm:$0xff]
        %v6291 = vld [vmem:[%s227 + $0x9f8] sm:$0xff]
        %v6292 = vunpack.c.l.b16 %v5793
        %v6293 = vunpack.c.h.b16 %v5793
        %v6294 = vunpack.c.l.b16 %v5807
        %v6295 = vunpack.c.h.b16 %v5807
        %v6296 = vunpack.c.l.b16 %v5821
        %v6297 = vunpack.c.h.b16 %v5821
        %v6298 = vunpack.c.l.b16 %v5835
        %v6299 = vunpack.c.h.b16 %v5835
        %v6300 = vunpack.c.l.b16 %v5849
        %v6301 = vunpack.c.h.b16 %v5849
        %v6302 = vunpack.c.l.b16 %v5863
        %v6303 = vunpack.c.h.b16 %v5863
        %v6304 = vunpack.c.l.b16 %v5877
        %v6305 = vunpack.c.h.b16 %v5877
        %v6306 = vunpack.c.l.b16 %v5891
        %v6307 = vunpack.c.h.b16 %v5891
        %v6308 = vunpack.c.l.b16 %v5905
        %v6309 = vunpack.c.h.b16 %v5905
        %v6310 = vunpack.c.l.b16 %v5919
        %v6311 = vunpack.c.h.b16 %v5919
        %v6312 = vunpack.c.l.b16 %v5933
        %v6313 = vunpack.c.h.b16 %v5933
        %v6314 = vunpack.c.l.b16 %v5947
        %v6315 = vunpack.c.h.b16 %v5947
        %v6316 = vunpack.c.l.b16 %v5961
        %v6317 = vunpack.c.h.b16 %v5961
        %v6318 = vunpack.c.l.b16 %v5975
        %v6319 = vunpack.c.h.b16 %v5975
        %v6320 = vunpack.c.l.b16 %v5989
        %v6321 = vunpack.c.h.b16 %v5989
        %v6322 = vunpack.c.l.b16 %v6003
        %v6323 = vunpack.c.h.b16 %v6003
        %v6324 = vunpack.c.l.b16 %v6017
        %v6325 = vunpack.c.h.b16 %v6017
        %v6326 = vunpack.c.l.b16 %v6031
        %v6327 = vunpack.c.h.b16 %v6031
        %v6328 = vunpack.c.l.b16 %v6045
        %v6329 = vunpack.c.h.b16 %v6045
        %v6330 = vunpack.c.l.b16 %v6059
        %v6331 = vunpack.c.h.b16 %v6059
        %v6332 = vunpack.c.l.b16 %v6073
        %v6333 = vunpack.c.h.b16 %v6073
        %v6334 = vunpack.c.l.b16 %v6087
        %v6335 = vunpack.c.h.b16 %v6087
        %v6336 = vunpack.c.l.b16 %v6101
        %v6337 = vunpack.c.h.b16 %v6101
        %v6338 = vunpack.c.l.b16 %v6115
        %v6339 = vunpack.c.h.b16 %v6115
        %v6340 = vunpack.c.l.b16 %v6129
        %v6341 = vunpack.c.h.b16 %v6129
        %v6342 = vunpack.c.l.b16 %v6143
        %v6343 = vunpack.c.h.b16 %v6143
        %v6344 = vunpack.c.l.b16 %v6157
        %v6345 = vunpack.c.h.b16 %v6157
        %v6346 = vunpack.c.l.b16 %v6171
        %v6347 = vunpack.c.h.b16 %v6171
        %v6348 = vunpack.c.l.b16 %v6185
        %v6349 = vunpack.c.h.b16 %v6185
        %v6350 = vunpack.c.l.b16 %v6199
        %v6351 = vunpack.c.h.b16 %v6199
        %v6352 = vunpack.c.l.b16 %v6213
        %v6353 = vunpack.c.h.b16 %v6213
        %v6354 = vunpack.c.l.b16 %v6227
        %v6355 = vunpack.c.h.b16 %v6227
        %v6356 = vpack.c.b16 %v6296, %v6292
        %v6357 = vpack.c.b16 %v6297, %v6293
        %v6358 = vpack.c.b16 %v6298, %v6294
        %v6359 = vpack.c.b16 %v6299, %v6295
        %v6360 = vpack.c.b16 %v6304, %v6300
        %v6361 = vpack.c.b16 %v6305, %v6301
        %v6362 = vpack.c.b16 %v6306, %v6302
        %v6363 = vpack.c.b16 %v6307, %v6303
        %v6364 = vpack.c.b16 %v6312, %v6308
        %v6365 = vpack.c.b16 %v6313, %v6309
        %v6366 = vpack.c.b16 %v6314, %v6310
        %v6367 = vpack.c.b16 %v6315, %v6311
        %v6368 = vpack.c.b16 %v6320, %v6316
        %v6369 = vpack.c.b16 %v6321, %v6317
        %v6370 = vpack.c.b16 %v6322, %v6318
        %v6371 = vpack.c.b16 %v6323, %v6319
        %v6372 = vpack.c.b16 %v6328, %v6324
        %v6373 = vpack.c.b16 %v6329, %v6325
        %v6374 = vpack.c.b16 %v6330, %v6326
        %v6375 = vpack.c.b16 %v6331, %v6327
        %v6376 = vpack.c.b16 %v6336, %v6332
        %v6377 = vpack.c.b16 %v6337, %v6333
        %v6378 = vpack.c.b16 %v6338, %v6334
        %v6379 = vpack.c.b16 %v6339, %v6335
        %v6380 = vpack.c.b16 %v6344, %v6340
        %v6381 = vpack.c.b16 %v6345, %v6341
        %v6382 = vpack.c.b16 %v6346, %v6342
        %v6383 = vpack.c.b16 %v6347, %v6343
        %v6384 = vpack.c.b16 %v6352, %v6348
        %v6385 = vpack.c.b16 %v6353, %v6349
        %v6386 = vpack.c.b16 %v6354, %v6350
        %v6387 = vpack.c.b16 %v6355, %v6351
        %v6484 = vunpack.c.l.b16 %v6228
        %v6485 = vunpack.c.h.b16 %v6228
        %v6486 = vunpack.c.l.b16 %v6229
        %v6487 = vunpack.c.h.b16 %v6229
        %v6488 = vunpack.c.l.b16 %v6230
        %v6489 = vunpack.c.h.b16 %v6230
        %v6490 = vunpack.c.l.b16 %v6231
        %v6491 = vunpack.c.h.b16 %v6231
        %v6492 = vunpack.c.l.b16 %v6232
        %v6493 = vunpack.c.h.b16 %v6232
        %v6494 = vunpack.c.l.b16 %v6233
        %v6495 = vunpack.c.h.b16 %v6233
        %v6496 = vunpack.c.l.b16 %v6234
        %v6497 = vunpack.c.h.b16 %v6234
        %v6498 = vunpack.c.l.b16 %v6235
        %v6499 = vunpack.c.h.b16 %v6235
        %v6500 = vunpack.c.l.b16 %v6236
        %v6501 = vunpack.c.h.b16 %v6236
        %v6502 = vunpack.c.l.b16 %v6237
        %v6503 = vunpack.c.h.b16 %v6237
        %v6504 = vunpack.c.l.b16 %v6238
        %v6505 = vunpack.c.h.b16 %v6238
        %v6506 = vunpack.c.l.b16 %v6239
        %v6507 = vunpack.c.h.b16 %v6239
        %v6508 = vunpack.c.l.b16 %v6240
        %v6509 = vunpack.c.h.b16 %v6240
        %v6510 = vunpack.c.l.b16 %v6241
        %v6511 = vunpack.c.h.b16 %v6241
        %v6512 = vunpack.c.l.b16 %v6242
        %v6513 = vunpack.c.h.b16 %v6242
        %v6514 = vunpack.c.l.b16 %v6243
        %v6515 = vunpack.c.h.b16 %v6243
        %v6516 = vunpack.c.l.b16 %v6244
        %v6517 = vunpack.c.h.b16 %v6244
        %v6518 = vunpack.c.l.b16 %v6245
        %v6519 = vunpack.c.h.b16 %v6245
        %v6520 = vunpack.c.l.b16 %v6246
        %v6521 = vunpack.c.h.b16 %v6246
        %v6522 = vunpack.c.l.b16 %v6247
        %v6523 = vunpack.c.h.b16 %v6247
        %v6524 = vunpack.c.l.b16 %v6248
        %v6525 = vunpack.c.h.b16 %v6248
        %v6526 = vunpack.c.l.b16 %v6249
        %v6527 = vunpack.c.h.b16 %v6249
        %v6528 = vunpack.c.l.b16 %v6250
        %v6529 = vunpack.c.h.b16 %v6250
        %v6530 = vunpack.c.l.b16 %v6251
        %v6531 = vunpack.c.h.b16 %v6251
        %v6532 = vunpack.c.l.b16 %v6252
        %v6533 = vunpack.c.h.b16 %v6252
        %v6534 = vunpack.c.l.b16 %v6253
        %v6535 = vunpack.c.h.b16 %v6253
        %v6536 = vunpack.c.l.b16 %v6254
        %v6537 = vunpack.c.h.b16 %v6254
        %v6538 = vunpack.c.l.b16 %v6255
        %v6539 = vunpack.c.h.b16 %v6255
        %v6540 = vunpack.c.l.b16 %v6256
        %v6541 = vunpack.c.h.b16 %v6256
        %v6542 = vunpack.c.l.b16 %v6257
        %v6543 = vunpack.c.h.b16 %v6257
        %v6544 = vunpack.c.l.b16 %v6258
        %v6545 = vunpack.c.h.b16 %v6258
        %v6546 = vunpack.c.l.b16 %v6259
        %v6547 = vunpack.c.h.b16 %v6259
        %v6548 = vunpack.c.l.b16 %v6260
        %v6549 = vunpack.c.h.b16 %v6260
        %v6550 = vunpack.c.l.b16 %v6261
        %v6551 = vunpack.c.h.b16 %v6261
        %v6552 = vunpack.c.l.b16 %v6262
        %v6553 = vunpack.c.h.b16 %v6262
        %v6554 = vunpack.c.l.b16 %v6263
        %v6555 = vunpack.c.h.b16 %v6263
        %v6556 = vunpack.c.l.b16 %v6264
        %v6557 = vunpack.c.h.b16 %v6264
        %v6558 = vunpack.c.l.b16 %v6265
        %v6559 = vunpack.c.h.b16 %v6265
        %v6560 = vunpack.c.l.b16 %v6266
        %v6561 = vunpack.c.h.b16 %v6266
        %v6562 = vunpack.c.l.b16 %v6267
        %v6563 = vunpack.c.h.b16 %v6267
        %v6564 = vunpack.c.l.b16 %v6268
        %v6565 = vunpack.c.h.b16 %v6268
        %v6566 = vunpack.c.l.b16 %v6269
        %v6567 = vunpack.c.h.b16 %v6269
        %v6568 = vunpack.c.l.b16 %v6270
        %v6569 = vunpack.c.h.b16 %v6270
        %v6570 = vunpack.c.l.b16 %v6271
        %v6571 = vunpack.c.h.b16 %v6271
        %v6572 = vunpack.c.l.b16 %v6272
        %v6573 = vunpack.c.h.b16 %v6272
        %v6574 = vunpack.c.l.b16 %v6273
        %v6575 = vunpack.c.h.b16 %v6273
        %v6576 = vunpack.c.l.b16 %v6274
        %v6577 = vunpack.c.h.b16 %v6274
        %v6578 = vunpack.c.l.b16 %v6275
        %v6579 = vunpack.c.h.b16 %v6275
        %v6580 = vunpack.c.l.b16 %v6276
        %v6581 = vunpack.c.h.b16 %v6276
        %v6582 = vunpack.c.l.b16 %v6277
        %v6583 = vunpack.c.h.b16 %v6277
        %v6584 = vunpack.c.l.b16 %v6278
        %v6585 = vunpack.c.h.b16 %v6278
        %v6586 = vunpack.c.l.b16 %v6279
        %v6587 = vunpack.c.h.b16 %v6279
        %v6588 = vunpack.c.l.b16 %v6280
        %v6589 = vunpack.c.h.b16 %v6280
        %v6590 = vunpack.c.l.b16 %v6281
        %v6591 = vunpack.c.h.b16 %v6281
        %v6592 = vunpack.c.l.b16 %v6282
        %v6593 = vunpack.c.h.b16 %v6282
        %v6594 = vunpack.c.l.b16 %v6283
        %v6595 = vunpack.c.h.b16 %v6283
        %v6596 = vunpack.c.l.b16 %v6284
        %v6597 = vunpack.c.h.b16 %v6284
        %v6598 = vunpack.c.l.b16 %v6285
        %v6599 = vunpack.c.h.b16 %v6285
        %v6600 = vunpack.c.l.b16 %v6286
        %v6601 = vunpack.c.h.b16 %v6286
        %v6602 = vunpack.c.l.b16 %v6287
        %v6603 = vunpack.c.h.b16 %v6287
        %v6604 = vunpack.c.l.b16 %v6288
        %v6605 = vunpack.c.h.b16 %v6288
        %v6606 = vunpack.c.l.b16 %v6289
        %v6607 = vunpack.c.h.b16 %v6289
        %v6608 = vunpack.c.l.b16 %v6290
        %v6609 = vunpack.c.h.b16 %v6290
        %v6610 = vunpack.c.l.b16 %v6291
        %v6611 = vunpack.c.h.b16 %v6291
        %v6612 = vpack.c.b16 %v6486, %v6484
        %v6613 = vpack.c.b16 %v6487, %v6485
        %v6614 = vpack.c.b16 %v6490, %v6488
        %v6615 = vpack.c.b16 %v6491, %v6489
        %v6616 = vpack.c.b16 %v6494, %v6492
        %v6617 = vpack.c.b16 %v6495, %v6493
        %v6618 = vpack.c.b16 %v6498, %v6496
        %v6619 = vpack.c.b16 %v6499, %v6497
        %v6620 = vpack.c.b16 %v6502, %v6500
        %v6621 = vpack.c.b16 %v6503, %v6501
        %v6622 = vpack.c.b16 %v6506, %v6504
        %v6623 = vpack.c.b16 %v6507, %v6505
        %v6624 = vpack.c.b16 %v6510, %v6508
        %v6625 = vpack.c.b16 %v6511, %v6509
        %v6626 = vpack.c.b16 %v6514, %v6512
        %v6627 = vpack.c.b16 %v6515, %v6513
        %v6628 = vpack.c.b16 %v6518, %v6516
        %v6629 = vpack.c.b16 %v6519, %v6517
        %v6630 = vpack.c.b16 %v6522, %v6520
        %v6631 = vpack.c.b16 %v6523, %v6521
        %v6632 = vpack.c.b16 %v6526, %v6524
        %v6633 = vpack.c.b16 %v6527, %v6525
        %v6634 = vpack.c.b16 %v6530, %v6528
        %v6635 = vpack.c.b16 %v6531, %v6529
        %v6636 = vpack.c.b16 %v6534, %v6532
        %v6637 = vpack.c.b16 %v6535, %v6533
        %v6638 = vpack.c.b16 %v6538, %v6536
        %v6639 = vpack.c.b16 %v6539, %v6537
        %v6640 = vpack.c.b16 %v6542, %v6540
        %v6641 = vpack.c.b16 %v6543, %v6541
        %v6642 = vpack.c.b16 %v6546, %v6544
        %v6643 = vpack.c.b16 %v6547, %v6545
        %v6644 = vpack.c.b16 %v6550, %v6548
        %v6645 = vpack.c.b16 %v6551, %v6549
        %v6646 = vpack.c.b16 %v6554, %v6552
        %v6647 = vpack.c.b16 %v6555, %v6553
        %v6648 = vpack.c.b16 %v6558, %v6556
        %v6649 = vpack.c.b16 %v6559, %v6557
        %v6650 = vpack.c.b16 %v6562, %v6560
        %v6651 = vpack.c.b16 %v6563, %v6561
        %v6652 = vpack.c.b16 %v6566, %v6564
        %v6653 = vpack.c.b16 %v6567, %v6565
        %v6654 = vpack.c.b16 %v6570, %v6568
        %v6655 = vpack.c.b16 %v6571, %v6569
        %v6656 = vpack.c.b16 %v6574, %v6572
        %v6657 = vpack.c.b16 %v6575, %v6573
        %v6658 = vpack.c.b16 %v6578, %v6576
        %v6659 = vpack.c.b16 %v6579, %v6577
        %v6660 = vpack.c.b16 %v6582, %v6580
        %v6661 = vpack.c.b16 %v6583, %v6581
        %v6662 = vpack.c.b16 %v6586, %v6584
        %v6663 = vpack.c.b16 %v6587, %v6585
        %v6664 = vpack.c.b16 %v6590, %v6588
        %v6665 = vpack.c.b16 %v6591, %v6589
        %v6666 = vpack.c.b16 %v6594, %v6592
        %v6667 = vpack.c.b16 %v6595, %v6593
        %v6668 = vpack.c.b16 %v6598, %v6596
        %v6669 = vpack.c.b16 %v6599, %v6597
        %v6670 = vpack.c.b16 %v6602, %v6600
        %v6671 = vpack.c.b16 %v6603, %v6601
        %v6672 = vpack.c.b16 %v6606, %v6604
        %v6673 = vpack.c.b16 %v6607, %v6605
        %v6674 = vpack.c.b16 %v6610, %v6608
        %v6675 = vpack.c.b16 %v6611, %v6609
        %6740 = vmatprep.subr.bf16.mxu0 %v6627
        %6741 = vmatpush1.bf16.msra.mxu0 %v6626
        %6742 = vmatprep.subr.bf16.mxu0 %v6625
        %6743 = vmatpush1.bf16.msra.mxu0 %v6624
        %6744 = vmatprep.subr.bf16.mxu0 %v6623
        %6745 = vmatpush1.bf16.msra.mxu0 %v6622
        %6746 = vmatprep.subr.bf16.mxu0 %v6621
        %6747 = vmatpush1.bf16.msra.mxu0 %v6620
        %6748 = vmatprep.subr.bf16.mxu0 %v6619
        %6749 = vmatpush1.bf16.msra.mxu0 %v6618
        %6750 = vmatprep.subr.bf16.mxu0 %v6617
        %6751 = vmatpush1.bf16.msra.mxu0 %v6616
        %6752 = vmatprep.subr.bf16.mxu0 %v6615
        %6753 = vmatpush1.bf16.msra.mxu0 %v6614
        %6754 = vmatprep.subr.bf16.mxu0 %v6613
        %6755 = vmatpush1.bf16.msra.mxu0 %v6612
        %6756 = vmatprep.subr.bf16.mxu0 %v6643
        %6757 = vmatpush2.bf16.msra.mxu0 %v6642
        %6758 = vmatprep.subr.bf16.mxu0 %v6641
        %6759 = vmatpush2.bf16.msra.mxu0 %v6640
        %6760 = vmatprep.subr.bf16.mxu0 %v6639
        %6761 = vmatpush2.bf16.msra.mxu0 %v6638
        %6762 = vmatprep.subr.bf16.mxu0 %v6637
        %6763 = vmatpush2.bf16.msra.mxu0 %v6636
        %6764 = vmatprep.subr.bf16.mxu0 %v6635
        %6765 = vmatpush2.bf16.msra.mxu0 %v6634
        %6766 = vmatprep.subr.bf16.mxu0 %v6633
        %6767 = vmatpush2.bf16.msra.mxu0 %v6632
        %6768 = vmatprep.subr.bf16.mxu0 %v6631
        %6769 = vmatpush2.bf16.msra.mxu0 %v6630
        %6770 = vmatprep.subr.bf16.mxu0 %v6629
        %6771 = vmatpush2.bf16.msra.mxu0 %v6628
        %6772 = vmatprep.mubr.bf16.mxu0 %v6357
        %6773 = vmatmul.mubr.bf16.gmra.mxu0 %v6356
        %v6774 = vpop.f32.mrf.mxu0
        %v6775 = vadd.f32 0.0, %v6774
        %v6776 = vpop.f32.mrf.mxu0
        %v6777 = vadd.f32 0.0, %v6776
        %v6778 = vpop.f32.mrf.mxu0
        %v6779 = vadd.f32 0.0, %v6778
        %v6780 = vpop.f32.mrf.mxu0
        %v6781 = vadd.f32 0.0, %v6780
        %6782 = vmatprep.mubr.bf16.mxu0 %v6361
        %6783 = vmatmul.mubr.bf16.gmra.mxu0 %v6360
        %v6784 = vpop.f32.mrf.mxu0
        %v6785 = vadd.f32 0.0, %v6784
        %v6786 = vpop.f32.mrf.mxu0
        %v6787 = vadd.f32 0.0, %v6786
        %v6788 = vpop.f32.mrf.mxu0
        %v6789 = vadd.f32 0.0, %v6788
        %v6790 = vpop.f32.mrf.mxu0
        %v6791 = vadd.f32 0.0, %v6790
        %6792 = vmatprep.mubr.bf16.mxu0 %v6365
        %6793 = vmatmul.mubr.bf16.gmra.mxu0 %v6364
        %v6794 = vpop.f32.mrf.mxu0
        %v6795 = vadd.f32 0.0, %v6794
        %v6796 = vpop.f32.mrf.mxu0
        %v6797 = vadd.f32 0.0, %v6796
        %v6798 = vpop.f32.mrf.mxu0
        %v6799 = vadd.f32 0.0, %v6798
        %v6800 = vpop.f32.mrf.mxu0
        %v6801 = vadd.f32 0.0, %v6800
        %6802 = vmatprep.mubr.bf16.mxu0 %v6369
        %6803 = vmatmul.mubr.bf16.gmra.mxu0 %v6368
        %v6804 = vpop.f32.mrf.mxu0
        %v6805 = vadd.f32 0.0, %v6804
        %v6806 = vpop.f32.mrf.mxu0
        %v6807 = vadd.f32 0.0, %v6806
        %v6808 = vpop.f32.mrf.mxu0
        %v6809 = vadd.f32 0.0, %v6808
        %v6810 = vpop.f32.mrf.mxu0
        %v6811 = vadd.f32 0.0, %v6810
        %6812 = vmatprep.mubr.bf16.mxu0 %v6373
        %6813 = vmatmul.mubr.bf16.gmra.mxu0 %v6372
        %v6814 = vpop.f32.mrf.mxu0
        %v6815 = vadd.f32 0.0, %v6814
        %v6816 = vpop.f32.mrf.mxu0
        %v6817 = vadd.f32 0.0, %v6816
        %v6818 = vpop.f32.mrf.mxu0
        %v6819 = vadd.f32 0.0, %v6818
        %v6820 = vpop.f32.mrf.mxu0
        %v6821 = vadd.f32 0.0, %v6820
        %6822 = vmatprep.mubr.bf16.mxu0 %v6377
        %6823 = vmatmul.mubr.bf16.gmra.mxu0 %v6376
        %v6824 = vpop.f32.mrf.mxu0
        %v6825 = vadd.f32 0.0, %v6824
        %v6826 = vpop.f32.mrf.mxu0
        %v6827 = vadd.f32 0.0, %v6826
        %v6828 = vpop.f32.mrf.mxu0
        %v6829 = vadd.f32 0.0, %v6828
        %v6830 = vpop.f32.mrf.mxu0
        %v6831 = vadd.f32 0.0, %v6830
        %6832 = vmatprep.mubr.bf16.mxu0 %v6381
        %6833 = vmatmul.mubr.bf16.gmra.mxu0 %v6380
        %v6834 = vpop.f32.mrf.mxu0
        %v6835 = vadd.f32 0.0, %v6834
        %v6836 = vpop.f32.mrf.mxu0
        %v6837 = vadd.f32 0.0, %v6836
        %v6838 = vpop.f32.mrf.mxu0
        %v6839 = vadd.f32 0.0, %v6838
        %v6840 = vpop.f32.mrf.mxu0
        %v6841 = vadd.f32 0.0, %v6840
        %6842 = vmatprep.mubr.bf16.mxu0 %v6385
        %6843 = vmatmul.mubr.bf16.gmra.mxu0 %v6384
        %v6844 = vpop.f32.mrf.mxu0
        %v6845 = vadd.f32 0.0, %v6844
        %v6846 = vpop.f32.mrf.mxu0
        %v6847 = vadd.f32 0.0, %v6846
        %v6848 = vpop.f32.mrf.mxu0
        %v6849 = vadd.f32 0.0, %v6848
        %v6850 = vpop.f32.mrf.mxu0
        %v6851 = vadd.f32 0.0, %v6850
        %6852 = vdwg.mxu0
        %6853 = vmatprep.subr.bf16.mxu0 %v6659
        %6854 = vmatpush1.bf16.msra.mxu0 %v6658
        %6855 = vmatprep.subr.bf16.mxu0 %v6657
        %6856 = vmatpush1.bf16.msra.mxu0 %v6656
        %6857 = vmatprep.subr.bf16.mxu0 %v6655
        %6858 = vmatpush1.bf16.msra.mxu0 %v6654
        %6859 = vmatprep.subr.bf16.mxu0 %v6653
        %6860 = vmatpush1.bf16.msra.mxu0 %v6652
        %6861 = vmatprep.subr.bf16.mxu0 %v6651
        %6862 = vmatpush1.bf16.msra.mxu0 %v6650
        %6863 = vmatprep.subr.bf16.mxu0 %v6649
        %6864 = vmatpush1.bf16.msra.mxu0 %v6648
        %6865 = vmatprep.subr.bf16.mxu0 %v6647
        %6866 = vmatpush1.bf16.msra.mxu0 %v6646
        %6867 = vmatprep.subr.bf16.mxu0 %v6645
        %6868 = vmatpush1.bf16.msra.mxu0 %v6644
        %6869 = vmatprep.subr.bf16.mxu0 %v6675
        %6870 = vmatpush2.bf16.msra.mxu0 %v6674
        %6871 = vmatprep.subr.bf16.mxu0 %v6673
        %6872 = vmatpush2.bf16.msra.mxu0 %v6672
        %6873 = vmatprep.subr.bf16.mxu0 %v6671
        %6874 = vmatpush2.bf16.msra.mxu0 %v6670
        %6875 = vmatprep.subr.bf16.mxu0 %v6669
        %6876 = vmatpush2.bf16.msra.mxu0 %v6668
        %6877 = vmatprep.subr.bf16.mxu0 %v6667
        %6878 = vmatpush2.bf16.msra.mxu0 %v6666
        %6879 = vmatprep.subr.bf16.mxu0 %v6665
        %6880 = vmatpush2.bf16.msra.mxu0 %v6664
        %6881 = vmatprep.subr.bf16.mxu0 %v6663
        %6882 = vmatpush2.bf16.msra.mxu0 %v6662
        %6883 = vmatprep.subr.bf16.mxu0 %v6661
        %6884 = vmatpush2.bf16.msra.mxu0 %v6660
        %6885 = vmatprep.mubr.bf16.mxu0 %v6359
        %6886 = vmatmul.mubr.bf16.gmra.mxu0 %v6358
        %v6887 = vpop.f32.mrf.mxu0
        %v6888 = vadd.f32 %v6775, %v6887
        %v6889 = vpop.f32.mrf.mxu0
        %v6890 = vadd.f32 %v6777, %v6889
        %v6891 = vpop.f32.mrf.mxu0
        %v6892 = vadd.f32 %v6779, %v6891
        %v6893 = vpop.f32.mrf.mxu0
        %v6894 = vadd.f32 %v6781, %v6893
        %6895 = vmatprep.mubr.bf16.mxu0 %v6363
        %6896 = vmatmul.mubr.bf16.gmra.mxu0 %v6362
        %v6897 = vpop.f32.mrf.mxu0
        %v6898 = vadd.f32 %v6785, %v6897
        %v6899 = vpop.f32.mrf.mxu0
        %v6900 = vadd.f32 %v6787, %v6899
        %v6901 = vpop.f32.mrf.mxu0
        %v6902 = vadd.f32 %v6789, %v6901
        %v6903 = vpop.f32.mrf.mxu0
        %v6904 = vadd.f32 %v6791, %v6903
        %6905 = vmatprep.mubr.bf16.mxu0 %v6367
        %6906 = vmatmul.mubr.bf16.gmra.mxu0 %v6366
        %v6907 = vpop.f32.mrf.mxu0
        %v6908 = vadd.f32 %v6795, %v6907
        %v6909 = vpop.f32.mrf.mxu0
        %v6910 = vadd.f32 %v6797, %v6909
        %v6911 = vpop.f32.mrf.mxu0
        %v6912 = vadd.f32 %v6799, %v6911
        %v6913 = vpop.f32.mrf.mxu0
        %v6914 = vadd.f32 %v6801, %v6913
        %6915 = vmatprep.mubr.bf16.mxu0 %v6371
        %6916 = vmatmul.mubr.bf16.gmra.mxu0 %v6370
        %v6917 = vpop.f32.mrf.mxu0
        %v6918 = vadd.f32 %v6805, %v6917
        %v6919 = vpop.f32.mrf.mxu0
        %v6920 = vadd.f32 %v6807, %v6919
        %v6921 = vpop.f32.mrf.mxu0
        %v6922 = vadd.f32 %v6809, %v6921
        %v6923 = vpop.f32.mrf.mxu0
        %v6924 = vadd.f32 %v6811, %v6923
        %6925 = vmatprep.mubr.bf16.mxu0 %v6375
        %6926 = vmatmul.mubr.bf16.gmra.mxu0 %v6374
        %v6927 = vpop.f32.mrf.mxu0
        %v6928 = vadd.f32 %v6815, %v6927
        %v6929 = vpop.f32.mrf.mxu0
        %v6930 = vadd.f32 %v6817, %v6929
        %v6931 = vpop.f32.mrf.mxu0
        %v6932 = vadd.f32 %v6819, %v6931
        %v6933 = vpop.f32.mrf.mxu0
        %v6934 = vadd.f32 %v6821, %v6933
        %6935 = vmatprep.mubr.bf16.mxu0 %v6379
        %6936 = vmatmul.mubr.bf16.gmra.mxu0 %v6378
        %v6937 = vpop.f32.mrf.mxu0
        %v6938 = vadd.f32 %v6825, %v6937
        %v6939 = vpop.f32.mrf.mxu0
        %v6940 = vadd.f32 %v6827, %v6939
        %v6941 = vpop.f32.mrf.mxu0
        %v6942 = vadd.f32 %v6829, %v6941
        %v6943 = vpop.f32.mrf.mxu0
        %v6944 = vadd.f32 %v6831, %v6943
        %6945 = vmatprep.mubr.bf16.mxu0 %v6383
        %6946 = vmatmul.mubr.bf16.gmra.mxu0 %v6382
        %v6947 = vpop.f32.mrf.mxu0
        %v6948 = vadd.f32 %v6835, %v6947
        %v6949 = vpop.f32.mrf.mxu0
        %v6950 = vadd.f32 %v6837, %v6949
        %v6951 = vpop.f32.mrf.mxu0
        %v6952 = vadd.f32 %v6839, %v6951
        %v6953 = vpop.f32.mrf.mxu0
        %v6954 = vadd.f32 %v6841, %v6953
        %6955 = vmatprep.mubr.bf16.mxu0 %v6387
        %6956 = vmatmul.mubr.bf16.gmra.mxu0 %v6386
        %v6957 = vpop.f32.mrf.mxu0
        %v6958 = vadd.f32 %v6845, %v6957
        %v6959 = vpop.f32.mrf.mxu0
        %v6960 = vadd.f32 %v6847, %v6959
        %v6961 = vpop.f32.mrf.mxu0
        %v6962 = vadd.f32 %v6849, %v6961
        %v6963 = vpop.f32.mrf.mxu0
        %v6964 = vadd.f32 %v6851, %v6963
        %6965 = vdwg.mxu0
        %v6966 = vadd.f32 %v6888, %v6892
        %v6967 = vadd.f32 %v6966, %v6898
        %v6968 = vadd.f32 %v6967, %v6902
        %v6969 = vadd.f32 %v6968, %v6908
        %v6970 = vadd.f32 %v6969, %v6912
        %v6971 = vadd.f32 %v6970, %v6918
        %v6972 = vadd.f32 %v6971, %v6922
        %v6973 = vrot.slane %v6972, 4
        %v6974 = vadd.f32 %v6972, %v6973
        %v6975 = vrot.slane %v6974, 2
        %v6976 = vadd.f32 %v6974, %v6975
        %v6977 = vrot.slane %v6976, 1
        %v6978 = vadd.f32 %v6976, %v6977
        %v6979 = vadd.f32 %v6890, %v6894
        %v6980 = vadd.f32 %v6979, %v6900
        %v6981 = vadd.f32 %v6980, %v6904
        %v6982 = vadd.f32 %v6981, %v6910
        %v6983 = vadd.f32 %v6982, %v6914
        %v6984 = vadd.f32 %v6983, %v6920
        %v6985 = vadd.f32 %v6984, %v6924
        %v6986 = vrot.slane %v6985, 4
        %v6987 = vadd.f32 %v6985, %v6986
        %v6988 = vrot.slane %v6987, 2
        %v6989 = vadd.f32 %v6987, %v6988
        %v6990 = vrot.slane %v6989, 1
        %v6991 = vadd.f32 %v6989, %v6990
        %v6992 = vadd.f32 %v6928, %v6932
        %v6993 = vadd.f32 %v6992, %v6938
        %v6994 = vadd.f32 %v6993, %v6942
        %v6995 = vadd.f32 %v6994, %v6948
        %v6996 = vadd.f32 %v6995, %v6952
        %v6997 = vadd.f32 %v6996, %v6958
        %v6998 = vadd.f32 %v6997, %v6962
        %v6999 = vrot.slane %v6998, 4
        %v7000 = vadd.f32 %v6998, %v6999
        %v7001 = vrot.slane %v7000, 2
        %v7002 = vadd.f32 %v7000, %v7001
        %v7003 = vrot.slane %v7002, 1
        %v7004 = vadd.f32 %v7002, %v7003
        %v7005 = vadd.f32 %v6930, %v6934
        %v7006 = vadd.f32 %v7005, %v6940
        %v7007 = vadd.f32 %v7006, %v6944
        %v7008 = vadd.f32 %v7007, %v6950
        %v7009 = vadd.f32 %v7008, %v6954
        %v7010 = vadd.f32 %v7009, %v6960
        %v7011 = vadd.f32 %v7010, %v6964
        %v7012 = vrot.slane %v7011, 4
        %v7013 = vadd.f32 %v7011, %v7012
        %v7014 = vrot.slane %v7013, 2
        %v7015 = vadd.f32 %v7013, %v7014
        %v7016 = vrot.slane %v7015, 1
        %v7017 = vadd.f32 %v7015, %v7016
        %v7018 = vmul.f32 %v6978, %v2506
        %v7019 = vmul.f32 %v6991, %v2506
        %v7020 = vmul.f32 %v7004, %v2506
        %v7021 = vmul.f32 %v7017, %v2506
        %v7022 = vadd.f32 %v5712, %v7018
        %v7023 = vadd.f32 %v5713, %v7019
        %v7024 = vadd.f32 %v5714, %v7020
        %v7025 = vadd.f32 %v5715, %v7021
        %v7026 = vld [vmem:[%s4853] sm:$0xee]
        %v7027 = vld [vmem:[%s4853 + $0x8] sm:$0xee]
        %v7028 = vld [vmem:[%s4853 + $0x20] sm:$0xee]
        %v7029 = vld [vmem:[%s4853 + $0x28] sm:$0xee]
        %v7030 = vld [vmem:[%s4853 + $0x40] sm:$0xee]
        %v7031 = vld [vmem:[%s4853 + $0x48] sm:$0xee]
        %v7032 = vld [vmem:[%s4853 + $0x60] sm:$0xee]
        %v7033 = vld [vmem:[%s4853 + $0x68] sm:$0xee]
        %v7034 = vld [vmem:[%s4853 + $0x80] sm:$0xee]
        %v7035 = vld [vmem:[%s4853 + $0x88] sm:$0xee]
        %v7036 = vld [vmem:[%s4853 + $0xa0] sm:$0xee]
        %v7037 = vld [vmem:[%s4853 + $0xa8] sm:$0xee]
        %v7038 = vld [vmem:[%s4853 + $0xc0] sm:$0xee]
        %v7039 = vld [vmem:[%s4853 + $0xc8] sm:$0xee]
        %v7040 = vld [vmem:[%s4853 + $0xe0] sm:$0xee]
        %v7041 = vld [vmem:[%s4853 + $0xe8] sm:$0xee]
        %v7042 = vld [vmem:[%s4853 + $0x140] sm:$0xee]
        %v7043 = vld [vmem:[%s4853 + $0x148] sm:$0xee]
        %v7044 = vld [vmem:[%s4853 + $0x160] sm:$0xee]
        %v7045 = vld [vmem:[%s4853 + $0x168] sm:$0xee]
        %v7046 = vld [vmem:[%s4853 + $0x180] sm:$0xee]
        %v7047 = vld [vmem:[%s4853 + $0x188] sm:$0xee]
        %v7048 = vld [vmem:[%s4853 + $0x1a0] sm:$0xee]
        %v7049 = vld [vmem:[%s4853 + $0x1a8] sm:$0xee]
        %v7050 = vld [vmem:[%s4853 + $0x1c0] sm:$0xee]
        %v7051 = vld [vmem:[%s4853 + $0x1c8] sm:$0xee]
        %v7052 = vld [vmem:[%s4853 + $0x1e0] sm:$0xee]
        %v7053 = vld [vmem:[%s4853 + $0x1e8] sm:$0xee]
        %v7054 = vld [vmem:[%s4853 + $0x200] sm:$0xee]
        %v7055 = vld [vmem:[%s4853 + $0x208] sm:$0xee]
        %v7056 = vld [vmem:[%s4853 + $0x220] sm:$0xee]
        %v7057 = vld [vmem:[%s4853 + $0x228] sm:$0xee]
        %v7122 = vrot.slane %v7026, 5
        %v7123 = vrot.slane %v7122, 4
        %v7124 = vrot.slane %v5718, 5
        %v7125 = vsel %vm3926, %v7123, %v7124
        %v7126 = vrot.slane %v7027, 5
        %v7127 = vrot.slane %v7126, 4
        %v7128 = vrot.slane %v5719, 5
        %v7129 = vsel %vm3926, %v7127, %v7128
        %v7130 = vrot.slane %v7028, 5
        %v7131 = vrot.slane %v7130, 4
        %v7132 = vrot.slane %v5722, 5
        %v7133 = vsel %vm3926, %v7131, %v7132
        %v7134 = vrot.slane %v7029, 5
        %v7135 = vrot.slane %v7134, 4
        %v7136 = vrot.slane %v5723, 5
        %v7137 = vsel %vm3926, %v7135, %v7136
        %v7138 = vrot.slane %v7030, 5
        %v7139 = vrot.slane %v7138, 4
        %v7140 = vrot.slane %v5726, 5
        %v7141 = vsel %vm3926, %v7139, %v7140
        %v7142 = vrot.slane %v7031, 5
        %v7143 = vrot.slane %v7142, 4
        %v7144 = vrot.slane %v5727, 5
        %v7145 = vsel %vm3926, %v7143, %v7144
        %v7146 = vrot.slane %v7032, 5
        %v7147 = vrot.slane %v7146, 4
        %v7148 = vrot.slane %v5730, 5
        %v7149 = vsel %vm3926, %v7147, %v7148
        %v7150 = vrot.slane %v7033, 5
        %v7151 = vrot.slane %v7150, 4
        %v7152 = vrot.slane %v5731, 5
        %v7153 = vsel %vm3926, %v7151, %v7152
        %v7154 = vrot.slane %v7034, 5
        %v7155 = vrot.slane %v7154, 4
        %v7156 = vrot.slane %v5734, 5
        %v7157 = vsel %vm3926, %v7155, %v7156
        %v7158 = vrot.slane %v7035, 5
        %v7159 = vrot.slane %v7158, 4
        %v7160 = vrot.slane %v5735, 5
        %v7161 = vsel %vm3926, %v7159, %v7160
        %v7162 = vrot.slane %v7036, 5
        %v7163 = vrot.slane %v7162, 4
        %v7164 = vrot.slane %v5738, 5
        %v7165 = vsel %vm3926, %v7163, %v7164
        %v7166 = vrot.slane %v7037, 5
        %v7167 = vrot.slane %v7166, 4
        %v7168 = vrot.slane %v5739, 5
        %v7169 = vsel %vm3926, %v7167, %v7168
        %v7170 = vrot.slane %v7038, 5
        %v7171 = vrot.slane %v7170, 4
        %v7172 = vrot.slane %v5742, 5
        %v7173 = vsel %vm3926, %v7171, %v7172
        %v7174 = vrot.slane %v7039, 5
        %v7175 = vrot.slane %v7174, 4
        %v7176 = vrot.slane %v5743, 5
        %v7177 = vsel %vm3926, %v7175, %v7176
        %v7178 = vrot.slane %v7040, 5
        %v7179 = vrot.slane %v7178, 4
        %v7180 = vrot.slane %v5746, 5
        %v7181 = vsel %vm3926, %v7179, %v7180
        %v7182 = vrot.slane %v7041, 5
        %v7183 = vrot.slane %v7182, 4
        %v7184 = vrot.slane %v5747, 5
        %v7185 = vsel %vm3926, %v7183, %v7184
        %v7186 = vrot.slane %v7042, 5
        %v7187 = vrot.slane %v7186, 4
        %v7188 = vrot.slane %v5750, 5
        %v7189 = vsel %vm3926, %v7187, %v7188
        %v7190 = vrot.slane %v7043, 5
        %v7191 = vrot.slane %v7190, 4
        %v7192 = vrot.slane %v5751, 5
        %v7193 = vsel %vm3926, %v7191, %v7192
        %v7194 = vrot.slane %v7044, 5
        %v7195 = vrot.slane %v7194, 4
        %v7196 = vrot.slane %v5754, 5
        %v7197 = vsel %vm3926, %v7195, %v7196
        %v7198 = vrot.slane %v7045, 5
        %v7199 = vrot.slane %v7198, 4
        %v7200 = vrot.slane %v5755, 5
        %v7201 = vsel %vm3926, %v7199, %v7200
        %v7202 = vrot.slane %v7046, 5
        %v7203 = vrot.slane %v7202, 4
        %v7204 = vrot.slane %v5758, 5
        %v7205 = vsel %vm3926, %v7203, %v7204
        %v7206 = vrot.slane %v7047, 5
        %v7207 = vrot.slane %v7206, 4
        %v7208 = vrot.slane %v5759, 5
        %v7209 = vsel %vm3926, %v7207, %v7208
        %v7210 = vrot.slane %v7048, 5
        %v7211 = vrot.slane %v7210, 4
        %v7212 = vrot.slane %v5762, 5
        %v7213 = vsel %vm3926, %v7211, %v7212
        %v7214 = vrot.slane %v7049, 5
        %v7215 = vrot.slane %v7214, 4
        %v7216 = vrot.slane %v5763, 5
        %v7217 = vsel %vm3926, %v7215, %v7216
        %v7218 = vrot.slane %v7050, 5
        %v7219 = vrot.slane %v7218, 4
        %v7220 = vrot.slane %v5766, 5
        %v7221 = vsel %vm3926, %v7219, %v7220
        %v7222 = vrot.slane %v7051, 5
        %v7223 = vrot.slane %v7222, 4
        %v7224 = vrot.slane %v5767, 5
        %v7225 = vsel %vm3926, %v7223, %v7224
        %v7226 = vrot.slane %v7052, 5
        %v7227 = vrot.slane %v7226, 4
        %v7228 = vrot.slane %v5770, 5
        %v7229 = vsel %vm3926, %v7227, %v7228
        %v7230 = vrot.slane %v7053, 5
        %v7231 = vrot.slane %v7230, 4
        %v7232 = vrot.slane %v5771, 5
        %v7233 = vsel %vm3926, %v7231, %v7232
        %v7234 = vrot.slane %v7054, 5
        %v7235 = vrot.slane %v7234, 4
        %v7236 = vrot.slane %v5774, 5
        %v7237 = vsel %vm3926, %v7235, %v7236
        %v7238 = vrot.slane %v7055, 5
        %v7239 = vrot.slane %v7238, 4
        %v7240 = vrot.slane %v5775, 5
        %v7241 = vsel %vm3926, %v7239, %v7240
        %v7242 = vrot.slane %v7056, 5
        %v7243 = vrot.slane %v7242, 4
        %v7244 = vrot.slane %v5778, 5
        %v7245 = vsel %vm3926, %v7243, %v7244
        %v7246 = vrot.slane %v7057, 5
        %v7247 = vrot.slane %v7246, 4
        %v7248 = vrot.slane %v5779, 5
        %v7249 = vsel %vm3926, %v7247, %v7248
        %v7250 = vld [vmem:[%s227 + $0xa00] sm:$0xff]
        %v7251 = vld [vmem:[%s227 + $0xa08] sm:$0xff]
        %v7252 = vld [vmem:[%s227 + $0xa10] sm:$0xff]
        %v7253 = vld [vmem:[%s227 + $0xa18] sm:$0xff]
        %v7254 = vld [vmem:[%s227 + $0xa20] sm:$0xff]
        %v7255 = vld [vmem:[%s227 + $0xa28] sm:$0xff]
        %v7256 = vld [vmem:[%s227 + $0xa30] sm:$0xff]
        %v7257 = vld [vmem:[%s227 + $0xa38] sm:$0xff]
        %v7258 = vld [vmem:[%s227 + $0xa40] sm:$0xff]
        %v7259 = vld [vmem:[%s227 + $0xa48] sm:$0xff]
        %v7260 = vld [vmem:[%s227 + $0xa50] sm:$0xff]
        %v7261 = vld [vmem:[%s227 + $0xa58] sm:$0xff]
        %v7262 = vld [vmem:[%s227 + $0xa60] sm:$0xff]
        %v7263 = vld [vmem:[%s227 + $0xa68] sm:$0xff]
        %v7264 = vld [vmem:[%s227 + $0xa70] sm:$0xff]
        %v7265 = vld [vmem:[%s227 + $0xa78] sm:$0xff]
        %v7266 = vld [vmem:[%s227 + $0xa80] sm:$0xff]
        %v7267 = vld [vmem:[%s227 + $0xa88] sm:$0xff]
        %v7268 = vld [vmem:[%s227 + $0xa90] sm:$0xff]
        %v7269 = vld [vmem:[%s227 + $0xa98] sm:$0xff]
        %v7270 = vld [vmem:[%s227 + $0xaa0] sm:$0xff]
        %v7271 = vld [vmem:[%s227 + $0xaa8] sm:$0xff]
        %v7272 = vld [vmem:[%s227 + $0xab0] sm:$0xff]
        %v7273 = vld [vmem:[%s227 + $0xab8] sm:$0xff]
        %v7274 = vld [vmem:[%s227 + $0xac0] sm:$0xff]
        %v7275 = vld [vmem:[%s227 + $0xac8] sm:$0xff]
        %v7276 = vld [vmem:[%s227 + $0xad0] sm:$0xff]
        %v7277 = vld [vmem:[%s227 + $0xad8] sm:$0xff]
        %v7278 = vld [vmem:[%s227 + $0xae0] sm:$0xff]
        %v7279 = vld [vmem:[%s227 + $0xae8] sm:$0xff]
        %v7280 = vld [vmem:[%s227 + $0xaf0] sm:$0xff]
        %v7281 = vld [vmem:[%s227 + $0xaf8] sm:$0xff]
        %v7282 = vld [vmem:[%s227 + $0xb00] sm:$0xff]
        %v7283 = vld [vmem:[%s227 + $0xb08] sm:$0xff]
        %v7284 = vld [vmem:[%s227 + $0xb10] sm:$0xff]
        %v7285 = vld [vmem:[%s227 + $0xb18] sm:$0xff]
        %v7286 = vld [vmem:[%s227 + $0xb20] sm:$0xff]
        %v7287 = vld [vmem:[%s227 + $0xb28] sm:$0xff]
        %v7288 = vld [vmem:[%s227 + $0xb30] sm:$0xff]
        %v7289 = vld [vmem:[%s227 + $0xb38] sm:$0xff]
        %v7290 = vld [vmem:[%s227 + $0xb40] sm:$0xff]
        %v7291 = vld [vmem:[%s227 + $0xb48] sm:$0xff]
        %v7292 = vld [vmem:[%s227 + $0xb50] sm:$0xff]
        %v7293 = vld [vmem:[%s227 + $0xb58] sm:$0xff]
        %v7294 = vld [vmem:[%s227 + $0xb60] sm:$0xff]
        %v7295 = vld [vmem:[%s227 + $0xb68] sm:$0xff]
        %v7296 = vld [vmem:[%s227 + $0xb70] sm:$0xff]
        %v7297 = vld [vmem:[%s227 + $0xb78] sm:$0xff]
        %v7298 = vld [vmem:[%s227 + $0xb80] sm:$0xff]
        %v7299 = vld [vmem:[%s227 + $0xb88] sm:$0xff]
        %v7300 = vld [vmem:[%s227 + $0xb90] sm:$0xff]
        %v7301 = vld [vmem:[%s227 + $0xb98] sm:$0xff]
        %v7302 = vld [vmem:[%s227 + $0xba0] sm:$0xff]
        %v7303 = vld [vmem:[%s227 + $0xba8] sm:$0xff]
        %v7304 = vld [vmem:[%s227 + $0xbb0] sm:$0xff]
        %v7305 = vld [vmem:[%s227 + $0xbb8] sm:$0xff]
        %v7306 = vld [vmem:[%s227 + $0xbc0] sm:$0xff]
        %v7307 = vld [vmem:[%s227 + $0xbc8] sm:$0xff]
        %v7308 = vld [vmem:[%s227 + $0xbd0] sm:$0xff]
        %v7309 = vld [vmem:[%s227 + $0xbd8] sm:$0xff]
        %v7310 = vld [vmem:[%s227 + $0xbe0] sm:$0xff]
        %v7311 = vld [vmem:[%s227 + $0xbe8] sm:$0xff]
        %v7312 = vld [vmem:[%s227 + $0xbf0] sm:$0xff]
        %v7313 = vld [vmem:[%s227 + $0xbf8] sm:$0xff]
        %v7314 = vunpack.c.l.b16 %v7125
        %v7315 = vunpack.c.h.b16 %v7125
        %v7316 = vunpack.c.l.b16 %v7129
        %v7317 = vunpack.c.h.b16 %v7129
        %v7318 = vunpack.c.l.b16 %v7133
        %v7319 = vunpack.c.h.b16 %v7133
        %v7320 = vunpack.c.l.b16 %v7137
        %v7321 = vunpack.c.h.b16 %v7137
        %v7322 = vunpack.c.l.b16 %v7141
        %v7323 = vunpack.c.h.b16 %v7141
        %v7324 = vunpack.c.l.b16 %v7145
        %v7325 = vunpack.c.h.b16 %v7145
        %v7326 = vunpack.c.l.b16 %v7149
        %v7327 = vunpack.c.h.b16 %v7149
        %v7328 = vunpack.c.l.b16 %v7153
        %v7329 = vunpack.c.h.b16 %v7153
        %v7330 = vunpack.c.l.b16 %v7157
        %v7331 = vunpack.c.h.b16 %v7157
        %v7332 = vunpack.c.l.b16 %v7161
        %v7333 = vunpack.c.h.b16 %v7161
        %v7334 = vunpack.c.l.b16 %v7165
        %v7335 = vunpack.c.h.b16 %v7165
        %v7336 = vunpack.c.l.b16 %v7169
        %v7337 = vunpack.c.h.b16 %v7169
        %v7338 = vunpack.c.l.b16 %v7173
        %v7339 = vunpack.c.h.b16 %v7173
        %v7340 = vunpack.c.l.b16 %v7177
        %v7341 = vunpack.c.h.b16 %v7177
        %v7342 = vunpack.c.l.b16 %v7181
        %v7343 = vunpack.c.h.b16 %v7181
        %v7344 = vunpack.c.l.b16 %v7185
        %v7345 = vunpack.c.h.b16 %v7185
        %v7346 = vunpack.c.l.b16 %v7189
        %v7347 = vunpack.c.h.b16 %v7189
        %v7348 = vunpack.c.l.b16 %v7193
        %v7349 = vunpack.c.h.b16 %v7193
        %v7350 = vunpack.c.l.b16 %v7197
        %v7351 = vunpack.c.h.b16 %v7197
        %v7352 = vunpack.c.l.b16 %v7201
        %v7353 = vunpack.c.h.b16 %v7201
        %v7354 = vunpack.c.l.b16 %v7205
        %v7355 = vunpack.c.h.b16 %v7205
        %v7356 = vunpack.c.l.b16 %v7209
        %v7357 = vunpack.c.h.b16 %v7209
        %v7358 = vunpack.c.l.b16 %v7213
        %v7359 = vunpack.c.h.b16 %v7213
        %v7360 = vunpack.c.l.b16 %v7217
        %v7361 = vunpack.c.h.b16 %v7217
        %v7362 = vunpack.c.l.b16 %v7221
        %v7363 = vunpack.c.h.b16 %v7221
        %v7364 = vunpack.c.l.b16 %v7225
        %v7365 = vunpack.c.h.b16 %v7225
        %v7366 = vunpack.c.l.b16 %v7229
        %v7367 = vunpack.c.h.b16 %v7229
        %v7368 = vunpack.c.l.b16 %v7233
        %v7369 = vunpack.c.h.b16 %v7233
        %v7370 = vunpack.c.l.b16 %v7237
        %v7371 = vunpack.c.h.b16 %v7237
        %v7372 = vunpack.c.l.b16 %v7241
        %v7373 = vunpack.c.h.b16 %v7241
        %v7374 = vunpack.c.l.b16 %v7245
        %v7375 = vunpack.c.h.b16 %v7245
        %v7376 = vunpack.c.l.b16 %v7249
        %v7377 = vunpack.c.h.b16 %v7249
        %v7378 = vpack.c.b16 %v7318, %v7314
        %v7379 = vpack.c.b16 %v7319, %v7315
        %v7380 = vpack.c.b16 %v7320, %v7316
        %v7381 = vpack.c.b16 %v7321, %v7317
        %v7382 = vpack.c.b16 %v7326, %v7322
        %v7383 = vpack.c.b16 %v7327, %v7323
        %v7384 = vpack.c.b16 %v7328, %v7324
        %v7385 = vpack.c.b16 %v7329, %v7325
        %v7386 = vpack.c.b16 %v7334, %v7330
        %v7387 = vpack.c.b16 %v7335, %v7331
        %v7388 = vpack.c.b16 %v7336, %v7332
        %v7389 = vpack.c.b16 %v7337, %v7333
        %v7390 = vpack.c.b16 %v7342, %v7338
        %v7391 = vpack.c.b16 %v7343, %v7339
        %v7392 = vpack.c.b16 %v7344, %v7340
        %v7393 = vpack.c.b16 %v7345, %v7341
        %v7394 = vpack.c.b16 %v7350, %v7346
        %v7395 = vpack.c.b16 %v7351, %v7347
        %v7396 = vpack.c.b16 %v7352, %v7348
        %v7397 = vpack.c.b16 %v7353, %v7349
        %v7398 = vpack.c.b16 %v7358, %v7354
        %v7399 = vpack.c.b16 %v7359, %v7355
        %v7400 = vpack.c.b16 %v7360, %v7356
        %v7401 = vpack.c.b16 %v7361, %v7357
        %v7402 = vpack.c.b16 %v7366, %v7362
        %v7403 = vpack.c.b16 %v7367, %v7363
        %v7404 = vpack.c.b16 %v7368, %v7364
        %v7405 = vpack.c.b16 %v7369, %v7365
        %v7406 = vpack.c.b16 %v7374, %v7370
        %v7407 = vpack.c.b16 %v7375, %v7371
        %v7408 = vpack.c.b16 %v7376, %v7372
        %v7409 = vpack.c.b16 %v7377, %v7373
        %v7506 = vunpack.c.l.b16 %v7250
        %v7507 = vunpack.c.h.b16 %v7250
        %v7508 = vunpack.c.l.b16 %v7251
        %v7509 = vunpack.c.h.b16 %v7251
        %v7510 = vunpack.c.l.b16 %v7252
        %v7511 = vunpack.c.h.b16 %v7252
        %v7512 = vunpack.c.l.b16 %v7253
        %v7513 = vunpack.c.h.b16 %v7253
        %v7514 = vunpack.c.l.b16 %v7254
        %v7515 = vunpack.c.h.b16 %v7254
        %v7516 = vunpack.c.l.b16 %v7255
        %v7517 = vunpack.c.h.b16 %v7255
        %v7518 = vunpack.c.l.b16 %v7256
        %v7519 = vunpack.c.h.b16 %v7256
        %v7520 = vunpack.c.l.b16 %v7257
        %v7521 = vunpack.c.h.b16 %v7257
        %v7522 = vunpack.c.l.b16 %v7258
        %v7523 = vunpack.c.h.b16 %v7258
        %v7524 = vunpack.c.l.b16 %v7259
        %v7525 = vunpack.c.h.b16 %v7259
        %v7526 = vunpack.c.l.b16 %v7260
        %v7527 = vunpack.c.h.b16 %v7260
        %v7528 = vunpack.c.l.b16 %v7261
        %v7529 = vunpack.c.h.b16 %v7261
        %v7530 = vunpack.c.l.b16 %v7262
        %v7531 = vunpack.c.h.b16 %v7262
        %v7532 = vunpack.c.l.b16 %v7263
        %v7533 = vunpack.c.h.b16 %v7263
        %v7534 = vunpack.c.l.b16 %v7264
        %v7535 = vunpack.c.h.b16 %v7264
        %v7536 = vunpack.c.l.b16 %v7265
        %v7537 = vunpack.c.h.b16 %v7265
        %v7538 = vunpack.c.l.b16 %v7266
        %v7539 = vunpack.c.h.b16 %v7266
        %v7540 = vunpack.c.l.b16 %v7267
        %v7541 = vunpack.c.h.b16 %v7267
        %v7542 = vunpack.c.l.b16 %v7268
        %v7543 = vunpack.c.h.b16 %v7268
        %v7544 = vunpack.c.l.b16 %v7269
        %v7545 = vunpack.c.h.b16 %v7269
        %v7546 = vunpack.c.l.b16 %v7270
        %v7547 = vunpack.c.h.b16 %v7270
        %v7548 = vunpack.c.l.b16 %v7271
        %v7549 = vunpack.c.h.b16 %v7271
        %v7550 = vunpack.c.l.b16 %v7272
        %v7551 = vunpack.c.h.b16 %v7272
        %v7552 = vunpack.c.l.b16 %v7273
        %v7553 = vunpack.c.h.b16 %v7273
        %v7554 = vunpack.c.l.b16 %v7274
        %v7555 = vunpack.c.h.b16 %v7274
        %v7556 = vunpack.c.l.b16 %v7275
        %v7557 = vunpack.c.h.b16 %v7275
        %v7558 = vunpack.c.l.b16 %v7276
        %v7559 = vunpack.c.h.b16 %v7276
        %v7560 = vunpack.c.l.b16 %v7277
        %v7561 = vunpack.c.h.b16 %v7277
        %v7562 = vunpack.c.l.b16 %v7278
        %v7563 = vunpack.c.h.b16 %v7278
        %v7564 = vunpack.c.l.b16 %v7279
        %v7565 = vunpack.c.h.b16 %v7279
        %v7566 = vunpack.c.l.b16 %v7280
        %v7567 = vunpack.c.h.b16 %v7280
        %v7568 = vunpack.c.l.b16 %v7281
        %v7569 = vunpack.c.h.b16 %v7281
        %v7570 = vunpack.c.l.b16 %v7282
        %v7571 = vunpack.c.h.b16 %v7282
        %v7572 = vunpack.c.l.b16 %v7283
        %v7573 = vunpack.c.h.b16 %v7283
        %v7574 = vunpack.c.l.b16 %v7284
        %v7575 = vunpack.c.h.b16 %v7284
        %v7576 = vunpack.c.l.b16 %v7285
        %v7577 = vunpack.c.h.b16 %v7285
        %v7578 = vunpack.c.l.b16 %v7286
        %v7579 = vunpack.c.h.b16 %v7286
        %v7580 = vunpack.c.l.b16 %v7287
        %v7581 = vunpack.c.h.b16 %v7287
        %v7582 = vunpack.c.l.b16 %v7288
        %v7583 = vunpack.c.h.b16 %v7288
        %v7584 = vunpack.c.l.b16 %v7289
        %v7585 = vunpack.c.h.b16 %v7289
        %v7586 = vunpack.c.l.b16 %v7290
        %v7587 = vunpack.c.h.b16 %v7290
        %v7588 = vunpack.c.l.b16 %v7291
        %v7589 = vunpack.c.h.b16 %v7291
        %v7590 = vunpack.c.l.b16 %v7292
        %v7591 = vunpack.c.h.b16 %v7292
        %v7592 = vunpack.c.l.b16 %v7293
        %v7593 = vunpack.c.h.b16 %v7293
        %v7594 = vunpack.c.l.b16 %v7294
        %v7595 = vunpack.c.h.b16 %v7294
        %v7596 = vunpack.c.l.b16 %v7295
        %v7597 = vunpack.c.h.b16 %v7295
        %v7598 = vunpack.c.l.b16 %v7296
        %v7599 = vunpack.c.h.b16 %v7296
        %v7600 = vunpack.c.l.b16 %v7297
        %v7601 = vunpack.c.h.b16 %v7297
        %v7602 = vunpack.c.l.b16 %v7298
        %v7603 = vunpack.c.h.b16 %v7298
        %v7604 = vunpack.c.l.b16 %v7299
        %v7605 = vunpack.c.h.b16 %v7299
        %v7606 = vunpack.c.l.b16 %v7300
        %v7607 = vunpack.c.h.b16 %v7300
        %v7608 = vunpack.c.l.b16 %v7301
        %v7609 = vunpack.c.h.b16 %v7301
        %v7610 = vunpack.c.l.b16 %v7302
        %v7611 = vunpack.c.h.b16 %v7302
        %v7612 = vunpack.c.l.b16 %v7303
        %v7613 = vunpack.c.h.b16 %v7303
        %v7614 = vunpack.c.l.b16 %v7304
        %v7615 = vunpack.c.h.b16 %v7304
        %v7616 = vunpack.c.l.b16 %v7305
        %v7617 = vunpack.c.h.b16 %v7305
        %v7618 = vunpack.c.l.b16 %v7306
        %v7619 = vunpack.c.h.b16 %v7306
        %v7620 = vunpack.c.l.b16 %v7307
        %v7621 = vunpack.c.h.b16 %v7307
        %v7622 = vunpack.c.l.b16 %v7308
        %v7623 = vunpack.c.h.b16 %v7308
        %v7624 = vunpack.c.l.b16 %v7309
        %v7625 = vunpack.c.h.b16 %v7309
        %v7626 = vunpack.c.l.b16 %v7310
        %v7627 = vunpack.c.h.b16 %v7310
        %v7628 = vunpack.c.l.b16 %v7311
        %v7629 = vunpack.c.h.b16 %v7311
        %v7630 = vunpack.c.l.b16 %v7312
        %v7631 = vunpack.c.h.b16 %v7312
        %v7632 = vunpack.c.l.b16 %v7313
        %v7633 = vunpack.c.h.b16 %v7313
        %v7634 = vpack.c.b16 %v7508, %v7506
        %v7635 = vpack.c.b16 %v7509, %v7507
        %v7636 = vpack.c.b16 %v7512, %v7510
        %v7637 = vpack.c.b16 %v7513, %v7511
        %v7638 = vpack.c.b16 %v7516, %v7514
        %v7639 = vpack.c.b16 %v7517, %v7515
        %v7640 = vpack.c.b16 %v7520, %v7518
        %v7641 = vpack.c.b16 %v7521, %v7519
        %v7642 = vpack.c.b16 %v7524, %v7522
        %v7643 = vpack.c.b16 %v7525, %v7523
        %v7644 = vpack.c.b16 %v7528, %v7526
        %v7645 = vpack.c.b16 %v7529, %v7527
        %v7646 = vpack.c.b16 %v7532, %v7530
        %v7647 = vpack.c.b16 %v7533, %v7531
        %v7648 = vpack.c.b16 %v7536, %v7534
        %v7649 = vpack.c.b16 %v7537, %v7535
        %v7650 = vpack.c.b16 %v7540, %v7538
        %v7651 = vpack.c.b16 %v7541, %v7539
        %v7652 = vpack.c.b16 %v7544, %v7542
        %v7653 = vpack.c.b16 %v7545, %v7543
        %v7654 = vpack.c.b16 %v7548, %v7546
        %v7655 = vpack.c.b16 %v7549, %v7547
        %v7656 = vpack.c.b16 %v7552, %v7550
        %v7657 = vpack.c.b16 %v7553, %v7551
        %v7658 = vpack.c.b16 %v7556, %v7554
        %v7659 = vpack.c.b16 %v7557, %v7555
        %v7660 = vpack.c.b16 %v7560, %v7558
        %v7661 = vpack.c.b16 %v7561, %v7559
        %v7662 = vpack.c.b16 %v7564, %v7562
        %v7663 = vpack.c.b16 %v7565, %v7563
        %v7664 = vpack.c.b16 %v7568, %v7566
        %v7665 = vpack.c.b16 %v7569, %v7567
        %v7666 = vpack.c.b16 %v7572, %v7570
        %v7667 = vpack.c.b16 %v7573, %v7571
        %v7668 = vpack.c.b16 %v7576, %v7574
        %v7669 = vpack.c.b16 %v7577, %v7575
        %v7670 = vpack.c.b16 %v7580, %v7578
        %v7671 = vpack.c.b16 %v7581, %v7579
        %v7672 = vpack.c.b16 %v7584, %v7582
        %v7673 = vpack.c.b16 %v7585, %v7583
        %v7674 = vpack.c.b16 %v7588, %v7586
        %v7675 = vpack.c.b16 %v7589, %v7587
        %v7676 = vpack.c.b16 %v7592, %v7590
        %v7677 = vpack.c.b16 %v7593, %v7591
        %v7678 = vpack.c.b16 %v7596, %v7594
        %v7679 = vpack.c.b16 %v7597, %v7595
        %v7680 = vpack.c.b16 %v7600, %v7598
        %v7681 = vpack.c.b16 %v7601, %v7599
        %v7682 = vpack.c.b16 %v7604, %v7602
        %v7683 = vpack.c.b16 %v7605, %v7603
        %v7684 = vpack.c.b16 %v7608, %v7606
        %v7685 = vpack.c.b16 %v7609, %v7607
        %v7686 = vpack.c.b16 %v7612, %v7610
        %v7687 = vpack.c.b16 %v7613, %v7611
        %v7688 = vpack.c.b16 %v7616, %v7614
        %v7689 = vpack.c.b16 %v7617, %v7615
        %v7690 = vpack.c.b16 %v7620, %v7618
        %v7691 = vpack.c.b16 %v7621, %v7619
        %v7692 = vpack.c.b16 %v7624, %v7622
        %v7693 = vpack.c.b16 %v7625, %v7623
        %v7694 = vpack.c.b16 %v7628, %v7626
        %v7695 = vpack.c.b16 %v7629, %v7627
        %v7696 = vpack.c.b16 %v7632, %v7630
        %v7697 = vpack.c.b16 %v7633, %v7631
        %7762 = vmatprep.subr.bf16.mxu0 %v7649
        %7763 = vmatpush1.bf16.msra.mxu0 %v7648
        %7764 = vmatprep.subr.bf16.mxu0 %v7647
        %7765 = vmatpush1.bf16.msra.mxu0 %v7646
        %7766 = vmatprep.subr.bf16.mxu0 %v7645
        %7767 = vmatpush1.bf16.msra.mxu0 %v7644
        %7768 = vmatprep.subr.bf16.mxu0 %v7643
        %7769 = vmatpush1.bf16.msra.mxu0 %v7642
        %7770 = vmatprep.subr.bf16.mxu0 %v7641
        %7771 = vmatpush1.bf16.msra.mxu0 %v7640
        %7772 = vmatprep.subr.bf16.mxu0 %v7639
        %7773 = vmatpush1.bf16.msra.mxu0 %v7638
        %7774 = vmatprep.subr.bf16.mxu0 %v7637
        %7775 = vmatpush1.bf16.msra.mxu0 %v7636
        %7776 = vmatprep.subr.bf16.mxu0 %v7635
        %7777 = vmatpush1.bf16.msra.mxu0 %v7634
        %7778 = vmatprep.subr.bf16.mxu0 %v7665
        %7779 = vmatpush2.bf16.msra.mxu0 %v7664
        %7780 = vmatprep.subr.bf16.mxu0 %v7663
        %7781 = vmatpush2.bf16.msra.mxu0 %v7662
        %7782 = vmatprep.subr.bf16.mxu0 %v7661
        %7783 = vmatpush2.bf16.msra.mxu0 %v7660
        %7784 = vmatprep.subr.bf16.mxu0 %v7659
        %7785 = vmatpush2.bf16.msra.mxu0 %v7658
        %7786 = vmatprep.subr.bf16.mxu0 %v7657
        %7787 = vmatpush2.bf16.msra.mxu0 %v7656
        %7788 = vmatprep.subr.bf16.mxu0 %v7655
        %7789 = vmatpush2.bf16.msra.mxu0 %v7654
        %7790 = vmatprep.subr.bf16.mxu0 %v7653
        %7791 = vmatpush2.bf16.msra.mxu0 %v7652
        %7792 = vmatprep.subr.bf16.mxu0 %v7651
        %7793 = vmatpush2.bf16.msra.mxu0 %v7650
        %7794 = vmatprep.mubr.bf16.mxu0 %v7379
        %7795 = vmatmul.mubr.bf16.gmra.mxu0 %v7378
        %v7796 = vpop.f32.mrf.mxu0
        %v7797 = vadd.f32 0.0, %v7796
        %v7798 = vpop.f32.mrf.mxu0
        %v7799 = vadd.f32 0.0, %v7798
        %v7800 = vpop.f32.mrf.mxu0
        %v7801 = vadd.f32 0.0, %v7800
        %v7802 = vpop.f32.mrf.mxu0
        %v7803 = vadd.f32 0.0, %v7802
        %7804 = vmatprep.mubr.bf16.mxu0 %v7383
        %7805 = vmatmul.mubr.bf16.gmra.mxu0 %v7382
        %v7806 = vpop.f32.mrf.mxu0
        %v7807 = vadd.f32 0.0, %v7806
        %v7808 = vpop.f32.mrf.mxu0
        %v7809 = vadd.f32 0.0, %v7808
        %v7810 = vpop.f32.mrf.mxu0
        %v7811 = vadd.f32 0.0, %v7810
        %v7812 = vpop.f32.mrf.mxu0
        %v7813 = vadd.f32 0.0, %v7812
        %7814 = vmatprep.mubr.bf16.mxu0 %v7387
        %7815 = vmatmul.mubr.bf16.gmra.mxu0 %v7386
        %v7816 = vpop.f32.mrf.mxu0
        %v7817 = vadd.f32 0.0, %v7816
        %v7818 = vpop.f32.mrf.mxu0
        %v7819 = vadd.f32 0.0, %v7818
        %v7820 = vpop.f32.mrf.mxu0
        %v7821 = vadd.f32 0.0, %v7820
        %v7822 = vpop.f32.mrf.mxu0
        %v7823 = vadd.f32 0.0, %v7822
        %7824 = vmatprep.mubr.bf16.mxu0 %v7391
        %7825 = vmatmul.mubr.bf16.gmra.mxu0 %v7390
        %v7826 = vpop.f32.mrf.mxu0
        %v7827 = vadd.f32 0.0, %v7826
        %v7828 = vpop.f32.mrf.mxu0
        %v7829 = vadd.f32 0.0, %v7828
        %v7830 = vpop.f32.mrf.mxu0
        %v7831 = vadd.f32 0.0, %v7830
        %v7832 = vpop.f32.mrf.mxu0
        %v7833 = vadd.f32 0.0, %v7832
        %7834 = vmatprep.mubr.bf16.mxu0 %v7395
        %7835 = vmatmul.mubr.bf16.gmra.mxu0 %v7394
        %v7836 = vpop.f32.mrf.mxu0
        %v7837 = vadd.f32 0.0, %v7836
        %v7838 = vpop.f32.mrf.mxu0
        %v7839 = vadd.f32 0.0, %v7838
        %v7840 = vpop.f32.mrf.mxu0
        %v7841 = vadd.f32 0.0, %v7840
        %v7842 = vpop.f32.mrf.mxu0
        %v7843 = vadd.f32 0.0, %v7842
        %7844 = vmatprep.mubr.bf16.mxu0 %v7399
        %7845 = vmatmul.mubr.bf16.gmra.mxu0 %v7398
        %v7846 = vpop.f32.mrf.mxu0
        %v7847 = vadd.f32 0.0, %v7846
        %v7848 = vpop.f32.mrf.mxu0
        %v7849 = vadd.f32 0.0, %v7848
        %v7850 = vpop.f32.mrf.mxu0
        %v7851 = vadd.f32 0.0, %v7850
        %v7852 = vpop.f32.mrf.mxu0
        %v7853 = vadd.f32 0.0, %v7852
        %7854 = vmatprep.mubr.bf16.mxu0 %v7403
        %7855 = vmatmul.mubr.bf16.gmra.mxu0 %v7402
        %v7856 = vpop.f32.mrf.mxu0
        %v7857 = vadd.f32 0.0, %v7856
        %v7858 = vpop.f32.mrf.mxu0
        %v7859 = vadd.f32 0.0, %v7858
        %v7860 = vpop.f32.mrf.mxu0
        %v7861 = vadd.f32 0.0, %v7860
        %v7862 = vpop.f32.mrf.mxu0
        %v7863 = vadd.f32 0.0, %v7862
        %7864 = vmatprep.mubr.bf16.mxu0 %v7407
        %7865 = vmatmul.mubr.bf16.gmra.mxu0 %v7406
        %v7866 = vpop.f32.mrf.mxu0
        %v7867 = vadd.f32 0.0, %v7866
        %v7868 = vpop.f32.mrf.mxu0
        %v7869 = vadd.f32 0.0, %v7868
        %v7870 = vpop.f32.mrf.mxu0
        %v7871 = vadd.f32 0.0, %v7870
        %v7872 = vpop.f32.mrf.mxu0
        %v7873 = vadd.f32 0.0, %v7872
        %7874 = vdwg.mxu0
        %7875 = vmatprep.subr.bf16.mxu0 %v7681
        %7876 = vmatpush1.bf16.msra.mxu0 %v7680
        %7877 = vmatprep.subr.bf16.mxu0 %v7679
        %7878 = vmatpush1.bf16.msra.mxu0 %v7678
        %7879 = vmatprep.subr.bf16.mxu0 %v7677
        %7880 = vmatpush1.bf16.msra.mxu0 %v7676
        %7881 = vmatprep.subr.bf16.mxu0 %v7675
        %7882 = vmatpush1.bf16.msra.mxu0 %v7674
        %7883 = vmatprep.subr.bf16.mxu0 %v7673
        %7884 = vmatpush1.bf16.msra.mxu0 %v7672
        %7885 = vmatprep.subr.bf16.mxu0 %v7671
        %7886 = vmatpush1.bf16.msra.mxu0 %v7670
        %7887 = vmatprep.subr.bf16.mxu0 %v7669
        %7888 = vmatpush1.bf16.msra.mxu0 %v7668
        %7889 = vmatprep.subr.bf16.mxu0 %v7667
        %7890 = vmatpush1.bf16.msra.mxu0 %v7666
        %7891 = vmatprep.subr.bf16.mxu0 %v7697
        %7892 = vmatpush2.bf16.msra.mxu0 %v7696
        %7893 = vmatprep.subr.bf16.mxu0 %v7695
        %7894 = vmatpush2.bf16.msra.mxu0 %v7694
        %7895 = vmatprep.subr.bf16.mxu0 %v7693
        %7896 = vmatpush2.bf16.msra.mxu0 %v7692
        %7897 = vmatprep.subr.bf16.mxu0 %v7691
        %7898 = vmatpush2.bf16.msra.mxu0 %v7690
        %7899 = vmatprep.subr.bf16.mxu0 %v7689
        %7900 = vmatpush2.bf16.msra.mxu0 %v7688
        %7901 = vmatprep.subr.bf16.mxu0 %v7687
        %7902 = vmatpush2.bf16.msra.mxu0 %v7686
        %7903 = vmatprep.subr.bf16.mxu0 %v7685
        %7904 = vmatpush2.bf16.msra.mxu0 %v7684
        %7905 = vmatprep.subr.bf16.mxu0 %v7683
        %7906 = vmatpush2.bf16.msra.mxu0 %v7682
        %7907 = vmatprep.mubr.bf16.mxu0 %v7381
        %7908 = vmatmul.mubr.bf16.gmra.mxu0 %v7380
        %v7909 = vpop.f32.mrf.mxu0
        %v7910 = vadd.f32 %v7797, %v7909
        %v7911 = vpop.f32.mrf.mxu0
        %v7912 = vadd.f32 %v7799, %v7911
        %v7913 = vpop.f32.mrf.mxu0
        %v7914 = vadd.f32 %v7801, %v7913
        %v7915 = vpop.f32.mrf.mxu0
        %v7916 = vadd.f32 %v7803, %v7915
        %7917 = vmatprep.mubr.bf16.mxu0 %v7385
        %7918 = vmatmul.mubr.bf16.gmra.mxu0 %v7384
        %v7919 = vpop.f32.mrf.mxu0
        %v7920 = vadd.f32 %v7807, %v7919
        %v7921 = vpop.f32.mrf.mxu0
        %v7922 = vadd.f32 %v7809, %v7921
        %v7923 = vpop.f32.mrf.mxu0
        %v7924 = vadd.f32 %v7811, %v7923
        %v7925 = vpop.f32.mrf.mxu0
        %v7926 = vadd.f32 %v7813, %v7925
        %7927 = vmatprep.mubr.bf16.mxu0 %v7389
        %7928 = vmatmul.mubr.bf16.gmra.mxu0 %v7388
        %v7929 = vpop.f32.mrf.mxu0
        %v7930 = vadd.f32 %v7817, %v7929
        %v7931 = vpop.f32.mrf.mxu0
        %v7932 = vadd.f32 %v7819, %v7931
        %v7933 = vpop.f32.mrf.mxu0
        %v7934 = vadd.f32 %v7821, %v7933
        %v7935 = vpop.f32.mrf.mxu0
        %v7936 = vadd.f32 %v7823, %v7935
        %7937 = vmatprep.mubr.bf16.mxu0 %v7393
        %7938 = vmatmul.mubr.bf16.gmra.mxu0 %v7392
        %v7939 = vpop.f32.mrf.mxu0
        %v7940 = vadd.f32 %v7827, %v7939
        %v7941 = vpop.f32.mrf.mxu0
        %v7942 = vadd.f32 %v7829, %v7941
        %v7943 = vpop.f32.mrf.mxu0
        %v7944 = vadd.f32 %v7831, %v7943
        %v7945 = vpop.f32.mrf.mxu0
        %v7946 = vadd.f32 %v7833, %v7945
        %7947 = vmatprep.mubr.bf16.mxu0 %v7397
        %7948 = vmatmul.mubr.bf16.gmra.mxu0 %v7396
        %v7949 = vpop.f32.mrf.mxu0
        %v7950 = vadd.f32 %v7837, %v7949
        %v7951 = vpop.f32.mrf.mxu0
        %v7952 = vadd.f32 %v7839, %v7951
        %v7953 = vpop.f32.mrf.mxu0
        %v7954 = vadd.f32 %v7841, %v7953
        %v7955 = vpop.f32.mrf.mxu0
        %v7956 = vadd.f32 %v7843, %v7955
        %7957 = vmatprep.mubr.bf16.mxu0 %v7401
        %7958 = vmatmul.mubr.bf16.gmra.mxu0 %v7400
        %v7959 = vpop.f32.mrf.mxu0
        %v7960 = vadd.f32 %v7847, %v7959
        %v7961 = vpop.f32.mrf.mxu0
        %v7962 = vadd.f32 %v7849, %v7961
        %v7963 = vpop.f32.mrf.mxu0
        %v7964 = vadd.f32 %v7851, %v7963
        %v7965 = vpop.f32.mrf.mxu0
        %v7966 = vadd.f32 %v7853, %v7965
        %7967 = vmatprep.mubr.bf16.mxu0 %v7405
        %7968 = vmatmul.mubr.bf16.gmra.mxu0 %v7404
        %v7969 = vpop.f32.mrf.mxu0
        %v7970 = vadd.f32 %v7857, %v7969
        %v7971 = vpop.f32.mrf.mxu0
        %v7972 = vadd.f32 %v7859, %v7971
        %v7973 = vpop.f32.mrf.mxu0
        %v7974 = vadd.f32 %v7861, %v7973
        %v7975 = vpop.f32.mrf.mxu0
        %v7976 = vadd.f32 %v7863, %v7975
        %7977 = vmatprep.mubr.bf16.mxu0 %v7409
        %7978 = vmatmul.mubr.bf16.gmra.mxu0 %v7408
        %v7979 = vpop.f32.mrf.mxu0
        %v7980 = vadd.f32 %v7867, %v7979
        %v7981 = vpop.f32.mrf.mxu0
        %v7982 = vadd.f32 %v7869, %v7981
        %v7983 = vpop.f32.mrf.mxu0
        %v7984 = vadd.f32 %v7871, %v7983
        %v7985 = vpop.f32.mrf.mxu0
        %v7986 = vadd.f32 %v7873, %v7985
        %7987 = vdwg.mxu0
        %v7988 = vadd.f32 %v7910, %v7914
        %v7989 = vadd.f32 %v7988, %v7920
        %v7990 = vadd.f32 %v7989, %v7924
        %v7991 = vadd.f32 %v7990, %v7930
        %v7992 = vadd.f32 %v7991, %v7934
        %v7993 = vadd.f32 %v7992, %v7940
        %v7994 = vadd.f32 %v7993, %v7944
        %v7995 = vrot.slane %v7994, 4
        %v7996 = vadd.f32 %v7994, %v7995
        %v7997 = vrot.slane %v7996, 2
        %v7998 = vadd.f32 %v7996, %v7997
        %v7999 = vrot.slane %v7998, 1
        %v8000 = vadd.f32 %v7998, %v7999
        %v8001 = vadd.f32 %v7912, %v7916
        %v8002 = vadd.f32 %v8001, %v7922
        %v8003 = vadd.f32 %v8002, %v7926
        %v8004 = vadd.f32 %v8003, %v7932
        %v8005 = vadd.f32 %v8004, %v7936
        %v8006 = vadd.f32 %v8005, %v7942
        %v8007 = vadd.f32 %v8006, %v7946
        %v8008 = vrot.slane %v8007, 4
        %v8009 = vadd.f32 %v8007, %v8008
        %v8010 = vrot.slane %v8009, 2
        %v8011 = vadd.f32 %v8009, %v8010
        %v8012 = vrot.slane %v8011, 1
        %v8013 = vadd.f32 %v8011, %v8012
        %v8014 = vadd.f32 %v7950, %v7954
        %v8015 = vadd.f32 %v8014, %v7960
        %v8016 = vadd.f32 %v8015, %v7964
        %v8017 = vadd.f32 %v8016, %v7970
        %v8018 = vadd.f32 %v8017, %v7974
        %v8019 = vadd.f32 %v8018, %v7980
        %v8020 = vadd.f32 %v8019, %v7984
        %v8021 = vrot.slane %v8020, 4
        %v8022 = vadd.f32 %v8020, %v8021
        %v8023 = vrot.slane %v8022, 2
        %v8024 = vadd.f32 %v8022, %v8023
        %v8025 = vrot.slane %v8024, 1
        %v8026 = vadd.f32 %v8024, %v8025
        %v8027 = vadd.f32 %v7952, %v7956
        %v8028 = vadd.f32 %v8027, %v7962
        %v8029 = vadd.f32 %v8028, %v7966
        %v8030 = vadd.f32 %v8029, %v7972
        %v8031 = vadd.f32 %v8030, %v7976
        %v8032 = vadd.f32 %v8031, %v7982
        %v8033 = vadd.f32 %v8032, %v7986
        %v8034 = vrot.slane %v8033, 4
        %v8035 = vadd.f32 %v8033, %v8034
        %v8036 = vrot.slane %v8035, 2
        %v8037 = vadd.f32 %v8035, %v8036
        %v8038 = vrot.slane %v8037, 1
        %v8039 = vadd.f32 %v8037, %v8038
        %v8040 = vmul.f32 %v8000, %v2506
        %v8041 = vmul.f32 %v8013, %v2506
        %v8042 = vmul.f32 %v8026, %v2506
        %v8043 = vmul.f32 %v8039, %v2506
        %v8044 = vadd.f32 %v7022, %v8040
        %v8045 = vadd.f32 %v7023, %v8041
        %v8046 = vadd.f32 %v7024, %v8042
        %v8047 = vadd.f32 %v7025, %v8043
        %s8048 = scalar_lea.vmem [#allocation2], 64
        %v8049 = vld [vmem:[%s8048] sm:$0xff]
        %v8050 = vld [vmem:[%s8048 + $0x8] sm:$0xff]
        %v8051 = vld [vmem:[%s8048 + $0x20] sm:$0xff]
        %v8052 = vld [vmem:[%s8048 + $0x28] sm:$0xff]
        %v8053 = vld [vmem:[%s8048 + $0x40] sm:$0xff]
        %v8054 = vld [vmem:[%s8048 + $0x48] sm:$0xff]
        %v8055 = vld [vmem:[%s8048 + $0x60] sm:$0xff]
        %v8056 = vld [vmem:[%s8048 + $0x68] sm:$0xff]
        %v8057 = vld [vmem:[%s8048 + $0x80] sm:$0xff]
        %v8058 = vld [vmem:[%s8048 + $0x88] sm:$0xff]
        %v8059 = vld [vmem:[%s8048 + $0xa0] sm:$0xff]
        %v8060 = vld [vmem:[%s8048 + $0xa8] sm:$0xff]
        %v8061 = vld [vmem:[%s8048 + $0xc0] sm:$0xff]
        %v8062 = vld [vmem:[%s8048 + $0xc8] sm:$0xff]
        %v8063 = vld [vmem:[%s8048 + $0xe0] sm:$0xff]
        %v8064 = vld [vmem:[%s8048 + $0xe8] sm:$0xff]
        %v8065 = vld [vmem:[%s8048 + $0x140] sm:$0xff]
        %v8066 = vld [vmem:[%s8048 + $0x148] sm:$0xff]
        %v8067 = vld [vmem:[%s8048 + $0x160] sm:$0xff]
        %v8068 = vld [vmem:[%s8048 + $0x168] sm:$0xff]
        %v8069 = vld [vmem:[%s8048 + $0x180] sm:$0xff]
        %v8070 = vld [vmem:[%s8048 + $0x188] sm:$0xff]
        %v8071 = vld [vmem:[%s8048 + $0x1a0] sm:$0xff]
        %v8072 = vld [vmem:[%s8048 + $0x1a8] sm:$0xff]
        %v8073 = vld [vmem:[%s8048 + $0x1c0] sm:$0xff]
        %v8074 = vld [vmem:[%s8048 + $0x1c8] sm:$0xff]
        %v8075 = vld [vmem:[%s8048 + $0x1e0] sm:$0xff]
        %v8076 = vld [vmem:[%s8048 + $0x1e8] sm:$0xff]
        %v8077 = vld [vmem:[%s8048 + $0x200] sm:$0xff]
        %v8078 = vld [vmem:[%s8048 + $0x208] sm:$0xff]
        %v8079 = vld [vmem:[%s8048 + $0x220] sm:$0xff]
        %v8080 = vld [vmem:[%s8048 + $0x228] sm:$0xff]
        %v8081 = vld [vmem:[%s227 + $0xc00] sm:$0xff]
        %v8082 = vld [vmem:[%s227 + $0xc08] sm:$0xff]
        %v8083 = vld [vmem:[%s227 + $0xc10] sm:$0xff]
        %v8084 = vld [vmem:[%s227 + $0xc18] sm:$0xff]
        %v8085 = vld [vmem:[%s227 + $0xc20] sm:$0xff]
        %v8086 = vld [vmem:[%s227 + $0xc28] sm:$0xff]
        %v8087 = vld [vmem:[%s227 + $0xc30] sm:$0xff]
        %v8088 = vld [vmem:[%s227 + $0xc38] sm:$0xff]
        %v8089 = vld [vmem:[%s227 + $0xc40] sm:$0xff]
        %v8090 = vld [vmem:[%s227 + $0xc48] sm:$0xff]
        %v8091 = vld [vmem:[%s227 + $0xc50] sm:$0xff]
        %v8092 = vld [vmem:[%s227 + $0xc58] sm:$0xff]
        %v8093 = vld [vmem:[%s227 + $0xc60] sm:$0xff]
        %v8094 = vld [vmem:[%s227 + $0xc68] sm:$0xff]
        %v8095 = vld [vmem:[%s227 + $0xc70] sm:$0xff]
        %v8096 = vld [vmem:[%s227 + $0xc78] sm:$0xff]
        %v8097 = vld [vmem:[%s227 + $0xc80] sm:$0xff]
        %v8098 = vld [vmem:[%s227 + $0xc88] sm:$0xff]
        %v8099 = vld [vmem:[%s227 + $0xc90] sm:$0xff]
        %v8100 = vld [vmem:[%s227 + $0xc98] sm:$0xff]
        %v8101 = vld [vmem:[%s227 + $0xca0] sm:$0xff]
        %v8102 = vld [vmem:[%s227 + $0xca8] sm:$0xff]
        %v8103 = vld [vmem:[%s227 + $0xcb0] sm:$0xff]
        %v8104 = vld [vmem:[%s227 + $0xcb8] sm:$0xff]
        %v8105 = vld [vmem:[%s227 + $0xcc0] sm:$0xff]
        %v8106 = vld [vmem:[%s227 + $0xcc8] sm:$0xff]
        %v8107 = vld [vmem:[%s227 + $0xcd0] sm:$0xff]
        %v8108 = vld [vmem:[%s227 + $0xcd8] sm:$0xff]
        %v8109 = vld [vmem:[%s227 + $0xce0] sm:$0xff]
        %v8110 = vld [vmem:[%s227 + $0xce8] sm:$0xff]
        %v8111 = vld [vmem:[%s227 + $0xcf0] sm:$0xff]
        %v8112 = vld [vmem:[%s227 + $0xcf8] sm:$0xff]
        %v8113 = vld [vmem:[%s227 + $0xd00] sm:$0xff]
        %v8114 = vld [vmem:[%s227 + $0xd08] sm:$0xff]
        %v8115 = vld [vmem:[%s227 + $0xd10] sm:$0xff]
        %v8116 = vld [vmem:[%s227 + $0xd18] sm:$0xff]
        %v8117 = vld [vmem:[%s227 + $0xd20] sm:$0xff]
        %v8118 = vld [vmem:[%s227 + $0xd28] sm:$0xff]
        %v8119 = vld [vmem:[%s227 + $0xd30] sm:$0xff]
        %v8120 = vld [vmem:[%s227 + $0xd38] sm:$0xff]
        %v8121 = vld [vmem:[%s227 + $0xd40] sm:$0xff]
        %v8122 = vld [vmem:[%s227 + $0xd48] sm:$0xff]
        %v8123 = vld [vmem:[%s227 + $0xd50] sm:$0xff]
        %v8124 = vld [vmem:[%s227 + $0xd58] sm:$0xff]
        %v8125 = vld [vmem:[%s227 + $0xd60] sm:$0xff]
        %v8126 = vld [vmem:[%s227 + $0xd68] sm:$0xff]
        %v8127 = vld [vmem:[%s227 + $0xd70] sm:$0xff]
        %v8128 = vld [vmem:[%s227 + $0xd78] sm:$0xff]
        %v8129 = vld [vmem:[%s227 + $0xd80] sm:$0xff]
        %v8130 = vld [vmem:[%s227 + $0xd88] sm:$0xff]
        %v8131 = vld [vmem:[%s227 + $0xd90] sm:$0xff]
        %v8132 = vld [vmem:[%s227 + $0xd98] sm:$0xff]
        %v8133 = vld [vmem:[%s227 + $0xda0] sm:$0xff]
        %v8134 = vld [vmem:[%s227 + $0xda8] sm:$0xff]
        %v8135 = vld [vmem:[%s227 + $0xdb0] sm:$0xff]
        %v8136 = vld [vmem:[%s227 + $0xdb8] sm:$0xff]
        %v8137 = vld [vmem:[%s227 + $0xdc0] sm:$0xff]
        %v8138 = vld [vmem:[%s227 + $0xdc8] sm:$0xff]
        %v8139 = vld [vmem:[%s227 + $0xdd0] sm:$0xff]
        %v8140 = vld [vmem:[%s227 + $0xdd8] sm:$0xff]
        %v8141 = vld [vmem:[%s227 + $0xde0] sm:$0xff]
        %v8142 = vld [vmem:[%s227 + $0xde8] sm:$0xff]
        %v8143 = vld [vmem:[%s227 + $0xdf0] sm:$0xff]
        %v8144 = vld [vmem:[%s227 + $0xdf8] sm:$0xff]
        %v8177 = vunpack.c.l.b16 %v8049
        %v8178 = vunpack.c.h.b16 %v8049
        %v8179 = vunpack.c.l.b16 %v8050
        %v8180 = vunpack.c.h.b16 %v8050
        %v8181 = vunpack.c.l.b16 %v8051
        %v8182 = vunpack.c.h.b16 %v8051
        %v8183 = vunpack.c.l.b16 %v8052
        %v8184 = vunpack.c.h.b16 %v8052
        %v8185 = vunpack.c.l.b16 %v8053
        %v8186 = vunpack.c.h.b16 %v8053
        %v8187 = vunpack.c.l.b16 %v8054
        %v8188 = vunpack.c.h.b16 %v8054
        %v8189 = vunpack.c.l.b16 %v8055
        %v8190 = vunpack.c.h.b16 %v8055
        %v8191 = vunpack.c.l.b16 %v8056
        %v8192 = vunpack.c.h.b16 %v8056
        %v8193 = vunpack.c.l.b16 %v8057
        %v8194 = vunpack.c.h.b16 %v8057
        %v8195 = vunpack.c.l.b16 %v8058
        %v8196 = vunpack.c.h.b16 %v8058
        %v8197 = vunpack.c.l.b16 %v8059
        %v8198 = vunpack.c.h.b16 %v8059
        %v8199 = vunpack.c.l.b16 %v8060
        %v8200 = vunpack.c.h.b16 %v8060
        %v8201 = vunpack.c.l.b16 %v8061
        %v8202 = vunpack.c.h.b16 %v8061
        %v8203 = vunpack.c.l.b16 %v8062
        %v8204 = vunpack.c.h.b16 %v8062
        %v8205 = vunpack.c.l.b16 %v8063
        %v8206 = vunpack.c.h.b16 %v8063
        %v8207 = vunpack.c.l.b16 %v8064
        %v8208 = vunpack.c.h.b16 %v8064
        %v8209 = vunpack.c.l.b16 %v8065
        %v8210 = vunpack.c.h.b16 %v8065
        %v8211 = vunpack.c.l.b16 %v8066
        %v8212 = vunpack.c.h.b16 %v8066
        %v8213 = vunpack.c.l.b16 %v8067
        %v8214 = vunpack.c.h.b16 %v8067
        %v8215 = vunpack.c.l.b16 %v8068
        %v8216 = vunpack.c.h.b16 %v8068
        %v8217 = vunpack.c.l.b16 %v8069
        %v8218 = vunpack.c.h.b16 %v8069
        %v8219 = vunpack.c.l.b16 %v8070
        %v8220 = vunpack.c.h.b16 %v8070
        %v8221 = vunpack.c.l.b16 %v8071
        %v8222 = vunpack.c.h.b16 %v8071
        %v8223 = vunpack.c.l.b16 %v8072
        %v8224 = vunpack.c.h.b16 %v8072
        %v8225 = vunpack.c.l.b16 %v8073
        %v8226 = vunpack.c.h.b16 %v8073
        %v8227 = vunpack.c.l.b16 %v8074
        %v8228 = vunpack.c.h.b16 %v8074
        %v8229 = vunpack.c.l.b16 %v8075
        %v8230 = vunpack.c.h.b16 %v8075
        %v8231 = vunpack.c.l.b16 %v8076
        %v8232 = vunpack.c.h.b16 %v8076
        %v8233 = vunpack.c.l.b16 %v8077
        %v8234 = vunpack.c.h.b16 %v8077
        %v8235 = vunpack.c.l.b16 %v8078
        %v8236 = vunpack.c.h.b16 %v8078
        %v8237 = vunpack.c.l.b16 %v8079
        %v8238 = vunpack.c.h.b16 %v8079
        %v8239 = vunpack.c.l.b16 %v8080
        %v8240 = vunpack.c.h.b16 %v8080
        %v8241 = vpack.c.b16 %v8181, %v8177
        %v8242 = vpack.c.b16 %v8182, %v8178
        %v8243 = vpack.c.b16 %v8183, %v8179
        %v8244 = vpack.c.b16 %v8184, %v8180
        %v8245 = vpack.c.b16 %v8189, %v8185
        %v8246 = vpack.c.b16 %v8190, %v8186
        %v8247 = vpack.c.b16 %v8191, %v8187
        %v8248 = vpack.c.b16 %v8192, %v8188
        %v8249 = vpack.c.b16 %v8197, %v8193
        %v8250 = vpack.c.b16 %v8198, %v8194
        %v8251 = vpack.c.b16 %v8199, %v8195
        %v8252 = vpack.c.b16 %v8200, %v8196
        %v8253 = vpack.c.b16 %v8205, %v8201
        %v8254 = vpack.c.b16 %v8206, %v8202
        %v8255 = vpack.c.b16 %v8207, %v8203
        %v8256 = vpack.c.b16 %v8208, %v8204
        %v8257 = vpack.c.b16 %v8213, %v8209
        %v8258 = vpack.c.b16 %v8214, %v8210
        %v8259 = vpack.c.b16 %v8215, %v8211
        %v8260 = vpack.c.b16 %v8216, %v8212
        %v8261 = vpack.c.b16 %v8221, %v8217
        %v8262 = vpack.c.b16 %v8222, %v8218
        %v8263 = vpack.c.b16 %v8223, %v8219
        %v8264 = vpack.c.b16 %v8224, %v8220
        %v8265 = vpack.c.b16 %v8229, %v8225
        %v8266 = vpack.c.b16 %v8230, %v8226
        %v8267 = vpack.c.b16 %v8231, %v8227
        %v8268 = vpack.c.b16 %v8232, %v8228
        %v8269 = vpack.c.b16 %v8237, %v8233
        %v8270 = vpack.c.b16 %v8238, %v8234
        %v8271 = vpack.c.b16 %v8239, %v8235
        %v8272 = vpack.c.b16 %v8240, %v8236
        %v8369 = vunpack.c.l.b16 %v8081
        %v8370 = vunpack.c.h.b16 %v8081
        %v8371 = vunpack.c.l.b16 %v8082
        %v8372 = vunpack.c.h.b16 %v8082
        %v8373 = vunpack.c.l.b16 %v8083
        %v8374 = vunpack.c.h.b16 %v8083
        %v8375 = vunpack.c.l.b16 %v8084
        %v8376 = vunpack.c.h.b16 %v8084
        %v8377 = vunpack.c.l.b16 %v8085
        %v8378 = vunpack.c.h.b16 %v8085
        %v8379 = vunpack.c.l.b16 %v8086
        %v8380 = vunpack.c.h.b16 %v8086
        %v8381 = vunpack.c.l.b16 %v8087
        %v8382 = vunpack.c.h.b16 %v8087
        %v8383 = vunpack.c.l.b16 %v8088
        %v8384 = vunpack.c.h.b16 %v8088
        %v8385 = vunpack.c.l.b16 %v8089
        %v8386 = vunpack.c.h.b16 %v8089
        %v8387 = vunpack.c.l.b16 %v8090
        %v8388 = vunpack.c.h.b16 %v8090
        %v8389 = vunpack.c.l.b16 %v8091
        %v8390 = vunpack.c.h.b16 %v8091
        %v8391 = vunpack.c.l.b16 %v8092
        %v8392 = vunpack.c.h.b16 %v8092
        %v8393 = vunpack.c.l.b16 %v8093
        %v8394 = vunpack.c.h.b16 %v8093
        %v8395 = vunpack.c.l.b16 %v8094
        %v8396 = vunpack.c.h.b16 %v8094
        %v8397 = vunpack.c.l.b16 %v8095
        %v8398 = vunpack.c.h.b16 %v8095
        %v8399 = vunpack.c.l.b16 %v8096
        %v8400 = vunpack.c.h.b16 %v8096
        %v8401 = vunpack.c.l.b16 %v8097
        %v8402 = vunpack.c.h.b16 %v8097
        %v8403 = vunpack.c.l.b16 %v8098
        %v8404 = vunpack.c.h.b16 %v8098
        %v8405 = vunpack.c.l.b16 %v8099
        %v8406 = vunpack.c.h.b16 %v8099
        %v8407 = vunpack.c.l.b16 %v8100
        %v8408 = vunpack.c.h.b16 %v8100
        %v8409 = vunpack.c.l.b16 %v8101
        %v8410 = vunpack.c.h.b16 %v8101
        %v8411 = vunpack.c.l.b16 %v8102
        %v8412 = vunpack.c.h.b16 %v8102
        %v8413 = vunpack.c.l.b16 %v8103
        %v8414 = vunpack.c.h.b16 %v8103
        %v8415 = vunpack.c.l.b16 %v8104
        %v8416 = vunpack.c.h.b16 %v8104
        %v8417 = vunpack.c.l.b16 %v8105
        %v8418 = vunpack.c.h.b16 %v8105
        %v8419 = vunpack.c.l.b16 %v8106
        %v8420 = vunpack.c.h.b16 %v8106
        %v8421 = vunpack.c.l.b16 %v8107
        %v8422 = vunpack.c.h.b16 %v8107
        %v8423 = vunpack.c.l.b16 %v8108
        %v8424 = vunpack.c.h.b16 %v8108
        %v8425 = vunpack.c.l.b16 %v8109
        %v8426 = vunpack.c.h.b16 %v8109
        %v8427 = vunpack.c.l.b16 %v8110
        %v8428 = vunpack.c.h.b16 %v8110
        %v8429 = vunpack.c.l.b16 %v8111
        %v8430 = vunpack.c.h.b16 %v8111
        %v8431 = vunpack.c.l.b16 %v8112
        %v8432 = vunpack.c.h.b16 %v8112
        %v8433 = vunpack.c.l.b16 %v8113
        %v8434 = vunpack.c.h.b16 %v8113
        %v8435 = vunpack.c.l.b16 %v8114
        %v8436 = vunpack.c.h.b16 %v8114
        %v8437 = vunpack.c.l.b16 %v8115
        %v8438 = vunpack.c.h.b16 %v8115
        %v8439 = vunpack.c.l.b16 %v8116
        %v8440 = vunpack.c.h.b16 %v8116
        %v8441 = vunpack.c.l.b16 %v8117
        %v8442 = vunpack.c.h.b16 %v8117
        %v8443 = vunpack.c.l.b16 %v8118
        %v8444 = vunpack.c.h.b16 %v8118
        %v8445 = vunpack.c.l.b16 %v8119
        %v8446 = vunpack.c.h.b16 %v8119
        %v8447 = vunpack.c.l.b16 %v8120
        %v8448 = vunpack.c.h.b16 %v8120
        %v8449 = vunpack.c.l.b16 %v8121
        %v8450 = vunpack.c.h.b16 %v8121
        %v8451 = vunpack.c.l.b16 %v8122
        %v8452 = vunpack.c.h.b16 %v8122
        %v8453 = vunpack.c.l.b16 %v8123
        %v8454 = vunpack.c.h.b16 %v8123
        %v8455 = vunpack.c.l.b16 %v8124
        %v8456 = vunpack.c.h.b16 %v8124
        %v8457 = vunpack.c.l.b16 %v8125
        %v8458 = vunpack.c.h.b16 %v8125
        %v8459 = vunpack.c.l.b16 %v8126
        %v8460 = vunpack.c.h.b16 %v8126
        %v8461 = vunpack.c.l.b16 %v8127
        %v8462 = vunpack.c.h.b16 %v8127
        %v8463 = vunpack.c.l.b16 %v8128
        %v8464 = vunpack.c.h.b16 %v8128
        %v8465 = vunpack.c.l.b16 %v8129
        %v8466 = vunpack.c.h.b16 %v8129
        %v8467 = vunpack.c.l.b16 %v8130
        %v8468 = vunpack.c.h.b16 %v8130
        %v8469 = vunpack.c.l.b16 %v8131
        %v8470 = vunpack.c.h.b16 %v8131
        %v8471 = vunpack.c.l.b16 %v8132
        %v8472 = vunpack.c.h.b16 %v8132
        %v8473 = vunpack.c.l.b16 %v8133
        %v8474 = vunpack.c.h.b16 %v8133
        %v8475 = vunpack.c.l.b16 %v8134
        %v8476 = vunpack.c.h.b16 %v8134
        %v8477 = vunpack.c.l.b16 %v8135
        %v8478 = vunpack.c.h.b16 %v8135
        %v8479 = vunpack.c.l.b16 %v8136
        %v8480 = vunpack.c.h.b16 %v8136
        %v8481 = vunpack.c.l.b16 %v8137
        %v8482 = vunpack.c.h.b16 %v8137
        %v8483 = vunpack.c.l.b16 %v8138
        %v8484 = vunpack.c.h.b16 %v8138
        %v8485 = vunpack.c.l.b16 %v8139
        %v8486 = vunpack.c.h.b16 %v8139
        %v8487 = vunpack.c.l.b16 %v8140
        %v8488 = vunpack.c.h.b16 %v8140
        %v8489 = vunpack.c.l.b16 %v8141
        %v8490 = vunpack.c.h.b16 %v8141
        %v8491 = vunpack.c.l.b16 %v8142
        %v8492 = vunpack.c.h.b16 %v8142
        %v8493 = vunpack.c.l.b16 %v8143
        %v8494 = vunpack.c.h.b16 %v8143
        %v8495 = vunpack.c.l.b16 %v8144
        %v8496 = vunpack.c.h.b16 %v8144
        %v8497 = vpack.c.b16 %v8371, %v8369
        %v8498 = vpack.c.b16 %v8372, %v8370
        %v8499 = vpack.c.b16 %v8375, %v8373
        %v8500 = vpack.c.b16 %v8376, %v8374
        %v8501 = vpack.c.b16 %v8379, %v8377
        %v8502 = vpack.c.b16 %v8380, %v8378
        %v8503 = vpack.c.b16 %v8383, %v8381
        %v8504 = vpack.c.b16 %v8384, %v8382
        %v8505 = vpack.c.b16 %v8387, %v8385
        %v8506 = vpack.c.b16 %v8388, %v8386
        %v8507 = vpack.c.b16 %v8391, %v8389
        %v8508 = vpack.c.b16 %v8392, %v8390
        %v8509 = vpack.c.b16 %v8395, %v8393
        %v8510 = vpack.c.b16 %v8396, %v8394
        %v8511 = vpack.c.b16 %v8399, %v8397
        %v8512 = vpack.c.b16 %v8400, %v8398
        %v8513 = vpack.c.b16 %v8403, %v8401
        %v8514 = vpack.c.b16 %v8404, %v8402
        %v8515 = vpack.c.b16 %v8407, %v8405
        %v8516 = vpack.c.b16 %v8408, %v8406
        %v8517 = vpack.c.b16 %v8411, %v8409
        %v8518 = vpack.c.b16 %v8412, %v8410
        %v8519 = vpack.c.b16 %v8415, %v8413
        %v8520 = vpack.c.b16 %v8416, %v8414
        %v8521 = vpack.c.b16 %v8419, %v8417
        %v8522 = vpack.c.b16 %v8420, %v8418
        %v8523 = vpack.c.b16 %v8423, %v8421
        %v8524 = vpack.c.b16 %v8424, %v8422
        %v8525 = vpack.c.b16 %v8427, %v8425
        %v8526 = vpack.c.b16 %v8428, %v8426
        %v8527 = vpack.c.b16 %v8431, %v8429
        %v8528 = vpack.c.b16 %v8432, %v8430
        %v8529 = vpack.c.b16 %v8435, %v8433
        %v8530 = vpack.c.b16 %v8436, %v8434
        %v8531 = vpack.c.b16 %v8439, %v8437
        %v8532 = vpack.c.b16 %v8440, %v8438
        %v8533 = vpack.c.b16 %v8443, %v8441
        %v8534 = vpack.c.b16 %v8444, %v8442
        %v8535 = vpack.c.b16 %v8447, %v8445
        %v8536 = vpack.c.b16 %v8448, %v8446
        %v8537 = vpack.c.b16 %v8451, %v8449
        %v8538 = vpack.c.b16 %v8452, %v8450
        %v8539 = vpack.c.b16 %v8455, %v8453
        %v8540 = vpack.c.b16 %v8456, %v8454
        %v8541 = vpack.c.b16 %v8459, %v8457
        %v8542 = vpack.c.b16 %v8460, %v8458
        %v8543 = vpack.c.b16 %v8463, %v8461
        %v8544 = vpack.c.b16 %v8464, %v8462
        %v8545 = vpack.c.b16 %v8467, %v8465
        %v8546 = vpack.c.b16 %v8468, %v8466
        %v8547 = vpack.c.b16 %v8471, %v8469
        %v8548 = vpack.c.b16 %v8472, %v8470
        %v8549 = vpack.c.b16 %v8475, %v8473
        %v8550 = vpack.c.b16 %v8476, %v8474
        %v8551 = vpack.c.b16 %v8479, %v8477
        %v8552 = vpack.c.b16 %v8480, %v8478
        %v8553 = vpack.c.b16 %v8483, %v8481
        %v8554 = vpack.c.b16 %v8484, %v8482
        %v8555 = vpack.c.b16 %v8487, %v8485
        %v8556 = vpack.c.b16 %v8488, %v8486
        %v8557 = vpack.c.b16 %v8491, %v8489
        %v8558 = vpack.c.b16 %v8492, %v8490
        %v8559 = vpack.c.b16 %v8495, %v8493
        %v8560 = vpack.c.b16 %v8496, %v8494
        %8625 = vmatprep.subr.bf16.mxu0 %v8512
        %8626 = vmatpush1.bf16.msra.mxu0 %v8511
        %8627 = vmatprep.subr.bf16.mxu0 %v8510
        %8628 = vmatpush1.bf16.msra.mxu0 %v8509
        %8629 = vmatprep.subr.bf16.mxu0 %v8508
        %8630 = vmatpush1.bf16.msra.mxu0 %v8507
        %8631 = vmatprep.subr.bf16.mxu0 %v8506
        %8632 = vmatpush1.bf16.msra.mxu0 %v8505
        %8633 = vmatprep.subr.bf16.mxu0 %v8504
        %8634 = vmatpush1.bf16.msra.mxu0 %v8503
        %8635 = vmatprep.subr.bf16.mxu0 %v8502
        %8636 = vmatpush1.bf16.msra.mxu0 %v8501
        %8637 = vmatprep.subr.bf16.mxu0 %v8500
        %8638 = vmatpush1.bf16.msra.mxu0 %v8499
        %8639 = vmatprep.subr.bf16.mxu0 %v8498
        %8640 = vmatpush1.bf16.msra.mxu0 %v8497
        %8641 = vmatprep.subr.bf16.mxu0 %v8528
        %8642 = vmatpush2.bf16.msra.mxu0 %v8527
        %8643 = vmatprep.subr.bf16.mxu0 %v8526
        %8644 = vmatpush2.bf16.msra.mxu0 %v8525
        %8645 = vmatprep.subr.bf16.mxu0 %v8524
        %8646 = vmatpush2.bf16.msra.mxu0 %v8523
        %8647 = vmatprep.subr.bf16.mxu0 %v8522
        %8648 = vmatpush2.bf16.msra.mxu0 %v8521
        %8649 = vmatprep.subr.bf16.mxu0 %v8520
        %8650 = vmatpush2.bf16.msra.mxu0 %v8519
        %8651 = vmatprep.subr.bf16.mxu0 %v8518
        %8652 = vmatpush2.bf16.msra.mxu0 %v8517
        %8653 = vmatprep.subr.bf16.mxu0 %v8516
        %8654 = vmatpush2.bf16.msra.mxu0 %v8515
        %8655 = vmatprep.subr.bf16.mxu0 %v8514
        %8656 = vmatpush2.bf16.msra.mxu0 %v8513
        %8657 = vmatprep.mubr.bf16.mxu0 %v8242
        %8658 = vmatmul.mubr.bf16.gmra.mxu0 %v8241
        %v8659 = vpop.f32.mrf.mxu0
        %v8660 = vadd.f32 0.0, %v8659
        %v8661 = vpop.f32.mrf.mxu0
        %v8662 = vadd.f32 0.0, %v8661
        %v8663 = vpop.f32.mrf.mxu0
        %v8664 = vadd.f32 0.0, %v8663
        %v8665 = vpop.f32.mrf.mxu0
        %v8666 = vadd.f32 0.0, %v8665
        %8667 = vmatprep.mubr.bf16.mxu0 %v8246
        %8668 = vmatmul.mubr.bf16.gmra.mxu0 %v8245
        %v8669 = vpop.f32.mrf.mxu0
        %v8670 = vadd.f32 0.0, %v8669
        %v8671 = vpop.f32.mrf.mxu0
        %v8672 = vadd.f32 0.0, %v8671
        %v8673 = vpop.f32.mrf.mxu0
        %v8674 = vadd.f32 0.0, %v8673
        %v8675 = vpop.f32.mrf.mxu0
        %v8676 = vadd.f32 0.0, %v8675
        %8677 = vmatprep.mubr.bf16.mxu0 %v8250
        %8678 = vmatmul.mubr.bf16.gmra.mxu0 %v8249
        %v8679 = vpop.f32.mrf.mxu0
        %v8680 = vadd.f32 0.0, %v8679
        %v8681 = vpop.f32.mrf.mxu0
        %v8682 = vadd.f32 0.0, %v8681
        %v8683 = vpop.f32.mrf.mxu0
        %v8684 = vadd.f32 0.0, %v8683
        %v8685 = vpop.f32.mrf.mxu0
        %v8686 = vadd.f32 0.0, %v8685
        %8687 = vmatprep.mubr.bf16.mxu0 %v8254
        %8688 = vmatmul.mubr.bf16.gmra.mxu0 %v8253
        %v8689 = vpop.f32.mrf.mxu0
        %v8690 = vadd.f32 0.0, %v8689
        %v8691 = vpop.f32.mrf.mxu0
        %v8692 = vadd.f32 0.0, %v8691
        %v8693 = vpop.f32.mrf.mxu0
        %v8694 = vadd.f32 0.0, %v8693
        %v8695 = vpop.f32.mrf.mxu0
        %v8696 = vadd.f32 0.0, %v8695
        %8697 = vmatprep.mubr.bf16.mxu0 %v8258
        %8698 = vmatmul.mubr.bf16.gmra.mxu0 %v8257
        %v8699 = vpop.f32.mrf.mxu0
        %v8700 = vadd.f32 0.0, %v8699
        %v8701 = vpop.f32.mrf.mxu0
        %v8702 = vadd.f32 0.0, %v8701
        %v8703 = vpop.f32.mrf.mxu0
        %v8704 = vadd.f32 0.0, %v8703
        %v8705 = vpop.f32.mrf.mxu0
        %v8706 = vadd.f32 0.0, %v8705
        %8707 = vmatprep.mubr.bf16.mxu0 %v8262
        %8708 = vmatmul.mubr.bf16.gmra.mxu0 %v8261
        %v8709 = vpop.f32.mrf.mxu0
        %v8710 = vadd.f32 0.0, %v8709
        %v8711 = vpop.f32.mrf.mxu0
        %v8712 = vadd.f32 0.0, %v8711
        %v8713 = vpop.f32.mrf.mxu0
        %v8714 = vadd.f32 0.0, %v8713
        %v8715 = vpop.f32.mrf.mxu0
        %v8716 = vadd.f32 0.0, %v8715
        %8717 = vmatprep.mubr.bf16.mxu0 %v8266
        %8718 = vmatmul.mubr.bf16.gmra.mxu0 %v8265
        %v8719 = vpop.f32.mrf.mxu0
        %v8720 = vadd.f32 0.0, %v8719
        %v8721 = vpop.f32.mrf.mxu0
        %v8722 = vadd.f32 0.0, %v8721
        %v8723 = vpop.f32.mrf.mxu0
        %v8724 = vadd.f32 0.0, %v8723
        %v8725 = vpop.f32.mrf.mxu0
        %v8726 = vadd.f32 0.0, %v8725
        %8727 = vmatprep.mubr.bf16.mxu0 %v8270
        %8728 = vmatmul.mubr.bf16.gmra.mxu0 %v8269
        %v8729 = vpop.f32.mrf.mxu0
        %v8730 = vadd.f32 0.0, %v8729
        %v8731 = vpop.f32.mrf.mxu0
        %v8732 = vadd.f32 0.0, %v8731
        %v8733 = vpop.f32.mrf.mxu0
        %v8734 = vadd.f32 0.0, %v8733
        %v8735 = vpop.f32.mrf.mxu0
        %v8736 = vadd.f32 0.0, %v8735
        %8737 = vdwg.mxu0
        %8738 = vmatprep.subr.bf16.mxu0 %v8544
        %8739 = vmatpush1.bf16.msra.mxu0 %v8543
        %8740 = vmatprep.subr.bf16.mxu0 %v8542
        %8741 = vmatpush1.bf16.msra.mxu0 %v8541
        %8742 = vmatprep.subr.bf16.mxu0 %v8540
        %8743 = vmatpush1.bf16.msra.mxu0 %v8539
        %8744 = vmatprep.subr.bf16.mxu0 %v8538
        %8745 = vmatpush1.bf16.msra.mxu0 %v8537
        %8746 = vmatprep.subr.bf16.mxu0 %v8536
        %8747 = vmatpush1.bf16.msra.mxu0 %v8535
        %8748 = vmatprep.subr.bf16.mxu0 %v8534
        %8749 = vmatpush1.bf16.msra.mxu0 %v8533
        %8750 = vmatprep.subr.bf16.mxu0 %v8532
        %8751 = vmatpush1.bf16.msra.mxu0 %v8531
        %8752 = vmatprep.subr.bf16.mxu0 %v8530
        %8753 = vmatpush1.bf16.msra.mxu0 %v8529
        %8754 = vmatprep.subr.bf16.mxu0 %v8560
        %8755 = vmatpush2.bf16.msra.mxu0 %v8559
        %8756 = vmatprep.subr.bf16.mxu0 %v8558
        %8757 = vmatpush2.bf16.msra.mxu0 %v8557
        %8758 = vmatprep.subr.bf16.mxu0 %v8556
        %8759 = vmatpush2.bf16.msra.mxu0 %v8555
        %8760 = vmatprep.subr.bf16.mxu0 %v8554
        %8761 = vmatpush2.bf16.msra.mxu0 %v8553
        %8762 = vmatprep.subr.bf16.mxu0 %v8552
        %8763 = vmatpush2.bf16.msra.mxu0 %v8551
        %8764 = vmatprep.subr.bf16.mxu0 %v8550
        %8765 = vmatpush2.bf16.msra.mxu0 %v8549
        %8766 = vmatprep.subr.bf16.mxu0 %v8548
        %8767 = vmatpush2.bf16.msra.mxu0 %v8547
        %8768 = vmatprep.subr.bf16.mxu0 %v8546
        %8769 = vmatpush2.bf16.msra.mxu0 %v8545
        %8770 = vmatprep.mubr.bf16.mxu0 %v8244
        %8771 = vmatmul.mubr.bf16.gmra.mxu0 %v8243
        %v8772 = vpop.f32.mrf.mxu0
        %v8773 = vadd.f32 %v8660, %v8772
        %v8774 = vpop.f32.mrf.mxu0
        %v8775 = vadd.f32 %v8662, %v8774
        %v8776 = vpop.f32.mrf.mxu0
        %v8777 = vadd.f32 %v8664, %v8776
        %v8778 = vpop.f32.mrf.mxu0
        %v8779 = vadd.f32 %v8666, %v8778
        %8780 = vmatprep.mubr.bf16.mxu0 %v8248
        %8781 = vmatmul.mubr.bf16.gmra.mxu0 %v8247
        %v8782 = vpop.f32.mrf.mxu0
        %v8783 = vadd.f32 %v8670, %v8782
        %v8784 = vpop.f32.mrf.mxu0
        %v8785 = vadd.f32 %v8672, %v8784
        %v8786 = vpop.f32.mrf.mxu0
        %v8787 = vadd.f32 %v8674, %v8786
        %v8788 = vpop.f32.mrf.mxu0
        %v8789 = vadd.f32 %v8676, %v8788
        %8790 = vmatprep.mubr.bf16.mxu0 %v8252
        %8791 = vmatmul.mubr.bf16.gmra.mxu0 %v8251
        %v8792 = vpop.f32.mrf.mxu0
        %v8793 = vadd.f32 %v8680, %v8792
        %v8794 = vpop.f32.mrf.mxu0
        %v8795 = vadd.f32 %v8682, %v8794
        %v8796 = vpop.f32.mrf.mxu0
        %v8797 = vadd.f32 %v8684, %v8796
        %v8798 = vpop.f32.mrf.mxu0
        %v8799 = vadd.f32 %v8686, %v8798
        %8800 = vmatprep.mubr.bf16.mxu0 %v8256
        %8801 = vmatmul.mubr.bf16.gmra.mxu0 %v8255
        %v8802 = vpop.f32.mrf.mxu0
        %v8803 = vadd.f32 %v8690, %v8802
        %v8804 = vpop.f32.mrf.mxu0
        %v8805 = vadd.f32 %v8692, %v8804
        %v8806 = vpop.f32.mrf.mxu0
        %v8807 = vadd.f32 %v8694, %v8806
        %v8808 = vpop.f32.mrf.mxu0
        %v8809 = vadd.f32 %v8696, %v8808
        %8810 = vmatprep.mubr.bf16.mxu0 %v8260
        %8811 = vmatmul.mubr.bf16.gmra.mxu0 %v8259
        %v8812 = vpop.f32.mrf.mxu0
        %v8813 = vadd.f32 %v8700, %v8812
        %v8814 = vpop.f32.mrf.mxu0
        %v8815 = vadd.f32 %v8702, %v8814
        %v8816 = vpop.f32.mrf.mxu0
        %v8817 = vadd.f32 %v8704, %v8816
        %v8818 = vpop.f32.mrf.mxu0
        %v8819 = vadd.f32 %v8706, %v8818
        %8820 = vmatprep.mubr.bf16.mxu0 %v8264
        %8821 = vmatmul.mubr.bf16.gmra.mxu0 %v8263
        %v8822 = vpop.f32.mrf.mxu0
        %v8823 = vadd.f32 %v8710, %v8822
        %v8824 = vpop.f32.mrf.mxu0
        %v8825 = vadd.f32 %v8712, %v8824
        %v8826 = vpop.f32.mrf.mxu0
        %v8827 = vadd.f32 %v8714, %v8826
        %v8828 = vpop.f32.mrf.mxu0
        %v8829 = vadd.f32 %v8716, %v8828
        %8830 = vmatprep.mubr.bf16.mxu0 %v8268
        %8831 = vmatmul.mubr.bf16.gmra.mxu0 %v8267
        %v8832 = vpop.f32.mrf.mxu0
        %v8833 = vadd.f32 %v8720, %v8832
        %v8834 = vpop.f32.mrf.mxu0
        %v8835 = vadd.f32 %v8722, %v8834
        %v8836 = vpop.f32.mrf.mxu0
        %v8837 = vadd.f32 %v8724, %v8836
        %v8838 = vpop.f32.mrf.mxu0
        %v8839 = vadd.f32 %v8726, %v8838
        %8840 = vmatprep.mubr.bf16.mxu0 %v8272
        %8841 = vmatmul.mubr.bf16.gmra.mxu0 %v8271
        %v8842 = vpop.f32.mrf.mxu0
        %v8843 = vadd.f32 %v8730, %v8842
        %v8844 = vpop.f32.mrf.mxu0
        %v8845 = vadd.f32 %v8732, %v8844
        %v8846 = vpop.f32.mrf.mxu0
        %v8847 = vadd.f32 %v8734, %v8846
        %v8848 = vpop.f32.mrf.mxu0
        %v8849 = vadd.f32 %v8736, %v8848
        %8850 = vdwg.mxu0
        %v8851 = vadd.f32 %v8773, %v8777
        %v8852 = vadd.f32 %v8851, %v8783
        %v8853 = vadd.f32 %v8852, %v8787
        %v8854 = vadd.f32 %v8853, %v8793
        %v8855 = vadd.f32 %v8854, %v8797
        %v8856 = vadd.f32 %v8855, %v8803
        %v8857 = vadd.f32 %v8856, %v8807
        %v8858 = vrot.slane %v8857, 4
        %v8859 = vadd.f32 %v8857, %v8858
        %v8860 = vrot.slane %v8859, 2
        %v8861 = vadd.f32 %v8859, %v8860
        %v8862 = vrot.slane %v8861, 1
        %v8863 = vadd.f32 %v8861, %v8862
        %v8864 = vadd.f32 %v8775, %v8779
        %v8865 = vadd.f32 %v8864, %v8785
        %v8866 = vadd.f32 %v8865, %v8789
        %v8867 = vadd.f32 %v8866, %v8795
        %v8868 = vadd.f32 %v8867, %v8799
        %v8869 = vadd.f32 %v8868, %v8805
        %v8870 = vadd.f32 %v8869, %v8809
        %v8871 = vrot.slane %v8870, 4
        %v8872 = vadd.f32 %v8870, %v8871
        %v8873 = vrot.slane %v8872, 2
        %v8874 = vadd.f32 %v8872, %v8873
        %v8875 = vrot.slane %v8874, 1
        %v8876 = vadd.f32 %v8874, %v8875
        %v8877 = vadd.f32 %v8813, %v8817
        %v8878 = vadd.f32 %v8877, %v8823
        %v8879 = vadd.f32 %v8878, %v8827
        %v8880 = vadd.f32 %v8879, %v8833
        %v8881 = vadd.f32 %v8880, %v8837
        %v8882 = vadd.f32 %v8881, %v8843
        %v8883 = vadd.f32 %v8882, %v8847
        %v8884 = vrot.slane %v8883, 4
        %v8885 = vadd.f32 %v8883, %v8884
        %v8886 = vrot.slane %v8885, 2
        %v8887 = vadd.f32 %v8885, %v8886
        %v8888 = vrot.slane %v8887, 1
        %v8889 = vadd.f32 %v8887, %v8888
        %v8890 = vadd.f32 %v8815, %v8819
        %v8891 = vadd.f32 %v8890, %v8825
        %v8892 = vadd.f32 %v8891, %v8829
        %v8893 = vadd.f32 %v8892, %v8835
        %v8894 = vadd.f32 %v8893, %v8839
        %v8895 = vadd.f32 %v8894, %v8845
        %v8896 = vadd.f32 %v8895, %v8849
        %v8897 = vrot.slane %v8896, 4
        %v8898 = vadd.f32 %v8896, %v8897
        %v8899 = vrot.slane %v8898, 2
        %v8900 = vadd.f32 %v8898, %v8899
        %v8901 = vrot.slane %v8900, 1
        %v8902 = vadd.f32 %v8900, %v8901
        %v8903 = vmul.f32 %v8863, %v2506
        %v8904 = vmul.f32 %v8876, %v2506
        %v8905 = vmul.f32 %v8889, %v2506
        %v8906 = vmul.f32 %v8902, %v2506
        %v8907 = vadd.f32 %v8044, %v8903
        %v8908 = vadd.f32 %v8045, %v8904
        %v8909 = vadd.f32 %v8046, %v8905
        %v8910 = vadd.f32 %v8047, %v8906
        %v8911 = vld [vmem:[%s8048] sm:$0xff]
        %v8912 = vld [vmem:[%s8048 + $0x8] sm:$0xff]
        %v8913 = vld [vmem:[%s8048 + $0x10] sm:$0x11]
        %v8914 = vld [vmem:[%s8048 + $0x18] sm:$0x11]
        %v8915 = vld [vmem:[%s8048 + $0x20] sm:$0xff]
        %v8916 = vld [vmem:[%s8048 + $0x28] sm:$0xff]
        %v8917 = vld [vmem:[%s8048 + $0x30] sm:$0x11]
        %v8918 = vld [vmem:[%s8048 + $0x38] sm:$0x11]
        %v8919 = vld [vmem:[%s8048 + $0x40] sm:$0xff]
        %v8920 = vld [vmem:[%s8048 + $0x48] sm:$0xff]
        %v8921 = vld [vmem:[%s8048 + $0x50] sm:$0x11]
        %v8922 = vld [vmem:[%s8048 + $0x58] sm:$0x11]
        %v8923 = vld [vmem:[%s8048 + $0x60] sm:$0xff]
        %v8924 = vld [vmem:[%s8048 + $0x68] sm:$0xff]
        %v8925 = vld [vmem:[%s8048 + $0x70] sm:$0x11]
        %v8926 = vld [vmem:[%s8048 + $0x78] sm:$0x11]
        %v8927 = vld [vmem:[%s8048 + $0x80] sm:$0xff]
        %v8928 = vld [vmem:[%s8048 + $0x88] sm:$0xff]
        %v8929 = vld [vmem:[%s8048 + $0x90] sm:$0x11]
        %v8930 = vld [vmem:[%s8048 + $0x98] sm:$0x11]
        %v8931 = vld [vmem:[%s8048 + $0xa0] sm:$0xff]
        %v8932 = vld [vmem:[%s8048 + $0xa8] sm:$0xff]
        %v8933 = vld [vmem:[%s8048 + $0xb0] sm:$0x11]
        %v8934 = vld [vmem:[%s8048 + $0xb8] sm:$0x11]
        %v8935 = vld [vmem:[%s8048 + $0xc0] sm:$0xff]
        %v8936 = vld [vmem:[%s8048 + $0xc8] sm:$0xff]
        %v8937 = vld [vmem:[%s8048 + $0xd0] sm:$0x11]
        %v8938 = vld [vmem:[%s8048 + $0xd8] sm:$0x11]
        %v8939 = vld [vmem:[%s8048 + $0xe0] sm:$0xff]
        %v8940 = vld [vmem:[%s8048 + $0xe8] sm:$0xff]
        %v8941 = vld [vmem:[%s8048 + $0xf0] sm:$0x11]
        %v8942 = vld [vmem:[%s8048 + $0xf8] sm:$0x11]
        %v8943 = vld [vmem:[%s8048 + $0x140] sm:$0xff]
        %v8944 = vld [vmem:[%s8048 + $0x148] sm:$0xff]
        %v8945 = vld [vmem:[%s8048 + $0x150] sm:$0x11]
        %v8946 = vld [vmem:[%s8048 + $0x158] sm:$0x11]
        %v8947 = vld [vmem:[%s8048 + $0x160] sm:$0xff]
        %v8948 = vld [vmem:[%s8048 + $0x168] sm:$0xff]
        %v8949 = vld [vmem:[%s8048 + $0x170] sm:$0x11]
        %v8950 = vld [vmem:[%s8048 + $0x178] sm:$0x11]
        %v8951 = vld [vmem:[%s8048 + $0x180] sm:$0xff]
        %v8952 = vld [vmem:[%s8048 + $0x188] sm:$0xff]
        %v8953 = vld [vmem:[%s8048 + $0x190] sm:$0x11]
        %v8954 = vld [vmem:[%s8048 + $0x198] sm:$0x11]
        %v8955 = vld [vmem:[%s8048 + $0x1a0] sm:$0xff]
        %v8956 = vld [vmem:[%s8048 + $0x1a8] sm:$0xff]
        %v8957 = vld [vmem:[%s8048 + $0x1b0] sm:$0x11]
        %v8958 = vld [vmem:[%s8048 + $0x1b8] sm:$0x11]
        %v8959 = vld [vmem:[%s8048 + $0x1c0] sm:$0xff]
        %v8960 = vld [vmem:[%s8048 + $0x1c8] sm:$0xff]
        %v8961 = vld [vmem:[%s8048 + $0x1d0] sm:$0x11]
        %v8962 = vld [vmem:[%s8048 + $0x1d8] sm:$0x11]
        %v8963 = vld [vmem:[%s8048 + $0x1e0] sm:$0xff]
        %v8964 = vld [vmem:[%s8048 + $0x1e8] sm:$0xff]
        %v8965 = vld [vmem:[%s8048 + $0x1f0] sm:$0x11]
        %v8966 = vld [vmem:[%s8048 + $0x1f8] sm:$0x11]
        %v8967 = vld [vmem:[%s8048 + $0x200] sm:$0xff]
        %v8968 = vld [vmem:[%s8048 + $0x208] sm:$0xff]
        %v8969 = vld [vmem:[%s8048 + $0x210] sm:$0x11]
        %v8970 = vld [vmem:[%s8048 + $0x218] sm:$0x11]
        %v8971 = vld [vmem:[%s8048 + $0x220] sm:$0xff]
        %v8972 = vld [vmem:[%s8048 + $0x228] sm:$0xff]
        %v8973 = vld [vmem:[%s8048 + $0x230] sm:$0x11]
        %v8974 = vld [vmem:[%s8048 + $0x238] sm:$0x11]
        %v8976 = vshrl.u32 %v8911, 16
        %v8978 = vrot.slane %v8976, 4
        %v8979 = vshll.u32 %v8911, 16
        %v8981 = vrot.slane %v8979, 5
        %v8982 = vor.u32 %v8978, %v8981
        %v8983 = vrot.slane %v8982, 4
        %v8985 = vshll.u32 %v8913, 16
        %v8987 = vrot.slane %v8985, 5
        %v8988 = vsel %vm2581, %v8983, %v8987
        %v8990 = vshrl.u32 %v8912, 16
        %v8992 = vrot.slane %v8990, 4
        %v8993 = vshll.u32 %v8912, 16
        %v8995 = vrot.slane %v8993, 5
        %v8996 = vor.u32 %v8992, %v8995
        %v8997 = vrot.slane %v8996, 4
        %v8999 = vshll.u32 %v8914, 16
        %v9001 = vrot.slane %v8999, 5
        %v9002 = vsel %vm2581, %v8997, %v9001
        %v9004 = vshrl.u32 %v8915, 16
        %v9006 = vrot.slane %v9004, 4
        %v9007 = vshll.u32 %v8915, 16
        %v9009 = vrot.slane %v9007, 5
        %v9010 = vor.u32 %v9006, %v9009
        %v9011 = vrot.slane %v9010, 4
        %v9013 = vshll.u32 %v8917, 16
        %v9015 = vrot.slane %v9013, 5
        %v9016 = vsel %vm2581, %v9011, %v9015
        %v9018 = vshrl.u32 %v8916, 16
        %v9020 = vrot.slane %v9018, 4
        %v9021 = vshll.u32 %v8916, 16
        %v9023 = vrot.slane %v9021, 5
        %v9024 = vor.u32 %v9020, %v9023
        %v9025 = vrot.slane %v9024, 4
        %v9027 = vshll.u32 %v8918, 16
        %v9029 = vrot.slane %v9027, 5
        %v9030 = vsel %vm2581, %v9025, %v9029
        %v9032 = vshrl.u32 %v8919, 16
        %v9034 = vrot.slane %v9032, 4
        %v9035 = vshll.u32 %v8919, 16
        %v9037 = vrot.slane %v9035, 5
        %v9038 = vor.u32 %v9034, %v9037
        %v9039 = vrot.slane %v9038, 4
        %v9041 = vshll.u32 %v8921, 16
        %v9043 = vrot.slane %v9041, 5
        %v9044 = vsel %vm2581, %v9039, %v9043
        %v9046 = vshrl.u32 %v8920, 16
        %v9048 = vrot.slane %v9046, 4
        %v9049 = vshll.u32 %v8920, 16
        %v9051 = vrot.slane %v9049, 5
        %v9052 = vor.u32 %v9048, %v9051
        %v9053 = vrot.slane %v9052, 4
        %v9055 = vshll.u32 %v8922, 16
        %v9057 = vrot.slane %v9055, 5
        %v9058 = vsel %vm2581, %v9053, %v9057
        %v9060 = vshrl.u32 %v8923, 16
        %v9062 = vrot.slane %v9060, 4
        %v9063 = vshll.u32 %v8923, 16
        %v9065 = vrot.slane %v9063, 5
        %v9066 = vor.u32 %v9062, %v9065
        %v9067 = vrot.slane %v9066, 4
        %v9069 = vshll.u32 %v8925, 16
        %v9071 = vrot.slane %v9069, 5
        %v9072 = vsel %vm2581, %v9067, %v9071
        %v9074 = vshrl.u32 %v8924, 16
        %v9076 = vrot.slane %v9074, 4
        %v9077 = vshll.u32 %v8924, 16
        %v9079 = vrot.slane %v9077, 5
        %v9080 = vor.u32 %v9076, %v9079
        %v9081 = vrot.slane %v9080, 4
        %v9083 = vshll.u32 %v8926, 16
        %v9085 = vrot.slane %v9083, 5
        %v9086 = vsel %vm2581, %v9081, %v9085
        %v9088 = vshrl.u32 %v8927, 16
        %v9090 = vrot.slane %v9088, 4
        %v9091 = vshll.u32 %v8927, 16
        %v9093 = vrot.slane %v9091, 5
        %v9094 = vor.u32 %v9090, %v9093
        %v9095 = vrot.slane %v9094, 4
        %v9097 = vshll.u32 %v8929, 16
        %v9099 = vrot.slane %v9097, 5
        %v9100 = vsel %vm2581, %v9095, %v9099
        %v9102 = vshrl.u32 %v8928, 16
        %v9104 = vrot.slane %v9102, 4
        %v9105 = vshll.u32 %v8928, 16
        %v9107 = vrot.slane %v9105, 5
        %v9108 = vor.u32 %v9104, %v9107
        %v9109 = vrot.slane %v9108, 4
        %v9111 = vshll.u32 %v8930, 16
        %v9113 = vrot.slane %v9111, 5
        %v9114 = vsel %vm2581, %v9109, %v9113
        %v9116 = vshrl.u32 %v8931, 16
        %v9118 = vrot.slane %v9116, 4
        %v9119 = vshll.u32 %v8931, 16
        %v9121 = vrot.slane %v9119, 5
        %v9122 = vor.u32 %v9118, %v9121
        %v9123 = vrot.slane %v9122, 4
        %v9125 = vshll.u32 %v8933, 16
        %v9127 = vrot.slane %v9125, 5
        %v9128 = vsel %vm2581, %v9123, %v9127
        %v9130 = vshrl.u32 %v8932, 16
        %v9132 = vrot.slane %v9130, 4
        %v9133 = vshll.u32 %v8932, 16
        %v9135 = vrot.slane %v9133, 5
        %v9136 = vor.u32 %v9132, %v9135
        %v9137 = vrot.slane %v9136, 4
        %v9139 = vshll.u32 %v8934, 16
        %v9141 = vrot.slane %v9139, 5
        %v9142 = vsel %vm2581, %v9137, %v9141
        %v9144 = vshrl.u32 %v8935, 16
        %v9146 = vrot.slane %v9144, 4
        %v9147 = vshll.u32 %v8935, 16
        %v9149 = vrot.slane %v9147, 5
        %v9150 = vor.u32 %v9146, %v9149
        %v9151 = vrot.slane %v9150, 4
        %v9153 = vshll.u32 %v8937, 16
        %v9155 = vrot.slane %v9153, 5
        %v9156 = vsel %vm2581, %v9151, %v9155
        %v9158 = vshrl.u32 %v8936, 16
        %v9160 = vrot.slane %v9158, 4
        %v9161 = vshll.u32 %v8936, 16
        %v9163 = vrot.slane %v9161, 5
        %v9164 = vor.u32 %v9160, %v9163
        %v9165 = vrot.slane %v9164, 4
        %v9167 = vshll.u32 %v8938, 16
        %v9169 = vrot.slane %v9167, 5
        %v9170 = vsel %vm2581, %v9165, %v9169
        %v9172 = vshrl.u32 %v8939, 16
        %v9174 = vrot.slane %v9172, 4
        %v9175 = vshll.u32 %v8939, 16
        %v9177 = vrot.slane %v9175, 5
        %v9178 = vor.u32 %v9174, %v9177
        %v9179 = vrot.slane %v9178, 4
        %v9181 = vshll.u32 %v8941, 16
        %v9183 = vrot.slane %v9181, 5
        %v9184 = vsel %vm2581, %v9179, %v9183
        %v9186 = vshrl.u32 %v8940, 16
        %v9188 = vrot.slane %v9186, 4
        %v9189 = vshll.u32 %v8940, 16
        %v9191 = vrot.slane %v9189, 5
        %v9192 = vor.u32 %v9188, %v9191
        %v9193 = vrot.slane %v9192, 4
        %v9195 = vshll.u32 %v8942, 16
        %v9197 = vrot.slane %v9195, 5
        %v9198 = vsel %vm2581, %v9193, %v9197
        %v9200 = vshrl.u32 %v8943, 16
        %v9202 = vrot.slane %v9200, 4
        %v9203 = vshll.u32 %v8943, 16
        %v9205 = vrot.slane %v9203, 5
        %v9206 = vor.u32 %v9202, %v9205
        %v9207 = vrot.slane %v9206, 4
        %v9209 = vshll.u32 %v8945, 16
        %v9211 = vrot.slane %v9209, 5
        %v9212 = vsel %vm2581, %v9207, %v9211
        %v9214 = vshrl.u32 %v8944, 16
        %v9216 = vrot.slane %v9214, 4
        %v9217 = vshll.u32 %v8944, 16
        %v9219 = vrot.slane %v9217, 5
        %v9220 = vor.u32 %v9216, %v9219
        %v9221 = vrot.slane %v9220, 4
        %v9223 = vshll.u32 %v8946, 16
        %v9225 = vrot.slane %v9223, 5
        %v9226 = vsel %vm2581, %v9221, %v9225
        %v9228 = vshrl.u32 %v8947, 16
        %v9230 = vrot.slane %v9228, 4
        %v9231 = vshll.u32 %v8947, 16
        %v9233 = vrot.slane %v9231, 5
        %v9234 = vor.u32 %v9230, %v9233
        %v9235 = vrot.slane %v9234, 4
        %v9237 = vshll.u32 %v8949, 16
        %v9239 = vrot.slane %v9237, 5
        %v9240 = vsel %vm2581, %v9235, %v9239
        %v9242 = vshrl.u32 %v8948, 16
        %v9244 = vrot.slane %v9242, 4
        %v9245 = vshll.u32 %v8948, 16
        %v9247 = vrot.slane %v9245, 5
        %v9248 = vor.u32 %v9244, %v9247
        %v9249 = vrot.slane %v9248, 4
        %v9251 = vshll.u32 %v8950, 16
        %v9253 = vrot.slane %v9251, 5
        %v9254 = vsel %vm2581, %v9249, %v9253
        %v9256 = vshrl.u32 %v8951, 16
        %v9258 = vrot.slane %v9256, 4
        %v9259 = vshll.u32 %v8951, 16
        %v9261 = vrot.slane %v9259, 5
        %v9262 = vor.u32 %v9258, %v9261
        %v9263 = vrot.slane %v9262, 4
        %v9265 = vshll.u32 %v8953, 16
        %v9267 = vrot.slane %v9265, 5
        %v9268 = vsel %vm2581, %v9263, %v9267
        %v9270 = vshrl.u32 %v8952, 16
        %v9272 = vrot.slane %v9270, 4
        %v9273 = vshll.u32 %v8952, 16
        %v9275 = vrot.slane %v9273, 5
        %v9276 = vor.u32 %v9272, %v9275
        %v9277 = vrot.slane %v9276, 4
        %v9279 = vshll.u32 %v8954, 16
        %v9281 = vrot.slane %v9279, 5
        %v9282 = vsel %vm2581, %v9277, %v9281
        %v9284 = vshrl.u32 %v8955, 16
        %v9286 = vrot.slane %v9284, 4
        %v9287 = vshll.u32 %v8955, 16
        %v9289 = vrot.slane %v9287, 5
        %v9290 = vor.u32 %v9286, %v9289
        %v9291 = vrot.slane %v9290, 4
        %v9293 = vshll.u32 %v8957, 16
        %v9295 = vrot.slane %v9293, 5
        %v9296 = vsel %vm2581, %v9291, %v9295
        %v9298 = vshrl.u32 %v8956, 16
        %v9300 = vrot.slane %v9298, 4
        %v9301 = vshll.u32 %v8956, 16
        %v9303 = vrot.slane %v9301, 5
        %v9304 = vor.u32 %v9300, %v9303
        %v9305 = vrot.slane %v9304, 4
        %v9307 = vshll.u32 %v8958, 16
        %v9309 = vrot.slane %v9307, 5
        %v9310 = vsel %vm2581, %v9305, %v9309
        %v9312 = vshrl.u32 %v8959, 16
        %v9314 = vrot.slane %v9312, 4
        %v9315 = vshll.u32 %v8959, 16
        %v9317 = vrot.slane %v9315, 5
        %v9318 = vor.u32 %v9314, %v9317
        %v9319 = vrot.slane %v9318, 4
        %v9321 = vshll.u32 %v8961, 16
        %v9323 = vrot.slane %v9321, 5
        %v9324 = vsel %vm2581, %v9319, %v9323
        %v9326 = vshrl.u32 %v8960, 16
        %v9328 = vrot.slane %v9326, 4
        %v9329 = vshll.u32 %v8960, 16
        %v9331 = vrot.slane %v9329, 5
        %v9332 = vor.u32 %v9328, %v9331
        %v9333 = vrot.slane %v9332, 4
        %v9335 = vshll.u32 %v8962, 16
        %v9337 = vrot.slane %v9335, 5
        %v9338 = vsel %vm2581, %v9333, %v9337
        %v9340 = vshrl.u32 %v8963, 16
        %v9342 = vrot.slane %v9340, 4
        %v9343 = vshll.u32 %v8963, 16
        %v9345 = vrot.slane %v9343, 5
        %v9346 = vor.u32 %v9342, %v9345
        %v9347 = vrot.slane %v9346, 4
        %v9349 = vshll.u32 %v8965, 16
        %v9351 = vrot.slane %v9349, 5
        %v9352 = vsel %vm2581, %v9347, %v9351
        %v9354 = vshrl.u32 %v8964, 16
        %v9356 = vrot.slane %v9354, 4
        %v9357 = vshll.u32 %v8964, 16
        %v9359 = vrot.slane %v9357, 5
        %v9360 = vor.u32 %v9356, %v9359
        %v9361 = vrot.slane %v9360, 4
        %v9363 = vshll.u32 %v8966, 16
        %v9365 = vrot.slane %v9363, 5
        %v9366 = vsel %vm2581, %v9361, %v9365
        %v9368 = vshrl.u32 %v8967, 16
        %v9370 = vrot.slane %v9368, 4
        %v9371 = vshll.u32 %v8967, 16
        %v9373 = vrot.slane %v9371, 5
        %v9374 = vor.u32 %v9370, %v9373
        %v9375 = vrot.slane %v9374, 4
        %v9377 = vshll.u32 %v8969, 16
        %v9379 = vrot.slane %v9377, 5
        %v9380 = vsel %vm2581, %v9375, %v9379
        %v9382 = vshrl.u32 %v8968, 16
        %v9384 = vrot.slane %v9382, 4
        %v9385 = vshll.u32 %v8968, 16
        %v9387 = vrot.slane %v9385, 5
        %v9388 = vor.u32 %v9384, %v9387
        %v9389 = vrot.slane %v9388, 4
        %v9391 = vshll.u32 %v8970, 16
        %v9393 = vrot.slane %v9391, 5
        %v9394 = vsel %vm2581, %v9389, %v9393
        %v9396 = vshrl.u32 %v8971, 16
        %v9398 = vrot.slane %v9396, 4
        %v9399 = vshll.u32 %v8971, 16
        %v9401 = vrot.slane %v9399, 5
        %v9402 = vor.u32 %v9398, %v9401
        %v9403 = vrot.slane %v9402, 4
        %v9405 = vshll.u32 %v8973, 16
        %v9407 = vrot.slane %v9405, 5
        %v9408 = vsel %vm2581, %v9403, %v9407
        %v9410 = vshrl.u32 %v8972, 16
        %v9412 = vrot.slane %v9410, 4
        %v9413 = vshll.u32 %v8972, 16
        %v9415 = vrot.slane %v9413, 5
        %v9416 = vor.u32 %v9412, %v9415
        %v9417 = vrot.slane %v9416, 4
        %v9419 = vshll.u32 %v8974, 16
        %v9421 = vrot.slane %v9419, 5
        %v9422 = vsel %vm2581, %v9417, %v9421
        %v9423 = vld [vmem:[%s227 + $0xe00] sm:$0xff]
        %v9424 = vld [vmem:[%s227 + $0xe08] sm:$0xff]
        %v9425 = vld [vmem:[%s227 + $0xe10] sm:$0xff]
        %v9426 = vld [vmem:[%s227 + $0xe18] sm:$0xff]
        %v9427 = vld [vmem:[%s227 + $0xe20] sm:$0xff]
        %v9428 = vld [vmem:[%s227 + $0xe28] sm:$0xff]
        %v9429 = vld [vmem:[%s227 + $0xe30] sm:$0xff]
        %v9430 = vld [vmem:[%s227 + $0xe38] sm:$0xff]
        %v9431 = vld [vmem:[%s227 + $0xe40] sm:$0xff]
        %v9432 = vld [vmem:[%s227 + $0xe48] sm:$0xff]
        %v9433 = vld [vmem:[%s227 + $0xe50] sm:$0xff]
        %v9434 = vld [vmem:[%s227 + $0xe58] sm:$0xff]
        %v9435 = vld [vmem:[%s227 + $0xe60] sm:$0xff]
        %v9436 = vld [vmem:[%s227 + $0xe68] sm:$0xff]
        %v9437 = vld [vmem:[%s227 + $0xe70] sm:$0xff]
        %v9438 = vld [vmem:[%s227 + $0xe78] sm:$0xff]
        %v9439 = vld [vmem:[%s227 + $0xe80] sm:$0xff]
        %v9440 = vld [vmem:[%s227 + $0xe88] sm:$0xff]
        %v9441 = vld [vmem:[%s227 + $0xe90] sm:$0xff]
        %v9442 = vld [vmem:[%s227 + $0xe98] sm:$0xff]
        %v9443 = vld [vmem:[%s227 + $0xea0] sm:$0xff]
        %v9444 = vld [vmem:[%s227 + $0xea8] sm:$0xff]
        %v9445 = vld [vmem:[%s227 + $0xeb0] sm:$0xff]
        %v9446 = vld [vmem:[%s227 + $0xeb8] sm:$0xff]
        %v9447 = vld [vmem:[%s227 + $0xec0] sm:$0xff]
        %v9448 = vld [vmem:[%s227 + $0xec8] sm:$0xff]
        %v9449 = vld [vmem:[%s227 + $0xed0] sm:$0xff]
        %v9450 = vld [vmem:[%s227 + $0xed8] sm:$0xff]
        %v9451 = vld [vmem:[%s227 + $0xee0] sm:$0xff]
        %v9452 = vld [vmem:[%s227 + $0xee8] sm:$0xff]
        %v9453 = vld [vmem:[%s227 + $0xef0] sm:$0xff]
        %v9454 = vld [vmem:[%s227 + $0xef8] sm:$0xff]
        %v9455 = vld [vmem:[%s227 + $0xf00] sm:$0xff]
        %v9456 = vld [vmem:[%s227 + $0xf08] sm:$0xff]
        %v9457 = vld [vmem:[%s227 + $0xf10] sm:$0xff]
        %v9458 = vld [vmem:[%s227 + $0xf18] sm:$0xff]
        %v9459 = vld [vmem:[%s227 + $0xf20] sm:$0xff]
        %v9460 = vld [vmem:[%s227 + $0xf28] sm:$0xff]
        %v9461 = vld [vmem:[%s227 + $0xf30] sm:$0xff]
        %v9462 = vld [vmem:[%s227 + $0xf38] sm:$0xff]
        %v9463 = vld [vmem:[%s227 + $0xf40] sm:$0xff]
        %v9464 = vld [vmem:[%s227 + $0xf48] sm:$0xff]
        %v9465 = vld [vmem:[%s227 + $0xf50] sm:$0xff]
        %v9466 = vld [vmem:[%s227 + $0xf58] sm:$0xff]
        %v9467 = vld [vmem:[%s227 + $0xf60] sm:$0xff]
        %v9468 = vld [vmem:[%s227 + $0xf68] sm:$0xff]
        %v9469 = vld [vmem:[%s227 + $0xf70] sm:$0xff]
        %v9470 = vld [vmem:[%s227 + $0xf78] sm:$0xff]
        %v9471 = vld [vmem:[%s227 + $0xf80] sm:$0xff]
        %v9472 = vld [vmem:[%s227 + $0xf88] sm:$0xff]
        %v9473 = vld [vmem:[%s227 + $0xf90] sm:$0xff]
        %v9474 = vld [vmem:[%s227 + $0xf98] sm:$0xff]
        %v9475 = vld [vmem:[%s227 + $0xfa0] sm:$0xff]
        %v9476 = vld [vmem:[%s227 + $0xfa8] sm:$0xff]
        %v9477 = vld [vmem:[%s227 + $0xfb0] sm:$0xff]
        %v9478 = vld [vmem:[%s227 + $0xfb8] sm:$0xff]
        %v9479 = vld [vmem:[%s227 + $0xfc0] sm:$0xff]
        %v9480 = vld [vmem:[%s227 + $0xfc8] sm:$0xff]
        %v9481 = vld [vmem:[%s227 + $0xfd0] sm:$0xff]
        %v9482 = vld [vmem:[%s227 + $0xfd8] sm:$0xff]
        %v9483 = vld [vmem:[%s227 + $0xfe0] sm:$0xff]
        %v9484 = vld [vmem:[%s227 + $0xfe8] sm:$0xff]
        %v9485 = vld [vmem:[%s227 + $0xff0] sm:$0xff]
        %v9486 = vld [vmem:[%s227 + $0xff8] sm:$0xff]
        %v9487 = vunpack.c.l.b16 %v8988
        %v9488 = vunpack.c.h.b16 %v8988
        %v9489 = vunpack.c.l.b16 %v9002
        %v9490 = vunpack.c.h.b16 %v9002
        %v9491 = vunpack.c.l.b16 %v9016
        %v9492 = vunpack.c.h.b16 %v9016
        %v9493 = vunpack.c.l.b16 %v9030
        %v9494 = vunpack.c.h.b16 %v9030
        %v9495 = vunpack.c.l.b16 %v9044
        %v9496 = vunpack.c.h.b16 %v9044
        %v9497 = vunpack.c.l.b16 %v9058
        %v9498 = vunpack.c.h.b16 %v9058
        %v9499 = vunpack.c.l.b16 %v9072
        %v9500 = vunpack.c.h.b16 %v9072
        %v9501 = vunpack.c.l.b16 %v9086
        %v9502 = vunpack.c.h.b16 %v9086
        %v9503 = vunpack.c.l.b16 %v9100
        %v9504 = vunpack.c.h.b16 %v9100
        %v9505 = vunpack.c.l.b16 %v9114
        %v9506 = vunpack.c.h.b16 %v9114
        %v9507 = vunpack.c.l.b16 %v9128
        %v9508 = vunpack.c.h.b16 %v9128
        %v9509 = vunpack.c.l.b16 %v9142
        %v9510 = vunpack.c.h.b16 %v9142
        %v9511 = vunpack.c.l.b16 %v9156
        %v9512 = vunpack.c.h.b16 %v9156
        %v9513 = vunpack.c.l.b16 %v9170
        %v9514 = vunpack.c.h.b16 %v9170
        %v9515 = vunpack.c.l.b16 %v9184
        %v9516 = vunpack.c.h.b16 %v9184
        %v9517 = vunpack.c.l.b16 %v9198
        %v9518 = vunpack.c.h.b16 %v9198
        %v9519 = vunpack.c.l.b16 %v9212
        %v9520 = vunpack.c.h.b16 %v9212
        %v9521 = vunpack.c.l.b16 %v9226
        %v9522 = vunpack.c.h.b16 %v9226
        %v9523 = vunpack.c.l.b16 %v9240
        %v9524 = vunpack.c.h.b16 %v9240
        %v9525 = vunpack.c.l.b16 %v9254
        %v9526 = vunpack.c.h.b16 %v9254
        %v9527 = vunpack.c.l.b16 %v9268
        %v9528 = vunpack.c.h.b16 %v9268
        %v9529 = vunpack.c.l.b16 %v9282
        %v9530 = vunpack.c.h.b16 %v9282
        %v9531 = vunpack.c.l.b16 %v9296
        %v9532 = vunpack.c.h.b16 %v9296
        %v9533 = vunpack.c.l.b16 %v9310
        %v9534 = vunpack.c.h.b16 %v9310
        %v9535 = vunpack.c.l.b16 %v9324
        %v9536 = vunpack.c.h.b16 %v9324
        %v9537 = vunpack.c.l.b16 %v9338
        %v9538 = vunpack.c.h.b16 %v9338
        %v9539 = vunpack.c.l.b16 %v9352
        %v9540 = vunpack.c.h.b16 %v9352
        %v9541 = vunpack.c.l.b16 %v9366
        %v9542 = vunpack.c.h.b16 %v9366
        %v9543 = vunpack.c.l.b16 %v9380
        %v9544 = vunpack.c.h.b16 %v9380
        %v9545 = vunpack.c.l.b16 %v9394
        %v9546 = vunpack.c.h.b16 %v9394
        %v9547 = vunpack.c.l.b16 %v9408
        %v9548 = vunpack.c.h.b16 %v9408
        %v9549 = vunpack.c.l.b16 %v9422
        %v9550 = vunpack.c.h.b16 %v9422
        %v9551 = vpack.c.b16 %v9491, %v9487
        %v9552 = vpack.c.b16 %v9492, %v9488
        %v9553 = vpack.c.b16 %v9493, %v9489
        %v9554 = vpack.c.b16 %v9494, %v9490
        %v9555 = vpack.c.b16 %v9499, %v9495
        %v9556 = vpack.c.b16 %v9500, %v9496
        %v9557 = vpack.c.b16 %v9501, %v9497
        %v9558 = vpack.c.b16 %v9502, %v9498
        %v9559 = vpack.c.b16 %v9507, %v9503
        %v9560 = vpack.c.b16 %v9508, %v9504
        %v9561 = vpack.c.b16 %v9509, %v9505
        %v9562 = vpack.c.b16 %v9510, %v9506
        %v9563 = vpack.c.b16 %v9515, %v9511
        %v9564 = vpack.c.b16 %v9516, %v9512
        %v9565 = vpack.c.b16 %v9517, %v9513
        %v9566 = vpack.c.b16 %v9518, %v9514
        %v9567 = vpack.c.b16 %v9523, %v9519
        %v9568 = vpack.c.b16 %v9524, %v9520
        %v9569 = vpack.c.b16 %v9525, %v9521
        %v9570 = vpack.c.b16 %v9526, %v9522
        %v9571 = vpack.c.b16 %v9531, %v9527
        %v9572 = vpack.c.b16 %v9532, %v9528
        %v9573 = vpack.c.b16 %v9533, %v9529
        %v9574 = vpack.c.b16 %v9534, %v9530
        %v9575 = vpack.c.b16 %v9539, %v9535
        %v9576 = vpack.c.b16 %v9540, %v9536
        %v9577 = vpack.c.b16 %v9541, %v9537
        %v9578 = vpack.c.b16 %v9542, %v9538
        %v9579 = vpack.c.b16 %v9547, %v9543
        %v9580 = vpack.c.b16 %v9548, %v9544
        %v9581 = vpack.c.b16 %v9549, %v9545
        %v9582 = vpack.c.b16 %v9550, %v9546
        %v9679 = vunpack.c.l.b16 %v9423
        %v9680 = vunpack.c.h.b16 %v9423
        %v9681 = vunpack.c.l.b16 %v9424
        %v9682 = vunpack.c.h.b16 %v9424
        %v9683 = vunpack.c.l.b16 %v9425
        %v9684 = vunpack.c.h.b16 %v9425
        %v9685 = vunpack.c.l.b16 %v9426
        %v9686 = vunpack.c.h.b16 %v9426
        %v9687 = vunpack.c.l.b16 %v9427
        %v9688 = vunpack.c.h.b16 %v9427
        %v9689 = vunpack.c.l.b16 %v9428
        %v9690 = vunpack.c.h.b16 %v9428
        %v9691 = vunpack.c.l.b16 %v9429
        %v9692 = vunpack.c.h.b16 %v9429
        %v9693 = vunpack.c.l.b16 %v9430
        %v9694 = vunpack.c.h.b16 %v9430
        %v9695 = vunpack.c.l.b16 %v9431
        %v9696 = vunpack.c.h.b16 %v9431
        %v9697 = vunpack.c.l.b16 %v9432
        %v9698 = vunpack.c.h.b16 %v9432
        %v9699 = vunpack.c.l.b16 %v9433
        %v9700 = vunpack.c.h.b16 %v9433
        %v9701 = vunpack.c.l.b16 %v9434
        %v9702 = vunpack.c.h.b16 %v9434
        %v9703 = vunpack.c.l.b16 %v9435
        %v9704 = vunpack.c.h.b16 %v9435
        %v9705 = vunpack.c.l.b16 %v9436
        %v9706 = vunpack.c.h.b16 %v9436
        %v9707 = vunpack.c.l.b16 %v9437
        %v9708 = vunpack.c.h.b16 %v9437
        %v9709 = vunpack.c.l.b16 %v9438
        %v9710 = vunpack.c.h.b16 %v9438
        %v9711 = vunpack.c.l.b16 %v9439
        %v9712 = vunpack.c.h.b16 %v9439
        %v9713 = vunpack.c.l.b16 %v9440
        %v9714 = vunpack.c.h.b16 %v9440
        %v9715 = vunpack.c.l.b16 %v9441
        %v9716 = vunpack.c.h.b16 %v9441
        %v9717 = vunpack.c.l.b16 %v9442
        %v9718 = vunpack.c.h.b16 %v9442
        %v9719 = vunpack.c.l.b16 %v9443
        %v9720 = vunpack.c.h.b16 %v9443
        %v9721 = vunpack.c.l.b16 %v9444
        %v9722 = vunpack.c.h.b16 %v9444
        %v9723 = vunpack.c.l.b16 %v9445
        %v9724 = vunpack.c.h.b16 %v9445
        %v9725 = vunpack.c.l.b16 %v9446
        %v9726 = vunpack.c.h.b16 %v9446
        %v9727 = vunpack.c.l.b16 %v9447
        %v9728 = vunpack.c.h.b16 %v9447
        %v9729 = vunpack.c.l.b16 %v9448
        %v9730 = vunpack.c.h.b16 %v9448
        %v9731 = vunpack.c.l.b16 %v9449
        %v9732 = vunpack.c.h.b16 %v9449
        %v9733 = vunpack.c.l.b16 %v9450
        %v9734 = vunpack.c.h.b16 %v9450
        %v9735 = vunpack.c.l.b16 %v9451
        %v9736 = vunpack.c.h.b16 %v9451
        %v9737 = vunpack.c.l.b16 %v9452
        %v9738 = vunpack.c.h.b16 %v9452
        %v9739 = vunpack.c.l.b16 %v9453
        %v9740 = vunpack.c.h.b16 %v9453
        %v9741 = vunpack.c.l.b16 %v9454
        %v9742 = vunpack.c.h.b16 %v9454
        %v9743 = vunpack.c.l.b16 %v9455
        %v9744 = vunpack.c.h.b16 %v9455
        %v9745 = vunpack.c.l.b16 %v9456
        %v9746 = vunpack.c.h.b16 %v9456
        %v9747 = vunpack.c.l.b16 %v9457
        %v9748 = vunpack.c.h.b16 %v9457
        %v9749 = vunpack.c.l.b16 %v9458
        %v9750 = vunpack.c.h.b16 %v9458
        %v9751 = vunpack.c.l.b16 %v9459
        %v9752 = vunpack.c.h.b16 %v9459
        %v9753 = vunpack.c.l.b16 %v9460
        %v9754 = vunpack.c.h.b16 %v9460
        %v9755 = vunpack.c.l.b16 %v9461
        %v9756 = vunpack.c.h.b16 %v9461
        %v9757 = vunpack.c.l.b16 %v9462
        %v9758 = vunpack.c.h.b16 %v9462
        %v9759 = vunpack.c.l.b16 %v9463
        %v9760 = vunpack.c.h.b16 %v9463
        %v9761 = vunpack.c.l.b16 %v9464
        %v9762 = vunpack.c.h.b16 %v9464
        %v9763 = vunpack.c.l.b16 %v9465
        %v9764 = vunpack.c.h.b16 %v9465
        %v9765 = vunpack.c.l.b16 %v9466
        %v9766 = vunpack.c.h.b16 %v9466
        %v9767 = vunpack.c.l.b16 %v9467
        %v9768 = vunpack.c.h.b16 %v9467
        %v9769 = vunpack.c.l.b16 %v9468
        %v9770 = vunpack.c.h.b16 %v9468
        %v9771 = vunpack.c.l.b16 %v9469
        %v9772 = vunpack.c.h.b16 %v9469
        %v9773 = vunpack.c.l.b16 %v9470
        %v9774 = vunpack.c.h.b16 %v9470
        %v9775 = vunpack.c.l.b16 %v9471
        %v9776 = vunpack.c.h.b16 %v9471
        %v9777 = vunpack.c.l.b16 %v9472
        %v9778 = vunpack.c.h.b16 %v9472
        %v9779 = vunpack.c.l.b16 %v9473
        %v9780 = vunpack.c.h.b16 %v9473
        %v9781 = vunpack.c.l.b16 %v9474
        %v9782 = vunpack.c.h.b16 %v9474
        %v9783 = vunpack.c.l.b16 %v9475
        %v9784 = vunpack.c.h.b16 %v9475
        %v9785 = vunpack.c.l.b16 %v9476
        %v9786 = vunpack.c.h.b16 %v9476
        %v9787 = vunpack.c.l.b16 %v9477
        %v9788 = vunpack.c.h.b16 %v9477
        %v9789 = vunpack.c.l.b16 %v9478
        %v9790 = vunpack.c.h.b16 %v9478
        %v9791 = vunpack.c.l.b16 %v9479
        %v9792 = vunpack.c.h.b16 %v9479
        %v9793 = vunpack.c.l.b16 %v9480
        %v9794 = vunpack.c.h.b16 %v9480
        %v9795 = vunpack.c.l.b16 %v9481
        %v9796 = vunpack.c.h.b16 %v9481
        %v9797 = vunpack.c.l.b16 %v9482
        %v9798 = vunpack.c.h.b16 %v9482
        %v9799 = vunpack.c.l.b16 %v9483
        %v9800 = vunpack.c.h.b16 %v9483
        %v9801 = vunpack.c.l.b16 %v9484
        %v9802 = vunpack.c.h.b16 %v9484
        %v9803 = vunpack.c.l.b16 %v9485
        %v9804 = vunpack.c.h.b16 %v9485
        %v9805 = vunpack.c.l.b16 %v9486
        %v9806 = vunpack.c.h.b16 %v9486
        %v9807 = vpack.c.b16 %v9681, %v9679
        %v9808 = vpack.c.b16 %v9682, %v9680
        %v9809 = vpack.c.b16 %v9685, %v9683
        %v9810 = vpack.c.b16 %v9686, %v9684
        %v9811 = vpack.c.b16 %v9689, %v9687
        %v9812 = vpack.c.b16 %v9690, %v9688
        %v9813 = vpack.c.b16 %v9693, %v9691
        %v9814 = vpack.c.b16 %v9694, %v9692
        %v9815 = vpack.c.b16 %v9697, %v9695
        %v9816 = vpack.c.b16 %v9698, %v9696
        %v9817 = vpack.c.b16 %v9701, %v9699
        %v9818 = vpack.c.b16 %v9702, %v9700
        %v9819 = vpack.c.b16 %v9705, %v9703
        %v9820 = vpack.c.b16 %v9706, %v9704
        %v9821 = vpack.c.b16 %v9709, %v9707
        %v9822 = vpack.c.b16 %v9710, %v9708
        %v9823 = vpack.c.b16 %v9713, %v9711
        %v9824 = vpack.c.b16 %v9714, %v9712
        %v9825 = vpack.c.b16 %v9717, %v9715
        %v9826 = vpack.c.b16 %v9718, %v9716
        %v9827 = vpack.c.b16 %v9721, %v9719
        %v9828 = vpack.c.b16 %v9722, %v9720
        %v9829 = vpack.c.b16 %v9725, %v9723
        %v9830 = vpack.c.b16 %v9726, %v9724
        %v9831 = vpack.c.b16 %v9729, %v9727
        %v9832 = vpack.c.b16 %v9730, %v9728
        %v9833 = vpack.c.b16 %v9733, %v9731
        %v9834 = vpack.c.b16 %v9734, %v9732
        %v9835 = vpack.c.b16 %v9737, %v9735
        %v9836 = vpack.c.b16 %v9738, %v9736
        %v9837 = vpack.c.b16 %v9741, %v9739
        %v9838 = vpack.c.b16 %v9742, %v9740
        %v9839 = vpack.c.b16 %v9745, %v9743
        %v9840 = vpack.c.b16 %v9746, %v9744
        %v9841 = vpack.c.b16 %v9749, %v9747
        %v9842 = vpack.c.b16 %v9750, %v9748
        %v9843 = vpack.c.b16 %v9753, %v9751
        %v9844 = vpack.c.b16 %v9754, %v9752
        %v9845 = vpack.c.b16 %v9757, %v9755
        %v9846 = vpack.c.b16 %v9758, %v9756
        %v9847 = vpack.c.b16 %v9761, %v9759
        %v9848 = vpack.c.b16 %v9762, %v9760
        %v9849 = vpack.c.b16 %v9765, %v9763
        %v9850 = vpack.c.b16 %v9766, %v9764
        %v9851 = vpack.c.b16 %v9769, %v9767
        %v9852 = vpack.c.b16 %v9770, %v9768
        %v9853 = vpack.c.b16 %v9773, %v9771
        %v9854 = vpack.c.b16 %v9774, %v9772
        %v9855 = vpack.c.b16 %v9777, %v9775
        %v9856 = vpack.c.b16 %v9778, %v9776
        %v9857 = vpack.c.b16 %v9781, %v9779
        %v9858 = vpack.c.b16 %v9782, %v9780
        %v9859 = vpack.c.b16 %v9785, %v9783
        %v9860 = vpack.c.b16 %v9786, %v9784
        %v9861 = vpack.c.b16 %v9789, %v9787
        %v9862 = vpack.c.b16 %v9790, %v9788
        %v9863 = vpack.c.b16 %v9793, %v9791
        %v9864 = vpack.c.b16 %v9794, %v9792
        %v9865 = vpack.c.b16 %v9797, %v9795
        %v9866 = vpack.c.b16 %v9798, %v9796
        %v9867 = vpack.c.b16 %v9801, %v9799
        %v9868 = vpack.c.b16 %v9802, %v9800
        %v9869 = vpack.c.b16 %v9805, %v9803
        %v9870 = vpack.c.b16 %v9806, %v9804
        %9935 = vmatprep.subr.bf16.mxu0 %v9822
        %9936 = vmatpush1.bf16.msra.mxu0 %v9821
        %9937 = vmatprep.subr.bf16.mxu0 %v9820
        %9938 = vmatpush1.bf16.msra.mxu0 %v9819
        %9939 = vmatprep.subr.bf16.mxu0 %v9818
        %9940 = vmatpush1.bf16.msra.mxu0 %v9817
        %9941 = vmatprep.subr.bf16.mxu0 %v9816
        %9942 = vmatpush1.bf16.msra.mxu0 %v9815
        %9943 = vmatprep.subr.bf16.mxu0 %v9814
        %9944 = vmatpush1.bf16.msra.mxu0 %v9813
        %9945 = vmatprep.subr.bf16.mxu0 %v9812
        %9946 = vmatpush1.bf16.msra.mxu0 %v9811
        %9947 = vmatprep.subr.bf16.mxu0 %v9810
        %9948 = vmatpush1.bf16.msra.mxu0 %v9809
        %9949 = vmatprep.subr.bf16.mxu0 %v9808
        %9950 = vmatpush1.bf16.msra.mxu0 %v9807
        %9951 = vmatprep.subr.bf16.mxu0 %v9838
        %9952 = vmatpush2.bf16.msra.mxu0 %v9837
        %9953 = vmatprep.subr.bf16.mxu0 %v9836
        %9954 = vmatpush2.bf16.msra.mxu0 %v9835
        %9955 = vmatprep.subr.bf16.mxu0 %v9834
        %9956 = vmatpush2.bf16.msra.mxu0 %v9833
        %9957 = vmatprep.subr.bf16.mxu0 %v9832
        %9958 = vmatpush2.bf16.msra.mxu0 %v9831
        %9959 = vmatprep.subr.bf16.mxu0 %v9830
        %9960 = vmatpush2.bf16.msra.mxu0 %v9829
        %9961 = vmatprep.subr.bf16.mxu0 %v9828
        %9962 = vmatpush2.bf16.msra.mxu0 %v9827
        %9963 = vmatprep.subr.bf16.mxu0 %v9826
        %9964 = vmatpush2.bf16.msra.mxu0 %v9825
        %9965 = vmatprep.subr.bf16.mxu0 %v9824
        %9966 = vmatpush2.bf16.msra.mxu0 %v9823
        %9967 = vmatprep.mubr.bf16.mxu0 %v9552
        %9968 = vmatmul.mubr.bf16.gmra.mxu0 %v9551
        %v9969 = vpop.f32.mrf.mxu0
        %v9970 = vadd.f32 0.0, %v9969
        %v9971 = vpop.f32.mrf.mxu0
        %v9972 = vadd.f32 0.0, %v9971
        %v9973 = vpop.f32.mrf.mxu0
        %v9974 = vadd.f32 0.0, %v9973
        %v9975 = vpop.f32.mrf.mxu0
        %v9976 = vadd.f32 0.0, %v9975
        %9977 = vmatprep.mubr.bf16.mxu0 %v9556
        %9978 = vmatmul.mubr.bf16.gmra.mxu0 %v9555
        %v9979 = vpop.f32.mrf.mxu0
        %v9980 = vadd.f32 0.0, %v9979
        %v9981 = vpop.f32.mrf.mxu0
        %v9982 = vadd.f32 0.0, %v9981
        %v9983 = vpop.f32.mrf.mxu0
        %v9984 = vadd.f32 0.0, %v9983
        %v9985 = vpop.f32.mrf.mxu0
        %v9986 = vadd.f32 0.0, %v9985
        %9987 = vmatprep.mubr.bf16.mxu0 %v9560
        %9988 = vmatmul.mubr.bf16.gmra.mxu0 %v9559
        %v9989 = vpop.f32.mrf.mxu0
        %v9990 = vadd.f32 0.0, %v9989
        %v9991 = vpop.f32.mrf.mxu0
        %v9992 = vadd.f32 0.0, %v9991
        %v9993 = vpop.f32.mrf.mxu0
        %v9994 = vadd.f32 0.0, %v9993
        %v9995 = vpop.f32.mrf.mxu0
        %v9996 = vadd.f32 0.0, %v9995
        %9997 = vmatprep.mubr.bf16.mxu0 %v9564
        %9998 = vmatmul.mubr.bf16.gmra.mxu0 %v9563
        %v9999 = vpop.f32.mrf.mxu0
        %v10000 = vadd.f32 0.0, %v9999
        %v10001 = vpop.f32.mrf.mxu0
        %v10002 = vadd.f32 0.0, %v10001
        %v10003 = vpop.f32.mrf.mxu0
        %v10004 = vadd.f32 0.0, %v10003
        %v10005 = vpop.f32.mrf.mxu0
        %v10006 = vadd.f32 0.0, %v10005
        %10007 = vmatprep.mubr.bf16.mxu0 %v9568
        %10008 = vmatmul.mubr.bf16.gmra.mxu0 %v9567
        %v10009 = vpop.f32.mrf.mxu0
        %v10010 = vadd.f32 0.0, %v10009
        %v10011 = vpop.f32.mrf.mxu0
        %v10012 = vadd.f32 0.0, %v10011
        %v10013 = vpop.f32.mrf.mxu0
        %v10014 = vadd.f32 0.0, %v10013
        %v10015 = vpop.f32.mrf.mxu0
        %v10016 = vadd.f32 0.0, %v10015
        %10017 = vmatprep.mubr.bf16.mxu0 %v9572
        %10018 = vmatmul.mubr.bf16.gmra.mxu0 %v9571
        %v10019 = vpop.f32.mrf.mxu0
        %v10020 = vadd.f32 0.0, %v10019
        %v10021 = vpop.f32.mrf.mxu0
        %v10022 = vadd.f32 0.0, %v10021
        %v10023 = vpop.f32.mrf.mxu0
        %v10024 = vadd.f32 0.0, %v10023
        %v10025 = vpop.f32.mrf.mxu0
        %v10026 = vadd.f32 0.0, %v10025
        %10027 = vmatprep.mubr.bf16.mxu0 %v9576
        %10028 = vmatmul.mubr.bf16.gmra.mxu0 %v9575
        %v10029 = vpop.f32.mrf.mxu0
        %v10030 = vadd.f32 0.0, %v10029
        %v10031 = vpop.f32.mrf.mxu0
        %v10032 = vadd.f32 0.0, %v10031
        %v10033 = vpop.f32.mrf.mxu0
        %v10034 = vadd.f32 0.0, %v10033
        %v10035 = vpop.f32.mrf.mxu0
        %v10036 = vadd.f32 0.0, %v10035
        %10037 = vmatprep.mubr.bf16.mxu0 %v9580
        %10038 = vmatmul.mubr.bf16.gmra.mxu0 %v9579
        %v10039 = vpop.f32.mrf.mxu0
        %v10040 = vadd.f32 0.0, %v10039
        %v10041 = vpop.f32.mrf.mxu0
        %v10042 = vadd.f32 0.0, %v10041
        %v10043 = vpop.f32.mrf.mxu0
        %v10044 = vadd.f32 0.0, %v10043
        %v10045 = vpop.f32.mrf.mxu0
        %v10046 = vadd.f32 0.0, %v10045
        %10047 = vdwg.mxu0
        %10048 = vmatprep.subr.bf16.mxu0 %v9854
        %10049 = vmatpush1.bf16.msra.mxu0 %v9853
        %10050 = vmatprep.subr.bf16.mxu0 %v9852
        %10051 = vmatpush1.bf16.msra.mxu0 %v9851
        %10052 = vmatprep.subr.bf16.mxu0 %v9850
        %10053 = vmatpush1.bf16.msra.mxu0 %v9849
        %10054 = vmatprep.subr.bf16.mxu0 %v9848
        %10055 = vmatpush1.bf16.msra.mxu0 %v9847
        %10056 = vmatprep.subr.bf16.mxu0 %v9846
        %10057 = vmatpush1.bf16.msra.mxu0 %v9845
        %10058 = vmatprep.subr.bf16.mxu0 %v9844
        %10059 = vmatpush1.bf16.msra.mxu0 %v9843
        %10060 = vmatprep.subr.bf16.mxu0 %v9842
        %10061 = vmatpush1.bf16.msra.mxu0 %v9841
        %10062 = vmatprep.subr.bf16.mxu0 %v9840
        %10063 = vmatpush1.bf16.msra.mxu0 %v9839
        %10064 = vmatprep.subr.bf16.mxu0 %v9870
        %10065 = vmatpush2.bf16.msra.mxu0 %v9869
        %10066 = vmatprep.subr.bf16.mxu0 %v9868
        %10067 = vmatpush2.bf16.msra.mxu0 %v9867
        %10068 = vmatprep.subr.bf16.mxu0 %v9866
        %10069 = vmatpush2.bf16.msra.mxu0 %v9865
        %10070 = vmatprep.subr.bf16.mxu0 %v9864
        %10071 = vmatpush2.bf16.msra.mxu0 %v9863
        %10072 = vmatprep.subr.bf16.mxu0 %v9862
        %10073 = vmatpush2.bf16.msra.mxu0 %v9861
        %10074 = vmatprep.subr.bf16.mxu0 %v9860
        %10075 = vmatpush2.bf16.msra.mxu0 %v9859
        %10076 = vmatprep.subr.bf16.mxu0 %v9858
        %10077 = vmatpush2.bf16.msra.mxu0 %v9857
        %10078 = vmatprep.subr.bf16.mxu0 %v9856
        %10079 = vmatpush2.bf16.msra.mxu0 %v9855
        %10080 = vmatprep.mubr.bf16.mxu0 %v9554
        %10081 = vmatmul.mubr.bf16.gmra.mxu0 %v9553
        %v10082 = vpop.f32.mrf.mxu0
        %v10083 = vadd.f32 %v9970, %v10082
        %v10084 = vpop.f32.mrf.mxu0
        %v10085 = vadd.f32 %v9972, %v10084
        %v10086 = vpop.f32.mrf.mxu0
        %v10087 = vadd.f32 %v9974, %v10086
        %v10088 = vpop.f32.mrf.mxu0
        %v10089 = vadd.f32 %v9976, %v10088
        %10090 = vmatprep.mubr.bf16.mxu0 %v9558
        %10091 = vmatmul.mubr.bf16.gmra.mxu0 %v9557
        %v10092 = vpop.f32.mrf.mxu0
        %v10093 = vadd.f32 %v9980, %v10092
        %v10094 = vpop.f32.mrf.mxu0
        %v10095 = vadd.f32 %v9982, %v10094
        %v10096 = vpop.f32.mrf.mxu0
        %v10097 = vadd.f32 %v9984, %v10096
        %v10098 = vpop.f32.mrf.mxu0
        %v10099 = vadd.f32 %v9986, %v10098
        %10100 = vmatprep.mubr.bf16.mxu0 %v9562
        %10101 = vmatmul.mubr.bf16.gmra.mxu0 %v9561
        %v10102 = vpop.f32.mrf.mxu0
        %v10103 = vadd.f32 %v9990, %v10102
        %v10104 = vpop.f32.mrf.mxu0
        %v10105 = vadd.f32 %v9992, %v10104
        %v10106 = vpop.f32.mrf.mxu0
        %v10107 = vadd.f32 %v9994, %v10106
        %v10108 = vpop.f32.mrf.mxu0
        %v10109 = vadd.f32 %v9996, %v10108
        %10110 = vmatprep.mubr.bf16.mxu0 %v9566
        %10111 = vmatmul.mubr.bf16.gmra.mxu0 %v9565
        %v10112 = vpop.f32.mrf.mxu0
        %v10113 = vadd.f32 %v10000, %v10112
        %v10114 = vpop.f32.mrf.mxu0
        %v10115 = vadd.f32 %v10002, %v10114
        %v10116 = vpop.f32.mrf.mxu0
        %v10117 = vadd.f32 %v10004, %v10116
        %v10118 = vpop.f32.mrf.mxu0
        %v10119 = vadd.f32 %v10006, %v10118
        %10120 = vmatprep.mubr.bf16.mxu0 %v9570
        %10121 = vmatmul.mubr.bf16.gmra.mxu0 %v9569
        %v10122 = vpop.f32.mrf.mxu0
        %v10123 = vadd.f32 %v10010, %v10122
        %v10124 = vpop.f32.mrf.mxu0
        %v10125 = vadd.f32 %v10012, %v10124
        %v10126 = vpop.f32.mrf.mxu0
        %v10127 = vadd.f32 %v10014, %v10126
        %v10128 = vpop.f32.mrf.mxu0
        %v10129 = vadd.f32 %v10016, %v10128
        %10130 = vmatprep.mubr.bf16.mxu0 %v9574
        %10131 = vmatmul.mubr.bf16.gmra.mxu0 %v9573
        %v10132 = vpop.f32.mrf.mxu0
        %v10133 = vadd.f32 %v10020, %v10132
        %v10134 = vpop.f32.mrf.mxu0
        %v10135 = vadd.f32 %v10022, %v10134
        %v10136 = vpop.f32.mrf.mxu0
        %v10137 = vadd.f32 %v10024, %v10136
        %v10138 = vpop.f32.mrf.mxu0
        %v10139 = vadd.f32 %v10026, %v10138
        %10140 = vmatprep.mubr.bf16.mxu0 %v9578
        %10141 = vmatmul.mubr.bf16.gmra.mxu0 %v9577
        %v10142 = vpop.f32.mrf.mxu0
        %v10143 = vadd.f32 %v10030, %v10142
        %v10144 = vpop.f32.mrf.mxu0
        %v10145 = vadd.f32 %v10032, %v10144
        %v10146 = vpop.f32.mrf.mxu0
        %v10147 = vadd.f32 %v10034, %v10146
        %v10148 = vpop.f32.mrf.mxu0
        %v10149 = vadd.f32 %v10036, %v10148
        %10150 = vmatprep.mubr.bf16.mxu0 %v9582
        %10151 = vmatmul.mubr.bf16.gmra.mxu0 %v9581
        %v10152 = vpop.f32.mrf.mxu0
        %v10153 = vadd.f32 %v10040, %v10152
        %v10154 = vpop.f32.mrf.mxu0
        %v10155 = vadd.f32 %v10042, %v10154
        %v10156 = vpop.f32.mrf.mxu0
        %v10157 = vadd.f32 %v10044, %v10156
        %v10158 = vpop.f32.mrf.mxu0
        %v10159 = vadd.f32 %v10046, %v10158
        %10160 = vdwg.mxu0
        %v10161 = vadd.f32 %v10083, %v10087
        %v10162 = vadd.f32 %v10161, %v10093
        %v10163 = vadd.f32 %v10162, %v10097
        %v10164 = vadd.f32 %v10163, %v10103
        %v10165 = vadd.f32 %v10164, %v10107
        %v10166 = vadd.f32 %v10165, %v10113
        %v10167 = vadd.f32 %v10166, %v10117
        %v10168 = vrot.slane %v10167, 4
        %v10169 = vadd.f32 %v10167, %v10168
        %v10170 = vrot.slane %v10169, 2
        %v10171 = vadd.f32 %v10169, %v10170
        %v10172 = vrot.slane %v10171, 1
        %v10173 = vadd.f32 %v10171, %v10172
        %v10174 = vadd.f32 %v10085, %v10089
        %v10175 = vadd.f32 %v10174, %v10095
        %v10176 = vadd.f32 %v10175, %v10099
        %v10177 = vadd.f32 %v10176, %v10105
        %v10178 = vadd.f32 %v10177, %v10109
        %v10179 = vadd.f32 %v10178, %v10115
        %v10180 = vadd.f32 %v10179, %v10119
        %v10181 = vrot.slane %v10180, 4
        %v10182 = vadd.f32 %v10180, %v10181
        %v10183 = vrot.slane %v10182, 2
        %v10184 = vadd.f32 %v10182, %v10183
        %v10185 = vrot.slane %v10184, 1
        %v10186 = vadd.f32 %v10184, %v10185
        %v10187 = vadd.f32 %v10123, %v10127
        %v10188 = vadd.f32 %v10187, %v10133
        %v10189 = vadd.f32 %v10188, %v10137
        %v10190 = vadd.f32 %v10189, %v10143
        %v10191 = vadd.f32 %v10190, %v10147
        %v10192 = vadd.f32 %v10191, %v10153
        %v10193 = vadd.f32 %v10192, %v10157
        %v10194 = vrot.slane %v10193, 4
        %v10195 = vadd.f32 %v10193, %v10194
        %v10196 = vrot.slane %v10195, 2
        %v10197 = vadd.f32 %v10195, %v10196
        %v10198 = vrot.slane %v10197, 1
        %v10199 = vadd.f32 %v10197, %v10198
        %v10200 = vadd.f32 %v10125, %v10129
        %v10201 = vadd.f32 %v10200, %v10135
        %v10202 = vadd.f32 %v10201, %v10139
        %v10203 = vadd.f32 %v10202, %v10145
        %v10204 = vadd.f32 %v10203, %v10149
        %v10205 = vadd.f32 %v10204, %v10155
        %v10206 = vadd.f32 %v10205, %v10159
        %v10207 = vrot.slane %v10206, 4
        %v10208 = vadd.f32 %v10206, %v10207
        %v10209 = vrot.slane %v10208, 2
        %v10210 = vadd.f32 %v10208, %v10209
        %v10211 = vrot.slane %v10210, 1
        %v10212 = vadd.f32 %v10210, %v10211
        %v10213 = vmul.f32 %v10173, %v2506
        %v10214 = vmul.f32 %v10186, %v2506
        %v10215 = vmul.f32 %v10199, %v2506
        %v10216 = vmul.f32 %v10212, %v2506
        %v10217 = vadd.f32 %v8907, %v10213
        %v10218 = vadd.f32 %v8908, %v10214
        %v10219 = vadd.f32 %v8909, %v10215
        %v10220 = vadd.f32 %v8910, %v10216
        %v10221 = vld [vmem:[%s8048] sm:$0xee]
        %v10222 = vld [vmem:[%s8048 + $0x8] sm:$0xee]
        %v10223 = vld [vmem:[%s8048 + $0x20] sm:$0xee]
        %v10224 = vld [vmem:[%s8048 + $0x28] sm:$0xee]
        %v10225 = vld [vmem:[%s8048 + $0x40] sm:$0xee]
        %v10226 = vld [vmem:[%s8048 + $0x48] sm:$0xee]
        %v10227 = vld [vmem:[%s8048 + $0x60] sm:$0xee]
        %v10228 = vld [vmem:[%s8048 + $0x68] sm:$0xee]
        %v10229 = vld [vmem:[%s8048 + $0x80] sm:$0xee]
        %v10230 = vld [vmem:[%s8048 + $0x88] sm:$0xee]
        %v10231 = vld [vmem:[%s8048 + $0xa0] sm:$0xee]
        %v10232 = vld [vmem:[%s8048 + $0xa8] sm:$0xee]
        %v10233 = vld [vmem:[%s8048 + $0xc0] sm:$0xee]
        %v10234 = vld [vmem:[%s8048 + $0xc8] sm:$0xee]
        %v10235 = vld [vmem:[%s8048 + $0xe0] sm:$0xee]
        %v10236 = vld [vmem:[%s8048 + $0xe8] sm:$0xee]
        %v10237 = vld [vmem:[%s8048 + $0x140] sm:$0xee]
        %v10238 = vld [vmem:[%s8048 + $0x148] sm:$0xee]
        %v10239 = vld [vmem:[%s8048 + $0x160] sm:$0xee]
        %v10240 = vld [vmem:[%s8048 + $0x168] sm:$0xee]
        %v10241 = vld [vmem:[%s8048 + $0x180] sm:$0xee]
        %v10242 = vld [vmem:[%s8048 + $0x188] sm:$0xee]
        %v10243 = vld [vmem:[%s8048 + $0x1a0] sm:$0xee]
        %v10244 = vld [vmem:[%s8048 + $0x1a8] sm:$0xee]
        %v10245 = vld [vmem:[%s8048 + $0x1c0] sm:$0xee]
        %v10246 = vld [vmem:[%s8048 + $0x1c8] sm:$0xee]
        %v10247 = vld [vmem:[%s8048 + $0x1e0] sm:$0xee]
        %v10248 = vld [vmem:[%s8048 + $0x1e8] sm:$0xee]
        %v10249 = vld [vmem:[%s8048 + $0x200] sm:$0xee]
        %v10250 = vld [vmem:[%s8048 + $0x208] sm:$0xee]
        %v10251 = vld [vmem:[%s8048 + $0x220] sm:$0xee]
        %v10252 = vld [vmem:[%s8048 + $0x228] sm:$0xee]
        %v10317 = vrot.slane %v10221, 5
        %v10318 = vrot.slane %v10317, 4
        %v10319 = vrot.slane %v8913, 5
        %v10320 = vsel %vm3926, %v10318, %v10319
        %v10321 = vrot.slane %v10222, 5
        %v10322 = vrot.slane %v10321, 4
        %v10323 = vrot.slane %v8914, 5
        %v10324 = vsel %vm3926, %v10322, %v10323
        %v10325 = vrot.slane %v10223, 5
        %v10326 = vrot.slane %v10325, 4
        %v10327 = vrot.slane %v8917, 5
        %v10328 = vsel %vm3926, %v10326, %v10327
        %v10329 = vrot.slane %v10224, 5
        %v10330 = vrot.slane %v10329, 4
        %v10331 = vrot.slane %v8918, 5
        %v10332 = vsel %vm3926, %v10330, %v10331
        %v10333 = vrot.slane %v10225, 5
        %v10334 = vrot.slane %v10333, 4
        %v10335 = vrot.slane %v8921, 5
        %v10336 = vsel %vm3926, %v10334, %v10335
        %v10337 = vrot.slane %v10226, 5
        %v10338 = vrot.slane %v10337, 4
        %v10339 = vrot.slane %v8922, 5
        %v10340 = vsel %vm3926, %v10338, %v10339
        %v10341 = vrot.slane %v10227, 5
        %v10342 = vrot.slane %v10341, 4
        %v10343 = vrot.slane %v8925, 5
        %v10344 = vsel %vm3926, %v10342, %v10343
        %v10345 = vrot.slane %v10228, 5
        %v10346 = vrot.slane %v10345, 4
        %v10347 = vrot.slane %v8926, 5
        %v10348 = vsel %vm3926, %v10346, %v10347
        %v10349 = vrot.slane %v10229, 5
        %v10350 = vrot.slane %v10349, 4
        %v10351 = vrot.slane %v8929, 5
        %v10352 = vsel %vm3926, %v10350, %v10351
        %v10353 = vrot.slane %v10230, 5
        %v10354 = vrot.slane %v10353, 4
        %v10355 = vrot.slane %v8930, 5
        %v10356 = vsel %vm3926, %v10354, %v10355
        %v10357 = vrot.slane %v10231, 5
        %v10358 = vrot.slane %v10357, 4
        %v10359 = vrot.slane %v8933, 5
        %v10360 = vsel %vm3926, %v10358, %v10359
        %v10361 = vrot.slane %v10232, 5
        %v10362 = vrot.slane %v10361, 4
        %v10363 = vrot.slane %v8934, 5
        %v10364 = vsel %vm3926, %v10362, %v10363
        %v10365 = vrot.slane %v10233, 5
        %v10366 = vrot.slane %v10365, 4
        %v10367 = vrot.slane %v8937, 5
        %v10368 = vsel %vm3926, %v10366, %v10367
        %v10369 = vrot.slane %v10234, 5
        %v10370 = vrot.slane %v10369, 4
        %v10371 = vrot.slane %v8938, 5
        %v10372 = vsel %vm3926, %v10370, %v10371
        %v10373 = vrot.slane %v10235, 5
        %v10374 = vrot.slane %v10373, 4
        %v10375 = vrot.slane %v8941, 5
        %v10376 = vsel %vm3926, %v10374, %v10375
        %v10377 = vrot.slane %v10236, 5
        %v10378 = vrot.slane %v10377, 4
        %v10379 = vrot.slane %v8942, 5
        %v10380 = vsel %vm3926, %v10378, %v10379
        %v10381 = vrot.slane %v10237, 5
        %v10382 = vrot.slane %v10381, 4
        %v10383 = vrot.slane %v8945, 5
        %v10384 = vsel %vm3926, %v10382, %v10383
        %v10385 = vrot.slane %v10238, 5
        %v10386 = vrot.slane %v10385, 4
        %v10387 = vrot.slane %v8946, 5
        %v10388 = vsel %vm3926, %v10386, %v10387
        %v10389 = vrot.slane %v10239, 5
        %v10390 = vrot.slane %v10389, 4
        %v10391 = vrot.slane %v8949, 5
        %v10392 = vsel %vm3926, %v10390, %v10391
        %v10393 = vrot.slane %v10240, 5
        %v10394 = vrot.slane %v10393, 4
        %v10395 = vrot.slane %v8950, 5
        %v10396 = vsel %vm3926, %v10394, %v10395
        %v10397 = vrot.slane %v10241, 5
        %v10398 = vrot.slane %v10397, 4
        %v10399 = vrot.slane %v8953, 5
        %v10400 = vsel %vm3926, %v10398, %v10399
        %v10401 = vrot.slane %v10242, 5
        %v10402 = vrot.slane %v10401, 4
        %v10403 = vrot.slane %v8954, 5
        %v10404 = vsel %vm3926, %v10402, %v10403
        %v10405 = vrot.slane %v10243, 5
        %v10406 = vrot.slane %v10405, 4
        %v10407 = vrot.slane %v8957, 5
        %v10408 = vsel %vm3926, %v10406, %v10407
        %v10409 = vrot.slane %v10244, 5
        %v10410 = vrot.slane %v10409, 4
        %v10411 = vrot.slane %v8958, 5
        %v10412 = vsel %vm3926, %v10410, %v10411
        %v10413 = vrot.slane %v10245, 5
        %v10414 = vrot.slane %v10413, 4
        %v10415 = vrot.slane %v8961, 5
        %v10416 = vsel %vm3926, %v10414, %v10415
        %v10417 = vrot.slane %v10246, 5
        %v10418 = vrot.slane %v10417, 4
        %v10419 = vrot.slane %v8962, 5
        %v10420 = vsel %vm3926, %v10418, %v10419
        %v10421 = vrot.slane %v10247, 5
        %v10422 = vrot.slane %v10421, 4
        %v10423 = vrot.slane %v8965, 5
        %v10424 = vsel %vm3926, %v10422, %v10423
        %v10425 = vrot.slane %v10248, 5
        %v10426 = vrot.slane %v10425, 4
        %v10427 = vrot.slane %v8966, 5
        %v10428 = vsel %vm3926, %v10426, %v10427
        %v10429 = vrot.slane %v10249, 5
        %v10430 = vrot.slane %v10429, 4
        %v10431 = vrot.slane %v8969, 5
        %v10432 = vsel %vm3926, %v10430, %v10431
        %v10433 = vrot.slane %v10250, 5
        %v10434 = vrot.slane %v10433, 4
        %v10435 = vrot.slane %v8970, 5
        %v10436 = vsel %vm3926, %v10434, %v10435
        %v10437 = vrot.slane %v10251, 5
        %v10438 = vrot.slane %v10437, 4
        %v10439 = vrot.slane %v8973, 5
        %v10440 = vsel %vm3926, %v10438, %v10439
        %v10441 = vrot.slane %v10252, 5
        %v10442 = vrot.slane %v10441, 4
        %v10443 = vrot.slane %v8974, 5
        %v10444 = vsel %vm3926, %v10442, %v10443
        %v10445 = vld [vmem:[%s227 + $0x1000] sm:$0xff]
        %v10446 = vld [vmem:[%s227 + $0x1008] sm:$0xff]
        %v10447 = vld [vmem:[%s227 + $0x1010] sm:$0xff]
        %v10448 = vld [vmem:[%s227 + $0x1018] sm:$0xff]
        %v10449 = vld [vmem:[%s227 + $0x1020] sm:$0xff]
        %v10450 = vld [vmem:[%s227 + $0x1028] sm:$0xff]
        %v10451 = vld [vmem:[%s227 + $0x1030] sm:$0xff]
        %v10452 = vld [vmem:[%s227 + $0x1038] sm:$0xff]
        %v10453 = vld [vmem:[%s227 + $0x1040] sm:$0xff]
        %v10454 = vld [vmem:[%s227 + $0x1048] sm:$0xff]
        %v10455 = vld [vmem:[%s227 + $0x1050] sm:$0xff]
        %v10456 = vld [vmem:[%s227 + $0x1058] sm:$0xff]
        %v10457 = vld [vmem:[%s227 + $0x1060] sm:$0xff]
        %v10458 = vld [vmem:[%s227 + $0x1068] sm:$0xff]
        %v10459 = vld [vmem:[%s227 + $0x1070] sm:$0xff]
        %v10460 = vld [vmem:[%s227 + $0x1078] sm:$0xff]
        %v10461 = vld [vmem:[%s227 + $0x1080] sm:$0xff]
        %v10462 = vld [vmem:[%s227 + $0x1088] sm:$0xff]
        %v10463 = vld [vmem:[%s227 + $0x1090] sm:$0xff]
        %v10464 = vld [vmem:[%s227 + $0x1098] sm:$0xff]
        %v10465 = vld [vmem:[%s227 + $0x10a0] sm:$0xff]
        %v10466 = vld [vmem:[%s227 + $0x10a8] sm:$0xff]
        %v10467 = vld [vmem:[%s227 + $0x10b0] sm:$0xff]
        %v10468 = vld [vmem:[%s227 + $0x10b8] sm:$0xff]
        %v10469 = vld [vmem:[%s227 + $0x10c0] sm:$0xff]
        %v10470 = vld [vmem:[%s227 + $0x10c8] sm:$0xff]
        %v10471 = vld [vmem:[%s227 + $0x10d0] sm:$0xff]
        %v10472 = vld [vmem:[%s227 + $0x10d8] sm:$0xff]
        %v10473 = vld [vmem:[%s227 + $0x10e0] sm:$0xff]
        %v10474 = vld [vmem:[%s227 + $0x10e8] sm:$0xff]
        %v10475 = vld [vmem:[%s227 + $0x10f0] sm:$0xff]
        %v10476 = vld [vmem:[%s227 + $0x10f8] sm:$0xff]
        %v10477 = vld [vmem:[%s227 + $0x1100] sm:$0xff]
        %v10478 = vld [vmem:[%s227 + $0x1108] sm:$0xff]
        %v10479 = vld [vmem:[%s227 + $0x1110] sm:$0xff]
        %v10480 = vld [vmem:[%s227 + $0x1118] sm:$0xff]
        %v10481 = vld [vmem:[%s227 + $0x1120] sm:$0xff]
        %v10482 = vld [vmem:[%s227 + $0x1128] sm:$0xff]
        %v10483 = vld [vmem:[%s227 + $0x1130] sm:$0xff]
        %v10484 = vld [vmem:[%s227 + $0x1138] sm:$0xff]
        %v10485 = vld [vmem:[%s227 + $0x1140] sm:$0xff]
        %v10486 = vld [vmem:[%s227 + $0x1148] sm:$0xff]
        %v10487 = vld [vmem:[%s227 + $0x1150] sm:$0xff]
        %v10488 = vld [vmem:[%s227 + $0x1158] sm:$0xff]
        %v10489 = vld [vmem:[%s227 + $0x1160] sm:$0xff]
        %v10490 = vld [vmem:[%s227 + $0x1168] sm:$0xff]
        %v10491 = vld [vmem:[%s227 + $0x1170] sm:$0xff]
        %v10492 = vld [vmem:[%s227 + $0x1178] sm:$0xff]
        %v10493 = vld [vmem:[%s227 + $0x1180] sm:$0xff]
        %v10494 = vld [vmem:[%s227 + $0x1188] sm:$0xff]
        %v10495 = vld [vmem:[%s227 + $0x1190] sm:$0xff]
        %v10496 = vld [vmem:[%s227 + $0x1198] sm:$0xff]
        %v10497 = vld [vmem:[%s227 + $0x11a0] sm:$0xff]
        %v10498 = vld [vmem:[%s227 + $0x11a8] sm:$0xff]
        %v10499 = vld [vmem:[%s227 + $0x11b0] sm:$0xff]
        %v10500 = vld [vmem:[%s227 + $0x11b8] sm:$0xff]
        %v10501 = vld [vmem:[%s227 + $0x11c0] sm:$0xff]
        %v10502 = vld [vmem:[%s227 + $0x11c8] sm:$0xff]
        %v10503 = vld [vmem:[%s227 + $0x11d0] sm:$0xff]
        %v10504 = vld [vmem:[%s227 + $0x11d8] sm:$0xff]
        %v10505 = vld [vmem:[%s227 + $0x11e0] sm:$0xff]
        %v10506 = vld [vmem:[%s227 + $0x11e8] sm:$0xff]
        %v10507 = vld [vmem:[%s227 + $0x11f0] sm:$0xff]
        %v10508 = vld [vmem:[%s227 + $0x11f8] sm:$0xff]
        %v10509 = vunpack.c.l.b16 %v10320
        %v10510 = vunpack.c.h.b16 %v10320
        %v10511 = vunpack.c.l.b16 %v10324
        %v10512 = vunpack.c.h.b16 %v10324
        %v10513 = vunpack.c.l.b16 %v10328
        %v10514 = vunpack.c.h.b16 %v10328
        %v10515 = vunpack.c.l.b16 %v10332
        %v10516 = vunpack.c.h.b16 %v10332
        %v10517 = vunpack.c.l.b16 %v10336
        %v10518 = vunpack.c.h.b16 %v10336
        %v10519 = vunpack.c.l.b16 %v10340
        %v10520 = vunpack.c.h.b16 %v10340
        %v10521 = vunpack.c.l.b16 %v10344
        %v10522 = vunpack.c.h.b16 %v10344
        %v10523 = vunpack.c.l.b16 %v10348
        %v10524 = vunpack.c.h.b16 %v10348
        %v10525 = vunpack.c.l.b16 %v10352
        %v10526 = vunpack.c.h.b16 %v10352
        %v10527 = vunpack.c.l.b16 %v10356
        %v10528 = vunpack.c.h.b16 %v10356
        %v10529 = vunpack.c.l.b16 %v10360
        %v10530 = vunpack.c.h.b16 %v10360
        %v10531 = vunpack.c.l.b16 %v10364
        %v10532 = vunpack.c.h.b16 %v10364
        %v10533 = vunpack.c.l.b16 %v10368
        %v10534 = vunpack.c.h.b16 %v10368
        %v10535 = vunpack.c.l.b16 %v10372
        %v10536 = vunpack.c.h.b16 %v10372
        %v10537 = vunpack.c.l.b16 %v10376
        %v10538 = vunpack.c.h.b16 %v10376
        %v10539 = vunpack.c.l.b16 %v10380
        %v10540 = vunpack.c.h.b16 %v10380
        %v10541 = vunpack.c.l.b16 %v10384
        %v10542 = vunpack.c.h.b16 %v10384
        %v10543 = vunpack.c.l.b16 %v10388
        %v10544 = vunpack.c.h.b16 %v10388
        %v10545 = vunpack.c.l.b16 %v10392
        %v10546 = vunpack.c.h.b16 %v10392
        %v10547 = vunpack.c.l.b16 %v10396
        %v10548 = vunpack.c.h.b16 %v10396
        %v10549 = vunpack.c.l.b16 %v10400
        %v10550 = vunpack.c.h.b16 %v10400
        %v10551 = vunpack.c.l.b16 %v10404
        %v10552 = vunpack.c.h.b16 %v10404
        %v10553 = vunpack.c.l.b16 %v10408
        %v10554 = vunpack.c.h.b16 %v10408
        %v10555 = vunpack.c.l.b16 %v10412
        %v10556 = vunpack.c.h.b16 %v10412
        %v10557 = vunpack.c.l.b16 %v10416
        %v10558 = vunpack.c.h.b16 %v10416
        %v10559 = vunpack.c.l.b16 %v10420
        %v10560 = vunpack.c.h.b16 %v10420
        %v10561 = vunpack.c.l.b16 %v10424
        %v10562 = vunpack.c.h.b16 %v10424
        %v10563 = vunpack.c.l.b16 %v10428
        %v10564 = vunpack.c.h.b16 %v10428
        %v10565 = vunpack.c.l.b16 %v10432
        %v10566 = vunpack.c.h.b16 %v10432
        %v10567 = vunpack.c.l.b16 %v10436
        %v10568 = vunpack.c.h.b16 %v10436
        %v10569 = vunpack.c.l.b16 %v10440
        %v10570 = vunpack.c.h.b16 %v10440
        %v10571 = vunpack.c.l.b16 %v10444
        %v10572 = vunpack.c.h.b16 %v10444
        %v10573 = vpack.c.b16 %v10513, %v10509
        %v10574 = vpack.c.b16 %v10514, %v10510
        %v10575 = vpack.c.b16 %v10515, %v10511
        %v10576 = vpack.c.b16 %v10516, %v10512
        %v10577 = vpack.c.b16 %v10521, %v10517
        %v10578 = vpack.c.b16 %v10522, %v10518
        %v10579 = vpack.c.b16 %v10523, %v10519
        %v10580 = vpack.c.b16 %v10524, %v10520
        %v10581 = vpack.c.b16 %v10529, %v10525
        %v10582 = vpack.c.b16 %v10530, %v10526
        %v10583 = vpack.c.b16 %v10531, %v10527
        %v10584 = vpack.c.b16 %v10532, %v10528
        %v10585 = vpack.c.b16 %v10537, %v10533
        %v10586 = vpack.c.b16 %v10538, %v10534
        %v10587 = vpack.c.b16 %v10539, %v10535
        %v10588 = vpack.c.b16 %v10540, %v10536
        %v10589 = vpack.c.b16 %v10545, %v10541
        %v10590 = vpack.c.b16 %v10546, %v10542
        %v10591 = vpack.c.b16 %v10547, %v10543
        %v10592 = vpack.c.b16 %v10548, %v10544
        %v10593 = vpack.c.b16 %v10553, %v10549
        %v10594 = vpack.c.b16 %v10554, %v10550
        %v10595 = vpack.c.b16 %v10555, %v10551
        %v10596 = vpack.c.b16 %v10556, %v10552
        %v10597 = vpack.c.b16 %v10561, %v10557
        %v10598 = vpack.c.b16 %v10562, %v10558
        %v10599 = vpack.c.b16 %v10563, %v10559
        %v10600 = vpack.c.b16 %v10564, %v10560
        %v10601 = vpack.c.b16 %v10569, %v10565
        %v10602 = vpack.c.b16 %v10570, %v10566
        %v10603 = vpack.c.b16 %v10571, %v10567
        %v10604 = vpack.c.b16 %v10572, %v10568
        %v10701 = vunpack.c.l.b16 %v10445
        %v10702 = vunpack.c.h.b16 %v10445
        %v10703 = vunpack.c.l.b16 %v10446
        %v10704 = vunpack.c.h.b16 %v10446
        %v10705 = vunpack.c.l.b16 %v10447
        %v10706 = vunpack.c.h.b16 %v10447
        %v10707 = vunpack.c.l.b16 %v10448
        %v10708 = vunpack.c.h.b16 %v10448
        %v10709 = vunpack.c.l.b16 %v10449
        %v10710 = vunpack.c.h.b16 %v10449
        %v10711 = vunpack.c.l.b16 %v10450
        %v10712 = vunpack.c.h.b16 %v10450
        %v10713 = vunpack.c.l.b16 %v10451
        %v10714 = vunpack.c.h.b16 %v10451
        %v10715 = vunpack.c.l.b16 %v10452
        %v10716 = vunpack.c.h.b16 %v10452
        %v10717 = vunpack.c.l.b16 %v10453
        %v10718 = vunpack.c.h.b16 %v10453
        %v10719 = vunpack.c.l.b16 %v10454
        %v10720 = vunpack.c.h.b16 %v10454
        %v10721 = vunpack.c.l.b16 %v10455
        %v10722 = vunpack.c.h.b16 %v10455
        %v10723 = vunpack.c.l.b16 %v10456
        %v10724 = vunpack.c.h.b16 %v10456
        %v10725 = vunpack.c.l.b16 %v10457
        %v10726 = vunpack.c.h.b16 %v10457
        %v10727 = vunpack.c.l.b16 %v10458
        %v10728 = vunpack.c.h.b16 %v10458
        %v10729 = vunpack.c.l.b16 %v10459
        %v10730 = vunpack.c.h.b16 %v10459
        %v10731 = vunpack.c.l.b16 %v10460
        %v10732 = vunpack.c.h.b16 %v10460
        %v10733 = vunpack.c.l.b16 %v10461
        %v10734 = vunpack.c.h.b16 %v10461
        %v10735 = vunpack.c.l.b16 %v10462
        %v10736 = vunpack.c.h.b16 %v10462
        %v10737 = vunpack.c.l.b16 %v10463
        %v10738 = vunpack.c.h.b16 %v10463
        %v10739 = vunpack.c.l.b16 %v10464
        %v10740 = vunpack.c.h.b16 %v10464
        %v10741 = vunpack.c.l.b16 %v10465
        %v10742 = vunpack.c.h.b16 %v10465
        %v10743 = vunpack.c.l.b16 %v10466
        %v10744 = vunpack.c.h.b16 %v10466
        %v10745 = vunpack.c.l.b16 %v10467
        %v10746 = vunpack.c.h.b16 %v10467
        %v10747 = vunpack.c.l.b16 %v10468
        %v10748 = vunpack.c.h.b16 %v10468
        %v10749 = vunpack.c.l.b16 %v10469
        %v10750 = vunpack.c.h.b16 %v10469
        %v10751 = vunpack.c.l.b16 %v10470
        %v10752 = vunpack.c.h.b16 %v10470
        %v10753 = vunpack.c.l.b16 %v10471
        %v10754 = vunpack.c.h.b16 %v10471
        %v10755 = vunpack.c.l.b16 %v10472
        %v10756 = vunpack.c.h.b16 %v10472
        %v10757 = vunpack.c.l.b16 %v10473
        %v10758 = vunpack.c.h.b16 %v10473
        %v10759 = vunpack.c.l.b16 %v10474
        %v10760 = vunpack.c.h.b16 %v10474
        %v10761 = vunpack.c.l.b16 %v10475
        %v10762 = vunpack.c.h.b16 %v10475
        %v10763 = vunpack.c.l.b16 %v10476
        %v10764 = vunpack.c.h.b16 %v10476
        %v10765 = vunpack.c.l.b16 %v10477
        %v10766 = vunpack.c.h.b16 %v10477
        %v10767 = vunpack.c.l.b16 %v10478
        %v10768 = vunpack.c.h.b16 %v10478
        %v10769 = vunpack.c.l.b16 %v10479
        %v10770 = vunpack.c.h.b16 %v10479
        %v10771 = vunpack.c.l.b16 %v10480
        %v10772 = vunpack.c.h.b16 %v10480
        %v10773 = vunpack.c.l.b16 %v10481
        %v10774 = vunpack.c.h.b16 %v10481
        %v10775 = vunpack.c.l.b16 %v10482
        %v10776 = vunpack.c.h.b16 %v10482
        %v10777 = vunpack.c.l.b16 %v10483
        %v10778 = vunpack.c.h.b16 %v10483
        %v10779 = vunpack.c.l.b16 %v10484
        %v10780 = vunpack.c.h.b16 %v10484
        %v10781 = vunpack.c.l.b16 %v10485
        %v10782 = vunpack.c.h.b16 %v10485
        %v10783 = vunpack.c.l.b16 %v10486
        %v10784 = vunpack.c.h.b16 %v10486
        %v10785 = vunpack.c.l.b16 %v10487
        %v10786 = vunpack.c.h.b16 %v10487
        %v10787 = vunpack.c.l.b16 %v10488
        %v10788 = vunpack.c.h.b16 %v10488
        %v10789 = vunpack.c.l.b16 %v10489
        %v10790 = vunpack.c.h.b16 %v10489
        %v10791 = vunpack.c.l.b16 %v10490
        %v10792 = vunpack.c.h.b16 %v10490
        %v10793 = vunpack.c.l.b16 %v10491
        %v10794 = vunpack.c.h.b16 %v10491
        %v10795 = vunpack.c.l.b16 %v10492
        %v10796 = vunpack.c.h.b16 %v10492
        %v10797 = vunpack.c.l.b16 %v10493
        %v10798 = vunpack.c.h.b16 %v10493
        %v10799 = vunpack.c.l.b16 %v10494
        %v10800 = vunpack.c.h.b16 %v10494
        %v10801 = vunpack.c.l.b16 %v10495
        %v10802 = vunpack.c.h.b16 %v10495
        %v10803 = vunpack.c.l.b16 %v10496
        %v10804 = vunpack.c.h.b16 %v10496
        %v10805 = vunpack.c.l.b16 %v10497
        %v10806 = vunpack.c.h.b16 %v10497
        %v10807 = vunpack.c.l.b16 %v10498
        %v10808 = vunpack.c.h.b16 %v10498
        %v10809 = vunpack.c.l.b16 %v10499
        %v10810 = vunpack.c.h.b16 %v10499
        %v10811 = vunpack.c.l.b16 %v10500
        %v10812 = vunpack.c.h.b16 %v10500
        %v10813 = vunpack.c.l.b16 %v10501
        %v10814 = vunpack.c.h.b16 %v10501
        %v10815 = vunpack.c.l.b16 %v10502
        %v10816 = vunpack.c.h.b16 %v10502
        %v10817 = vunpack.c.l.b16 %v10503
        %v10818 = vunpack.c.h.b16 %v10503
        %v10819 = vunpack.c.l.b16 %v10504
        %v10820 = vunpack.c.h.b16 %v10504
        %v10821 = vunpack.c.l.b16 %v10505
        %v10822 = vunpack.c.h.b16 %v10505
        %v10823 = vunpack.c.l.b16 %v10506
        %v10824 = vunpack.c.h.b16 %v10506
        %v10825 = vunpack.c.l.b16 %v10507
        %v10826 = vunpack.c.h.b16 %v10507
        %v10827 = vunpack.c.l.b16 %v10508
        %v10828 = vunpack.c.h.b16 %v10508
        %v10829 = vpack.c.b16 %v10703, %v10701
        %v10830 = vpack.c.b16 %v10704, %v10702
        %v10831 = vpack.c.b16 %v10707, %v10705
        %v10832 = vpack.c.b16 %v10708, %v10706
        %v10833 = vpack.c.b16 %v10711, %v10709
        %v10834 = vpack.c.b16 %v10712, %v10710
        %v10835 = vpack.c.b16 %v10715, %v10713
        %v10836 = vpack.c.b16 %v10716, %v10714
        %v10837 = vpack.c.b16 %v10719, %v10717
        %v10838 = vpack.c.b16 %v10720, %v10718
        %v10839 = vpack.c.b16 %v10723, %v10721
        %v10840 = vpack.c.b16 %v10724, %v10722
        %v10841 = vpack.c.b16 %v10727, %v10725
        %v10842 = vpack.c.b16 %v10728, %v10726
        %v10843 = vpack.c.b16 %v10731, %v10729
        %v10844 = vpack.c.b16 %v10732, %v10730
        %v10845 = vpack.c.b16 %v10735, %v10733
        %v10846 = vpack.c.b16 %v10736, %v10734
        %v10847 = vpack.c.b16 %v10739, %v10737
        %v10848 = vpack.c.b16 %v10740, %v10738
        %v10849 = vpack.c.b16 %v10743, %v10741
        %v10850 = vpack.c.b16 %v10744, %v10742
        %v10851 = vpack.c.b16 %v10747, %v10745
        %v10852 = vpack.c.b16 %v10748, %v10746
        %v10853 = vpack.c.b16 %v10751, %v10749
        %v10854 = vpack.c.b16 %v10752, %v10750
        %v10855 = vpack.c.b16 %v10755, %v10753
        %v10856 = vpack.c.b16 %v10756, %v10754
        %v10857 = vpack.c.b16 %v10759, %v10757
        %v10858 = vpack.c.b16 %v10760, %v10758
        %v10859 = vpack.c.b16 %v10763, %v10761
        %v10860 = vpack.c.b16 %v10764, %v10762
        %v10861 = vpack.c.b16 %v10767, %v10765
        %v10862 = vpack.c.b16 %v10768, %v10766
        %v10863 = vpack.c.b16 %v10771, %v10769
        %v10864 = vpack.c.b16 %v10772, %v10770
        %v10865 = vpack.c.b16 %v10775, %v10773
        %v10866 = vpack.c.b16 %v10776, %v10774
        %v10867 = vpack.c.b16 %v10779, %v10777
        %v10868 = vpack.c.b16 %v10780, %v10778
        %v10869 = vpack.c.b16 %v10783, %v10781
        %v10870 = vpack.c.b16 %v10784, %v10782
        %v10871 = vpack.c.b16 %v10787, %v10785
        %v10872 = vpack.c.b16 %v10788, %v10786
        %v10873 = vpack.c.b16 %v10791, %v10789
        %v10874 = vpack.c.b16 %v10792, %v10790
        %v10875 = vpack.c.b16 %v10795, %v10793
        %v10876 = vpack.c.b16 %v10796, %v10794
        %v10877 = vpack.c.b16 %v10799, %v10797
        %v10878 = vpack.c.b16 %v10800, %v10798
        %v10879 = vpack.c.b16 %v10803, %v10801
        %v10880 = vpack.c.b16 %v10804, %v10802
        %v10881 = vpack.c.b16 %v10807, %v10805
        %v10882 = vpack.c.b16 %v10808, %v10806
        %v10883 = vpack.c.b16 %v10811, %v10809
        %v10884 = vpack.c.b16 %v10812, %v10810
        %v10885 = vpack.c.b16 %v10815, %v10813
        %v10886 = vpack.c.b16 %v10816, %v10814
        %v10887 = vpack.c.b16 %v10819, %v10817
        %v10888 = vpack.c.b16 %v10820, %v10818
        %v10889 = vpack.c.b16 %v10823, %v10821
        %v10890 = vpack.c.b16 %v10824, %v10822
        %v10891 = vpack.c.b16 %v10827, %v10825
        %v10892 = vpack.c.b16 %v10828, %v10826
        %10957 = vmatprep.subr.bf16.mxu0 %v10844
        %10958 = vmatpush1.bf16.msra.mxu0 %v10843
        %10959 = vmatprep.subr.bf16.mxu0 %v10842
        %10960 = vmatpush1.bf16.msra.mxu0 %v10841
        %10961 = vmatprep.subr.bf16.mxu0 %v10840
        %10962 = vmatpush1.bf16.msra.mxu0 %v10839
        %10963 = vmatprep.subr.bf16.mxu0 %v10838
        %10964 = vmatpush1.bf16.msra.mxu0 %v10837
        %10965 = vmatprep.subr.bf16.mxu0 %v10836
        %10966 = vmatpush1.bf16.msra.mxu0 %v10835
        %10967 = vmatprep.subr.bf16.mxu0 %v10834
        %10968 = vmatpush1.bf16.msra.mxu0 %v10833
        %10969 = vmatprep.subr.bf16.mxu0 %v10832
        %10970 = vmatpush1.bf16.msra.mxu0 %v10831
        %10971 = vmatprep.subr.bf16.mxu0 %v10830
        %10972 = vmatpush1.bf16.msra.mxu0 %v10829
        %10973 = vmatprep.subr.bf16.mxu0 %v10860
        %10974 = vmatpush2.bf16.msra.mxu0 %v10859
        %10975 = vmatprep.subr.bf16.mxu0 %v10858
        %10976 = vmatpush2.bf16.msra.mxu0 %v10857
        %10977 = vmatprep.subr.bf16.mxu0 %v10856
        %10978 = vmatpush2.bf16.msra.mxu0 %v10855
        %10979 = vmatprep.subr.bf16.mxu0 %v10854
        %10980 = vmatpush2.bf16.msra.mxu0 %v10853
        %10981 = vmatprep.subr.bf16.mxu0 %v10852
        %10982 = vmatpush2.bf16.msra.mxu0 %v10851
        %10983 = vmatprep.subr.bf16.mxu0 %v10850
        %10984 = vmatpush2.bf16.msra.mxu0 %v10849
        %10985 = vmatprep.subr.bf16.mxu0 %v10848
        %10986 = vmatpush2.bf16.msra.mxu0 %v10847
        %10987 = vmatprep.subr.bf16.mxu0 %v10846
        %10988 = vmatpush2.bf16.msra.mxu0 %v10845
        %10989 = vmatprep.mubr.bf16.mxu0 %v10574
        %10990 = vmatmul.mubr.bf16.gmra.mxu0 %v10573
        %v10991 = vpop.f32.mrf.mxu0
        %v10992 = vadd.f32 0.0, %v10991
        %v10993 = vpop.f32.mrf.mxu0
        %v10994 = vadd.f32 0.0, %v10993
        %v10995 = vpop.f32.mrf.mxu0
        %v10996 = vadd.f32 0.0, %v10995
        %v10997 = vpop.f32.mrf.mxu0
        %v10998 = vadd.f32 0.0, %v10997
        %10999 = vmatprep.mubr.bf16.mxu0 %v10578
        %11000 = vmatmul.mubr.bf16.gmra.mxu0 %v10577
        %v11001 = vpop.f32.mrf.mxu0
        %v11002 = vadd.f32 0.0, %v11001
        %v11003 = vpop.f32.mrf.mxu0
        %v11004 = vadd.f32 0.0, %v11003
        %v11005 = vpop.f32.mrf.mxu0
        %v11006 = vadd.f32 0.0, %v11005
        %v11007 = vpop.f32.mrf.mxu0
        %v11008 = vadd.f32 0.0, %v11007
        %11009 = vmatprep.mubr.bf16.mxu0 %v10582
        %11010 = vmatmul.mubr.bf16.gmra.mxu0 %v10581
        %v11011 = vpop.f32.mrf.mxu0
        %v11012 = vadd.f32 0.0, %v11011
        %v11013 = vpop.f32.mrf.mxu0
        %v11014 = vadd.f32 0.0, %v11013
        %v11015 = vpop.f32.mrf.mxu0
        %v11016 = vadd.f32 0.0, %v11015
        %v11017 = vpop.f32.mrf.mxu0
        %v11018 = vadd.f32 0.0, %v11017
        %11019 = vmatprep.mubr.bf16.mxu0 %v10586
        %11020 = vmatmul.mubr.bf16.gmra.mxu0 %v10585
        %v11021 = vpop.f32.mrf.mxu0
        %v11022 = vadd.f32 0.0, %v11021
        %v11023 = vpop.f32.mrf.mxu0
        %v11024 = vadd.f32 0.0, %v11023
        %v11025 = vpop.f32.mrf.mxu0
        %v11026 = vadd.f32 0.0, %v11025
        %v11027 = vpop.f32.mrf.mxu0
        %v11028 = vadd.f32 0.0, %v11027
        %11029 = vmatprep.mubr.bf16.mxu0 %v10590
        %11030 = vmatmul.mubr.bf16.gmra.mxu0 %v10589
        %v11031 = vpop.f32.mrf.mxu0
        %v11032 = vadd.f32 0.0, %v11031
        %v11033 = vpop.f32.mrf.mxu0
        %v11034 = vadd.f32 0.0, %v11033
        %v11035 = vpop.f32.mrf.mxu0
        %v11036 = vadd.f32 0.0, %v11035
        %v11037 = vpop.f32.mrf.mxu0
        %v11038 = vadd.f32 0.0, %v11037
        %11039 = vmatprep.mubr.bf16.mxu0 %v10594
        %11040 = vmatmul.mubr.bf16.gmra.mxu0 %v10593
        %v11041 = vpop.f32.mrf.mxu0
        %v11042 = vadd.f32 0.0, %v11041
        %v11043 = vpop.f32.mrf.mxu0
        %v11044 = vadd.f32 0.0, %v11043
        %v11045 = vpop.f32.mrf.mxu0
        %v11046 = vadd.f32 0.0, %v11045
        %v11047 = vpop.f32.mrf.mxu0
        %v11048 = vadd.f32 0.0, %v11047
        %11049 = vmatprep.mubr.bf16.mxu0 %v10598
        %11050 = vmatmul.mubr.bf16.gmra.mxu0 %v10597
        %v11051 = vpop.f32.mrf.mxu0
        %v11052 = vadd.f32 0.0, %v11051
        %v11053 = vpop.f32.mrf.mxu0
        %v11054 = vadd.f32 0.0, %v11053
        %v11055 = vpop.f32.mrf.mxu0
        %v11056 = vadd.f32 0.0, %v11055
        %v11057 = vpop.f32.mrf.mxu0
        %v11058 = vadd.f32 0.0, %v11057
        %11059 = vmatprep.mubr.bf16.mxu0 %v10602
        %11060 = vmatmul.mubr.bf16.gmra.mxu0 %v10601
        %v11061 = vpop.f32.mrf.mxu0
        %v11062 = vadd.f32 0.0, %v11061
        %v11063 = vpop.f32.mrf.mxu0
        %v11064 = vadd.f32 0.0, %v11063
        %v11065 = vpop.f32.mrf.mxu0
        %v11066 = vadd.f32 0.0, %v11065
        %v11067 = vpop.f32.mrf.mxu0
        %v11068 = vadd.f32 0.0, %v11067
        %11069 = vdwg.mxu0
        %11070 = vmatprep.subr.bf16.mxu0 %v10876
        %11071 = vmatpush1.bf16.msra.mxu0 %v10875
        %11072 = vmatprep.subr.bf16.mxu0 %v10874
        %11073 = vmatpush1.bf16.msra.mxu0 %v10873
        %11074 = vmatprep.subr.bf16.mxu0 %v10872
        %11075 = vmatpush1.bf16.msra.mxu0 %v10871
        %11076 = vmatprep.subr.bf16.mxu0 %v10870
        %11077 = vmatpush1.bf16.msra.mxu0 %v10869
        %11078 = vmatprep.subr.bf16.mxu0 %v10868
        %11079 = vmatpush1.bf16.msra.mxu0 %v10867
        %11080 = vmatprep.subr.bf16.mxu0 %v10866
        %11081 = vmatpush1.bf16.msra.mxu0 %v10865
        %11082 = vmatprep.subr.bf16.mxu0 %v10864
        %11083 = vmatpush1.bf16.msra.mxu0 %v10863
        %11084 = vmatprep.subr.bf16.mxu0 %v10862
        %11085 = vmatpush1.bf16.msra.mxu0 %v10861
        %11086 = vmatprep.subr.bf16.mxu0 %v10892
        %11087 = vmatpush2.bf16.msra.mxu0 %v10891
        %11088 = vmatprep.subr.bf16.mxu0 %v10890
        %11089 = vmatpush2.bf16.msra.mxu0 %v10889
        %11090 = vmatprep.subr.bf16.mxu0 %v10888
        %11091 = vmatpush2.bf16.msra.mxu0 %v10887
        %11092 = vmatprep.subr.bf16.mxu0 %v10886
        %11093 = vmatpush2.bf16.msra.mxu0 %v10885
        %11094 = vmatprep.subr.bf16.mxu0 %v10884
        %11095 = vmatpush2.bf16.msra.mxu0 %v10883
        %11096 = vmatprep.subr.bf16.mxu0 %v10882
        %11097 = vmatpush2.bf16.msra.mxu0 %v10881
        %11098 = vmatprep.subr.bf16.mxu0 %v10880
        %11099 = vmatpush2.bf16.msra.mxu0 %v10879
        %11100 = vmatprep.subr.bf16.mxu0 %v10878
        %11101 = vmatpush2.bf16.msra.mxu0 %v10877
        %11102 = vmatprep.mubr.bf16.mxu0 %v10576
        %11103 = vmatmul.mubr.bf16.gmra.mxu0 %v10575
        %v11104 = vpop.f32.mrf.mxu0
        %v11105 = vadd.f32 %v10992, %v11104
        %v11106 = vpop.f32.mrf.mxu0
        %v11107 = vadd.f32 %v10994, %v11106
        %v11108 = vpop.f32.mrf.mxu0
        %v11109 = vadd.f32 %v10996, %v11108
        %v11110 = vpop.f32.mrf.mxu0
        %v11111 = vadd.f32 %v10998, %v11110
        %11112 = vmatprep.mubr.bf16.mxu0 %v10580
        %11113 = vmatmul.mubr.bf16.gmra.mxu0 %v10579
        %v11114 = vpop.f32.mrf.mxu0
        %v11115 = vadd.f32 %v11002, %v11114
        %v11116 = vpop.f32.mrf.mxu0
        %v11117 = vadd.f32 %v11004, %v11116
        %v11118 = vpop.f32.mrf.mxu0
        %v11119 = vadd.f32 %v11006, %v11118
        %v11120 = vpop.f32.mrf.mxu0
        %v11121 = vadd.f32 %v11008, %v11120
        %11122 = vmatprep.mubr.bf16.mxu0 %v10584
        %11123 = vmatmul.mubr.bf16.gmra.mxu0 %v10583
        %v11124 = vpop.f32.mrf.mxu0
        %v11125 = vadd.f32 %v11012, %v11124
        %v11126 = vpop.f32.mrf.mxu0
        %v11127 = vadd.f32 %v11014, %v11126
        %v11128 = vpop.f32.mrf.mxu0
        %v11129 = vadd.f32 %v11016, %v11128
        %v11130 = vpop.f32.mrf.mxu0
        %v11131 = vadd.f32 %v11018, %v11130
        %11132 = vmatprep.mubr.bf16.mxu0 %v10588
        %11133 = vmatmul.mubr.bf16.gmra.mxu0 %v10587
        %v11134 = vpop.f32.mrf.mxu0
        %v11135 = vadd.f32 %v11022, %v11134
        %v11136 = vpop.f32.mrf.mxu0
        %v11137 = vadd.f32 %v11024, %v11136
        %v11138 = vpop.f32.mrf.mxu0
        %v11139 = vadd.f32 %v11026, %v11138
        %v11140 = vpop.f32.mrf.mxu0
        %v11141 = vadd.f32 %v11028, %v11140
        %11142 = vmatprep.mubr.bf16.mxu0 %v10592
        %11143 = vmatmul.mubr.bf16.gmra.mxu0 %v10591
        %v11144 = vpop.f32.mrf.mxu0
        %v11145 = vadd.f32 %v11032, %v11144
        %v11146 = vpop.f32.mrf.mxu0
        %v11147 = vadd.f32 %v11034, %v11146
        %v11148 = vpop.f32.mrf.mxu0
        %v11149 = vadd.f32 %v11036, %v11148
        %v11150 = vpop.f32.mrf.mxu0
        %v11151 = vadd.f32 %v11038, %v11150
        %11152 = vmatprep.mubr.bf16.mxu0 %v10596
        %11153 = vmatmul.mubr.bf16.gmra.mxu0 %v10595
        %v11154 = vpop.f32.mrf.mxu0
        %v11155 = vadd.f32 %v11042, %v11154
        %v11156 = vpop.f32.mrf.mxu0
        %v11157 = vadd.f32 %v11044, %v11156
        %v11158 = vpop.f32.mrf.mxu0
        %v11159 = vadd.f32 %v11046, %v11158
        %v11160 = vpop.f32.mrf.mxu0
        %v11161 = vadd.f32 %v11048, %v11160
        %11162 = vmatprep.mubr.bf16.mxu0 %v10600
        %11163 = vmatmul.mubr.bf16.gmra.mxu0 %v10599
        %v11164 = vpop.f32.mrf.mxu0
        %v11165 = vadd.f32 %v11052, %v11164
        %v11166 = vpop.f32.mrf.mxu0
        %v11167 = vadd.f32 %v11054, %v11166
        %v11168 = vpop.f32.mrf.mxu0
        %v11169 = vadd.f32 %v11056, %v11168
        %v11170 = vpop.f32.mrf.mxu0
        %v11171 = vadd.f32 %v11058, %v11170
        %11172 = vmatprep.mubr.bf16.mxu0 %v10604
        %11173 = vmatmul.mubr.bf16.gmra.mxu0 %v10603
        %v11174 = vpop.f32.mrf.mxu0
        %v11175 = vadd.f32 %v11062, %v11174
        %v11176 = vpop.f32.mrf.mxu0
        %v11177 = vadd.f32 %v11064, %v11176
        %v11178 = vpop.f32.mrf.mxu0
        %v11179 = vadd.f32 %v11066, %v11178
        %v11180 = vpop.f32.mrf.mxu0
        %v11181 = vadd.f32 %v11068, %v11180
        %11182 = vdwg.mxu0
        %v11183 = vadd.f32 %v11105, %v11109
        %v11184 = vadd.f32 %v11183, %v11115
        %v11185 = vadd.f32 %v11184, %v11119
        %v11186 = vadd.f32 %v11185, %v11125
        %v11187 = vadd.f32 %v11186, %v11129
        %v11188 = vadd.f32 %v11187, %v11135
        %v11189 = vadd.f32 %v11188, %v11139
        %v11190 = vrot.slane %v11189, 4
        %v11191 = vadd.f32 %v11189, %v11190
        %v11192 = vrot.slane %v11191, 2
        %v11193 = vadd.f32 %v11191, %v11192
        %v11194 = vrot.slane %v11193, 1
        %v11195 = vadd.f32 %v11193, %v11194
        %v11196 = vadd.f32 %v11107, %v11111
        %v11197 = vadd.f32 %v11196, %v11117
        %v11198 = vadd.f32 %v11197, %v11121
        %v11199 = vadd.f32 %v11198, %v11127
        %v11200 = vadd.f32 %v11199, %v11131
        %v11201 = vadd.f32 %v11200, %v11137
        %v11202 = vadd.f32 %v11201, %v11141
        %v11203 = vrot.slane %v11202, 4
        %v11204 = vadd.f32 %v11202, %v11203
        %v11205 = vrot.slane %v11204, 2
        %v11206 = vadd.f32 %v11204, %v11205
        %v11207 = vrot.slane %v11206, 1
        %v11208 = vadd.f32 %v11206, %v11207
        %v11209 = vadd.f32 %v11145, %v11149
        %v11210 = vadd.f32 %v11209, %v11155
        %v11211 = vadd.f32 %v11210, %v11159
        %v11212 = vadd.f32 %v11211, %v11165
        %v11213 = vadd.f32 %v11212, %v11169
        %v11214 = vadd.f32 %v11213, %v11175
        %v11215 = vadd.f32 %v11214, %v11179
        %v11216 = vrot.slane %v11215, 4
        %v11217 = vadd.f32 %v11215, %v11216
        %v11218 = vrot.slane %v11217, 2
        %v11219 = vadd.f32 %v11217, %v11218
        %v11220 = vrot.slane %v11219, 1
        %v11221 = vadd.f32 %v11219, %v11220
        %v11222 = vadd.f32 %v11147, %v11151
        %v11223 = vadd.f32 %v11222, %v11157
        %v11224 = vadd.f32 %v11223, %v11161
        %v11225 = vadd.f32 %v11224, %v11167
        %v11226 = vadd.f32 %v11225, %v11171
        %v11227 = vadd.f32 %v11226, %v11177
        %v11228 = vadd.f32 %v11227, %v11181
        %v11229 = vrot.slane %v11228, 4
        %v11230 = vadd.f32 %v11228, %v11229
        %v11231 = vrot.slane %v11230, 2
        %v11232 = vadd.f32 %v11230, %v11231
        %v11233 = vrot.slane %v11232, 1
        %v11234 = vadd.f32 %v11232, %v11233
        %v11235 = vmul.f32 %v11195, %v2506
        %v11236 = vmul.f32 %v11208, %v2506
        %v11237 = vmul.f32 %v11221, %v2506
        %v11238 = vmul.f32 %v11234, %v2506
        %v11239 = vadd.f32 %v10217, %v11235
        %v11240 = vadd.f32 %v10218, %v11236
        %v11241 = vadd.f32 %v10219, %v11237
        %v11242 = vadd.f32 %v10220, %v11238
        %v11243 = vpack.c.bf16 %v11239, %v11239
        %v11244 = vpack.c.bf16 %v11240, %v11240
        %v11245 = vpack.c.bf16 %v11241, %v11241
        %v11246 = vpack.c.bf16 %v11242, %v11242
        %v11247 = vld [vmem:[%s236] sm:$0xff]
        %v11248 = vld [vmem:[%s236 + $0x8] sm:$0xff]
        %v11249 = vld [vmem:[%s236 + $0x10] sm:$0xff]
        %v11250 = vld [vmem:[%s236 + $0x18] sm:$0xff]
        %v11251 = vld [vmem:[%s236 + $0x20] sm:$0xff]
        %v11252 = vld [vmem:[%s236 + $0x28] sm:$0xff]
        %v11253 = vld [vmem:[%s236 + $0x30] sm:$0xff]
        %v11254 = vld [vmem:[%s236 + $0x38] sm:$0xff]
        %v11255 = vld [vmem:[%s236 + $0x40] sm:$0xff]
        %v11256 = vld [vmem:[%s236 + $0x48] sm:$0xff]
        %v11257 = vld [vmem:[%s236 + $0x50] sm:$0xff]
        %v11258 = vld [vmem:[%s236 + $0x58] sm:$0xff]
        %v11259 = vld [vmem:[%s236 + $0x60] sm:$0xff]
        %v11260 = vld [vmem:[%s236 + $0x68] sm:$0xff]
        %v11261 = vld [vmem:[%s236 + $0x70] sm:$0xff]
        %v11262 = vld [vmem:[%s236 + $0x78] sm:$0xff]
        %v11263 = vld [vmem:[%s236 + $0x80] sm:$0xff]
        %v11264 = vld [vmem:[%s236 + $0x88] sm:$0xff]
        %v11265 = vld [vmem:[%s236 + $0x90] sm:$0xff]
        %v11266 = vld [vmem:[%s236 + $0x98] sm:$0xff]
        %v11267 = vld [vmem:[%s236 + $0xa0] sm:$0xff]
        %v11268 = vld [vmem:[%s236 + $0xa8] sm:$0xff]
        %v11269 = vld [vmem:[%s236 + $0xb0] sm:$0xff]
        %v11270 = vld [vmem:[%s236 + $0xb8] sm:$0xff]
        %v11271 = vld [vmem:[%s236 + $0xc0] sm:$0xff]
        %v11272 = vld [vmem:[%s236 + $0xc8] sm:$0xff]
        %v11273 = vld [vmem:[%s236 + $0xd0] sm:$0xff]
        %v11274 = vld [vmem:[%s236 + $0xd8] sm:$0xff]
        %v11275 = vld [vmem:[%s236 + $0xe0] sm:$0xff]
        %v11276 = vld [vmem:[%s236 + $0xe8] sm:$0xff]
        %v11277 = vld [vmem:[%s236 + $0xf0] sm:$0xff]
        %v11278 = vld [vmem:[%s236 + $0xf8] sm:$0xff]
        %v11279 = vld [vmem:[%s236 + $0x100] sm:$0xff]
        %v11280 = vld [vmem:[%s236 + $0x108] sm:$0xff]
        %v11281 = vld [vmem:[%s236 + $0x110] sm:$0xff]
        %v11282 = vld [vmem:[%s236 + $0x118] sm:$0xff]
        %v11283 = vld [vmem:[%s236 + $0x120] sm:$0xff]
        %v11284 = vld [vmem:[%s236 + $0x128] sm:$0xff]
        %v11285 = vld [vmem:[%s236 + $0x130] sm:$0xff]
        %v11286 = vld [vmem:[%s236 + $0x138] sm:$0xff]
        %v11287 = vld [vmem:[%s236 + $0x140] sm:$0xff]
        %v11288 = vld [vmem:[%s236 + $0x148] sm:$0xff]
        %v11289 = vld [vmem:[%s236 + $0x150] sm:$0xff]
        %v11290 = vld [vmem:[%s236 + $0x158] sm:$0xff]
        %v11291 = vld [vmem:[%s236 + $0x160] sm:$0xff]
        %v11292 = vld [vmem:[%s236 + $0x168] sm:$0xff]
        %v11293 = vld [vmem:[%s236 + $0x170] sm:$0xff]
        %v11294 = vld [vmem:[%s236 + $0x178] sm:$0xff]
        %v11295 = vld [vmem:[%s236 + $0x180] sm:$0xff]
        %v11296 = vld [vmem:[%s236 + $0x188] sm:$0xff]
        %v11297 = vld [vmem:[%s236 + $0x190] sm:$0xff]
        %v11298 = vld [vmem:[%s236 + $0x198] sm:$0xff]
        %v11299 = vld [vmem:[%s236 + $0x1a0] sm:$0xff]
        %v11300 = vld [vmem:[%s236 + $0x1a8] sm:$0xff]
        %v11301 = vld [vmem:[%s236 + $0x1b0] sm:$0xff]
        %v11302 = vld [vmem:[%s236 + $0x1b8] sm:$0xff]
        %v11303 = vld [vmem:[%s236 + $0x1c0] sm:$0xff]
        %v11304 = vld [vmem:[%s236 + $0x1c8] sm:$0xff]
        %v11305 = vld [vmem:[%s236 + $0x1d0] sm:$0xff]
        %v11306 = vld [vmem:[%s236 + $0x1d8] sm:$0xff]
        %v11307 = vld [vmem:[%s236 + $0x1e0] sm:$0xff]
        %v11308 = vld [vmem:[%s236 + $0x1e8] sm:$0xff]
        %v11309 = vld [vmem:[%s236 + $0x1f0] sm:$0xff]
        %v11310 = vld [vmem:[%s236 + $0x1f8] sm:$0xff]
        %v11311 = vld [vmem:[%s236 + $0x200] sm:$0xff]
        %v11312 = vld [vmem:[%s236 + $0x208] sm:$0xff]
        %v11313 = vld [vmem:[%s236 + $0x210] sm:$0xff]
        %v11314 = vld [vmem:[%s236 + $0x218] sm:$0xff]
        %v11315 = vld [vmem:[%s236 + $0x220] sm:$0xff]
        %v11316 = vld [vmem:[%s236 + $0x228] sm:$0xff]
        %v11317 = vld [vmem:[%s236 + $0x230] sm:$0xff]
        %v11318 = vld [vmem:[%s236 + $0x238] sm:$0xff]
        %v11319 = vld [vmem:[%s236 + $0x240] sm:$0xff]
        %v11320 = vld [vmem:[%s236 + $0x248] sm:$0xff]
        %v11321 = vld [vmem:[%s236 + $0x250] sm:$0xff]
        %v11322 = vld [vmem:[%s236 + $0x258] sm:$0xff]
        %v11323 = vld [vmem:[%s236 + $0x260] sm:$0xff]
        %v11324 = vld [vmem:[%s236 + $0x268] sm:$0xff]
        %v11325 = vld [vmem:[%s236 + $0x270] sm:$0xff]
        %v11326 = vld [vmem:[%s236 + $0x278] sm:$0xff]
        %v11327 = vld [vmem:[%s236 + $0x280] sm:$0xff]
        %v11328 = vld [vmem:[%s236 + $0x288] sm:$0xff]
        %v11329 = vld [vmem:[%s236 + $0x290] sm:$0xff]
        %v11330 = vld [vmem:[%s236 + $0x298] sm:$0xff]
        %v11331 = vld [vmem:[%s236 + $0x2a0] sm:$0xff]
        %v11332 = vld [vmem:[%s236 + $0x2a8] sm:$0xff]
        %v11333 = vld [vmem:[%s236 + $0x2b0] sm:$0xff]
        %v11334 = vld [vmem:[%s236 + $0x2b8] sm:$0xff]
        %v11335 = vld [vmem:[%s236 + $0x2c0] sm:$0xff]
        %v11336 = vld [vmem:[%s236 + $0x2c8] sm:$0xff]
        %v11337 = vld [vmem:[%s236 + $0x2d0] sm:$0xff]
        %v11338 = vld [vmem:[%s236 + $0x2d8] sm:$0xff]
        %v11339 = vld [vmem:[%s236 + $0x2e0] sm:$0xff]
        %v11340 = vld [vmem:[%s236 + $0x2e8] sm:$0xff]
        %v11341 = vld [vmem:[%s236 + $0x2f0] sm:$0xff]
        %v11342 = vld [vmem:[%s236 + $0x2f8] sm:$0xff]
        %v11343 = vld [vmem:[%s236 + $0x300] sm:$0xff]
        %v11344 = vld [vmem:[%s236 + $0x308] sm:$0xff]
        %v11345 = vld [vmem:[%s236 + $0x310] sm:$0xff]
        %v11346 = vld [vmem:[%s236 + $0x318] sm:$0xff]
        %v11347 = vld [vmem:[%s236 + $0x320] sm:$0xff]
        %v11348 = vld [vmem:[%s236 + $0x328] sm:$0xff]
        %v11349 = vld [vmem:[%s236 + $0x330] sm:$0xff]
        %v11350 = vld [vmem:[%s236 + $0x338] sm:$0xff]
        %v11351 = vld [vmem:[%s236 + $0x340] sm:$0xff]
        %v11352 = vld [vmem:[%s236 + $0x348] sm:$0xff]
        %v11353 = vld [vmem:[%s236 + $0x350] sm:$0xff]
        %v11354 = vld [vmem:[%s236 + $0x358] sm:$0xff]
        %v11355 = vld [vmem:[%s236 + $0x360] sm:$0xff]
        %v11356 = vld [vmem:[%s236 + $0x368] sm:$0xff]
        %v11357 = vld [vmem:[%s236 + $0x370] sm:$0xff]
        %v11358 = vld [vmem:[%s236 + $0x378] sm:$0xff]
        %v11359 = vld [vmem:[%s236 + $0x380] sm:$0xff]
        %v11360 = vld [vmem:[%s236 + $0x388] sm:$0xff]
        %v11361 = vld [vmem:[%s236 + $0x390] sm:$0xff]
        %v11362 = vld [vmem:[%s236 + $0x398] sm:$0xff]
        %v11363 = vld [vmem:[%s236 + $0x3a0] sm:$0xff]
        %v11364 = vld [vmem:[%s236 + $0x3a8] sm:$0xff]
        %v11365 = vld [vmem:[%s236 + $0x3b0] sm:$0xff]
        %v11366 = vld [vmem:[%s236 + $0x3b8] sm:$0xff]
        %v11367 = vld [vmem:[%s236 + $0x3c0] sm:$0xff]
        %v11368 = vld [vmem:[%s236 + $0x3c8] sm:$0xff]
        %v11369 = vld [vmem:[%s236 + $0x3d0] sm:$0xff]
        %v11370 = vld [vmem:[%s236 + $0x3d8] sm:$0xff]
        %v11371 = vld [vmem:[%s236 + $0x3e0] sm:$0xff]
        %v11372 = vld [vmem:[%s236 + $0x3e8] sm:$0xff]
        %v11373 = vld [vmem:[%s236 + $0x3f0] sm:$0xff]
        %v11374 = vld [vmem:[%s236 + $0x3f8] sm:$0xff]
        %v11379 = vunpack.c.l.b16 %v11243
        %v11380 = vunpack.c.l.b16 %v11244
        %v11381 = vunpack.c.l.b16 %v11245
        %v11382 = vunpack.c.l.b16 %v11246
        %vm11383 = vcmask 1041409
        %v11384 = vsel %vm11383, %v11381, %v11379
        %v11385 = vsel %vm11383, %v11382, %v11380
        %v11386 = vpack.c.b16 %v11384, %v11384
        %v11387 = vpack.c.b16 %v11385, %v11385
        %v11518 = vunpack.c.l.b16 %v11247
        %v11519 = vunpack.c.h.b16 %v11247
        %v11520 = vunpack.c.l.b16 %v11248
        %v11521 = vunpack.c.h.b16 %v11248
        %v11522 = vunpack.c.l.b16 %v11249
        %v11523 = vunpack.c.h.b16 %v11249
        %v11524 = vunpack.c.l.b16 %v11250
        %v11525 = vunpack.c.h.b16 %v11250
        %v11526 = vunpack.c.l.b16 %v11251
        %v11527 = vunpack.c.h.b16 %v11251
        %v11528 = vunpack.c.l.b16 %v11252
        %v11529 = vunpack.c.h.b16 %v11252
        %v11530 = vunpack.c.l.b16 %v11253
        %v11531 = vunpack.c.h.b16 %v11253
        %v11532 = vunpack.c.l.b16 %v11254
        %v11533 = vunpack.c.h.b16 %v11254
        %v11534 = vunpack.c.l.b16 %v11255
        %v11535 = vunpack.c.h.b16 %v11255
        %v11536 = vunpack.c.l.b16 %v11256
        %v11537 = vunpack.c.h.b16 %v11256
        %v11538 = vunpack.c.l.b16 %v11257
        %v11539 = vunpack.c.h.b16 %v11257
        %v11540 = vunpack.c.l.b16 %v11258
        %v11541 = vunpack.c.h.b16 %v11258
        %v11542 = vunpack.c.l.b16 %v11259
        %v11543 = vunpack.c.h.b16 %v11259
        %v11544 = vunpack.c.l.b16 %v11260
        %v11545 = vunpack.c.h.b16 %v11260
        %v11546 = vunpack.c.l.b16 %v11261
        %v11547 = vunpack.c.h.b16 %v11261
        %v11548 = vunpack.c.l.b16 %v11262
        %v11549 = vunpack.c.h.b16 %v11262
        %v11550 = vunpack.c.l.b16 %v11263
        %v11551 = vunpack.c.h.b16 %v11263
        %v11552 = vunpack.c.l.b16 %v11264
        %v11553 = vunpack.c.h.b16 %v11264
        %v11554 = vunpack.c.l.b16 %v11265
        %v11555 = vunpack.c.h.b16 %v11265
        %v11556 = vunpack.c.l.b16 %v11266
        %v11557 = vunpack.c.h.b16 %v11266
        %v11558 = vunpack.c.l.b16 %v11267
        %v11559 = vunpack.c.h.b16 %v11267
        %v11560 = vunpack.c.l.b16 %v11268
        %v11561 = vunpack.c.h.b16 %v11268
        %v11562 = vunpack.c.l.b16 %v11269
        %v11563 = vunpack.c.h.b16 %v11269
        %v11564 = vunpack.c.l.b16 %v11270
        %v11565 = vunpack.c.h.b16 %v11270
        %v11566 = vunpack.c.l.b16 %v11271
        %v11567 = vunpack.c.h.b16 %v11271
        %v11568 = vunpack.c.l.b16 %v11272
        %v11569 = vunpack.c.h.b16 %v11272
        %v11570 = vunpack.c.l.b16 %v11273
        %v11571 = vunpack.c.h.b16 %v11273
        %v11572 = vunpack.c.l.b16 %v11274
        %v11573 = vunpack.c.h.b16 %v11274
        %v11574 = vunpack.c.l.b16 %v11275
        %v11575 = vunpack.c.h.b16 %v11275
        %v11576 = vunpack.c.l.b16 %v11276
        %v11577 = vunpack.c.h.b16 %v11276
        %v11578 = vunpack.c.l.b16 %v11277
        %v11579 = vunpack.c.h.b16 %v11277
        %v11580 = vunpack.c.l.b16 %v11278
        %v11581 = vunpack.c.h.b16 %v11278
        %v11582 = vunpack.c.l.b16 %v11279
        %v11583 = vunpack.c.h.b16 %v11279
        %v11584 = vunpack.c.l.b16 %v11280
        %v11585 = vunpack.c.h.b16 %v11280
        %v11586 = vunpack.c.l.b16 %v11281
        %v11587 = vunpack.c.h.b16 %v11281
        %v11588 = vunpack.c.l.b16 %v11282
        %v11589 = vunpack.c.h.b16 %v11282
        %v11590 = vunpack.c.l.b16 %v11283
        %v11591 = vunpack.c.h.b16 %v11283
        %v11592 = vunpack.c.l.b16 %v11284
        %v11593 = vunpack.c.h.b16 %v11284
        %v11594 = vunpack.c.l.b16 %v11285
        %v11595 = vunpack.c.h.b16 %v11285
        %v11596 = vunpack.c.l.b16 %v11286
        %v11597 = vunpack.c.h.b16 %v11286
        %v11598 = vunpack.c.l.b16 %v11287
        %v11599 = vunpack.c.h.b16 %v11287
        %v11600 = vunpack.c.l.b16 %v11288
        %v11601 = vunpack.c.h.b16 %v11288
        %v11602 = vunpack.c.l.b16 %v11289
        %v11603 = vunpack.c.h.b16 %v11289
        %v11604 = vunpack.c.l.b16 %v11290
        %v11605 = vunpack.c.h.b16 %v11290
        %v11606 = vunpack.c.l.b16 %v11291
        %v11607 = vunpack.c.h.b16 %v11291
        %v11608 = vunpack.c.l.b16 %v11292
        %v11609 = vunpack.c.h.b16 %v11292
        %v11610 = vunpack.c.l.b16 %v11293
        %v11611 = vunpack.c.h.b16 %v11293
        %v11612 = vunpack.c.l.b16 %v11294
        %v11613 = vunpack.c.h.b16 %v11294
        %v11614 = vunpack.c.l.b16 %v11295
        %v11615 = vunpack.c.h.b16 %v11295
        %v11616 = vunpack.c.l.b16 %v11296
        %v11617 = vunpack.c.h.b16 %v11296
        %v11618 = vunpack.c.l.b16 %v11297
        %v11619 = vunpack.c.h.b16 %v11297
        %v11620 = vunpack.c.l.b16 %v11298
        %v11621 = vunpack.c.h.b16 %v11298
        %v11622 = vunpack.c.l.b16 %v11299
        %v11623 = vunpack.c.h.b16 %v11299
        %v11624 = vunpack.c.l.b16 %v11300
        %v11625 = vunpack.c.h.b16 %v11300
        %v11626 = vunpack.c.l.b16 %v11301
        %v11627 = vunpack.c.h.b16 %v11301
        %v11628 = vunpack.c.l.b16 %v11302
        %v11629 = vunpack.c.h.b16 %v11302
        %v11630 = vunpack.c.l.b16 %v11303
        %v11631 = vunpack.c.h.b16 %v11303
        %v11632 = vunpack.c.l.b16 %v11304
        %v11633 = vunpack.c.h.b16 %v11304
        %v11634 = vunpack.c.l.b16 %v11305
        %v11635 = vunpack.c.h.b16 %v11305
        %v11636 = vunpack.c.l.b16 %v11306
        %v11637 = vunpack.c.h.b16 %v11306
        %v11638 = vunpack.c.l.b16 %v11307
        %v11639 = vunpack.c.h.b16 %v11307
        %v11640 = vunpack.c.l.b16 %v11308
        %v11641 = vunpack.c.h.b16 %v11308
        %v11642 = vunpack.c.l.b16 %v11309
        %v11643 = vunpack.c.h.b16 %v11309
        %v11644 = vunpack.c.l.b16 %v11310
        %v11645 = vunpack.c.h.b16 %v11310
        %v11646 = vunpack.c.l.b16 %v11311
        %v11647 = vunpack.c.h.b16 %v11311
        %v11648 = vunpack.c.l.b16 %v11312
        %v11649 = vunpack.c.h.b16 %v11312
        %v11650 = vunpack.c.l.b16 %v11313
        %v11651 = vunpack.c.h.b16 %v11313
        %v11652 = vunpack.c.l.b16 %v11314
        %v11653 = vunpack.c.h.b16 %v11314
        %v11654 = vunpack.c.l.b16 %v11315
        %v11655 = vunpack.c.h.b16 %v11315
        %v11656 = vunpack.c.l.b16 %v11316
        %v11657 = vunpack.c.h.b16 %v11316
        %v11658 = vunpack.c.l.b16 %v11317
        %v11659 = vunpack.c.h.b16 %v11317
        %v11660 = vunpack.c.l.b16 %v11318
        %v11661 = vunpack.c.h.b16 %v11318
        %v11662 = vunpack.c.l.b16 %v11319
        %v11663 = vunpack.c.h.b16 %v11319
        %v11664 = vunpack.c.l.b16 %v11320
        %v11665 = vunpack.c.h.b16 %v11320
        %v11666 = vunpack.c.l.b16 %v11321
        %v11667 = vunpack.c.h.b16 %v11321
        %v11668 = vunpack.c.l.b16 %v11322
        %v11669 = vunpack.c.h.b16 %v11322
        %v11670 = vunpack.c.l.b16 %v11323
        %v11671 = vunpack.c.h.b16 %v11323
        %v11672 = vunpack.c.l.b16 %v11324
        %v11673 = vunpack.c.h.b16 %v11324
        %v11674 = vunpack.c.l.b16 %v11325
        %v11675 = vunpack.c.h.b16 %v11325
        %v11676 = vunpack.c.l.b16 %v11326
        %v11677 = vunpack.c.h.b16 %v11326
        %v11678 = vunpack.c.l.b16 %v11327
        %v11679 = vunpack.c.h.b16 %v11327
        %v11680 = vunpack.c.l.b16 %v11328
        %v11681 = vunpack.c.h.b16 %v11328
        %v11682 = vunpack.c.l.b16 %v11329
        %v11683 = vunpack.c.h.b16 %v11329
        %v11684 = vunpack.c.l.b16 %v11330
        %v11685 = vunpack.c.h.b16 %v11330
        %v11686 = vunpack.c.l.b16 %v11331
        %v11687 = vunpack.c.h.b16 %v11331
        %v11688 = vunpack.c.l.b16 %v11332
        %v11689 = vunpack.c.h.b16 %v11332
        %v11690 = vunpack.c.l.b16 %v11333
        %v11691 = vunpack.c.h.b16 %v11333
        %v11692 = vunpack.c.l.b16 %v11334
        %v11693 = vunpack.c.h.b16 %v11334
        %v11694 = vunpack.c.l.b16 %v11335
        %v11695 = vunpack.c.h.b16 %v11335
        %v11696 = vunpack.c.l.b16 %v11336
        %v11697 = vunpack.c.h.b16 %v11336
        %v11698 = vunpack.c.l.b16 %v11337
        %v11699 = vunpack.c.h.b16 %v11337
        %v11700 = vunpack.c.l.b16 %v11338
        %v11701 = vunpack.c.h.b16 %v11338
        %v11702 = vunpack.c.l.b16 %v11339
        %v11703 = vunpack.c.h.b16 %v11339
        %v11704 = vunpack.c.l.b16 %v11340
        %v11705 = vunpack.c.h.b16 %v11340
        %v11706 = vunpack.c.l.b16 %v11341
        %v11707 = vunpack.c.h.b16 %v11341
        %v11708 = vunpack.c.l.b16 %v11342
        %v11709 = vunpack.c.h.b16 %v11342
        %v11710 = vunpack.c.l.b16 %v11343
        %v11711 = vunpack.c.h.b16 %v11343
        %v11712 = vunpack.c.l.b16 %v11344
        %v11713 = vunpack.c.h.b16 %v11344
        %v11714 = vunpack.c.l.b16 %v11345
        %v11715 = vunpack.c.h.b16 %v11345
        %v11716 = vunpack.c.l.b16 %v11346
        %v11717 = vunpack.c.h.b16 %v11346
        %v11718 = vunpack.c.l.b16 %v11347
        %v11719 = vunpack.c.h.b16 %v11347
        %v11720 = vunpack.c.l.b16 %v11348
        %v11721 = vunpack.c.h.b16 %v11348
        %v11722 = vunpack.c.l.b16 %v11349
        %v11723 = vunpack.c.h.b16 %v11349
        %v11724 = vunpack.c.l.b16 %v11350
        %v11725 = vunpack.c.h.b16 %v11350
        %v11726 = vunpack.c.l.b16 %v11351
        %v11727 = vunpack.c.h.b16 %v11351
        %v11728 = vunpack.c.l.b16 %v11352
        %v11729 = vunpack.c.h.b16 %v11352
        %v11730 = vunpack.c.l.b16 %v11353
        %v11731 = vunpack.c.h.b16 %v11353
        %v11732 = vunpack.c.l.b16 %v11354
        %v11733 = vunpack.c.h.b16 %v11354
        %v11734 = vunpack.c.l.b16 %v11355
        %v11735 = vunpack.c.h.b16 %v11355
        %v11736 = vunpack.c.l.b16 %v11356
        %v11737 = vunpack.c.h.b16 %v11356
        %v11738 = vunpack.c.l.b16 %v11357
        %v11739 = vunpack.c.h.b16 %v11357
        %v11740 = vunpack.c.l.b16 %v11358
        %v11741 = vunpack.c.h.b16 %v11358
        %v11742 = vunpack.c.l.b16 %v11359
        %v11743 = vunpack.c.h.b16 %v11359
        %v11744 = vunpack.c.l.b16 %v11360
        %v11745 = vunpack.c.h.b16 %v11360
        %v11746 = vunpack.c.l.b16 %v11361
        %v11747 = vunpack.c.h.b16 %v11361
        %v11748 = vunpack.c.l.b16 %v11362
        %v11749 = vunpack.c.h.b16 %v11362
        %v11750 = vunpack.c.l.b16 %v11363
        %v11751 = vunpack.c.h.b16 %v11363
        %v11752 = vunpack.c.l.b16 %v11364
        %v11753 = vunpack.c.h.b16 %v11364
        %v11754 = vunpack.c.l.b16 %v11365
        %v11755 = vunpack.c.h.b16 %v11365
        %v11756 = vunpack.c.l.b16 %v11366
        %v11757 = vunpack.c.h.b16 %v11366
        %v11758 = vunpack.c.l.b16 %v11367
        %v11759 = vunpack.c.h.b16 %v11367
        %v11760 = vunpack.c.l.b16 %v11368
        %v11761 = vunpack.c.h.b16 %v11368
        %v11762 = vunpack.c.l.b16 %v11369
        %v11763 = vunpack.c.h.b16 %v11369
        %v11764 = vunpack.c.l.b16 %v11370
        %v11765 = vunpack.c.h.b16 %v11370
        %v11766 = vunpack.c.l.b16 %v11371
        %v11767 = vunpack.c.h.b16 %v11371
        %v11768 = vunpack.c.l.b16 %v11372
        %v11769 = vunpack.c.h.b16 %v11372
        %v11770 = vunpack.c.l.b16 %v11373
        %v11771 = vunpack.c.h.b16 %v11373
        %v11772 = vunpack.c.l.b16 %v11374
        %v11773 = vunpack.c.h.b16 %v11374
        %v11774 = vpack.c.b16 %v11526, %v11518
        %v11775 = vpack.c.b16 %v11527, %v11519
        %v11776 = vpack.c.b16 %v11528, %v11520
        %v11777 = vpack.c.b16 %v11529, %v11521
        %v11778 = vpack.c.b16 %v11530, %v11522
        %v11779 = vpack.c.b16 %v11531, %v11523
        %v11780 = vpack.c.b16 %v11532, %v11524
        %v11781 = vpack.c.b16 %v11533, %v11525
        %v11782 = vpack.c.b16 %v11542, %v11534
        %v11783 = vpack.c.b16 %v11543, %v11535
        %v11784 = vpack.c.b16 %v11544, %v11536
        %v11785 = vpack.c.b16 %v11545, %v11537
        %v11786 = vpack.c.b16 %v11546, %v11538
        %v11787 = vpack.c.b16 %v11547, %v11539
        %v11788 = vpack.c.b16 %v11548, %v11540
        %v11789 = vpack.c.b16 %v11549, %v11541
        %v11790 = vpack.c.b16 %v11558, %v11550
        %v11791 = vpack.c.b16 %v11559, %v11551
        %v11792 = vpack.c.b16 %v11560, %v11552
        %v11793 = vpack.c.b16 %v11561, %v11553
        %v11794 = vpack.c.b16 %v11562, %v11554
        %v11795 = vpack.c.b16 %v11563, %v11555
        %v11796 = vpack.c.b16 %v11564, %v11556
        %v11797 = vpack.c.b16 %v11565, %v11557
        %v11798 = vpack.c.b16 %v11574, %v11566
        %v11799 = vpack.c.b16 %v11575, %v11567
        %v11800 = vpack.c.b16 %v11576, %v11568
        %v11801 = vpack.c.b16 %v11577, %v11569
        %v11802 = vpack.c.b16 %v11578, %v11570
        %v11803 = vpack.c.b16 %v11579, %v11571
        %v11804 = vpack.c.b16 %v11580, %v11572
        %v11805 = vpack.c.b16 %v11581, %v11573
        %v11806 = vpack.c.b16 %v11590, %v11582
        %v11807 = vpack.c.b16 %v11591, %v11583
        %v11808 = vpack.c.b16 %v11592, %v11584
        %v11809 = vpack.c.b16 %v11593, %v11585
        %v11810 = vpack.c.b16 %v11594, %v11586
        %v11811 = vpack.c.b16 %v11595, %v11587
        %v11812 = vpack.c.b16 %v11596, %v11588
        %v11813 = vpack.c.b16 %v11597, %v11589
        %v11814 = vpack.c.b16 %v11606, %v11598
        %v11815 = vpack.c.b16 %v11607, %v11599
        %v11816 = vpack.c.b16 %v11608, %v11600
        %v11817 = vpack.c.b16 %v11609, %v11601
        %v11818 = vpack.c.b16 %v11610, %v11602
        %v11819 = vpack.c.b16 %v11611, %v11603
        %v11820 = vpack.c.b16 %v11612, %v11604
        %v11821 = vpack.c.b16 %v11613, %v11605
        %v11822 = vpack.c.b16 %v11622, %v11614
        %v11823 = vpack.c.b16 %v11623, %v11615
        %v11824 = vpack.c.b16 %v11624, %v11616
        %v11825 = vpack.c.b16 %v11625, %v11617
        %v11826 = vpack.c.b16 %v11626, %v11618
        %v11827 = vpack.c.b16 %v11627, %v11619
        %v11828 = vpack.c.b16 %v11628, %v11620
        %v11829 = vpack.c.b16 %v11629, %v11621
        %v11830 = vpack.c.b16 %v11638, %v11630
        %v11831 = vpack.c.b16 %v11639, %v11631
        %v11832 = vpack.c.b16 %v11640, %v11632
        %v11833 = vpack.c.b16 %v11641, %v11633
        %v11834 = vpack.c.b16 %v11642, %v11634
        %v11835 = vpack.c.b16 %v11643, %v11635
        %v11836 = vpack.c.b16 %v11644, %v11636
        %v11837 = vpack.c.b16 %v11645, %v11637
        %v11838 = vpack.c.b16 %v11654, %v11646
        %v11839 = vpack.c.b16 %v11655, %v11647
        %v11840 = vpack.c.b16 %v11656, %v11648
        %v11841 = vpack.c.b16 %v11657, %v11649
        %v11842 = vpack.c.b16 %v11658, %v11650
        %v11843 = vpack.c.b16 %v11659, %v11651
        %v11844 = vpack.c.b16 %v11660, %v11652
        %v11845 = vpack.c.b16 %v11661, %v11653
        %v11846 = vpack.c.b16 %v11670, %v11662
        %v11847 = vpack.c.b16 %v11671, %v11663
        %v11848 = vpack.c.b16 %v11672, %v11664
        %v11849 = vpack.c.b16 %v11673, %v11665
        %v11850 = vpack.c.b16 %v11674, %v11666
        %v11851 = vpack.c.b16 %v11675, %v11667
        %v11852 = vpack.c.b16 %v11676, %v11668
        %v11853 = vpack.c.b16 %v11677, %v11669
        %v11854 = vpack.c.b16 %v11686, %v11678
        %v11855 = vpack.c.b16 %v11687, %v11679
        %v11856 = vpack.c.b16 %v11688, %v11680
        %v11857 = vpack.c.b16 %v11689, %v11681
        %v11858 = vpack.c.b16 %v11690, %v11682
        %v11859 = vpack.c.b16 %v11691, %v11683
        %v11860 = vpack.c.b16 %v11692, %v11684
        %v11861 = vpack.c.b16 %v11693, %v11685
        %v11862 = vpack.c.b16 %v11702, %v11694
        %v11863 = vpack.c.b16 %v11703, %v11695
        %v11864 = vpack.c.b16 %v11704, %v11696
        %v11865 = vpack.c.b16 %v11705, %v11697
        %v11866 = vpack.c.b16 %v11706, %v11698
        %v11867 = vpack.c.b16 %v11707, %v11699
        %v11868 = vpack.c.b16 %v11708, %v11700
        %v11869 = vpack.c.b16 %v11709, %v11701
        %v11870 = vpack.c.b16 %v11718, %v11710
        %v11871 = vpack.c.b16 %v11719, %v11711
        %v11872 = vpack.c.b16 %v11720, %v11712
        %v11873 = vpack.c.b16 %v11721, %v11713
        %v11874 = vpack.c.b16 %v11722, %v11714
        %v11875 = vpack.c.b16 %v11723, %v11715
        %v11876 = vpack.c.b16 %v11724, %v11716
        %v11877 = vpack.c.b16 %v11725, %v11717
        %v11878 = vpack.c.b16 %v11734, %v11726
        %v11879 = vpack.c.b16 %v11735, %v11727
        %v11880 = vpack.c.b16 %v11736, %v11728
        %v11881 = vpack.c.b16 %v11737, %v11729
        %v11882 = vpack.c.b16 %v11738, %v11730
        %v11883 = vpack.c.b16 %v11739, %v11731
        %v11884 = vpack.c.b16 %v11740, %v11732
        %v11885 = vpack.c.b16 %v11741, %v11733
        %v11886 = vpack.c.b16 %v11750, %v11742
        %v11887 = vpack.c.b16 %v11751, %v11743
        %v11888 = vpack.c.b16 %v11752, %v11744
        %v11889 = vpack.c.b16 %v11753, %v11745
        %v11890 = vpack.c.b16 %v11754, %v11746
        %v11891 = vpack.c.b16 %v11755, %v11747
        %v11892 = vpack.c.b16 %v11756, %v11748
        %v11893 = vpack.c.b16 %v11757, %v11749
        %v11894 = vpack.c.b16 %v11766, %v11758
        %v11895 = vpack.c.b16 %v11767, %v11759
        %v11896 = vpack.c.b16 %v11768, %v11760
        %v11897 = vpack.c.b16 %v11769, %v11761
        %v11898 = vpack.c.b16 %v11770, %v11762
        %v11899 = vpack.c.b16 %v11771, %v11763
        %v11900 = vpack.c.b16 %v11772, %v11764
        %v11901 = vpack.c.b16 %v11773, %v11765
        %12030 = vmatprep.subr.bf16.mxu0 %v11831
        %12031 = vmatpush1.bf16.msra.mxu0 %v11830
        %12032 = vmatprep.subr.bf16.mxu0 %v11823
        %12033 = vmatpush1.bf16.msra.mxu0 %v11822
        %12034 = vmatprep.subr.bf16.mxu0 %v11815
        %12035 = vmatpush1.bf16.msra.mxu0 %v11814
        %12036 = vmatprep.subr.bf16.mxu0 %v11807
        %12037 = vmatpush1.bf16.msra.mxu0 %v11806
        %12038 = vmatprep.subr.bf16.mxu0 %v11799
        %12039 = vmatpush1.bf16.msra.mxu0 %v11798
        %12040 = vmatprep.subr.bf16.mxu0 %v11791
        %12041 = vmatpush1.bf16.msra.mxu0 %v11790
        %12042 = vmatprep.subr.bf16.mxu0 %v11783
        %12043 = vmatpush1.bf16.msra.mxu0 %v11782
        %12044 = vmatprep.subr.bf16.mxu0 %v11775
        %12045 = vmatpush1.bf16.msra.mxu0 %v11774
        %12046 = vmatprep.subr.bf16.mxu0 %v11895
        %12047 = vmatpush2.bf16.msra.mxu0 %v11894
        %12048 = vmatprep.subr.bf16.mxu0 %v11887
        %12049 = vmatpush2.bf16.msra.mxu0 %v11886
        %12050 = vmatprep.subr.bf16.mxu0 %v11879
        %12051 = vmatpush2.bf16.msra.mxu0 %v11878
        %12052 = vmatprep.subr.bf16.mxu0 %v11871
        %12053 = vmatpush2.bf16.msra.mxu0 %v11870
        %12054 = vmatprep.subr.bf16.mxu0 %v11863
        %12055 = vmatpush2.bf16.msra.mxu0 %v11862
        %12056 = vmatprep.subr.bf16.mxu0 %v11855
        %12057 = vmatpush2.bf16.msra.mxu0 %v11854
        %12058 = vmatprep.subr.bf16.mxu0 %v11847
        %12059 = vmatpush2.bf16.msra.mxu0 %v11846
        %12060 = vmatprep.subr.bf16.mxu0 %v11839
        %12061 = vmatpush2.bf16.msra.mxu0 %v11838
        %12062 = vmatprep.mubr.bf16.mxu0 %v11387
        %12063 = vmatmul.mubr.bf16.gmra.mxu0 %v11386
        %v12064 = vpop.f32.mrf.mxu0
        %v12065 = vadd.f32 0.0, %v12064
        %v12066 = vpop.f32.mrf.mxu0
        %v12067 = vadd.f32 0.0, %v12066
        %v12068 = vpop.f32.mrf.mxu0
        %v12069 = vpop.f32.mrf.mxu0
        %12070 = vdwg.mxu0
        %12071 = vmatprep.subr.bf16.mxu0 %v11833
        %12072 = vmatpush1.bf16.msra.mxu0 %v11832
        %12073 = vmatprep.subr.bf16.mxu0 %v11825
        %12074 = vmatpush1.bf16.msra.mxu0 %v11824
        %12075 = vmatprep.subr.bf16.mxu0 %v11817
        %12076 = vmatpush1.bf16.msra.mxu0 %v11816
        %12077 = vmatprep.subr.bf16.mxu0 %v11809
        %12078 = vmatpush1.bf16.msra.mxu0 %v11808
        %12079 = vmatprep.subr.bf16.mxu0 %v11801
        %12080 = vmatpush1.bf16.msra.mxu0 %v11800
        %12081 = vmatprep.subr.bf16.mxu0 %v11793
        %12082 = vmatpush1.bf16.msra.mxu0 %v11792
        %12083 = vmatprep.subr.bf16.mxu0 %v11785
        %12084 = vmatpush1.bf16.msra.mxu0 %v11784
        %12085 = vmatprep.subr.bf16.mxu0 %v11777
        %12086 = vmatpush1.bf16.msra.mxu0 %v11776
        %12087 = vmatprep.subr.bf16.mxu0 %v11897
        %12088 = vmatpush2.bf16.msra.mxu0 %v11896
        %12089 = vmatprep.subr.bf16.mxu0 %v11889
        %12090 = vmatpush2.bf16.msra.mxu0 %v11888
        %12091 = vmatprep.subr.bf16.mxu0 %v11881
        %12092 = vmatpush2.bf16.msra.mxu0 %v11880
        %12093 = vmatprep.subr.bf16.mxu0 %v11873
        %12094 = vmatpush2.bf16.msra.mxu0 %v11872
        %12095 = vmatprep.subr.bf16.mxu0 %v11865
        %12096 = vmatpush2.bf16.msra.mxu0 %v11864
        %12097 = vmatprep.subr.bf16.mxu0 %v11857
        %12098 = vmatpush2.bf16.msra.mxu0 %v11856
        %12099 = vmatprep.subr.bf16.mxu0 %v11849
        %12100 = vmatpush2.bf16.msra.mxu0 %v11848
        %12101 = vmatprep.subr.bf16.mxu0 %v11841
        %12102 = vmatpush2.bf16.msra.mxu0 %v11840
        %12103 = vmatprep.mubr.bf16.mxu0 %v11387
        %12104 = vmatmul.mubr.bf16.gmra.mxu0 %v11386
        %v12105 = vpop.f32.mrf.mxu0
        %v12106 = vadd.f32 0.0, %v12105
        %v12107 = vpop.f32.mrf.mxu0
        %v12108 = vadd.f32 0.0, %v12107
        %v12109 = vpop.f32.mrf.mxu0
        %v12110 = vpop.f32.mrf.mxu0
        %12111 = vdwg.mxu0
        %12112 = vmatprep.subr.bf16.mxu0 %v11835
        %12113 = vmatpush1.bf16.msra.mxu0 %v11834
        %12114 = vmatprep.subr.bf16.mxu0 %v11827
        %12115 = vmatpush1.bf16.msra.mxu0 %v11826
        %12116 = vmatprep.subr.bf16.mxu0 %v11819
        %12117 = vmatpush1.bf16.msra.mxu0 %v11818
        %12118 = vmatprep.subr.bf16.mxu0 %v11811
        %12119 = vmatpush1.bf16.msra.mxu0 %v11810
        %12120 = vmatprep.subr.bf16.mxu0 %v11803
        %12121 = vmatpush1.bf16.msra.mxu0 %v11802
        %12122 = vmatprep.subr.bf16.mxu0 %v11795
        %12123 = vmatpush1.bf16.msra.mxu0 %v11794
        %12124 = vmatprep.subr.bf16.mxu0 %v11787
        %12125 = vmatpush1.bf16.msra.mxu0 %v11786
        %12126 = vmatprep.subr.bf16.mxu0 %v11779
        %12127 = vmatpush1.bf16.msra.mxu0 %v11778
        %12128 = vmatprep.subr.bf16.mxu0 %v11899
        %12129 = vmatpush2.bf16.msra.mxu0 %v11898
        %12130 = vmatprep.subr.bf16.mxu0 %v11891
        %12131 = vmatpush2.bf16.msra.mxu0 %v11890
        %12132 = vmatprep.subr.bf16.mxu0 %v11883
        %12133 = vmatpush2.bf16.msra.mxu0 %v11882
        %12134 = vmatprep.subr.bf16.mxu0 %v11875
        %12135 = vmatpush2.bf16.msra.mxu0 %v11874
        %12136 = vmatprep.subr.bf16.mxu0 %v11867
        %12137 = vmatpush2.bf16.msra.mxu0 %v11866
        %12138 = vmatprep.subr.bf16.mxu0 %v11859
        %12139 = vmatpush2.bf16.msra.mxu0 %v11858
        %12140 = vmatprep.subr.bf16.mxu0 %v11851
        %12141 = vmatpush2.bf16.msra.mxu0 %v11850
        %12142 = vmatprep.subr.bf16.mxu0 %v11843
        %12143 = vmatpush2.bf16.msra.mxu0 %v11842
        %12144 = vmatprep.mubr.bf16.mxu0 %v11387
        %12145 = vmatmul.mubr.bf16.gmra.mxu0 %v11386
        %v12146 = vpop.f32.mrf.mxu0
        %v12147 = vadd.f32 0.0, %v12146
        %v12148 = vpop.f32.mrf.mxu0
        %v12149 = vadd.f32 0.0, %v12148
        %v12150 = vpop.f32.mrf.mxu0
        %v12151 = vpop.f32.mrf.mxu0
        %12152 = vdwg.mxu0
        %12153 = vmatprep.subr.bf16.mxu0 %v11837
        %12154 = vmatpush1.bf16.msra.mxu0 %v11836
        %12155 = vmatprep.subr.bf16.mxu0 %v11829
        %12156 = vmatpush1.bf16.msra.mxu0 %v11828
        %12157 = vmatprep.subr.bf16.mxu0 %v11821
        %12158 = vmatpush1.bf16.msra.mxu0 %v11820
        %12159 = vmatprep.subr.bf16.mxu0 %v11813
        %12160 = vmatpush1.bf16.msra.mxu0 %v11812
        %12161 = vmatprep.subr.bf16.mxu0 %v11805
        %12162 = vmatpush1.bf16.msra.mxu0 %v11804
        %12163 = vmatprep.subr.bf16.mxu0 %v11797
        %12164 = vmatpush1.bf16.msra.mxu0 %v11796
        %12165 = vmatprep.subr.bf16.mxu0 %v11789
        %12166 = vmatpush1.bf16.msra.mxu0 %v11788
        %12167 = vmatprep.subr.bf16.mxu0 %v11781
        %12168 = vmatpush1.bf16.msra.mxu0 %v11780
        %12169 = vmatprep.subr.bf16.mxu0 %v11901
        %12170 = vmatpush2.bf16.msra.mxu0 %v11900
        %12171 = vmatprep.subr.bf16.mxu0 %v11893
        %12172 = vmatpush2.bf16.msra.mxu0 %v11892
        %12173 = vmatprep.subr.bf16.mxu0 %v11885
        %12174 = vmatpush2.bf16.msra.mxu0 %v11884
        %12175 = vmatprep.subr.bf16.mxu0 %v11877
        %12176 = vmatpush2.bf16.msra.mxu0 %v11876
        %12177 = vmatprep.subr.bf16.mxu0 %v11869
        %12178 = vmatpush2.bf16.msra.mxu0 %v11868
        %12179 = vmatprep.subr.bf16.mxu0 %v11861
        %12180 = vmatpush2.bf16.msra.mxu0 %v11860
        %12181 = vmatprep.subr.bf16.mxu0 %v11853
        %12182 = vmatpush2.bf16.msra.mxu0 %v11852
        %12183 = vmatprep.subr.bf16.mxu0 %v11845
        %12184 = vmatpush2.bf16.msra.mxu0 %v11844
        %12185 = vmatprep.mubr.bf16.mxu0 %v11387
        %12186 = vmatmul.mubr.bf16.gmra.mxu0 %v11386
        %v12187 = vpop.f32.mrf.mxu0
        %v12188 = vadd.f32 0.0, %v12187
        %v12189 = vpop.f32.mrf.mxu0
        %v12190 = vadd.f32 0.0, %v12189
        %v12191 = vpop.f32.mrf.mxu0
        %v12192 = vpop.f32.mrf.mxu0
        %12193 = vdwg.mxu0
        %v12202 = vcombine.low %v12065, %v12067
        %v12203 = vcombine.low %v12106, %v12108
        %v12205 = vunpack.c.l.s4 1983009808
        %v12206 = vunpack.c.0.s8 %v12205
        %v12207 = vlaneseq
        %v12208 = vshrl.u32 %v12207, 7
        %v12209 = vsub.s32 %v12206, %v12208
        %v12210 = vrot.slane %v12202, %v12209
        %v12212 = vunpack.c.l.s4 1983009808
        %v12213 = vunpack.c.0.s8 %v12212
        %v12214 = vlaneseq
        %v12215 = vshrl.u32 %v12214, 7
        %v12216 = vsub.s32 %v12213, %v12215
        %v12217 = vrot.slane %v12203, %v12216
        %v12218 = vcombine.low %v12210, %v12217
        %v12219 = vcombine.low %v12147, %v12149
        %v12220 = vcombine.low %v12188, %v12190
        %v12222 = vunpack.c.l.s4 1983009808
        %v12223 = vunpack.c.0.s8 %v12222
        %v12224 = vlaneseq
        %v12225 = vshrl.u32 %v12224, 7
        %v12226 = vsub.s32 %v12223, %v12225
        %v12227 = vrot.slane %v12219, %v12226
        %v12229 = vunpack.c.l.s4 1983009808
        %v12230 = vunpack.c.0.s8 %v12229
        %v12231 = vlaneseq
        %v12232 = vshrl.u32 %v12231, 7
        %v12233 = vsub.s32 %v12230, %v12232
        %v12234 = vrot.slane %v12220, %v12233
        %v12235 = vcombine.low %v12227, %v12234
        %12238 = vst [vmem:[%s272] sm:$0xff] %v12218
        %12239 = vst [vmem:[%s272 + $0x8] sm:$0xff] %v12235
        %p12240 = scmp.lt.s32.totalorder %s19, 3
        %s12241 = scalar_select %p12240, %s19, 3
        %s12242 = smul.addr %s12241, 8
        %s12243 = smul.addr %s12242, 2
        %s12244 = scalar_lea.vmem %s4, %s12243
        // Predicated region
        $region49: #{_forward.1} parent=35 // pred_check
          %p12245 = pneg %p131
        $region50: #{_forward.1} parent=35 // pred_check_branch
          %12247 = sbr.rel (%p12245) target = $region52
        $region51: #{_forward.1} parent=35 // pred_region
          _
        $region52: #{_forward.1} parent=35 // pred_fallthru
          _
      $region36: #{_forward.1} parent=5 // pred_fallthru
        _
      %p12248 = scmp.le.s32.totalorder 2, %s14
      // Predicated region
      $region53: #{_forward.1} parent=5 // pred_check
        %p12249 = pneg %p12248
      $region54: #{_forward.1} parent=5 // pred_check_branch
        %12251 = sbr.rel (%p12249) target = $region56
      $region55: #{_forward.1} parent=5 // pred_region
        %s12252 = ssub.s32 %s14, 2
        // Predicated region
        $region57: #{_forward.1} parent=55 // pred_check
          %p12253 = pneg %p137
        $region58: #{_forward.1} parent=55 // pred_check_branch
          %12255 = sbr.rel (%p12253) target = $region60
        $region59: #{_forward.1} parent=55 // pred_region
          %p12256 = scmp.lt.s32.totalorder %s20, 3
          %s12257 = scalar_select %p12256, %s20, 3
          %s12258 = smul.addr %s12257, 8
          %s12259 = smul.addr %s12258, 2
          %s12260 = scalar_lea.vmem %s4, %s12259
        $region60: #{_forward.1} parent=55 // pred_fallthru
          _
      $region56: #{_forward.1} parent=5 // pred_fallthru
        _
    $region6: #{_forward.1} parent=1 // loop_footer
      %s18 = sadd.s32 1, %s14
    $region7: #{_forward.1} parent=1 // loop_footer_branch
      %13 = sbr.rel target = $region3
    $region8: #{_forward.1} parent=1 // loop_exit
      _
    %12261 = vsyncpa [#allocation4], 1
    %s12262 = scalar_lea.sflag [#allocation4], 1
    %12263 = vsyncpa %s12262, 1
    %12264 = vsyncpa [#allocation6], 1
    %s12265 = scalar_lea.sflag [#allocation6], 1
    %12266 = vsyncpa %s12265, 1

</llo_original>
